<compile_context>
chip_gen: v7x
topology: tpu7x:2x2x1
jax: 0.10.0
libtpu: 0.0.40
codegen_flags: <defaults>
</compile_context>

<pallas_src>
import functools

import jax
import jax.numpy as jnp
from jax.experimental import pallas as pl
from jax.experimental.pallas import tpu as pltpu

# --- module hyper-parameters (from small_GPT_hp.py) ---
N_EMBD = 384
BLOCK_SIZE = 256              # max context; T <= BLOCK_SIZE
N_HEAD = 6
HEAD_SIZE = N_EMBD // N_HEAD  # 64
LN_EPS = 1e-5                 # torch nn.LayerNorm default


def _layernorm(z, gamma, beta):
    """f32 layernorm over the last dim; gamma/beta are (1, C)."""
    mu = jnp.mean(z, axis=-1, keepdims=True)
    zc = z - mu
    var = jnp.mean(zc * zc, axis=-1, keepdims=True)
    inv = jax.lax.rsqrt(var + LN_EPS)
    return zc * inv * gamma + beta


def _block_kernel(x_ref, g1_ref, b1_ref, wqkv_ref, wpT_ref, bp_ref,
                  g2_ref, b2_ref, w1T_ref, bf1_ref, w2T_ref, bf2_ref,
                  o_ref, *, num_heads):
    """One grid step = bblk batch rows; full Block forward (eval mode)."""
    bblk, T, C = x_ref.shape
    hs = C // num_heads
    rows = bblk * T

    # residual stream stays f32
    x = x_ref[...].astype(jnp.float32).reshape(rows, C)

    # ---- LayerNorm 1 ----
    xl1 = _layernorm(x, g1_ref[...], b1_ref[...]).astype(jnp.bfloat16)

    # ---- fused QKV projection: one lane-dense (rows, C) @ (C, 3C) matmul ----
    qkv = jnp.dot(xl1, wqkv_ref[...], preferred_element_type=jnp.float32)
    scale = C ** -0.5  # NOTE: PyTorch scales by n_embd**-0.5 (intentional, matches source)
    q_all = (qkv[:, 0:C] * scale).astype(jnp.bfloat16)     # scale q once, not per (T,T) tile
    k_all = qkv[:, C:2 * C].astype(jnp.bfloat16)
    v_all = qkv[:, 2 * C:3 * C].astype(jnp.bfloat16)

    # ---- stage into head-major batched layout: (num_heads*bblk, T, hs) bf16 ----
    def to_heads(z):
        # leading-dim concat of per-head (bblk, T, hs) slabs -> (H*bblk, T, hs)
        return jnp.concatenate(
            [z[:, h * hs:(h + 1) * hs].reshape(bblk, T, hs) for h in range(num_heads)],
            axis=0)

    qh = to_heads(q_all)
    kh = to_heads(k_all)
    vh = to_heads(v_all)

    # ---- batched attention (all heads / batch rows in one set of MXU passes) ----
    s = jnp.einsum('bqd,bkd->bqk', qh, kh,
                   preferred_element_type=jnp.float32)          # (H*bblk, T, T) f32

    row_i = jax.lax.broadcasted_iota(jnp.int32, (T, T), 0)
    col_i = jax.lax.broadcasted_iota(jnp.int32, (T, T), 1)
    causal = (row_i >= col_i)[None, :, :]
    neg_big = jnp.float32(-1e30)   # finite mask value (diagonal always unmasked)
    s = jnp.where(causal, s, neg_big)

    m = jnp.max(s, axis=-1, keepdims=True)
    p = jnp.exp(s - m)
    denom = jnp.sum(p, axis=-1, keepdims=True)
    p = (p * pl.reciprocal(denom, approx=True)).astype(jnp.bfloat16)
    # attention dropout -> identity (eval mode)

    oh = jnp.einsum('bqk,bkd->bqd', p, vh,
                    preferred_element_type=jnp.float32)          # (H*bblk, T, hs) f32

    # ---- concat heads once -> ONE fused output projection with K=C=384 ----
    o_cat = jnp.concatenate(
        [oh[h * bblk:(h + 1) * bblk] for h in range(num_heads)], axis=-1)  # (bblk, T, C)
    o_cat = o_cat.reshape(rows, C).astype(jnp.bfloat16)
    sa = jnp.dot(o_cat, wpT_ref[...], preferred_element_type=jnp.float32) + bp_ref[...]
    # projection dropout -> identity (eval mode)

    # ---- residual 1 ----
    x = x + sa

    # ---- LayerNorm 2 + FeedForward ----
    xl2 = _layernorm(x, g2_ref[...], b2_ref[...]).astype(jnp.bfloat16)
    h1 = jnp.dot(xl2, w1T_ref[...], preferred_element_type=jnp.float32) + bf1_ref[...]
    h1 = jnp.maximum(h1, 0.0).astype(jnp.bfloat16)
    ff = jnp.dot(h1, w2T_ref[...], preferred_element_type=jnp.float32) + bf2_ref[...]
    # ffwd dropout -> identity (eval mode)

    # ---- residual 2 ----
    out = x + ff
    o_ref[...] = out.reshape(bblk, T, C).astype(o_ref.dtype)


def _num_parallel_tc():
    """How many TensorCores share the 'parallel' grid axis (megacore / v7x)."""
    try:
        kind = jax.devices()[0].device_kind.lower()
    except Exception:
        return 1
    if any(s in kind for s in ("v4", "v5p", "v7")):
        return 2
    return 1


def _pick_bblk(B, T, num_tc):
    """Batch rows per grid step.  Target ~512 rows to fill the MXU M dim; on
    single-TC chips a grid of (1,) is fine (grid is a sequential loop).  On
    multi-TC chips prefer a grid that splits evenly across cores, but only if
    that costs at most 2x M fill."""
    limit = max(1, 512 // T)
    divs = [d for d in range(1, B + 1) if B % d == 0]
    cands = [d for d in divs if d <= limit] or [1]
    best = max(cands)
    if num_tc > 1:
        even = [d for d in cands if (B // d) % num_tc == 0]
        if even and max(even) * 2 >= best:
            best = max(even)
    return best


def _vmem_limit_bytes():
    try:
        cap = pltpu.get_tpu_info().vmem_capacity_bytes
        return int(min(cap * 3 // 4, 96 * 1024 * 1024))
    except Exception:
        return 48 * 1024 * 1024


def prepare_block_weights(g1, b1, wq, wk, wv, wp, bp, g2, b2, w1, bf1, w2, bf2):
    """One-time weight preprocessing (hoisted out of the per-step path).

    wq, wk, wv : (n_head, head_size, n_embd)  torch Linear.weight convention (out, in)
    wp : (n_embd, n_embd) (out, in);  w1 : (4C, C);  w2 : (C, 4C)
    Returns the fused / transposed / bf16 weights consumed by the kernel.
    """
    H, hs, C = wq.shape
    C4 = 4 * C

    def fuse(w):  # (H, hs, C) -> lane-dense (C, H*hs) so q = xl1 @ Wq
        return jnp.transpose(w, (2, 0, 1)).reshape(C, H * hs)

    wqkv = jnp.concatenate([fuse(wq), fuse(wk), fuse(wv)], axis=1).astype(jnp.bfloat16)  # (C,3C)
    wpT = wp.T.astype(jnp.bfloat16)    # (C, C)
    w1T = w1.T.astype(jnp.bfloat16)    # (C, 4C)
    w2T = w2.T.astype(jnp.bfloat16)    # (4C, C)

    fused = (g1.reshape(1, C), b1.reshape(1, C), wqkv, wpT, bp.reshape(1, C),
             g2.reshape(1, C), b2.reshape(1, C), w1T, bf1.reshape(1, C4),
             w2T, bf2.reshape(1, C))
    return fused, H


@functools.partial(jax.jit, static_argnames=("num_heads",))
def block_forward(x, g1r, b1r, wqkv, wpT, bpr, g2r, b2r, w1T, bf1r, w2T, bf2r,
                  *, num_heads):
    """x : (B, T, n_embd) f32 -> (B, T, n_embd) f32."""
    B, T, C = x.shape
    C4 = 4 * C

    # pad T to a multiple of 8 (causality makes the pad rows inert; sliced off below)
    Tp = ((T + 7) // 8) * 8
    xp = x if Tp == T else jnp.pad(x, ((0, 0), (0, Tp - T), (0, 0)))

    bblk = _pick_bblk(B, Tp, _num_parallel_tc())
    grid = (B // bblk,)

    kernel = functools.partial(_block_kernel, num_heads=num_heads)

    out = pl.pallas_call(
        kernel,
        out_shape=jax.ShapeDtypeStruct((B, Tp, C), x.dtype),
        grid_spec=pltpu.PrefetchScalarGridSpec(
            num_scalar_prefetch=0,
            grid=grid,
            in_specs=[
                pl.BlockSpec((bblk, Tp, C), lambda i: (i, 0, 0)),  # x (residual stream, f32)
                pl.BlockSpec((1, C), lambda i: (0, 0)),            # ln1 gamma
                pl.BlockSpec((1, C), lambda i: (0, 0)),            # ln1 beta
                pl.BlockSpec((C, 3 * C), lambda i: (0, 0)),        # fused QKV weight (bf16)
                pl.BlockSpec((C, C), lambda i: (0, 0)),            # proj W^T (bf16)
                pl.BlockSpec((1, C), lambda i: (0, 0)),            # proj bias
                pl.BlockSpec((1, C), lambda i: (0, 0)),            # ln2 gamma
                pl.BlockSpec((1, C), lambda i: (0, 0)),            # ln2 beta
                pl.BlockSpec((C, C4), lambda i: (0, 0)),           # ffn W1^T (bf16)
                pl.BlockSpec((1, C4), lambda i: (0, 0)),           # ffn b1
                pl.BlockSpec((C4, C), lambda i: (0, 0)),           # ffn W2^T (bf16)
                pl.BlockSpec((1, C), lambda i: (0, 0)),            # ffn b2
            ],
            out_specs=pl.BlockSpec((bblk, Tp, C), lambda i: (i, 0, 0)),
        ),
        compiler_params=pltpu.CompilerParams(
            dimension_semantics=("parallel",),
            vmem_limit_bytes=_vmem_limit_bytes(),
        ),
    )(xp, g1r, b1r, wqkv, wpT, bpr, g2r, b2r, w1T, bf1r, w2T, bf2r)

    return out if Tp == T else out[:, :T, :]


def transformer_block(x, g1, b1, wq, wk, wv, wp, bp, g2, b2, w1, bf1, w2, bf2):
    """Convenience wrapper taking raw torch-convention weights (prep NOT hoisted)."""
    fused, H = prepare_block_weights(g1, b1, wq, wk, wv, wp, bp, g2, b2, w1, bf1, w2, bf2)
    return block_forward(x, *fused, num_heads=H)


def _reference(x, g1, b1, wq, wk, wv, wp, bp, g2, b2, w1, bf1, w2, bf2):
    """Pure-JAX f32 reference mirroring the PyTorch Block.forward (eval mode)."""
    B, T, C = x.shape

    def ln(z, g, b):
        mu = z.mean(-1, keepdims=True)
        var = ((z - mu) ** 2).mean(-1, keepdims=True)
        return (z - mu) / jnp.sqrt(var + LN_EPS) * g + b

    h = ln(x, g1, b1)
    mask = jnp.tril(jnp.ones((T, T), dtype=bool))
    scale = C ** -0.5
    outs = []
    for i in range(wq.shape[0]):
        q = h @ wq[i].T
        k = h @ wk[i].T
        v = h @ wv[i].T
        wei = (q @ jnp.swapaxes(k, -1, -2)) * scale
        wei = jnp.where(mask[None, :, :], wei, -jnp.inf)
        wei = jax.nn.softmax(wei, axis=-1)
        outs.append(wei @ v)
    cat = jnp.concatenate(outs, axis=-1)
    x = x + (cat @ wp.T + bp)
    h2 = ln(x, g2, b2)
    ff = jnp.maximum(h2 @ w1.T + bf1, 0.0) @ w2.T + bf2
    return x + ff


if __name__ == "__main__":
    # small shapes consistent with the module: n_embd fixed at 384, batch=2, seq=16 (<=256)
    B, T = 2, 16

    key = jax.random.PRNGKey(0)
    keys = jax.random.split(key, 14)

    x = jax.random.normal(keys[0], (B, T, N_EMBD), dtype=jnp.float32)

    g1 = 1.0 + 0.1 * jax.random.normal(keys[1], (N_EMBD,), dtype=jnp.float32)
    b1 = 0.1 * jax.random.normal(keys[2], (N_EMBD,), dtype=jnp.float32)
    wq = 0.02 * jax.random.normal(keys[3], (N_HEAD, HEAD_SIZE, N_EMBD), dtype=jnp.float32)
    wk = 0.02 * jax.random.normal(keys[4], (N_HEAD, HEAD_SIZE, N_EMBD), dtype=jnp.float32)
    wv = 0.02 * jax.random.normal(keys[5], (N_HEAD, HEAD_SIZE, N_EMBD), dtype=jnp.float32)
    wp = 0.02 * jax.random.normal(keys[6], (N_EMBD, N_EMBD), dtype=jnp.float32)
    bp = 0.02 * jax.random.normal(keys[7], (N_EMBD,), dtype=jnp.float32)
    g2 = 1.0 + 0.1 * jax.random.normal(keys[8], (N_EMBD,), dtype=jnp.float32)
    b2 = 0.1 * jax.random.normal(keys[9], (N_EMBD,), dtype=jnp.float32)
    w1 = 0.02 * jax.random.normal(keys[10], (4 * N_EMBD, N_EMBD), dtype=jnp.float32)
    bf1 = 0.02 * jax.random.normal(keys[11], (4 * N_EMBD,), dtype=jnp.float32)
    w2 = 0.02 * jax.random.normal(keys[12], (N_EMBD, 4 * N_EMBD), dtype=jnp.float32)
    bf2 = 0.02 * jax.random.normal(keys[13], (N_EMBD,), dtype=jnp.float32)

    # one-time weight preprocessing (hoisted out of the per-step jitted path)
    fused, H = prepare_block_weights(g1, b1, wq, wk, wv, wp, bp, g2, b2, w1, bf1, w2, bf2)
    fused = jax.tree_util.tree_map(jax.block_until_ready, fused)

    out = block_forward(x, *fused, num_heads=H)
    out = jax.block_until_ready(out)

    ref = _reference(x, g1, b1, wq, wk, wv, wp, bp, g2, b2, w1, bf1, w2, bf2)
    assert out.shape == (B, T, N_EMBD)
    # bf16 matmul inputs (f32 accumulation) + approx reciprocal -> relaxed tolerance
    assert jnp.allclose(out, ref, atol=3e-2, rtol=3e-2), "mismatch vs reference"

    print("KERNEL_OK")
</pallas_src>

<mosaic_0001>
module attributes {stable_mosaic.version = 11 : i64} {
  func.func @_block_kernel(%arg0: i32, %arg1: memref<2x16x384xf32, #tpu.memory_space<vmem>>, %arg2: memref<1x384xf32, #tpu.memory_space<vmem>>, %arg3: memref<1x384xf32, #tpu.memory_space<vmem>>, %arg4: memref<384x1152xbf16, #tpu.memory_space<vmem>>, %arg5: memref<384x384xbf16, #tpu.memory_space<vmem>>, %arg6: memref<1x384xf32, #tpu.memory_space<vmem>>, %arg7: memref<1x384xf32, #tpu.memory_space<vmem>>, %arg8: memref<1x384xf32, #tpu.memory_space<vmem>>, %arg9: memref<384x1536xbf16, #tpu.memory_space<vmem>>, %arg10: memref<1x1536xf32, #tpu.memory_space<vmem>>, %arg11: memref<1536x384xbf16, #tpu.memory_space<vmem>>, %arg12: memref<1x384xf32, #tpu.memory_space<vmem>>, %arg13: memref<2x16x384xf32, #tpu.memory_space<vmem>>) attributes {dimension_semantics = [#tpu.dimension_semantics<parallel>], iteration_bounds = array<i64: 1>, scalar_prefetch = 0 : i64, scratch_operands = 0 : i64, tpu.core_type = #tpu.core_type<tc>, window_params = [{transform_indices = @transform_0, window_bounds = array<i64: 2, 16, 384>}, {pipeline_mode = #tpu.pipeline_mode<synchronous>, transform_indices = @transform_1, window_bounds = array<i64: 1, 384>}, {pipeline_mode = #tpu.pipeline_mode<synchronous>, transform_indices = @transform_2, window_bounds = array<i64: 1, 384>}, {pipeline_mode = #tpu.pipeline_mode<synchronous>, transform_indices = @transform_3, window_bounds = array<i64: 384, 1152>}, {pipeline_mode = #tpu.pipeline_mode<synchronous>, transform_indices = @transform_4, window_bounds = array<i64: 384, 384>}, {pipeline_mode = #tpu.pipeline_mode<synchronous>, transform_indices = @transform_5, window_bounds = array<i64: 1, 384>}, {pipeline_mode = #tpu.pipeline_mode<synchronous>, transform_indices = @transform_6, window_bounds = array<i64: 1, 384>}, {pipeline_mode = #tpu.pipeline_mode<synchronous>, transform_indices = @transform_7, window_bounds = array<i64: 1, 384>}, {pipeline_mode = #tpu.pipeline_mode<synchronous>, transform_indices = @transform_8, window_bounds = array<i64: 384, 1536>}, {pipeline_mode = #tpu.pipeline_mode<synchronous>, transform_indices = @transform_9, window_bounds = array<i64: 1, 1536>}, {pipeline_mode = #tpu.pipeline_mode<synchronous>, transform_indices = @transform_10, window_bounds = array<i64: 1536, 384>}, {pipeline_mode = #tpu.pipeline_mode<synchronous>, transform_indices = @transform_11, window_bounds = array<i64: 1, 384>}, {transform_indices = @transform_12, window_bounds = array<i64: 2, 16, 384>}]} {
    %c0 = arith.constant 0 : index
    %c0_0 = arith.constant 0 : index
    %c0_1 = arith.constant 0 : index
    %0 = vector.load %arg1[%c0, %c0_0, %c0_1] : memref<2x16x384xf32, #tpu.memory_space<vmem>>, vector<2x16x384xf32>
    %1 = vector.shape_cast %0 : vector<2x16x384xf32> to vector<32x384xf32>
    %c0_2 = arith.constant 0 : index
    %c0_3 = arith.constant 0 : index
    %2 = vector.load %arg2[%c0_2, %c0_3] : memref<1x384xf32, #tpu.memory_space<vmem>>, vector<1x384xf32>
    %c0_4 = arith.constant 0 : index
    %c0_5 = arith.constant 0 : index
    %3 = vector.load %arg3[%c0_4, %c0_5] : memref<1x384xf32, #tpu.memory_space<vmem>>, vector<1x384xf32>
    %cst = arith.constant dense<0.000000e+00> : vector<32xf32>
    %4 = vector.multi_reduction <add>, %1, %cst [1] : vector<32x384xf32> to vector<32xf32>
    %5 = vector.shape_cast %4 : vector<32xf32> to vector<32x1xf32>
    %cst_6 = arith.constant 3.840000e+02 : f32
    %6 = vector.broadcast %cst_6 : f32 to vector<32x1xf32>
    %7 = arith.divf %5, %6 : vector<32x1xf32>
    %8 = vector.broadcast %7 : vector<32x1xf32> to vector<32x384xf32>
    %9 = arith.subf %1, %8 : vector<32x384xf32>
    %10 = arith.mulf %9, %9 : vector<32x384xf32>
    %cst_7 = arith.constant dense<0.000000e+00> : vector<32xf32>
    %11 = vector.multi_reduction <add>, %10, %cst_7 [1] : vector<32x384xf32> to vector<32xf32>
    %12 = vector.shape_cast %11 : vector<32xf32> to vector<32x1xf32>
    %cst_8 = arith.constant 3.840000e+02 : f32
    %13 = vector.broadcast %cst_8 : f32 to vector<32x1xf32>
    %14 = arith.divf %12, %13 : vector<32x1xf32>
    %cst_9 = arith.constant 9.99999974E-6 : f32
    %15 = vector.broadcast %cst_9 : f32 to vector<32x1xf32>
    %16 = arith.addf %14, %15 : vector<32x1xf32>
    %17 = math.rsqrt %16 : vector<32x1xf32>
    %18 = vector.broadcast %17 : vector<32x1xf32> to vector<32x384xf32>
    %19 = arith.mulf %9, %18 : vector<32x384xf32>
    %20 = vector.broadcast %2 : vector<1x384xf32> to vector<32x384xf32>
    %21 = arith.mulf %19, %20 : vector<32x384xf32>
    %22 = vector.broadcast %3 : vector<1x384xf32> to vector<32x384xf32>
    %23 = arith.addf %21, %22 : vector<32x384xf32>
    %24 = arith.truncf %23 : vector<32x384xf32> to vector<32x384xbf16>
    %c0_10 = arith.constant 0 : index
    %c0_11 = arith.constant 0 : index
    %25 = vector.load %arg4[%c0_10, %c0_11] : memref<384x1152xbf16, #tpu.memory_space<vmem>>, vector<384x1152xbf16>
    %cst_12 = arith.constant dense<0.000000e+00> : vector<32x1152xf32>
    %26 = tpu.matmul %24, %25, %cst_12 {dimension_numbers = #tpu.dot_dimension_numbers<[1], [0], [0], [1], [0, 0, 1, 1], [], []>} : vector<32x384xbf16>, vector<384x1152xbf16>, vector<32x1152xf32> -> vector<32x1152xf32>
    %27 = vector.extract_strided_slice %26 {offsets = [0, 0], sizes = [32, 384], strides = [1, 1]} : vector<32x1152xf32> to vector<32x384xf32>
    %cst_13 = arith.constant 0.0510310382 : f32
    %28 = vector.broadcast %cst_13 : f32 to vector<32x384xf32>
    %29 = arith.mulf %27, %28 : vector<32x384xf32>
    %30 = arith.truncf %29 : vector<32x384xf32> to vector<32x384xbf16>
    %31 = vector.extract_strided_slice %26 {offsets = [0, 384], sizes = [32, 384], strides = [1, 1]} : vector<32x1152xf32> to vector<32x384xf32>
    %32 = arith.truncf %31 : vector<32x384xf32> to vector<32x384xbf16>
    %33 = vector.extract_strided_slice %26 {offsets = [0, 768], sizes = [32, 384], strides = [1, 1]} : vector<32x1152xf32> to vector<32x384xf32>
    %34 = arith.truncf %33 : vector<32x384xf32> to vector<32x384xbf16>
    %35 = vector.extract_strided_slice %30 {offsets = [0, 0], sizes = [32, 64], strides = [1, 1]} : vector<32x384xbf16> to vector<32x64xbf16>
    %36 = vector.shape_cast %35 : vector<32x64xbf16> to vector<2x16x64xbf16>
    %37 = vector.extract_strided_slice %30 {offsets = [0, 64], sizes = [32, 64], strides = [1, 1]} : vector<32x384xbf16> to vector<32x64xbf16>
    %38 = vector.shape_cast %37 : vector<32x64xbf16> to vector<2x16x64xbf16>
    %39 = vector.extract_strided_slice %30 {offsets = [0, 128], sizes = [32, 64], strides = [1, 1]} : vector<32x384xbf16> to vector<32x64xbf16>
    %40 = vector.shape_cast %39 : vector<32x64xbf16> to vector<2x16x64xbf16>
    %41 = vector.extract_strided_slice %30 {offsets = [0, 192], sizes = [32, 64], strides = [1, 1]} : vector<32x384xbf16> to vector<32x64xbf16>
    %42 = vector.shape_cast %41 : vector<32x64xbf16> to vector<2x16x64xbf16>
    %43 = vector.extract_strided_slice %30 {offsets = [0, 256], sizes = [32, 64], strides = [1, 1]} : vector<32x384xbf16> to vector<32x64xbf16>
    %44 = vector.shape_cast %43 : vector<32x64xbf16> to vector<2x16x64xbf16>
    %45 = vector.extract_strided_slice %30 {offsets = [0, 320], sizes = [32, 64], strides = [1, 1]} : vector<32x384xbf16> to vector<32x64xbf16>
    %46 = vector.shape_cast %45 : vector<32x64xbf16> to vector<2x16x64xbf16>
    %47 = tpu.concatenate %36, %38, %40, %42, %44, %46 in 0 : vector<2x16x64xbf16>, vector<2x16x64xbf16>, vector<2x16x64xbf16>, vector<2x16x64xbf16>, vector<2x16x64xbf16>, vector<2x16x64xbf16> -> vector<12x16x64xbf16>
    %48 = vector.extract_strided_slice %32 {offsets = [0, 0], sizes = [32, 64], strides = [1, 1]} : vector<32x384xbf16> to vector<32x64xbf16>
    %49 = vector.shape_cast %48 : vector<32x64xbf16> to vector<2x16x64xbf16>
    %50 = vector.extract_strided_slice %32 {offsets = [0, 64], sizes = [32, 64], strides = [1, 1]} : vector<32x384xbf16> to vector<32x64xbf16>
    %51 = vector.shape_cast %50 : vector<32x64xbf16> to vector<2x16x64xbf16>
    %52 = vector.extract_strided_slice %32 {offsets = [0, 128], sizes = [32, 64], strides = [1, 1]} : vector<32x384xbf16> to vector<32x64xbf16>
    %53 = vector.shape_cast %52 : vector<32x64xbf16> to vector<2x16x64xbf16>
    %54 = vector.extract_strided_slice %32 {offsets = [0, 192], sizes = [32, 64], strides = [1, 1]} : vector<32x384xbf16> to vector<32x64xbf16>
    %55 = vector.shape_cast %54 : vector<32x64xbf16> to vector<2x16x64xbf16>
    %56 = vector.extract_strided_slice %32 {offsets = [0, 256], sizes = [32, 64], strides = [1, 1]} : vector<32x384xbf16> to vector<32x64xbf16>
    %57 = vector.shape_cast %56 : vector<32x64xbf16> to vector<2x16x64xbf16>
    %58 = vector.extract_strided_slice %32 {offsets = [0, 320], sizes = [32, 64], strides = [1, 1]} : vector<32x384xbf16> to vector<32x64xbf16>
    %59 = vector.shape_cast %58 : vector<32x64xbf16> to vector<2x16x64xbf16>
    %60 = tpu.concatenate %49, %51, %53, %55, %57, %59 in 0 : vector<2x16x64xbf16>, vector<2x16x64xbf16>, vector<2x16x64xbf16>, vector<2x16x64xbf16>, vector<2x16x64xbf16>, vector<2x16x64xbf16> -> vector<12x16x64xbf16>
    %61 = vector.extract_strided_slice %34 {offsets = [0, 0], sizes = [32, 64], strides = [1, 1]} : vector<32x384xbf16> to vector<32x64xbf16>
    %62 = vector.shape_cast %61 : vector<32x64xbf16> to vector<2x16x64xbf16>
    %63 = vector.extract_strided_slice %34 {offsets = [0, 64], sizes = [32, 64], strides = [1, 1]} : vector<32x384xbf16> to vector<32x64xbf16>
    %64 = vector.shape_cast %63 : vector<32x64xbf16> to vector<2x16x64xbf16>
    %65 = vector.extract_strided_slice %34 {offsets = [0, 128], sizes = [32, 64], strides = [1, 1]} : vector<32x384xbf16> to vector<32x64xbf16>
    %66 = vector.shape_cast %65 : vector<32x64xbf16> to vector<2x16x64xbf16>
    %67 = vector.extract_strided_slice %34 {offsets = [0, 192], sizes = [32, 64], strides = [1, 1]} : vector<32x384xbf16> to vector<32x64xbf16>
    %68 = vector.shape_cast %67 : vector<32x64xbf16> to vector<2x16x64xbf16>
    %69 = vector.extract_strided_slice %34 {offsets = [0, 256], sizes = [32, 64], strides = [1, 1]} : vector<32x384xbf16> to vector<32x64xbf16>
    %70 = vector.shape_cast %69 : vector<32x64xbf16> to vector<2x16x64xbf16>
    %71 = vector.extract_strided_slice %34 {offsets = [0, 320], sizes = [32, 64], strides = [1, 1]} : vector<32x384xbf16> to vector<32x64xbf16>
    %72 = vector.shape_cast %71 : vector<32x64xbf16> to vector<2x16x64xbf16>
    %73 = tpu.concatenate %62, %64, %66, %68, %70, %72 in 0 : vector<2x16x64xbf16>, vector<2x16x64xbf16>, vector<2x16x64xbf16>, vector<2x16x64xbf16>, vector<2x16x64xbf16>, vector<2x16x64xbf16> -> vector<12x16x64xbf16>
    "tpu.trace_start"() <{level = 10 : i32, message = "bqd,bkd->bqk"}> : () -> ()
    %cst_14 = arith.constant dense<0.000000e+00> : vector<12x16x16xf32>
    %74 = tpu.matmul %47, %60, %cst_14 {dimension_numbers = #tpu.dot_dimension_numbers<[2], [2], [1], [1], [0, 0, 0, 1, 1, 1], [0], [0]>} : vector<12x16x64xbf16>, vector<12x16x64xbf16>, vector<12x16x16xf32> -> vector<12x16x16xf32>
    "tpu.trace_stop"() : () -> ()
    %75 = tpu.iota {dimensions = array<i32: 0>} : vector<16x16xi32>
    %76 = tpu.iota {dimensions = array<i32: 1>} : vector<16x16xi32>
    %77 = arith.cmpi sge, %75, %76 : vector<16x16xi32>
    %78 = vector.shape_cast %77 : vector<16x16xi1> to vector<1x16x16xi1>
    %cst_15 = arith.constant -1.000000e+30 : f32
    %79 = vector.shape_cast %78 : vector<1x16x16xi1> to vector<1x16x16xi1>
    %80 = vector.broadcast %79 : vector<1x16x16xi1> to vector<12x16x16xi1>
    %81 = vector.broadcast %cst_15 : f32 to vector<12x16x16xf32>
    %82 = arith.select %80, %74, %81 : vector<12x16x16xi1>, vector<12x16x16xf32>
    %cst_16 = arith.constant dense<0xFF800000> : vector<12x16xf32>
    %83 = vector.multi_reduction <maximumf>, %82, %cst_16 [2] : vector<12x16x16xf32> to vector<12x16xf32>
    %84 = vector.shape_cast %83 : vector<12x16xf32> to vector<12x16x1xf32>
    %85 = vector.broadcast %84 : vector<12x16x1xf32> to vector<12x16x16xf32>
    %86 = arith.subf %82, %85 : vector<12x16x16xf32>
    %87 = math.exp %86 : vector<12x16x16xf32>
    %cst_17 = arith.constant dense<0.000000e+00> : vector<12x16xf32>
    %88 = vector.multi_reduction <add>, %87, %cst_17 [2] : vector<12x16x16xf32> to vector<12x16xf32>
    %89 = vector.shape_cast %88 : vector<12x16xf32> to vector<12x16x1xf32>
    %90 = tpu.reciprocal %89 {approx = true} : vector<12x16x1xf32> -> vector<12x16x1xf32>
    %91 = vector.broadcast %90 : vector<12x16x1xf32> to vector<12x16x16xf32>
    %92 = arith.mulf %87, %91 : vector<12x16x16xf32>
    %93 = arith.truncf %92 : vector<12x16x16xf32> to vector<12x16x16xbf16>
    "tpu.trace_start"() <{level = 10 : i32, message = "bqk,bkd->bqd"}> : () -> ()
    %cst_18 = arith.constant dense<0.000000e+00> : vector<12x16x64xf32>
    %94 = tpu.matmul %93, %73, %cst_18 {dimension_numbers = #tpu.dot_dimension_numbers<[2], [1], [1], [2], [0, 0, 0, 1, 1, 2], [0], [0]>} : vector<12x16x16xbf16>, vector<12x16x64xbf16>, vector<12x16x64xf32> -> vector<12x16x64xf32>
    "tpu.trace_stop"() : () -> ()
    %95 = vector.extract_strided_slice %94 {offsets = [0, 0, 0], sizes = [2, 16, 64], strides = [1, 1, 1]} : vector<12x16x64xf32> to vector<2x16x64xf32>
    %96 = vector.extract_strided_slice %94 {offsets = [2, 0, 0], sizes = [2, 16, 64], strides = [1, 1, 1]} : vector<12x16x64xf32> to vector<2x16x64xf32>
    %97 = vector.extract_strided_slice %94 {offsets = [4, 0, 0], sizes = [2, 16, 64], strides = [1, 1, 1]} : vector<12x16x64xf32> to vector<2x16x64xf32>
    %98 = vector.extract_strided_slice %94 {offsets = [6, 0, 0], sizes = [2, 16, 64], strides = [1, 1, 1]} : vector<12x16x64xf32> to vector<2x16x64xf32>
    %99 = vector.extract_strided_slice %94 {offsets = [8, 0, 0], sizes = [2, 16, 64], strides = [1, 1, 1]} : vector<12x16x64xf32> to vector<2x16x64xf32>
    %100 = vector.extract_strided_slice %94 {offsets = [10, 0, 0], sizes = [2, 16, 64], strides = [1, 1, 1]} : vector<12x16x64xf32> to vector<2x16x64xf32>
    %101 = tpu.concatenate %95, %96, %97, %98, %99, %100 in 2 : vector<2x16x64xf32>, vector<2x16x64xf32>, vector<2x16x64xf32>, vector<2x16x64xf32>, vector<2x16x64xf32>, vector<2x16x64xf32> -> vector<2x16x384xf32>
    %102 = vector.shape_cast %101 : vector<2x16x384xf32> to vector<32x384xf32>
    %103 = arith.truncf %102 : vector<32x384xf32> to vector<32x384xbf16>
    %c0_19 = arith.constant 0 : index
    %c0_20 = arith.constant 0 : index
    %104 = vector.load %arg5[%c0_19, %c0_20] : memref<384x384xbf16, #tpu.memory_space<vmem>>, vector<384x384xbf16>
    %cst_21 = arith.constant dense<0.000000e+00> : vector<32x384xf32>
    %105 = tpu.matmul %103, %104, %cst_21 {dimension_numbers = #tpu.dot_dimension_numbers<[1], [0], [0], [1], [0, 0, 1, 1], [], []>} : vector<32x384xbf16>, vector<384x384xbf16>, vector<32x384xf32> -> vector<32x384xf32>
    %c0_22 = arith.constant 0 : index
    %c0_23 = arith.constant 0 : index
    %106 = vector.load %arg6[%c0_22, %c0_23] : memref<1x384xf32, #tpu.memory_space<vmem>>, vector<1x384xf32>
    %107 = vector.broadcast %106 : vector<1x384xf32> to vector<32x384xf32>
    %108 = arith.addf %105, %107 : vector<32x384xf32>
    %109 = arith.addf %1, %108 : vector<32x384xf32>
    %c0_24 = arith.constant 0 : index
    %c0_25 = arith.constant 0 : index
    %110 = vector.load %arg7[%c0_24, %c0_25] : memref<1x384xf32, #tpu.memory_space<vmem>>, vector<1x384xf32>
    %c0_26 = arith.constant 0 : index
    %c0_27 = arith.constant 0 : index
    %111 = vector.load %arg8[%c0_26, %c0_27] : memref<1x384xf32, #tpu.memory_space<vmem>>, vector<1x384xf32>
    %cst_28 = arith.constant dense<0.000000e+00> : vector<32xf32>
    %112 = vector.multi_reduction <add>, %109, %cst_28 [1] : vector<32x384xf32> to vector<32xf32>
    %113 = vector.shape_cast %112 : vector<32xf32> to vector<32x1xf32>
    %cst_29 = arith.constant 3.840000e+02 : f32
    %114 = vector.broadcast %cst_29 : f32 to vector<32x1xf32>
    %115 = arith.divf %113, %114 : vector<32x1xf32>
    %116 = vector.broadcast %115 : vector<32x1xf32> to vector<32x384xf32>
    %117 = arith.subf %109, %116 : vector<32x384xf32>
    %118 = arith.mulf %117, %117 : vector<32x384xf32>
    %cst_30 = arith.constant dense<0.000000e+00> : vector<32xf32>
    %119 = vector.multi_reduction <add>, %118, %cst_30 [1] : vector<32x384xf32> to vector<32xf32>
    %120 = vector.shape_cast %119 : vector<32xf32> to vector<32x1xf32>
    %cst_31 = arith.constant 3.840000e+02 : f32
    %121 = vector.broadcast %cst_31 : f32 to vector<32x1xf32>
    %122 = arith.divf %120, %121 : vector<32x1xf32>
    %cst_32 = arith.constant 9.99999974E-6 : f32
    %123 = vector.broadcast %cst_32 : f32 to vector<32x1xf32>
    %124 = arith.addf %122, %123 : vector<32x1xf32>
    %125 = math.rsqrt %124 : vector<32x1xf32>
    %126 = vector.broadcast %125 : vector<32x1xf32> to vector<32x384xf32>
    %127 = arith.mulf %117, %126 : vector<32x384xf32>
    %128 = vector.broadcast %110 : vector<1x384xf32> to vector<32x384xf32>
    %129 = arith.mulf %127, %128 : vector<32x384xf32>
    %130 = vector.broadcast %111 : vector<1x384xf32> to vector<32x384xf32>
    %131 = arith.addf %129, %130 : vector<32x384xf32>
    %132 = arith.truncf %131 : vector<32x384xf32> to vector<32x384xbf16>
    %c0_33 = arith.constant 0 : index
    %c0_34 = arith.constant 0 : index
    %133 = vector.load %arg9[%c0_33, %c0_34] : memref<384x1536xbf16, #tpu.memory_space<vmem>>, vector<384x1536xbf16>
    %cst_35 = arith.constant dense<0.000000e+00> : vector<32x1536xf32>
    %134 = tpu.matmul %132, %133, %cst_35 {dimension_numbers = #tpu.dot_dimension_numbers<[1], [0], [0], [1], [0, 0, 1, 1], [], []>} : vector<32x384xbf16>, vector<384x1536xbf16>, vector<32x1536xf32> -> vector<32x1536xf32>
    %c0_36 = arith.constant 0 : index
    %c0_37 = arith.constant 0 : index
    %135 = vector.load %arg10[%c0_36, %c0_37] : memref<1x1536xf32, #tpu.memory_space<vmem>>, vector<1x1536xf32>
    %136 = vector.broadcast %135 : vector<1x1536xf32> to vector<32x1536xf32>
    %137 = arith.addf %134, %136 : vector<32x1536xf32>
    %cst_38 = arith.constant 0.000000e+00 : f32
    %138 = vector.broadcast %cst_38 : f32 to vector<32x1536xf32>
    %139 = arith.maximumf %137, %138 : vector<32x1536xf32>
    %140 = arith.truncf %139 : vector<32x1536xf32> to vector<32x1536xbf16>
    %c0_39 = arith.constant 0 : index
    %c0_40 = arith.constant 0 : index
    %141 = vector.load %arg11[%c0_39, %c0_40] : memref<1536x384xbf16, #tpu.memory_space<vmem>>, vector<1536x384xbf16>
    %cst_41 = arith.constant dense<0.000000e+00> : vector<32x384xf32>
    %142 = tpu.matmul %140, %141, %cst_41 {dimension_numbers = #tpu.dot_dimension_numbers<[1], [0], [0], [1], [0, 0, 1, 1], [], []>} : vector<32x1536xbf16>, vector<1536x384xbf16>, vector<32x384xf32> -> vector<32x384xf32>
    %c0_42 = arith.constant 0 : index
    %c0_43 = arith.constant 0 : index
    %143 = vector.load %arg12[%c0_42, %c0_43] : memref<1x384xf32, #tpu.memory_space<vmem>>, vector<1x384xf32>
    %144 = vector.broadcast %143 : vector<1x384xf32> to vector<32x384xf32>
    %145 = arith.addf %142, %144 : vector<32x384xf32>
    %146 = arith.addf %109, %145 : vector<32x384xf32>
    %147 = vector.shape_cast %146 : vector<32x384xf32> to vector<2x16x384xf32>
    %c0_44 = arith.constant 0 : index
    %c0_45 = arith.constant 0 : index
    %c0_46 = arith.constant 0 : index
    %148 = vector.load %arg13[%c0_44, %c0_45, %c0_46] : memref<2x16x384xf32, #tpu.memory_space<vmem>>, vector<2x16x384xf32>
    tpu.vector_store %arg13[%c0_44, %c0_45, %c0_46], %147 {strides = array<i32>} : memref<2x16x384xf32, #tpu.memory_space<vmem>>, vector<2x16x384xf32>,
    return
  }
  func.func @transform_0(%arg0: i32) -> (i32, i32, i32) {
    %c0_i32 = arith.constant 0 : i32
    %c0_i32_0 = arith.constant 0 : i32
    %c0_i32_1 = arith.constant 0 : i32
    return %arg0, %c0_i32, %c0_i32_0 : i32, i32, i32
  }
  func.func @transform_1(%arg0: i32) -> (i32, i32) {
    %c0_i32 = arith.constant 0 : i32
    %c0_i32_0 = arith.constant 0 : i32
    %c0_i32_1 = arith.constant 0 : i32
    return %c0_i32, %c0_i32_0 : i32, i32
  }
  func.func @transform_2(%arg0: i32) -> (i32, i32) {
    %c0_i32 = arith.constant 0 : i32
    %c0_i32_0 = arith.constant 0 : i32
    %c0_i32_1 = arith.constant 0 : i32
    return %c0_i32, %c0_i32_0 : i32, i32
  }
  func.func @transform_3(%arg0: i32) -> (i32, i32) {
    %c0_i32 = arith.constant 0 : i32
    %c0_i32_0 = arith.constant 0 : i32
    %c0_i32_1 = arith.constant 0 : i32
    return %c0_i32, %c0_i32_0 : i32, i32
  }
  func.func @transform_4(%arg0: i32) -> (i32, i32) {
    %c0_i32 = arith.constant 0 : i32
    %c0_i32_0 = arith.constant 0 : i32
    %c0_i32_1 = arith.constant 0 : i32
    return %c0_i32, %c0_i32_0 : i32, i32
  }
  func.func @transform_5(%arg0: i32) -> (i32, i32) {
    %c0_i32 = arith.constant 0 : i32
    %c0_i32_0 = arith.constant 0 : i32
    %c0_i32_1 = arith.constant 0 : i32
    return %c0_i32, %c0_i32_0 : i32, i32
  }
  func.func @transform_6(%arg0: i32) -> (i32, i32) {
    %c0_i32 = arith.constant 0 : i32
    %c0_i32_0 = arith.constant 0 : i32
    %c0_i32_1 = arith.constant 0 : i32
    return %c0_i32, %c0_i32_0 : i32, i32
  }
  func.func @transform_7(%arg0: i32) -> (i32, i32) {
    %c0_i32 = arith.constant 0 : i32
    %c0_i32_0 = arith.constant 0 : i32
    %c0_i32_1 = arith.constant 0 : i32
    return %c0_i32, %c0_i32_0 : i32, i32
  }
  func.func @transform_8(%arg0: i32) -> (i32, i32) {
    %c0_i32 = arith.constant 0 : i32
    %c0_i32_0 = arith.constant 0 : i32
    %c0_i32_1 = arith.constant 0 : i32
    return %c0_i32, %c0_i32_0 : i32, i32
  }
  func.func @transform_9(%arg0: i32) -> (i32, i32) {
    %c0_i32 = arith.constant 0 : i32
    %c0_i32_0 = arith.constant 0 : i32
    %c0_i32_1 = arith.constant 0 : i32
    return %c0_i32, %c0_i32_0 : i32, i32
  }
  func.func @transform_10(%arg0: i32) -> (i32, i32) {
    %c0_i32 = arith.constant 0 : i32
    %c0_i32_0 = arith.constant 0 : i32
    %c0_i32_1 = arith.constant 0 : i32
    return %c0_i32, %c0_i32_0 : i32, i32
  }
  func.func @transform_11(%arg0: i32) -> (i32, i32) {
    %c0_i32 = arith.constant 0 : i32
    %c0_i32_0 = arith.constant 0 : i32
    %c0_i32_1 = arith.constant 0 : i32
    return %c0_i32, %c0_i32_0 : i32, i32
  }
  func.func @transform_12(%arg0: i32) -> (i32, i32, i32) {
    %c0_i32 = arith.constant 0 : i32
    %c0_i32_0 = arith.constant 0 : i32
    %c0_i32_1 = arith.constant 0 : i32
    return %arg0, %c0_i32, %c0_i32_0 : i32, i32, i32
  }
}

</mosaic_0001>

<llo_original>
// kernel: block_forward.1
$region0: #{block_forward.1}
  #allocation0 [shape = 'u32[]', space=smem, size = 0x4, offset = 0x4, fixed_abs, tag = 'smem constant byte address 0x4 - core index']
  #allocation1 [shape = 'u32[144,128]{1,0:T(1,128)}', space=vmem, size = 0x12000, scoped, tag = 'internal scratch']
  %s0 = inlined_call_operand.hbm [shape: f32[2,16,384], index: 0, kind: input, shape index: {}]
  %s1 = inlined_call_operand.hbm [shape: f32[1,384], index: 1, kind: input, shape index: {}]
  %s2 = inlined_call_operand.hbm [shape: f32[1,384], index: 2, kind: input, shape index: {}]
  %s3 = inlined_call_operand.hbm [shape: bf16[384,1152], index: 3, kind: input, shape index: {}]
  %s4 = inlined_call_operand.hbm [shape: bf16[384,384], index: 4, kind: input, shape index: {}]
  %s5 = inlined_call_operand.hbm [shape: f32[1,384], index: 5, kind: input, shape index: {}]
  %s6 = inlined_call_operand.hbm [shape: f32[1,384], index: 6, kind: input, shape index: {}]
  %s7 = inlined_call_operand.hbm [shape: f32[1,384], index: 7, kind: input, shape index: {}]
  %s8 = inlined_call_operand.hbm [shape: bf16[384,1536], index: 8, kind: input, shape index: {}]
  %s9 = inlined_call_operand.hbm [shape: f32[1,1536], index: 9, kind: input, shape index: {}]
  %s10 = inlined_call_operand.hbm [shape: bf16[1536,384], index: 10, kind: input, shape index: {}]
  %s11 = inlined_call_operand.hbm [shape: f32[1,384], index: 11, kind: input, shape index: {}]
  %s12 = inlined_call_operand.hbm [shape: f32[2,16,384], index: 12, kind: output, shape index: {}]
  %s13 = sld [smem:[#allocation0]]
  $region106: #{block_forward.1} parent=0
    _
  %s15 = ssub.s32 1, %s13
  %s16 = scalar_select 0, %s15, %s13
  $region1: #{block_forward.1} parent=0
    #allocation2 [shape = 'u8[49152]{0}', space=vmem, size = 0xc000, scoped, tag = 'input window, operand 0, single buffered']
    #allocation3 [shape = 's32[1]{0}', space=sflag, size = 0x4, scoped, tag = 'scoped memory for block_forward.1']
    #allocation4 [shape = 's32[1]{0}', space=sflag, size = 0x4, scoped, tag = 'scoped memory for block_forward.1']
    #allocation5 [shape = 'u8[1536]{0}', space=vmem, size = 0x800, scoped, tag = 'input window, operand 1, single buffered']
    #allocation6 [shape = 's32[1]{0}', space=sflag, size = 0x4, scoped, tag = 'scoped memory for block_forward.1']
    #allocation7 [shape = 'u8[1536]{0}', space=vmem, size = 0x800, scoped, tag = 'input window, operand 2, single buffered']
    #allocation8 [shape = 'u8[884736]{0}', space=vmem, size = 0xd8000, scoped, tag = 'input window, operand 3, single buffered']
    #allocation9 [shape = 's32[1]{0}', space=sflag, size = 0x4, scoped, tag = 'scoped memory for block_forward.1']
    #allocation10 [shape = 'u8[294912]{0}', space=vmem, size = 0x48000, scoped, tag = 'input window, operand 4, single buffered']
    #allocation11 [shape = 'u8[1536]{0}', space=vmem, size = 0x800, scoped, tag = 'input window, operand 5, single buffered']
    #allocation12 [shape = 's32[1]{0}', space=sflag, size = 0x4, scoped, tag = 'scoped memory for block_forward.1']
    #allocation13 [shape = 'u8[1536]{0}', space=vmem, size = 0x800, scoped, tag = 'input window, operand 6, single buffered']
    #allocation14 [shape = 'u8[1536]{0}', space=vmem, size = 0x800, scoped, tag = 'input window, operand 7, single buffered']
    #allocation15 [shape = 's32[1]{0}', space=sflag, size = 0x4, scoped, tag = 'scoped memory for block_forward.1']
    #allocation16 [shape = 'u8[1179648]{0}', space=vmem, size = 0x120000, scoped, tag = 'input window, operand 8, single buffered']
    #allocation17 [shape = 'u8[6144]{0}', space=vmem, size = 0x1800, scoped, tag = 'input window, operand 9, single buffered']
    #allocation18 [shape = 's32[1]{0}', space=sflag, size = 0x4, scoped, tag = 'scoped memory for block_forward.1']
    #allocation19 [shape = 'u8[1179648]{0}', space=vmem, size = 0x120000, scoped, tag = 'input window, operand 10, single buffered']
    #allocation20 [shape = 'u8[1536]{0}', space=vmem, size = 0x800, scoped, tag = 'input window, operand 11, single buffered']
    #allocation21 [shape = 's32[1]{0}', space=sflag, size = 0x4, scoped, tag = 'scoped memory for block_forward.1']
    #allocation22 [shape = 'u8[49152]{0}', space=vmem, size = 0xc000, scoped, tag = 'output window, operand 0, single buffered']
    %17 = vsyncpa [#allocation3], 0
    %18 = vsyncpa [#allocation6], 0
    %19 = vsyncpa [#allocation9], 0
    %20 = vsyncpa [#allocation12], 0
    %21 = vsyncpa [#allocation15], 0
    %22 = vsyncpa [#allocation18], 0
    %23 = vsyncpa [#allocation21], 0
    %24 = vsyncpa [#allocation4], 0
    // Predicated region
    $region2: #{block_forward.1} parent=1 // pred_check
      _
    $region3: #{block_forward.1} parent=1 // pred_check_branch
      %26 = sbr.rel (0) target = $region5
    $region4: #{block_forward.1} parent=1 // pred_region
      %s28 = ssub.s32 1536, 1536
      %29 = vsyncadd [#allocation3], %s28
      %s30 = sshll.u32 [#allocation2], 4
      %s31 = int_to_ptr.vmem [resolvable:$true] %s30
      %36 = dma.hbm_to_vmem [thread:$0]  %s0, 1536, %s31, [#allocation3], 384, 384, 24
    $region5: #{block_forward.1} parent=1 // pred_fallthru
      _
    // Predicated region
    $region6: #{block_forward.1} parent=1 // pred_check
      _
    $region7: #{block_forward.1} parent=1 // pred_check_branch
      %38 = sbr.rel (0) target = $region9
    $region8: #{block_forward.1} parent=1 // pred_region
      %s40 = ssub.s32 48, 48
      %41 = vsyncadd [#allocation6], %s40
      %s43 = sshll.u32 [#allocation5], 4
      %s44 = int_to_ptr.vmem [resolvable:$true] %s43
      %46 = dma.hbm_to_vmem [thread:$0]  %s1, 48, %s44, [#allocation6]
    $region9: #{block_forward.1} parent=1 // pred_fallthru
      _
    // Predicated region
    $region10: #{block_forward.1} parent=1 // pred_check
      _
    $region11: #{block_forward.1} parent=1 // pred_check_branch
      %48 = sbr.rel (0) target = $region13
    $region12: #{block_forward.1} parent=1 // pred_region
      %s50 = ssub.s32 48, 48
      %51 = vsyncadd [#allocation6], %s50
      %s53 = sshll.u32 [#allocation7], 4
      %s54 = int_to_ptr.vmem [resolvable:$true] %s53
      %56 = dma.hbm_to_vmem [thread:$0]  %s2, 48, %s54, [#allocation6]
    $region13: #{block_forward.1} parent=1 // pred_fallthru
      _
    // Predicated region
    $region14: #{block_forward.1} parent=1 // pred_check
      _
    $region15: #{block_forward.1} parent=1 // pred_check_branch
      %58 = sbr.rel (0) target = $region17
    $region16: #{block_forward.1} parent=1 // pred_region
      %s60 = ssub.s32 27648, 27648
      %61 = vsyncadd [#allocation9], %s60
      %s62 = sshll.u32 [#allocation8], 4
      %s63 = int_to_ptr.vmem [resolvable:$true] %s62
      %68 = dma.hbm_to_vmem [thread:$0]  %s3, 27648, %s63, [#allocation9], 576, 576, 36
    $region17: #{block_forward.1} parent=1 // pred_fallthru
      _
    // Predicated region
    $region18: #{block_forward.1} parent=1 // pred_check
      _
    $region19: #{block_forward.1} parent=1 // pred_check_branch
      %70 = sbr.rel (0) target = $region21
    $region20: #{block_forward.1} parent=1 // pred_region
      %s72 = ssub.s32 9216, 9216
      %73 = vsyncadd [#allocation9], %s72
      %s74 = sshll.u32 [#allocation10], 4
      %s75 = int_to_ptr.vmem [resolvable:$true] %s74
      %80 = dma.hbm_to_vmem [thread:$0]  %s4, 9216, %s75, [#allocation9], 192, 192, 12
    $region21: #{block_forward.1} parent=1 // pred_fallthru
      _
    // Predicated region
    $region22: #{block_forward.1} parent=1 // pred_check
      _
    $region23: #{block_forward.1} parent=1 // pred_check_branch
      %82 = sbr.rel (0) target = $region25
    $region24: #{block_forward.1} parent=1 // pred_region
      %s84 = ssub.s32 48, 48
      %85 = vsyncadd [#allocation12], %s84
      %s87 = sshll.u32 [#allocation11], 4
      %s88 = int_to_ptr.vmem [resolvable:$true] %s87
      %90 = dma.hbm_to_vmem [thread:$0]  %s5, 48, %s88, [#allocation12]
    $region25: #{block_forward.1} parent=1 // pred_fallthru
      _
    // Predicated region
    $region26: #{block_forward.1} parent=1 // pred_check
      _
    $region27: #{block_forward.1} parent=1 // pred_check_branch
      %92 = sbr.rel (0) target = $region29
    $region28: #{block_forward.1} parent=1 // pred_region
      %s94 = ssub.s32 48, 48
      %95 = vsyncadd [#allocation12], %s94
      %s97 = sshll.u32 [#allocation13], 4
      %s98 = int_to_ptr.vmem [resolvable:$true] %s97
      %100 = dma.hbm_to_vmem [thread:$0]  %s6, 48, %s98, [#allocation12]
    $region29: #{block_forward.1} parent=1 // pred_fallthru
      _
    // Predicated region
    $region30: #{block_forward.1} parent=1 // pred_check
      _
    $region31: #{block_forward.1} parent=1 // pred_check_branch
      %102 = sbr.rel (0) target = $region33
    $region32: #{block_forward.1} parent=1 // pred_region
      %s104 = ssub.s32 48, 48
      %105 = vsyncadd [#allocation15], %s104
      %s107 = sshll.u32 [#allocation14], 4
      %s108 = int_to_ptr.vmem [resolvable:$true] %s107
      %110 = dma.hbm_to_vmem [thread:$0]  %s7, 48, %s108, [#allocation15]
    $region33: #{block_forward.1} parent=1 // pred_fallthru
      _
    // Predicated region
    $region34: #{block_forward.1} parent=1 // pred_check
      _
    $region35: #{block_forward.1} parent=1 // pred_check_branch
      %112 = sbr.rel (0) target = $region37
    $region36: #{block_forward.1} parent=1 // pred_region
      %s114 = ssub.s32 36864, 36864
      %115 = vsyncadd [#allocation15], %s114
      %s116 = sshll.u32 [#allocation16], 4
      %s117 = int_to_ptr.vmem [resolvable:$true] %s116
      %122 = dma.hbm_to_vmem [thread:$0]  %s8, 36864, %s117, [#allocation15], 768, 768, 48
    $region37: #{block_forward.1} parent=1 // pred_fallthru
      _
    // Predicated region
    $region38: #{block_forward.1} parent=1 // pred_check
      _
    $region39: #{block_forward.1} parent=1 // pred_check_branch
      %124 = sbr.rel (0) target = $region41
    $region40: #{block_forward.1} parent=1 // pred_region
      %s126 = ssub.s32 192, 192
      %127 = vsyncadd [#allocation18], %s126
      %s129 = sshll.u32 [#allocation17], 4
      %s130 = int_to_ptr.vmem [resolvable:$true] %s129
      %132 = dma.hbm_to_vmem [thread:$0]  %s9, 192, %s130, [#allocation18]
    $region41: #{block_forward.1} parent=1 // pred_fallthru
      _
    // Predicated region
    $region42: #{block_forward.1} parent=1 // pred_check
      _
    $region43: #{block_forward.1} parent=1 // pred_check_branch
      %134 = sbr.rel (0) target = $region45
    $region44: #{block_forward.1} parent=1 // pred_region
      %s136 = ssub.s32 36864, 36864
      %137 = vsyncadd [#allocation18], %s136
      %s138 = sshll.u32 [#allocation19], 4
      %s139 = int_to_ptr.vmem [resolvable:$true] %s138
      %144 = dma.hbm_to_vmem [thread:$0]  %s10, 36864, %s139, [#allocation18], 192, 192, 12
    $region45: #{block_forward.1} parent=1 // pred_fallthru
      _
    // Predicated region
    $region46: #{block_forward.1} parent=1 // pred_check
      _
    $region47: #{block_forward.1} parent=1 // pred_check_branch
      %146 = sbr.rel (0) target = $region49
    $region48: #{block_forward.1} parent=1 // pred_region
      %s148 = ssub.s32 48, 48
      %149 = vsyncadd [#allocation21], %s148
      %s151 = sshll.u32 [#allocation20], 4
      %s152 = int_to_ptr.vmem [resolvable:$true] %s151
      %154 = dma.hbm_to_vmem [thread:$0]  %s11, 48, %s152, [#allocation21]
    $region49: #{block_forward.1} parent=1 // pred_fallthru
      _
    // Predicated region
    $region50: #{block_forward.1} parent=1 // pred_check
      _
    $region51: #{block_forward.1} parent=1 // pred_check_branch
      %156 = sbr.rel (0) target = $region53
    $region52: #{block_forward.1} parent=1 // pred_region
      %157 = dma.done [#allocation3], 1536
    $region53: #{block_forward.1} parent=1 // pred_fallthru
      _
    // Predicated region
    $region54: #{block_forward.1} parent=1 // pred_check
      _
    $region55: #{block_forward.1} parent=1 // pred_check_branch
      %159 = sbr.rel (0) target = $region57
    $region56: #{block_forward.1} parent=1 // pred_region
      %160 = dma.done [#allocation6], 48
    $region57: #{block_forward.1} parent=1 // pred_fallthru
      _
    // Predicated region
    $region58: #{block_forward.1} parent=1 // pred_check
      _
    $region59: #{block_forward.1} parent=1 // pred_check_branch
      %162 = sbr.rel (0) target = $region61
    $region60: #{block_forward.1} parent=1 // pred_region
      %163 = dma.done [#allocation6], 48
    $region61: #{block_forward.1} parent=1 // pred_fallthru
      _
    // Predicated region
    $region62: #{block_forward.1} parent=1 // pred_check
      _
    $region63: #{block_forward.1} parent=1 // pred_check_branch
      %165 = sbr.rel (0) target = $region65
    $region64: #{block_forward.1} parent=1 // pred_region
      %166 = dma.done [#allocation9], 27648
    $region65: #{block_forward.1} parent=1 // pred_fallthru
      _
    // Predicated region
    $region66: #{block_forward.1} parent=1 // pred_check
      _
    $region67: #{block_forward.1} parent=1 // pred_check_branch
      %168 = sbr.rel (0) target = $region69
    $region68: #{block_forward.1} parent=1 // pred_region
      %169 = dma.done [#allocation9], 9216
    $region69: #{block_forward.1} parent=1 // pred_fallthru
      _
    // Predicated region
    $region70: #{block_forward.1} parent=1 // pred_check
      _
    $region71: #{block_forward.1} parent=1 // pred_check_branch
      %171 = sbr.rel (0) target = $region73
    $region72: #{block_forward.1} parent=1 // pred_region
      %172 = dma.done [#allocation12], 48
    $region73: #{block_forward.1} parent=1 // pred_fallthru
      _
    // Predicated region
    $region74: #{block_forward.1} parent=1 // pred_check
      _
    $region75: #{block_forward.1} parent=1 // pred_check_branch
      %174 = sbr.rel (0) target = $region77
    $region76: #{block_forward.1} parent=1 // pred_region
      %175 = dma.done [#allocation12], 48
    $region77: #{block_forward.1} parent=1 // pred_fallthru
      _
    // Predicated region
    $region78: #{block_forward.1} parent=1 // pred_check
      _
    $region79: #{block_forward.1} parent=1 // pred_check_branch
      %177 = sbr.rel (0) target = $region81
    $region80: #{block_forward.1} parent=1 // pred_region
      %178 = dma.done [#allocation15], 48
    $region81: #{block_forward.1} parent=1 // pred_fallthru
      _
    // Predicated region
    $region82: #{block_forward.1} parent=1 // pred_check
      _
    $region83: #{block_forward.1} parent=1 // pred_check_branch
      %180 = sbr.rel (0) target = $region85
    $region84: #{block_forward.1} parent=1 // pred_region
      %181 = dma.done [#allocation15], 36864
    $region85: #{block_forward.1} parent=1 // pred_fallthru
      _
    // Predicated region
    $region86: #{block_forward.1} parent=1 // pred_check
      _
    $region87: #{block_forward.1} parent=1 // pred_check_branch
      %183 = sbr.rel (0) target = $region89
    $region88: #{block_forward.1} parent=1 // pred_region
      %184 = dma.done [#allocation18], 192
    $region89: #{block_forward.1} parent=1 // pred_fallthru
      _
    // Predicated region
    $region90: #{block_forward.1} parent=1 // pred_check
      _
    $region91: #{block_forward.1} parent=1 // pred_check_branch
      %186 = sbr.rel (0) target = $region93
    $region92: #{block_forward.1} parent=1 // pred_region
      %187 = dma.done [#allocation18], 36864
    $region93: #{block_forward.1} parent=1 // pred_fallthru
      _
    // Predicated region
    $region94: #{block_forward.1} parent=1 // pred_check
      _
    $region95: #{block_forward.1} parent=1 // pred_check_branch
      %189 = sbr.rel (0) target = $region97
    $region96: #{block_forward.1} parent=1 // pred_region
      %190 = dma.done [#allocation21], 48
    $region97: #{block_forward.1} parent=1 // pred_fallthru
      _
    %v192 = vld [vmem:[#allocation2] sm:$0xff]
    %v193 = vld [vmem:[#allocation2 + $0x8] sm:$0xff]
    %v194 = vld [vmem:[#allocation2 + $0x10] sm:$0xff]
    %v195 = vld [vmem:[#allocation2 + $0x18] sm:$0xff]
    %v196 = vld [vmem:[#allocation2 + $0x20] sm:$0xff]
    %v197 = vld [vmem:[#allocation2 + $0x28] sm:$0xff]
    %v198 = vld [vmem:[#allocation2 + $0x30] sm:$0xff]
    %v199 = vld [vmem:[#allocation2 + $0x38] sm:$0xff]
    %v200 = vld [vmem:[#allocation2 + $0x40] sm:$0xff]
    %v201 = vld [vmem:[#allocation2 + $0x48] sm:$0xff]
    %v202 = vld [vmem:[#allocation2 + $0x50] sm:$0xff]
    %v203 = vld [vmem:[#allocation2 + $0x58] sm:$0xff]
    %v204 = vld [vmem:[#allocation5] sm:$0x7]
    %v205 = vld [vmem:[#allocation7] sm:$0x7]
    %v206 = vadd.f32 %v192, %v193
    %v207 = vadd.f32 %v206, %v194
    %208 = vadd.xlane.f32.xlu0 %v207
    %v209 = vpop.xlane.xlu0 %208
    %v210 = vadd.f32 %v195, %v196
    %v211 = vadd.f32 %v210, %v197
    %212 = vadd.xlane.f32.xlu0 %v211
    %v213 = vpop.xlane.xlu0 %212
    %v214 = vadd.f32 %v198, %v199
    %v215 = vadd.f32 %v214, %v200
    %216 = vadd.xlane.f32.xlu0 %v215
    %v217 = vpop.xlane.xlu0 %216
    %v218 = vadd.f32 %v201, %v202
    %v219 = vadd.f32 %v218, %v203
    %220 = vadd.xlane.f32.xlu0 %v219
    %v221 = vpop.xlane.xlu0 %220
    %v222 = vrcp.pop 384.0
    %v223 = vmul.f32 %v209, %v222
    %v224 = vmul.f32 %v213, %v222
    %v225 = vmul.f32 %v217, %v222
    %v226 = vmul.f32 %v221, %v222
    %v227 = vsub.f32 %v192, %v223
    %v228 = vsub.f32 %v193, %v223
    %v229 = vsub.f32 %v194, %v223
    %v230 = vsub.f32 %v195, %v224
    %v231 = vsub.f32 %v196, %v224
    %v232 = vsub.f32 %v197, %v224
    %v233 = vsub.f32 %v198, %v225
    %v234 = vsub.f32 %v199, %v225
    %v235 = vsub.f32 %v200, %v225
    %v236 = vsub.f32 %v201, %v226
    %v237 = vsub.f32 %v202, %v226
    %v238 = vsub.f32 %v203, %v226
    %v239 = vmul.f32 %v227, %v227
    %v240 = vmul.f32 %v228, %v228
    %v241 = vmul.f32 %v229, %v229
    %v242 = vmul.f32 %v230, %v230
    %v243 = vmul.f32 %v231, %v231
    %v244 = vmul.f32 %v232, %v232
    %v245 = vmul.f32 %v233, %v233
    %v246 = vmul.f32 %v234, %v234
    %v247 = vmul.f32 %v235, %v235
    %v248 = vmul.f32 %v236, %v236
    %v249 = vmul.f32 %v237, %v237
    %v250 = vmul.f32 %v238, %v238
    %v251 = vadd.f32 %v239, %v240
    %v252 = vadd.f32 %v251, %v241
    %253 = vadd.xlane.f32.xlu0 %v252
    %v254 = vpop.xlane.xlu0 %253
    %v255 = vadd.f32 %v242, %v243
    %v256 = vadd.f32 %v255, %v244
    %257 = vadd.xlane.f32.xlu0 %v256
    %v258 = vpop.xlane.xlu0 %257
    %v259 = vadd.f32 %v245, %v246
    %v260 = vadd.f32 %v259, %v247
    %261 = vadd.xlane.f32.xlu0 %v260
    %v262 = vpop.xlane.xlu0 %261
    %v263 = vadd.f32 %v248, %v249
    %v264 = vadd.f32 %v263, %v250
    %265 = vadd.xlane.f32.xlu0 %v264
    %v266 = vpop.xlane.xlu0 %265
    %v267 = vmul.f32 %v254, %v222
    %v268 = vmul.f32 %v258, %v222
    %v269 = vmul.f32 %v262, %v222
    %v270 = vmul.f32 %v266, %v222
    %v271 = vadd.f32 %v267, 1e-05
    %v272 = vadd.f32 %v268, 1e-05
    %v273 = vadd.f32 %v269, 1e-05
    %v274 = vadd.f32 %v270, 1e-05
    %v275 = vrsqrt.pop %v271
    %v276 = vrsqrt.pop %v272
    %v277 = vrsqrt.pop %v273
    %v278 = vrsqrt.pop %v274
    %v279 = vmul.f32 %v227, %v275
    %v280 = vmul.f32 %v228, %v275
    %v281 = vmul.f32 %v229, %v275
    %v282 = vmul.f32 %v230, %v276
    %v283 = vmul.f32 %v231, %v276
    %v284 = vmul.f32 %v232, %v276
    %v285 = vmul.f32 %v233, %v277
    %v286 = vmul.f32 %v234, %v277
    %v287 = vmul.f32 %v235, %v277
    %v288 = vmul.f32 %v236, %v278
    %v289 = vmul.f32 %v237, %v278
    %v290 = vmul.f32 %v238, %v278
    %v292 = vlaneseq
    %v293 = vshrl.u32 %v292, 7
    %v294 = vsub.s32 0, %v293
    %v295 = vrot.slane %v204, %v294
    %v296 = vlaneseq
    %v297 = vshrl.u32 %v296, 7
    %v298 = vsub.s32 1, %v297
    %v299 = vrot.slane %v204, %v298
    %v300 = vlaneseq
    %v301 = vshrl.u32 %v300, 7
    %v302 = vsub.s32 2, %v301
    %v303 = vrot.slane %v204, %v302
    %v307 = vmul.f32 %v279, %v295
    %v308 = vmul.f32 %v280, %v299
    %v309 = vmul.f32 %v281, %v303
    %v310 = vmul.f32 %v282, %v295
    %v311 = vmul.f32 %v283, %v299
    %v312 = vmul.f32 %v284, %v303
    %v313 = vmul.f32 %v285, %v295
    %v314 = vmul.f32 %v286, %v299
    %v315 = vmul.f32 %v287, %v303
    %v316 = vmul.f32 %v288, %v295
    %v317 = vmul.f32 %v289, %v299
    %v318 = vmul.f32 %v290, %v303
    %v320 = vlaneseq
    %v321 = vshrl.u32 %v320, 7
    %v322 = vsub.s32 0, %v321
    %v323 = vrot.slane %v205, %v322
    %v324 = vlaneseq
    %v325 = vshrl.u32 %v324, 7
    %v326 = vsub.s32 1, %v325
    %v327 = vrot.slane %v205, %v326
    %v328 = vlaneseq
    %v329 = vshrl.u32 %v328, 7
    %v330 = vsub.s32 2, %v329
    %v331 = vrot.slane %v205, %v330
    %v335 = vadd.f32 %v307, %v323
    %v336 = vadd.f32 %v308, %v327
    %v337 = vadd.f32 %v309, %v331
    %v338 = vadd.f32 %v310, %v323
    %v339 = vadd.f32 %v311, %v327
    %v340 = vadd.f32 %v312, %v331
    %v341 = vadd.f32 %v313, %v323
    %v342 = vadd.f32 %v314, %v327
    %v343 = vadd.f32 %v315, %v331
    %v344 = vadd.f32 %v316, %v323
    %v345 = vadd.f32 %v317, %v327
    %v346 = vadd.f32 %v318, %v331
    %v347 = vpack.c.bf16 %v338, %v335
    %v348 = vpack.c.bf16 %v339, %v336
    %v349 = vpack.c.bf16 %v340, %v337
    %v350 = vpack.c.bf16 %v344, %v341
    %v351 = vpack.c.bf16 %v345, %v342
    %v352 = vpack.c.bf16 %v346, %v343
    %v353 = vld [vmem:[#allocation8] sm:$0xff]
    %v354 = vld [vmem:[#allocation8 + $0x8] sm:$0xff]
    %v355 = vld [vmem:[#allocation8 + $0x10] sm:$0xff]
    %v356 = vld [vmem:[#allocation8 + $0x18] sm:$0xff]
    %v357 = vld [vmem:[#allocation8 + $0x20] sm:$0xf]
    %v358 = vld [vmem:[#allocation8 + $0x24] sm:$0xff]
    %v359 = vld [vmem:[#allocation8 + $0x2c] sm:$0xff]
    %v360 = vld [vmem:[#allocation8 + $0x34] sm:$0xff]
    %v361 = vld [vmem:[#allocation8 + $0x3c] sm:$0xff]
    %v362 = vld [vmem:[#allocation8 + $0x44] sm:$0xf]
    %v363 = vld [vmem:[#allocation8 + $0x48] sm:$0xff]
    %v364 = vld [vmem:[#allocation8 + $0x50] sm:$0xff]
    %v365 = vld [vmem:[#allocation8 + $0x58] sm:$0xff]
    %v366 = vld [vmem:[#allocation8 + $0x60] sm:$0xff]
    %v367 = vld [vmem:[#allocation8 + $0x68] sm:$0xf]
    %v368 = vld [vmem:[#allocation8 + $0x6c] sm:$0xff]
    %v369 = vld [vmem:[#allocation8 + $0x74] sm:$0xff]
    %v370 = vld [vmem:[#allocation8 + $0x7c] sm:$0xff]
    %v371 = vld [vmem:[#allocation8 + $0x84] sm:$0xff]
    %v372 = vld [vmem:[#allocation8 + $0x8c] sm:$0xf]
    %v373 = vld [vmem:[#allocation8 + $0x90] sm:$0xff]
    %v374 = vld [vmem:[#allocation8 + $0x98] sm:$0xff]
    %v375 = vld [vmem:[#allocation8 + $0xa0] sm:$0xff]
    %v376 = vld [vmem:[#allocation8 + $0xa8] sm:$0xff]
    %v377 = vld [vmem:[#allocation8 + $0xb0] sm:$0xf]
    %v378 = vld [vmem:[#allocation8 + $0xb4] sm:$0xff]
    %v379 = vld [vmem:[#allocation8 + $0xbc] sm:$0xff]
    %v380 = vld [vmem:[#allocation8 + $0xc4] sm:$0xff]
    %v381 = vld [vmem:[#allocation8 + $0xcc] sm:$0xff]
    %v382 = vld [vmem:[#allocation8 + $0xd4] sm:$0xf]
    %v383 = vld [vmem:[#allocation8 + $0xd8] sm:$0xff]
    %v384 = vld [vmem:[#allocation8 + $0xe0] sm:$0xff]
    %v385 = vld [vmem:[#allocation8 + $0xe8] sm:$0xff]
    %v386 = vld [vmem:[#allocation8 + $0xf0] sm:$0xff]
    %v387 = vld [vmem:[#allocation8 + $0xf8] sm:$0xf]
    %v388 = vld [vmem:[#allocation8 + $0xfc] sm:$0xff]
    %v389 = vld [vmem:[#allocation8 + $0x104] sm:$0xff]
    %v390 = vld [vmem:[#allocation8 + $0x10c] sm:$0xff]
    %v391 = vld [vmem:[#allocation8 + $0x114] sm:$0xff]
    %v392 = vld [vmem:[#allocation8 + $0x11c] sm:$0xf]
    %v393 = vld [vmem:[#allocation8 + $0x120] sm:$0xff]
    %v394 = vld [vmem:[#allocation8 + $0x128] sm:$0xff]
    %v395 = vld [vmem:[#allocation8 + $0x130] sm:$0xff]
    %v396 = vld [vmem:[#allocation8 + $0x138] sm:$0xff]
    %v397 = vld [vmem:[#allocation8 + $0x140] sm:$0xf]
    %v398 = vld [vmem:[#allocation8 + $0x144] sm:$0xff]
    %v399 = vld [vmem:[#allocation8 + $0x14c] sm:$0xff]
    %v400 = vld [vmem:[#allocation8 + $0x154] sm:$0xff]
    %v401 = vld [vmem:[#allocation8 + $0x15c] sm:$0xff]
    %v402 = vld [vmem:[#allocation8 + $0x164] sm:$0xf]
    %v403 = vld [vmem:[#allocation8 + $0x168] sm:$0xff]
    %v404 = vld [vmem:[#allocation8 + $0x170] sm:$0xff]
    %v405 = vld [vmem:[#allocation8 + $0x178] sm:$0xff]
    %v406 = vld [vmem:[#allocation8 + $0x180] sm:$0xff]
    %v407 = vld [vmem:[#allocation8 + $0x188] sm:$0xf]
    %v408 = vld [vmem:[#allocation8 + $0x18c] sm:$0xff]
    %v409 = vld [vmem:[#allocation8 + $0x194] sm:$0xff]
    %v410 = vld [vmem:[#allocation8 + $0x19c] sm:$0xff]
    %v411 = vld [vmem:[#allocation8 + $0x1a4] sm:$0xff]
    %v412 = vld [vmem:[#allocation8 + $0x1ac] sm:$0xf]
    %v413 = vld [vmem:[#allocation8 + $0x1b0] sm:$0xff]
    %v414 = vld [vmem:[#allocation8 + $0x1b8] sm:$0xff]
    %v415 = vld [vmem:[#allocation8 + $0x1c0] sm:$0xff]
    %v416 = vld [vmem:[#allocation8 + $0x1c8] sm:$0xff]
    %v417 = vld [vmem:[#allocation8 + $0x1d0] sm:$0xf]
    %v418 = vld [vmem:[#allocation8 + $0x1d4] sm:$0xff]
    %v419 = vld [vmem:[#allocation8 + $0x1dc] sm:$0xff]
    %v420 = vld [vmem:[#allocation8 + $0x1e4] sm:$0xff]
    %v421 = vld [vmem:[#allocation8 + $0x1ec] sm:$0xff]
    %v422 = vld [vmem:[#allocation8 + $0x1f4] sm:$0xf]
    %v423 = vld [vmem:[#allocation8 + $0x1f8] sm:$0xff]
    %v424 = vld [vmem:[#allocation8 + $0x200] sm:$0xff]
    %v425 = vld [vmem:[#allocation8 + $0x208] sm:$0xff]
    %v426 = vld [vmem:[#allocation8 + $0x210] sm:$0xff]
    %v427 = vld [vmem:[#allocation8 + $0x218] sm:$0xf]
    %v428 = vld [vmem:[#allocation8 + $0x21c] sm:$0xff]
    %v429 = vld [vmem:[#allocation8 + $0x224] sm:$0xff]
    %v430 = vld [vmem:[#allocation8 + $0x22c] sm:$0xff]
    %v431 = vld [vmem:[#allocation8 + $0x234] sm:$0xff]
    %v432 = vld [vmem:[#allocation8 + $0x23c] sm:$0xf]
    %v433 = vld [vmem:[#allocation8 + $0x240] sm:$0xff]
    %v434 = vld [vmem:[#allocation8 + $0x248] sm:$0xff]
    %v435 = vld [vmem:[#allocation8 + $0x250] sm:$0xff]
    %v436 = vld [vmem:[#allocation8 + $0x258] sm:$0xff]
    %v437 = vld [vmem:[#allocation8 + $0x260] sm:$0xf]
    %v438 = vld [vmem:[#allocation8 + $0x264] sm:$0xff]
    %v439 = vld [vmem:[#allocation8 + $0x26c] sm:$0xff]
    %v440 = vld [vmem:[#allocation8 + $0x274] sm:$0xff]
    %v441 = vld [vmem:[#allocation8 + $0x27c] sm:$0xff]
    %v442 = vld [vmem:[#allocation8 + $0x284] sm:$0xf]
    %v443 = vld [vmem:[#allocation8 + $0x288] sm:$0xff]
    %v444 = vld [vmem:[#allocation8 + $0x290] sm:$0xff]
    %v445 = vld [vmem:[#allocation8 + $0x298] sm:$0xff]
    %v446 = vld [vmem:[#allocation8 + $0x2a0] sm:$0xff]
    %v447 = vld [vmem:[#allocation8 + $0x2a8] sm:$0xf]
    %v448 = vld [vmem:[#allocation8 + $0x2ac] sm:$0xff]
    %v449 = vld [vmem:[#allocation8 + $0x2b4] sm:$0xff]
    %v450 = vld [vmem:[#allocation8 + $0x2bc] sm:$0xff]
    %v451 = vld [vmem:[#allocation8 + $0x2c4] sm:$0xff]
    %v452 = vld [vmem:[#allocation8 + $0x2cc] sm:$0xf]
    %v453 = vld [vmem:[#allocation8 + $0x2d0] sm:$0xff]
    %v454 = vld [vmem:[#allocation8 + $0x2d8] sm:$0xff]
    %v455 = vld [vmem:[#allocation8 + $0x2e0] sm:$0xff]
    %v456 = vld [vmem:[#allocation8 + $0x2e8] sm:$0xff]
    %v457 = vld [vmem:[#allocation8 + $0x2f0] sm:$0xf]
    %v458 = vld [vmem:[#allocation8 + $0x2f4] sm:$0xff]
    %v459 = vld [vmem:[#allocation8 + $0x2fc] sm:$0xff]
    %v460 = vld [vmem:[#allocation8 + $0x304] sm:$0xff]
    %v461 = vld [vmem:[#allocation8 + $0x30c] sm:$0xff]
    %v462 = vld [vmem:[#allocation8 + $0x314] sm:$0xf]
    %v463 = vld [vmem:[#allocation8 + $0x318] sm:$0xff]
    %v464 = vld [vmem:[#allocation8 + $0x320] sm:$0xff]
    %v465 = vld [vmem:[#allocation8 + $0x328] sm:$0xff]
    %v466 = vld [vmem:[#allocation8 + $0x330] sm:$0xff]
    %v467 = vld [vmem:[#allocation8 + $0x338] sm:$0xf]
    %v468 = vld [vmem:[#allocation8 + $0x33c] sm:$0xff]
    %v469 = vld [vmem:[#allocation8 + $0x344] sm:$0xff]
    %v470 = vld [vmem:[#allocation8 + $0x34c] sm:$0xff]
    %v471 = vld [vmem:[#allocation8 + $0x354] sm:$0xff]
    %v472 = vld [vmem:[#allocation8 + $0x35c] sm:$0xf]
    %v473 = vld [vmem:[#allocation8 + $0x360] sm:$0xff]
    %v474 = vld [vmem:[#allocation8 + $0x368] sm:$0xff]
    %v475 = vld [vmem:[#allocation8 + $0x370] sm:$0xff]
    %v476 = vld [vmem:[#allocation8 + $0x378] sm:$0xff]
    %v477 = vld [vmem:[#allocation8 + $0x380] sm:$0xf]
    %v478 = vld [vmem:[#allocation8 + $0x384] sm:$0xff]
    %v479 = vld [vmem:[#allocation8 + $0x38c] sm:$0xff]
    %v480 = vld [vmem:[#allocation8 + $0x394] sm:$0xff]
    %v481 = vld [vmem:[#allocation8 + $0x39c] sm:$0xff]
    %v482 = vld [vmem:[#allocation8 + $0x3a4] sm:$0xf]
    %v483 = vld [vmem:[#allocation8 + $0x3a8] sm:$0xff]
    %v484 = vld [vmem:[#allocation8 + $0x3b0] sm:$0xff]
    %v485 = vld [vmem:[#allocation8 + $0x3b8] sm:$0xff]
    %v486 = vld [vmem:[#allocation8 + $0x3c0] sm:$0xff]
    %v487 = vld [vmem:[#allocation8 + $0x3c8] sm:$0xf]
    %v488 = vld [vmem:[#allocation8 + $0x3cc] sm:$0xff]
    %v489 = vld [vmem:[#allocation8 + $0x3d4] sm:$0xff]
    %v490 = vld [vmem:[#allocation8 + $0x3dc] sm:$0xff]
    %v491 = vld [vmem:[#allocation8 + $0x3e4] sm:$0xff]
    %v492 = vld [vmem:[#allocation8 + $0x3ec] sm:$0xf]
    %v493 = vld [vmem:[#allocation8 + $0x3f0] sm:$0xff]
    %v494 = vld [vmem:[#allocation8 + $0x3f8] sm:$0xff]
    %v495 = vld [vmem:[#allocation8 + $0x400] sm:$0xff]
    %v496 = vld [vmem:[#allocation8 + $0x408] sm:$0xff]
    %v497 = vld [vmem:[#allocation8 + $0x410] sm:$0xf]
    %v498 = vld [vmem:[#allocation8 + $0x414] sm:$0xff]
    %v499 = vld [vmem:[#allocation8 + $0x41c] sm:$0xff]
    %v500 = vld [vmem:[#allocation8 + $0x424] sm:$0xff]
    %v501 = vld [vmem:[#allocation8 + $0x42c] sm:$0xff]
    %v502 = vld [vmem:[#allocation8 + $0x434] sm:$0xf]
    %v503 = vld [vmem:[#allocation8 + $0x438] sm:$0xff]
    %v504 = vld [vmem:[#allocation8 + $0x440] sm:$0xff]
    %v505 = vld [vmem:[#allocation8 + $0x448] sm:$0xff]
    %v506 = vld [vmem:[#allocation8 + $0x450] sm:$0xff]
    %v507 = vld [vmem:[#allocation8 + $0x458] sm:$0xf]
    %v508 = vld [vmem:[#allocation8 + $0x45c] sm:$0xff]
    %v509 = vld [vmem:[#allocation8 + $0x464] sm:$0xff]
    %v510 = vld [vmem:[#allocation8 + $0x46c] sm:$0xff]
    %v511 = vld [vmem:[#allocation8 + $0x474] sm:$0xff]
    %v512 = vld [vmem:[#allocation8 + $0x47c] sm:$0xf]
    %v513 = vld [vmem:[#allocation8 + $0x480] sm:$0xff]
    %v514 = vld [vmem:[#allocation8 + $0x488] sm:$0xff]
    %v515 = vld [vmem:[#allocation8 + $0x490] sm:$0xff]
    %v516 = vld [vmem:[#allocation8 + $0x498] sm:$0xff]
    %v517 = vld [vmem:[#allocation8 + $0x4a0] sm:$0xf]
    %v518 = vld [vmem:[#allocation8 + $0x4a4] sm:$0xff]
    %v519 = vld [vmem:[#allocation8 + $0x4ac] sm:$0xff]
    %v520 = vld [vmem:[#allocation8 + $0x4b4] sm:$0xff]
    %v521 = vld [vmem:[#allocation8 + $0x4bc] sm:$0xff]
    %v522 = vld [vmem:[#allocation8 + $0x4c4] sm:$0xf]
    %v523 = vld [vmem:[#allocation8 + $0x4c8] sm:$0xff]
    %v524 = vld [vmem:[#allocation8 + $0x4d0] sm:$0xff]
    %v525 = vld [vmem:[#allocation8 + $0x4d8] sm:$0xff]
    %v526 = vld [vmem:[#allocation8 + $0x4e0] sm:$0xff]
    %v527 = vld [vmem:[#allocation8 + $0x4e8] sm:$0xf]
    %v528 = vld [vmem:[#allocation8 + $0x4ec] sm:$0xff]
    %v529 = vld [vmem:[#allocation8 + $0x4f4] sm:$0xff]
    %v530 = vld [vmem:[#allocation8 + $0x4fc] sm:$0xff]
    %v531 = vld [vmem:[#allocation8 + $0x504] sm:$0xff]
    %v532 = vld [vmem:[#allocation8 + $0x50c] sm:$0xf]
    %v533 = vld [vmem:[#allocation8 + $0x510] sm:$0xff]
    %v534 = vld [vmem:[#allocation8 + $0x518] sm:$0xff]
    %v535 = vld [vmem:[#allocation8 + $0x520] sm:$0xff]
    %v536 = vld [vmem:[#allocation8 + $0x528] sm:$0xff]
    %v537 = vld [vmem:[#allocation8 + $0x530] sm:$0xf]
    %v538 = vld [vmem:[#allocation8 + $0x534] sm:$0xff]
    %v539 = vld [vmem:[#allocation8 + $0x53c] sm:$0xff]
    %v540 = vld [vmem:[#allocation8 + $0x544] sm:$0xff]
    %v541 = vld [vmem:[#allocation8 + $0x54c] sm:$0xff]
    %v542 = vld [vmem:[#allocation8 + $0x554] sm:$0xf]
    %v543 = vld [vmem:[#allocation8 + $0x558] sm:$0xff]
    %v544 = vld [vmem:[#allocation8 + $0x560] sm:$0xff]
    %v545 = vld [vmem:[#allocation8 + $0x568] sm:$0xff]
    %v546 = vld [vmem:[#allocation8 + $0x570] sm:$0xff]
    %v547 = vld [vmem:[#allocation8 + $0x578] sm:$0xf]
    %v548 = vld [vmem:[#allocation8 + $0x57c] sm:$0xff]
    %v549 = vld [vmem:[#allocation8 + $0x584] sm:$0xff]
    %v550 = vld [vmem:[#allocation8 + $0x58c] sm:$0xff]
    %v551 = vld [vmem:[#allocation8 + $0x594] sm:$0xff]
    %v552 = vld [vmem:[#allocation8 + $0x59c] sm:$0xf]
    %v553 = vld [vmem:[#allocation8 + $0x5a0] sm:$0xff]
    %v554 = vld [vmem:[#allocation8 + $0x5a8] sm:$0xff]
    %v555 = vld [vmem:[#allocation8 + $0x5b0] sm:$0xff]
    %v556 = vld [vmem:[#allocation8 + $0x5b8] sm:$0xff]
    %v557 = vld [vmem:[#allocation8 + $0x5c0] sm:$0xf]
    %v558 = vld [vmem:[#allocation8 + $0x5c4] sm:$0xff]
    %v559 = vld [vmem:[#allocation8 + $0x5cc] sm:$0xff]
    %v560 = vld [vmem:[#allocation8 + $0x5d4] sm:$0xff]
    %v561 = vld [vmem:[#allocation8 + $0x5dc] sm:$0xff]
    %v562 = vld [vmem:[#allocation8 + $0x5e4] sm:$0xf]
    %v563 = vld [vmem:[#allocation8 + $0x5e8] sm:$0xff]
    %v564 = vld [vmem:[#allocation8 + $0x5f0] sm:$0xff]
    %v565 = vld [vmem:[#allocation8 + $0x5f8] sm:$0xff]
    %v566 = vld [vmem:[#allocation8 + $0x600] sm:$0xff]
    %v567 = vld [vmem:[#allocation8 + $0x608] sm:$0xf]
    %v568 = vld [vmem:[#allocation8 + $0x60c] sm:$0xff]
    %v569 = vld [vmem:[#allocation8 + $0x614] sm:$0xff]
    %v570 = vld [vmem:[#allocation8 + $0x61c] sm:$0xff]
    %v571 = vld [vmem:[#allocation8 + $0x624] sm:$0xff]
    %v572 = vld [vmem:[#allocation8 + $0x62c] sm:$0xf]
    %v573 = vld [vmem:[#allocation8 + $0x630] sm:$0xff]
    %v574 = vld [vmem:[#allocation8 + $0x638] sm:$0xff]
    %v575 = vld [vmem:[#allocation8 + $0x640] sm:$0xff]
    %v576 = vld [vmem:[#allocation8 + $0x648] sm:$0xff]
    %v577 = vld [vmem:[#allocation8 + $0x650] sm:$0xf]
    %v578 = vld [vmem:[#allocation8 + $0x654] sm:$0xff]
    %v579 = vld [vmem:[#allocation8 + $0x65c] sm:$0xff]
    %v580 = vld [vmem:[#allocation8 + $0x664] sm:$0xff]
    %v581 = vld [vmem:[#allocation8 + $0x66c] sm:$0xff]
    %v582 = vld [vmem:[#allocation8 + $0x674] sm:$0xf]
    %v583 = vld [vmem:[#allocation8 + $0x678] sm:$0xff]
    %v584 = vld [vmem:[#allocation8 + $0x680] sm:$0xff]
    %v585 = vld [vmem:[#allocation8 + $0x688] sm:$0xff]
    %v586 = vld [vmem:[#allocation8 + $0x690] sm:$0xff]
    %v587 = vld [vmem:[#allocation8 + $0x698] sm:$0xf]
    %v588 = vld [vmem:[#allocation8 + $0x69c] sm:$0xff]
    %v589 = vld [vmem:[#allocation8 + $0x6a4] sm:$0xff]
    %v590 = vld [vmem:[#allocation8 + $0x6ac] sm:$0xff]
    %v591 = vld [vmem:[#allocation8 + $0x6b4] sm:$0xff]
    %v592 = vld [vmem:[#allocation8 + $0x6bc] sm:$0xf]
    %v833 = vunpack.c.l.b16 %v353
    %v834 = vunpack.c.h.b16 %v353
    %v835 = vunpack.c.l.b16 %v354
    %v836 = vunpack.c.h.b16 %v354
    %v837 = vunpack.c.l.b16 %v355
    %v838 = vunpack.c.h.b16 %v355
    %v839 = vunpack.c.l.b16 %v356
    %v840 = vunpack.c.h.b16 %v356
    %v841 = vunpack.c.l.b16 %v357
    %v842 = vunpack.c.l.b16 %v358
    %v843 = vunpack.c.h.b16 %v358
    %v844 = vunpack.c.l.b16 %v359
    %v845 = vunpack.c.h.b16 %v359
    %v846 = vunpack.c.l.b16 %v360
    %v847 = vunpack.c.h.b16 %v360
    %v848 = vunpack.c.l.b16 %v361
    %v849 = vunpack.c.h.b16 %v361
    %v850 = vunpack.c.l.b16 %v362
    %v851 = vunpack.c.l.b16 %v363
    %v852 = vunpack.c.h.b16 %v363
    %v853 = vunpack.c.l.b16 %v364
    %v854 = vunpack.c.h.b16 %v364
    %v855 = vunpack.c.l.b16 %v365
    %v856 = vunpack.c.h.b16 %v365
    %v857 = vunpack.c.l.b16 %v366
    %v858 = vunpack.c.h.b16 %v366
    %v859 = vunpack.c.l.b16 %v367
    %v860 = vunpack.c.l.b16 %v368
    %v861 = vunpack.c.h.b16 %v368
    %v862 = vunpack.c.l.b16 %v369
    %v863 = vunpack.c.h.b16 %v369
    %v864 = vunpack.c.l.b16 %v370
    %v865 = vunpack.c.h.b16 %v370
    %v866 = vunpack.c.l.b16 %v371
    %v867 = vunpack.c.h.b16 %v371
    %v868 = vunpack.c.l.b16 %v372
    %v869 = vunpack.c.l.b16 %v373
    %v870 = vunpack.c.h.b16 %v373
    %v871 = vunpack.c.l.b16 %v374
    %v872 = vunpack.c.h.b16 %v374
    %v873 = vunpack.c.l.b16 %v375
    %v874 = vunpack.c.h.b16 %v375
    %v875 = vunpack.c.l.b16 %v376
    %v876 = vunpack.c.h.b16 %v376
    %v877 = vunpack.c.l.b16 %v377
    %v878 = vunpack.c.l.b16 %v378
    %v879 = vunpack.c.h.b16 %v378
    %v880 = vunpack.c.l.b16 %v379
    %v881 = vunpack.c.h.b16 %v379
    %v882 = vunpack.c.l.b16 %v380
    %v883 = vunpack.c.h.b16 %v380
    %v884 = vunpack.c.l.b16 %v381
    %v885 = vunpack.c.h.b16 %v381
    %v886 = vunpack.c.l.b16 %v382
    %v887 = vunpack.c.l.b16 %v383
    %v888 = vunpack.c.h.b16 %v383
    %v889 = vunpack.c.l.b16 %v384
    %v890 = vunpack.c.h.b16 %v384
    %v891 = vunpack.c.l.b16 %v385
    %v892 = vunpack.c.h.b16 %v385
    %v893 = vunpack.c.l.b16 %v386
    %v894 = vunpack.c.h.b16 %v386
    %v895 = vunpack.c.l.b16 %v387
    %v896 = vunpack.c.l.b16 %v388
    %v897 = vunpack.c.h.b16 %v388
    %v898 = vunpack.c.l.b16 %v389
    %v899 = vunpack.c.h.b16 %v389
    %v900 = vunpack.c.l.b16 %v390
    %v901 = vunpack.c.h.b16 %v390
    %v902 = vunpack.c.l.b16 %v391
    %v903 = vunpack.c.h.b16 %v391
    %v904 = vunpack.c.l.b16 %v392
    %v905 = vunpack.c.l.b16 %v393
    %v906 = vunpack.c.h.b16 %v393
    %v907 = vunpack.c.l.b16 %v394
    %v908 = vunpack.c.h.b16 %v394
    %v909 = vunpack.c.l.b16 %v395
    %v910 = vunpack.c.h.b16 %v395
    %v911 = vunpack.c.l.b16 %v396
    %v912 = vunpack.c.h.b16 %v396
    %v913 = vunpack.c.l.b16 %v397
    %v914 = vunpack.c.l.b16 %v398
    %v915 = vunpack.c.h.b16 %v398
    %v916 = vunpack.c.l.b16 %v399
    %v917 = vunpack.c.h.b16 %v399
    %v918 = vunpack.c.l.b16 %v400
    %v919 = vunpack.c.h.b16 %v400
    %v920 = vunpack.c.l.b16 %v401
    %v921 = vunpack.c.h.b16 %v401
    %v922 = vunpack.c.l.b16 %v402
    %v923 = vunpack.c.l.b16 %v403
    %v924 = vunpack.c.h.b16 %v403
    %v925 = vunpack.c.l.b16 %v404
    %v926 = vunpack.c.h.b16 %v404
    %v927 = vunpack.c.l.b16 %v405
    %v928 = vunpack.c.h.b16 %v405
    %v929 = vunpack.c.l.b16 %v406
    %v930 = vunpack.c.h.b16 %v406
    %v931 = vunpack.c.l.b16 %v407
    %v932 = vunpack.c.l.b16 %v408
    %v933 = vunpack.c.h.b16 %v408
    %v934 = vunpack.c.l.b16 %v409
    %v935 = vunpack.c.h.b16 %v409
    %v936 = vunpack.c.l.b16 %v410
    %v937 = vunpack.c.h.b16 %v410
    %v938 = vunpack.c.l.b16 %v411
    %v939 = vunpack.c.h.b16 %v411
    %v940 = vunpack.c.l.b16 %v412
    %v941 = vunpack.c.l.b16 %v413
    %v942 = vunpack.c.h.b16 %v413
    %v943 = vunpack.c.l.b16 %v414
    %v944 = vunpack.c.h.b16 %v414
    %v945 = vunpack.c.l.b16 %v415
    %v946 = vunpack.c.h.b16 %v415
    %v947 = vunpack.c.l.b16 %v416
    %v948 = vunpack.c.h.b16 %v416
    %v949 = vunpack.c.l.b16 %v417
    %v950 = vunpack.c.l.b16 %v418
    %v951 = vunpack.c.h.b16 %v418
    %v952 = vunpack.c.l.b16 %v419
    %v953 = vunpack.c.h.b16 %v419
    %v954 = vunpack.c.l.b16 %v420
    %v955 = vunpack.c.h.b16 %v420
    %v956 = vunpack.c.l.b16 %v421
    %v957 = vunpack.c.h.b16 %v421
    %v958 = vunpack.c.l.b16 %v422
    %v959 = vunpack.c.l.b16 %v423
    %v960 = vunpack.c.h.b16 %v423
    %v961 = vunpack.c.l.b16 %v424
    %v962 = vunpack.c.h.b16 %v424
    %v963 = vunpack.c.l.b16 %v425
    %v964 = vunpack.c.h.b16 %v425
    %v965 = vunpack.c.l.b16 %v426
    %v966 = vunpack.c.h.b16 %v426
    %v967 = vunpack.c.l.b16 %v427
    %v968 = vunpack.c.l.b16 %v428
    %v969 = vunpack.c.h.b16 %v428
    %v970 = vunpack.c.l.b16 %v429
    %v971 = vunpack.c.h.b16 %v429
    %v972 = vunpack.c.l.b16 %v430
    %v973 = vunpack.c.h.b16 %v430
    %v974 = vunpack.c.l.b16 %v431
    %v975 = vunpack.c.h.b16 %v431
    %v976 = vunpack.c.l.b16 %v432
    %v977 = vunpack.c.l.b16 %v433
    %v978 = vunpack.c.h.b16 %v433
    %v979 = vunpack.c.l.b16 %v434
    %v980 = vunpack.c.h.b16 %v434
    %v981 = vunpack.c.l.b16 %v435
    %v982 = vunpack.c.h.b16 %v435
    %v983 = vunpack.c.l.b16 %v436
    %v984 = vunpack.c.h.b16 %v436
    %v985 = vunpack.c.l.b16 %v437
    %v986 = vunpack.c.l.b16 %v438
    %v987 = vunpack.c.h.b16 %v438
    %v988 = vunpack.c.l.b16 %v439
    %v989 = vunpack.c.h.b16 %v439
    %v990 = vunpack.c.l.b16 %v440
    %v991 = vunpack.c.h.b16 %v440
    %v992 = vunpack.c.l.b16 %v441
    %v993 = vunpack.c.h.b16 %v441
    %v994 = vunpack.c.l.b16 %v442
    %v995 = vunpack.c.l.b16 %v443
    %v996 = vunpack.c.h.b16 %v443
    %v997 = vunpack.c.l.b16 %v444
    %v998 = vunpack.c.h.b16 %v444
    %v999 = vunpack.c.l.b16 %v445
    %v1000 = vunpack.c.h.b16 %v445
    %v1001 = vunpack.c.l.b16 %v446
    %v1002 = vunpack.c.h.b16 %v446
    %v1003 = vunpack.c.l.b16 %v447
    %v1004 = vunpack.c.l.b16 %v448
    %v1005 = vunpack.c.h.b16 %v448
    %v1006 = vunpack.c.l.b16 %v449
    %v1007 = vunpack.c.h.b16 %v449
    %v1008 = vunpack.c.l.b16 %v450
    %v1009 = vunpack.c.h.b16 %v450
    %v1010 = vunpack.c.l.b16 %v451
    %v1011 = vunpack.c.h.b16 %v451
    %v1012 = vunpack.c.l.b16 %v452
    %v1013 = vunpack.c.l.b16 %v453
    %v1014 = vunpack.c.h.b16 %v453
    %v1015 = vunpack.c.l.b16 %v454
    %v1016 = vunpack.c.h.b16 %v454
    %v1017 = vunpack.c.l.b16 %v455
    %v1018 = vunpack.c.h.b16 %v455
    %v1019 = vunpack.c.l.b16 %v456
    %v1020 = vunpack.c.h.b16 %v456
    %v1021 = vunpack.c.l.b16 %v457
    %v1022 = vunpack.c.l.b16 %v458
    %v1023 = vunpack.c.h.b16 %v458
    %v1024 = vunpack.c.l.b16 %v459
    %v1025 = vunpack.c.h.b16 %v459
    %v1026 = vunpack.c.l.b16 %v460
    %v1027 = vunpack.c.h.b16 %v460
    %v1028 = vunpack.c.l.b16 %v461
    %v1029 = vunpack.c.h.b16 %v461
    %v1030 = vunpack.c.l.b16 %v462
    %v1031 = vunpack.c.l.b16 %v463
    %v1032 = vunpack.c.h.b16 %v463
    %v1033 = vunpack.c.l.b16 %v464
    %v1034 = vunpack.c.h.b16 %v464
    %v1035 = vunpack.c.l.b16 %v465
    %v1036 = vunpack.c.h.b16 %v465
    %v1037 = vunpack.c.l.b16 %v466
    %v1038 = vunpack.c.h.b16 %v466
    %v1039 = vunpack.c.l.b16 %v467
    %v1040 = vunpack.c.l.b16 %v468
    %v1041 = vunpack.c.h.b16 %v468
    %v1042 = vunpack.c.l.b16 %v469
    %v1043 = vunpack.c.h.b16 %v469
    %v1044 = vunpack.c.l.b16 %v470
    %v1045 = vunpack.c.h.b16 %v470
    %v1046 = vunpack.c.l.b16 %v471
    %v1047 = vunpack.c.h.b16 %v471
    %v1048 = vunpack.c.l.b16 %v472
    %v1049 = vunpack.c.l.b16 %v473
    %v1050 = vunpack.c.h.b16 %v473
    %v1051 = vunpack.c.l.b16 %v474
    %v1052 = vunpack.c.h.b16 %v474
    %v1053 = vunpack.c.l.b16 %v475
    %v1054 = vunpack.c.h.b16 %v475
    %v1055 = vunpack.c.l.b16 %v476
    %v1056 = vunpack.c.h.b16 %v476
    %v1057 = vunpack.c.l.b16 %v477
    %v1058 = vunpack.c.l.b16 %v478
    %v1059 = vunpack.c.h.b16 %v478
    %v1060 = vunpack.c.l.b16 %v479
    %v1061 = vunpack.c.h.b16 %v479
    %v1062 = vunpack.c.l.b16 %v480
    %v1063 = vunpack.c.h.b16 %v480
    %v1064 = vunpack.c.l.b16 %v481
    %v1065 = vunpack.c.h.b16 %v481
    %v1066 = vunpack.c.l.b16 %v482
    %v1067 = vunpack.c.l.b16 %v483
    %v1068 = vunpack.c.h.b16 %v483
    %v1069 = vunpack.c.l.b16 %v484
    %v1070 = vunpack.c.h.b16 %v484
    %v1071 = vunpack.c.l.b16 %v485
    %v1072 = vunpack.c.h.b16 %v485
    %v1073 = vunpack.c.l.b16 %v486
    %v1074 = vunpack.c.h.b16 %v486
    %v1075 = vunpack.c.l.b16 %v487
    %v1076 = vunpack.c.l.b16 %v488
    %v1077 = vunpack.c.h.b16 %v488
    %v1078 = vunpack.c.l.b16 %v489
    %v1079 = vunpack.c.h.b16 %v489
    %v1080 = vunpack.c.l.b16 %v490
    %v1081 = vunpack.c.h.b16 %v490
    %v1082 = vunpack.c.l.b16 %v491
    %v1083 = vunpack.c.h.b16 %v491
    %v1084 = vunpack.c.l.b16 %v492
    %v1085 = vunpack.c.l.b16 %v493
    %v1086 = vunpack.c.h.b16 %v493
    %v1087 = vunpack.c.l.b16 %v494
    %v1088 = vunpack.c.h.b16 %v494
    %v1089 = vunpack.c.l.b16 %v495
    %v1090 = vunpack.c.h.b16 %v495
    %v1091 = vunpack.c.l.b16 %v496
    %v1092 = vunpack.c.h.b16 %v496
    %v1093 = vunpack.c.l.b16 %v497
    %v1094 = vunpack.c.l.b16 %v498
    %v1095 = vunpack.c.h.b16 %v498
    %v1096 = vunpack.c.l.b16 %v499
    %v1097 = vunpack.c.h.b16 %v499
    %v1098 = vunpack.c.l.b16 %v500
    %v1099 = vunpack.c.h.b16 %v500
    %v1100 = vunpack.c.l.b16 %v501
    %v1101 = vunpack.c.h.b16 %v501
    %v1102 = vunpack.c.l.b16 %v502
    %v1103 = vunpack.c.l.b16 %v503
    %v1104 = vunpack.c.h.b16 %v503
    %v1105 = vunpack.c.l.b16 %v504
    %v1106 = vunpack.c.h.b16 %v504
    %v1107 = vunpack.c.l.b16 %v505
    %v1108 = vunpack.c.h.b16 %v505
    %v1109 = vunpack.c.l.b16 %v506
    %v1110 = vunpack.c.h.b16 %v506
    %v1111 = vunpack.c.l.b16 %v507
    %v1112 = vunpack.c.l.b16 %v508
    %v1113 = vunpack.c.h.b16 %v508
    %v1114 = vunpack.c.l.b16 %v509
    %v1115 = vunpack.c.h.b16 %v509
    %v1116 = vunpack.c.l.b16 %v510
    %v1117 = vunpack.c.h.b16 %v510
    %v1118 = vunpack.c.l.b16 %v511
    %v1119 = vunpack.c.h.b16 %v511
    %v1120 = vunpack.c.l.b16 %v512
    %v1121 = vunpack.c.l.b16 %v513
    %v1122 = vunpack.c.h.b16 %v513
    %v1123 = vunpack.c.l.b16 %v514
    %v1124 = vunpack.c.h.b16 %v514
    %v1125 = vunpack.c.l.b16 %v515
    %v1126 = vunpack.c.h.b16 %v515
    %v1127 = vunpack.c.l.b16 %v516
    %v1128 = vunpack.c.h.b16 %v516
    %v1129 = vunpack.c.l.b16 %v517
    %v1130 = vunpack.c.l.b16 %v518
    %v1131 = vunpack.c.h.b16 %v518
    %v1132 = vunpack.c.l.b16 %v519
    %v1133 = vunpack.c.h.b16 %v519
    %v1134 = vunpack.c.l.b16 %v520
    %v1135 = vunpack.c.h.b16 %v520
    %v1136 = vunpack.c.l.b16 %v521
    %v1137 = vunpack.c.h.b16 %v521
    %v1138 = vunpack.c.l.b16 %v522
    %v1139 = vunpack.c.l.b16 %v523
    %v1140 = vunpack.c.h.b16 %v523
    %v1141 = vunpack.c.l.b16 %v524
    %v1142 = vunpack.c.h.b16 %v524
    %v1143 = vunpack.c.l.b16 %v525
    %v1144 = vunpack.c.h.b16 %v525
    %v1145 = vunpack.c.l.b16 %v526
    %v1146 = vunpack.c.h.b16 %v526
    %v1147 = vunpack.c.l.b16 %v527
    %v1148 = vunpack.c.l.b16 %v528
    %v1149 = vunpack.c.h.b16 %v528
    %v1150 = vunpack.c.l.b16 %v529
    %v1151 = vunpack.c.h.b16 %v529
    %v1152 = vunpack.c.l.b16 %v530
    %v1153 = vunpack.c.h.b16 %v530
    %v1154 = vunpack.c.l.b16 %v531
    %v1155 = vunpack.c.h.b16 %v531
    %v1156 = vunpack.c.l.b16 %v532
    %v1157 = vunpack.c.l.b16 %v533
    %v1158 = vunpack.c.h.b16 %v533
    %v1159 = vunpack.c.l.b16 %v534
    %v1160 = vunpack.c.h.b16 %v534
    %v1161 = vunpack.c.l.b16 %v535
    %v1162 = vunpack.c.h.b16 %v535
    %v1163 = vunpack.c.l.b16 %v536
    %v1164 = vunpack.c.h.b16 %v536
    %v1165 = vunpack.c.l.b16 %v537
    %v1166 = vunpack.c.l.b16 %v538
    %v1167 = vunpack.c.h.b16 %v538
    %v1168 = vunpack.c.l.b16 %v539
    %v1169 = vunpack.c.h.b16 %v539
    %v1170 = vunpack.c.l.b16 %v540
    %v1171 = vunpack.c.h.b16 %v540
    %v1172 = vunpack.c.l.b16 %v541
    %v1173 = vunpack.c.h.b16 %v541
    %v1174 = vunpack.c.l.b16 %v542
    %v1175 = vunpack.c.l.b16 %v543
    %v1176 = vunpack.c.h.b16 %v543
    %v1177 = vunpack.c.l.b16 %v544
    %v1178 = vunpack.c.h.b16 %v544
    %v1179 = vunpack.c.l.b16 %v545
    %v1180 = vunpack.c.h.b16 %v545
    %v1181 = vunpack.c.l.b16 %v546
    %v1182 = vunpack.c.h.b16 %v546
    %v1183 = vunpack.c.l.b16 %v547
    %v1184 = vunpack.c.l.b16 %v548
    %v1185 = vunpack.c.h.b16 %v548
    %v1186 = vunpack.c.l.b16 %v549
    %v1187 = vunpack.c.h.b16 %v549
    %v1188 = vunpack.c.l.b16 %v550
    %v1189 = vunpack.c.h.b16 %v550
    %v1190 = vunpack.c.l.b16 %v551
    %v1191 = vunpack.c.h.b16 %v551
    %v1192 = vunpack.c.l.b16 %v552
    %v1193 = vunpack.c.l.b16 %v553
    %v1194 = vunpack.c.h.b16 %v553
    %v1195 = vunpack.c.l.b16 %v554
    %v1196 = vunpack.c.h.b16 %v554
    %v1197 = vunpack.c.l.b16 %v555
    %v1198 = vunpack.c.h.b16 %v555
    %v1199 = vunpack.c.l.b16 %v556
    %v1200 = vunpack.c.h.b16 %v556
    %v1201 = vunpack.c.l.b16 %v557
    %v1202 = vunpack.c.l.b16 %v558
    %v1203 = vunpack.c.h.b16 %v558
    %v1204 = vunpack.c.l.b16 %v559
    %v1205 = vunpack.c.h.b16 %v559
    %v1206 = vunpack.c.l.b16 %v560
    %v1207 = vunpack.c.h.b16 %v560
    %v1208 = vunpack.c.l.b16 %v561
    %v1209 = vunpack.c.h.b16 %v561
    %v1210 = vunpack.c.l.b16 %v562
    %v1211 = vunpack.c.l.b16 %v563
    %v1212 = vunpack.c.h.b16 %v563
    %v1213 = vunpack.c.l.b16 %v564
    %v1214 = vunpack.c.h.b16 %v564
    %v1215 = vunpack.c.l.b16 %v565
    %v1216 = vunpack.c.h.b16 %v565
    %v1217 = vunpack.c.l.b16 %v566
    %v1218 = vunpack.c.h.b16 %v566
    %v1219 = vunpack.c.l.b16 %v567
    %v1220 = vunpack.c.l.b16 %v568
    %v1221 = vunpack.c.h.b16 %v568
    %v1222 = vunpack.c.l.b16 %v569
    %v1223 = vunpack.c.h.b16 %v569
    %v1224 = vunpack.c.l.b16 %v570
    %v1225 = vunpack.c.h.b16 %v570
    %v1226 = vunpack.c.l.b16 %v571
    %v1227 = vunpack.c.h.b16 %v571
    %v1228 = vunpack.c.l.b16 %v572
    %v1229 = vunpack.c.l.b16 %v573
    %v1230 = vunpack.c.h.b16 %v573
    %v1231 = vunpack.c.l.b16 %v574
    %v1232 = vunpack.c.h.b16 %v574
    %v1233 = vunpack.c.l.b16 %v575
    %v1234 = vunpack.c.h.b16 %v575
    %v1235 = vunpack.c.l.b16 %v576
    %v1236 = vunpack.c.h.b16 %v576
    %v1237 = vunpack.c.l.b16 %v577
    %v1238 = vunpack.c.l.b16 %v578
    %v1239 = vunpack.c.h.b16 %v578
    %v1240 = vunpack.c.l.b16 %v579
    %v1241 = vunpack.c.h.b16 %v579
    %v1242 = vunpack.c.l.b16 %v580
    %v1243 = vunpack.c.h.b16 %v580
    %v1244 = vunpack.c.l.b16 %v581
    %v1245 = vunpack.c.h.b16 %v581
    %v1246 = vunpack.c.l.b16 %v582
    %v1247 = vunpack.c.l.b16 %v583
    %v1248 = vunpack.c.h.b16 %v583
    %v1249 = vunpack.c.l.b16 %v584
    %v1250 = vunpack.c.h.b16 %v584
    %v1251 = vunpack.c.l.b16 %v585
    %v1252 = vunpack.c.h.b16 %v585
    %v1253 = vunpack.c.l.b16 %v586
    %v1254 = vunpack.c.h.b16 %v586
    %v1255 = vunpack.c.l.b16 %v587
    %v1256 = vunpack.c.l.b16 %v588
    %v1257 = vunpack.c.h.b16 %v588
    %v1258 = vunpack.c.l.b16 %v589
    %v1259 = vunpack.c.h.b16 %v589
    %v1260 = vunpack.c.l.b16 %v590
    %v1261 = vunpack.c.h.b16 %v590
    %v1262 = vunpack.c.l.b16 %v591
    %v1263 = vunpack.c.h.b16 %v591
    %v1264 = vunpack.c.l.b16 %v592
    %v1265 = vpack.c.b16 %v842, %v833
    %v1266 = vpack.c.b16 %v843, %v834
    %v1267 = vpack.c.b16 %v844, %v835
    %v1268 = vpack.c.b16 %v845, %v836
    %v1269 = vpack.c.b16 %v846, %v837
    %v1270 = vpack.c.b16 %v847, %v838
    %v1271 = vpack.c.b16 %v848, %v839
    %v1272 = vpack.c.b16 %v849, %v840
    %v1273 = vpack.c.b16 %v850, %v841
    %v1274 = vpack.c.b16 %v860, %v851
    %v1275 = vpack.c.b16 %v861, %v852
    %v1276 = vpack.c.b16 %v862, %v853
    %v1277 = vpack.c.b16 %v863, %v854
    %v1278 = vpack.c.b16 %v864, %v855
    %v1279 = vpack.c.b16 %v865, %v856
    %v1280 = vpack.c.b16 %v866, %v857
    %v1281 = vpack.c.b16 %v867, %v858
    %v1282 = vpack.c.b16 %v868, %v859
    %v1283 = vpack.c.b16 %v878, %v869
    %v1284 = vpack.c.b16 %v879, %v870
    %v1285 = vpack.c.b16 %v880, %v871
    %v1286 = vpack.c.b16 %v881, %v872
    %v1287 = vpack.c.b16 %v882, %v873
    %v1288 = vpack.c.b16 %v883, %v874
    %v1289 = vpack.c.b16 %v884, %v875
    %v1290 = vpack.c.b16 %v885, %v876
    %v1291 = vpack.c.b16 %v886, %v877
    %v1292 = vpack.c.b16 %v896, %v887
    %v1293 = vpack.c.b16 %v897, %v888
    %v1294 = vpack.c.b16 %v898, %v889
    %v1295 = vpack.c.b16 %v899, %v890
    %v1296 = vpack.c.b16 %v900, %v891
    %v1297 = vpack.c.b16 %v901, %v892
    %v1298 = vpack.c.b16 %v902, %v893
    %v1299 = vpack.c.b16 %v903, %v894
    %v1300 = vpack.c.b16 %v904, %v895
    %v1301 = vpack.c.b16 %v914, %v905
    %v1302 = vpack.c.b16 %v915, %v906
    %v1303 = vpack.c.b16 %v916, %v907
    %v1304 = vpack.c.b16 %v917, %v908
    %v1305 = vpack.c.b16 %v918, %v909
    %v1306 = vpack.c.b16 %v919, %v910
    %v1307 = vpack.c.b16 %v920, %v911
    %v1308 = vpack.c.b16 %v921, %v912
    %v1309 = vpack.c.b16 %v922, %v913
    %v1310 = vpack.c.b16 %v932, %v923
    %v1311 = vpack.c.b16 %v933, %v924
    %v1312 = vpack.c.b16 %v934, %v925
    %v1313 = vpack.c.b16 %v935, %v926
    %v1314 = vpack.c.b16 %v936, %v927
    %v1315 = vpack.c.b16 %v937, %v928
    %v1316 = vpack.c.b16 %v938, %v929
    %v1317 = vpack.c.b16 %v939, %v930
    %v1318 = vpack.c.b16 %v940, %v931
    %v1319 = vpack.c.b16 %v950, %v941
    %v1320 = vpack.c.b16 %v951, %v942
    %v1321 = vpack.c.b16 %v952, %v943
    %v1322 = vpack.c.b16 %v953, %v944
    %v1323 = vpack.c.b16 %v954, %v945
    %v1324 = vpack.c.b16 %v955, %v946
    %v1325 = vpack.c.b16 %v956, %v947
    %v1326 = vpack.c.b16 %v957, %v948
    %v1327 = vpack.c.b16 %v958, %v949
    %v1328 = vpack.c.b16 %v968, %v959
    %v1329 = vpack.c.b16 %v969, %v960
    %v1330 = vpack.c.b16 %v970, %v961
    %v1331 = vpack.c.b16 %v971, %v962
    %v1332 = vpack.c.b16 %v972, %v963
    %v1333 = vpack.c.b16 %v973, %v964
    %v1334 = vpack.c.b16 %v974, %v965
    %v1335 = vpack.c.b16 %v975, %v966
    %v1336 = vpack.c.b16 %v976, %v967
    %v1337 = vpack.c.b16 %v986, %v977
    %v1338 = vpack.c.b16 %v987, %v978
    %v1339 = vpack.c.b16 %v988, %v979
    %v1340 = vpack.c.b16 %v989, %v980
    %v1341 = vpack.c.b16 %v990, %v981
    %v1342 = vpack.c.b16 %v991, %v982
    %v1343 = vpack.c.b16 %v992, %v983
    %v1344 = vpack.c.b16 %v993, %v984
    %v1345 = vpack.c.b16 %v994, %v985
    %v1346 = vpack.c.b16 %v1004, %v995
    %v1347 = vpack.c.b16 %v1005, %v996
    %v1348 = vpack.c.b16 %v1006, %v997
    %v1349 = vpack.c.b16 %v1007, %v998
    %v1350 = vpack.c.b16 %v1008, %v999
    %v1351 = vpack.c.b16 %v1009, %v1000
    %v1352 = vpack.c.b16 %v1010, %v1001
    %v1353 = vpack.c.b16 %v1011, %v1002
    %v1354 = vpack.c.b16 %v1012, %v1003
    %v1355 = vpack.c.b16 %v1022, %v1013
    %v1356 = vpack.c.b16 %v1023, %v1014
    %v1357 = vpack.c.b16 %v1024, %v1015
    %v1358 = vpack.c.b16 %v1025, %v1016
    %v1359 = vpack.c.b16 %v1026, %v1017
    %v1360 = vpack.c.b16 %v1027, %v1018
    %v1361 = vpack.c.b16 %v1028, %v1019
    %v1362 = vpack.c.b16 %v1029, %v1020
    %v1363 = vpack.c.b16 %v1030, %v1021
    %v1364 = vpack.c.b16 %v1040, %v1031
    %v1365 = vpack.c.b16 %v1041, %v1032
    %v1366 = vpack.c.b16 %v1042, %v1033
    %v1367 = vpack.c.b16 %v1043, %v1034
    %v1368 = vpack.c.b16 %v1044, %v1035
    %v1369 = vpack.c.b16 %v1045, %v1036
    %v1370 = vpack.c.b16 %v1046, %v1037
    %v1371 = vpack.c.b16 %v1047, %v1038
    %v1372 = vpack.c.b16 %v1048, %v1039
    %v1373 = vpack.c.b16 %v1058, %v1049
    %v1374 = vpack.c.b16 %v1059, %v1050
    %v1375 = vpack.c.b16 %v1060, %v1051
    %v1376 = vpack.c.b16 %v1061, %v1052
    %v1377 = vpack.c.b16 %v1062, %v1053
    %v1378 = vpack.c.b16 %v1063, %v1054
    %v1379 = vpack.c.b16 %v1064, %v1055
    %v1380 = vpack.c.b16 %v1065, %v1056
    %v1381 = vpack.c.b16 %v1066, %v1057
    %v1382 = vpack.c.b16 %v1076, %v1067
    %v1383 = vpack.c.b16 %v1077, %v1068
    %v1384 = vpack.c.b16 %v1078, %v1069
    %v1385 = vpack.c.b16 %v1079, %v1070
    %v1386 = vpack.c.b16 %v1080, %v1071
    %v1387 = vpack.c.b16 %v1081, %v1072
    %v1388 = vpack.c.b16 %v1082, %v1073
    %v1389 = vpack.c.b16 %v1083, %v1074
    %v1390 = vpack.c.b16 %v1084, %v1075
    %v1391 = vpack.c.b16 %v1094, %v1085
    %v1392 = vpack.c.b16 %v1095, %v1086
    %v1393 = vpack.c.b16 %v1096, %v1087
    %v1394 = vpack.c.b16 %v1097, %v1088
    %v1395 = vpack.c.b16 %v1098, %v1089
    %v1396 = vpack.c.b16 %v1099, %v1090
    %v1397 = vpack.c.b16 %v1100, %v1091
    %v1398 = vpack.c.b16 %v1101, %v1092
    %v1399 = vpack.c.b16 %v1102, %v1093
    %v1400 = vpack.c.b16 %v1112, %v1103
    %v1401 = vpack.c.b16 %v1113, %v1104
    %v1402 = vpack.c.b16 %v1114, %v1105
    %v1403 = vpack.c.b16 %v1115, %v1106
    %v1404 = vpack.c.b16 %v1116, %v1107
    %v1405 = vpack.c.b16 %v1117, %v1108
    %v1406 = vpack.c.b16 %v1118, %v1109
    %v1407 = vpack.c.b16 %v1119, %v1110
    %v1408 = vpack.c.b16 %v1120, %v1111
    %v1409 = vpack.c.b16 %v1130, %v1121
    %v1410 = vpack.c.b16 %v1131, %v1122
    %v1411 = vpack.c.b16 %v1132, %v1123
    %v1412 = vpack.c.b16 %v1133, %v1124
    %v1413 = vpack.c.b16 %v1134, %v1125
    %v1414 = vpack.c.b16 %v1135, %v1126
    %v1415 = vpack.c.b16 %v1136, %v1127
    %v1416 = vpack.c.b16 %v1137, %v1128
    %v1417 = vpack.c.b16 %v1138, %v1129
    %v1418 = vpack.c.b16 %v1148, %v1139
    %v1419 = vpack.c.b16 %v1149, %v1140
    %v1420 = vpack.c.b16 %v1150, %v1141
    %v1421 = vpack.c.b16 %v1151, %v1142
    %v1422 = vpack.c.b16 %v1152, %v1143
    %v1423 = vpack.c.b16 %v1153, %v1144
    %v1424 = vpack.c.b16 %v1154, %v1145
    %v1425 = vpack.c.b16 %v1155, %v1146
    %v1426 = vpack.c.b16 %v1156, %v1147
    %v1427 = vpack.c.b16 %v1166, %v1157
    %v1428 = vpack.c.b16 %v1167, %v1158
    %v1429 = vpack.c.b16 %v1168, %v1159
    %v1430 = vpack.c.b16 %v1169, %v1160
    %v1431 = vpack.c.b16 %v1170, %v1161
    %v1432 = vpack.c.b16 %v1171, %v1162
    %v1433 = vpack.c.b16 %v1172, %v1163
    %v1434 = vpack.c.b16 %v1173, %v1164
    %v1435 = vpack.c.b16 %v1174, %v1165
    %v1436 = vpack.c.b16 %v1184, %v1175
    %v1437 = vpack.c.b16 %v1185, %v1176
    %v1438 = vpack.c.b16 %v1186, %v1177
    %v1439 = vpack.c.b16 %v1187, %v1178
    %v1440 = vpack.c.b16 %v1188, %v1179
    %v1441 = vpack.c.b16 %v1189, %v1180
    %v1442 = vpack.c.b16 %v1190, %v1181
    %v1443 = vpack.c.b16 %v1191, %v1182
    %v1444 = vpack.c.b16 %v1192, %v1183
    %v1445 = vpack.c.b16 %v1202, %v1193
    %v1446 = vpack.c.b16 %v1203, %v1194
    %v1447 = vpack.c.b16 %v1204, %v1195
    %v1448 = vpack.c.b16 %v1205, %v1196
    %v1449 = vpack.c.b16 %v1206, %v1197
    %v1450 = vpack.c.b16 %v1207, %v1198
    %v1451 = vpack.c.b16 %v1208, %v1199
    %v1452 = vpack.c.b16 %v1209, %v1200
    %v1453 = vpack.c.b16 %v1210, %v1201
    %v1454 = vpack.c.b16 %v1220, %v1211
    %v1455 = vpack.c.b16 %v1221, %v1212
    %v1456 = vpack.c.b16 %v1222, %v1213
    %v1457 = vpack.c.b16 %v1223, %v1214
    %v1458 = vpack.c.b16 %v1224, %v1215
    %v1459 = vpack.c.b16 %v1225, %v1216
    %v1460 = vpack.c.b16 %v1226, %v1217
    %v1461 = vpack.c.b16 %v1227, %v1218
    %v1462 = vpack.c.b16 %v1228, %v1219
    %v1463 = vpack.c.b16 %v1238, %v1229
    %v1464 = vpack.c.b16 %v1239, %v1230
    %v1465 = vpack.c.b16 %v1240, %v1231
    %v1466 = vpack.c.b16 %v1241, %v1232
    %v1467 = vpack.c.b16 %v1242, %v1233
    %v1468 = vpack.c.b16 %v1243, %v1234
    %v1469 = vpack.c.b16 %v1244, %v1235
    %v1470 = vpack.c.b16 %v1245, %v1236
    %v1471 = vpack.c.b16 %v1246, %v1237
    %v1472 = vpack.c.b16 %v1256, %v1247
    %v1473 = vpack.c.b16 %v1257, %v1248
    %v1474 = vpack.c.b16 %v1258, %v1249
    %v1475 = vpack.c.b16 %v1259, %v1250
    %v1476 = vpack.c.b16 %v1260, %v1251
    %v1477 = vpack.c.b16 %v1261, %v1252
    %v1478 = vpack.c.b16 %v1262, %v1253
    %v1479 = vpack.c.b16 %v1263, %v1254
    %v1480 = vpack.c.b16 %v1264, %v1255
    %1697 = vmatprep.subr.bf16.mxu0 %v1266
    %1698 = vmatpush1.bf16.msra.mxu0 %v1265
    %1699 = vmatprep.subr.bf16.mxu0 %v1275
    %1700 = vmatpush1.bf16.msra.mxu0 %v1274
    %1701 = vmatprep.subr.bf16.mxu0 %v1284
    %1702 = vmatpush1.bf16.msra.mxu0 %v1283
    %1703 = vmatprep.subr.bf16.mxu0 %v1293
    %1704 = vmatpush1.bf16.msra.mxu0 %v1292
    %1705 = vmatprep.subr.bf16.mxu0 %v1302
    %1706 = vmatpush1.bf16.msra.mxu0 %v1301
    %1707 = vmatprep.subr.bf16.mxu0 %v1311
    %1708 = vmatpush1.bf16.msra.mxu0 %v1310
    %1709 = vmatprep.subr.bf16.mxu0 %v1320
    %1710 = vmatpush1.bf16.msra.mxu0 %v1319
    %1711 = vmatprep.subr.bf16.mxu0 %v1329
    %1712 = vmatpush1.bf16.msra.mxu0 %v1328
    %1713 = vmatprep.subr.bf16.mxu0 %v1338
    %1714 = vmatpush1.bf16.msra.mxu0 %v1337
    %1715 = vmatprep.subr.bf16.mxu0 %v1347
    %1716 = vmatpush1.bf16.msra.mxu0 %v1346
    %1717 = vmatprep.subr.bf16.mxu0 %v1356
    %1718 = vmatpush1.bf16.msra.mxu0 %v1355
    %1719 = vmatprep.subr.bf16.mxu0 %v1365
    %1720 = vmatpush1.bf16.msra.mxu0 %v1364
    %1721 = vmatprep.subr.bf16.mxu0 %v1374
    %1722 = vmatpush1.bf16.msra.mxu0 %v1373
    %1723 = vmatprep.subr.bf16.mxu0 %v1383
    %1724 = vmatpush1.bf16.msra.mxu0 %v1382
    %1725 = vmatprep.subr.bf16.mxu0 %v1392
    %1726 = vmatpush1.bf16.msra.mxu0 %v1391
    %1727 = vmatprep.subr.bf16.mxu0 %v1401
    %1728 = vmatpush1.bf16.msra.mxu0 %v1400
    %1729 = vmatprep.mubr.bf16.mxu0 %v348
    %1730 = vmatmul.mubr.bf16.gmra.mrb[0].mxu0 %v347
    %v1731 = vpop.f32.mrb[0].mxu0
    %v1732 = vadd.f32 0.0, %v1731
    %v1733 = vpop.f32.mrb[0].mxu0
    %v1734 = vadd.f32 0.0, %v1733
    %v1735 = vpop.f32.mrb[0].mxu0
    %v1736 = vadd.f32 0.0, %v1735
    %v1737 = vpop.f32.mrb[0].mxu0
    %v1738 = vadd.f32 0.0, %v1737
    %1739 = vmatprep.mubr.bf16.mxu0 %v351
    %1740 = vmatmul.mubr.bf16.gmra.mrb[0].mxu0 %v350
    %v1741 = vpop.f32.mrb[0].mxu0
    %v1742 = vadd.f32 0.0, %v1741
    %v1743 = vpop.f32.mrb[0].mxu0
    %v1744 = vadd.f32 0.0, %v1743
    %v1745 = vpop.f32.mrb[0].mxu0
    %v1746 = vadd.f32 0.0, %v1745
    %v1747 = vpop.f32.mrb[0].mxu0
    %v1748 = vadd.f32 0.0, %v1747
    %1749 = vdwg.mxu0
    %1750 = vmatprep.subr.bf16.mxu0 %v1410
    %1751 = vmatpush1.bf16.msra.mxu0 %v1409
    %1752 = vmatprep.subr.bf16.mxu0 %v1419
    %1753 = vmatpush1.bf16.msra.mxu0 %v1418
    %1754 = vmatprep.subr.bf16.mxu0 %v1428
    %1755 = vmatpush1.bf16.msra.mxu0 %v1427
    %1756 = vmatprep.subr.bf16.mxu0 %v1437
    %1757 = vmatpush1.bf16.msra.mxu0 %v1436
    %1758 = vmatprep.subr.bf16.mxu0 %v1446
    %1759 = vmatpush1.bf16.msra.mxu0 %v1445
    %1760 = vmatprep.subr.bf16.mxu0 %v1455
    %1761 = vmatpush1.bf16.msra.mxu0 %v1454
    %1762 = vmatprep.subr.bf16.mxu0 %v1464
    %1763 = vmatpush1.bf16.msra.mxu0 %v1463
    %1764 = vmatprep.subr.bf16.mxu0 %v1473
    %1765 = vmatpush1.bf16.msra.mxu0 %v1472
    %1766 = vmatprep.subr.bf16.mxu0 0
    %1767 = vmatpush1.bf16.msra.mxu0 0
    %1768 = vmatprep.subr.bf16.mxu0 0
    %1769 = vmatpush1.bf16.msra.mxu0 0
    %1770 = vmatprep.subr.bf16.mxu0 0
    %1771 = vmatpush1.bf16.msra.mxu0 0
    %1772 = vmatprep.subr.bf16.mxu0 0
    %1773 = vmatpush1.bf16.msra.mxu0 0
    %1774 = vmatprep.subr.bf16.mxu0 0
    %1775 = vmatpush1.bf16.msra.mxu0 0
    %1776 = vmatprep.subr.bf16.mxu0 0
    %1777 = vmatpush1.bf16.msra.mxu0 0
    %1778 = vmatprep.subr.bf16.mxu0 0
    %1779 = vmatpush1.bf16.msra.mxu0 0
    %1780 = vmatprep.subr.bf16.mxu0 0
    %1781 = vmatpush1.bf16.msra.mxu0 0
    %1782 = vmatprep.mubr.bf16.mxu0 0
    %1783 = vmatmul.mubr.bf16.gmra.mrb[0].mxu0 %v349
    %v1784 = vpop.f32.mrb[0].mxu0
    %v1785 = vadd.f32 %v1732, %v1784
    %v1786 = vpop.f32.mrb[0].mxu0
    %v1787 = vadd.f32 %v1734, %v1786
    %v1788 = vpop.f32.mrb[0].mxu0
    %v1789 = vadd.f32 %v1736, %v1788
    %v1790 = vpop.f32.mrb[0].mxu0
    %v1791 = vadd.f32 %v1738, %v1790
    %1792 = vmatprep.mubr.bf16.mxu0 0
    %1793 = vmatmul.mubr.bf16.gmra.mrb[0].mxu0 %v352
    %v1794 = vpop.f32.mrb[0].mxu0
    %v1795 = vadd.f32 %v1742, %v1794
    %v1796 = vpop.f32.mrb[0].mxu0
    %v1797 = vadd.f32 %v1744, %v1796
    %v1798 = vpop.f32.mrb[0].mxu0
    %v1799 = vadd.f32 %v1746, %v1798
    %v1800 = vpop.f32.mrb[0].mxu0
    %v1801 = vadd.f32 %v1748, %v1800
    %1802 = vdwg.mxu0
    %1803 = vmatprep.subr.bf16.mxu0 %v1268
    %1804 = vmatpush1.bf16.msra.mxu0 %v1267
    %1805 = vmatprep.subr.bf16.mxu0 %v1277
    %1806 = vmatpush1.bf16.msra.mxu0 %v1276
    %1807 = vmatprep.subr.bf16.mxu0 %v1286
    %1808 = vmatpush1.bf16.msra.mxu0 %v1285
    %1809 = vmatprep.subr.bf16.mxu0 %v1295
    %1810 = vmatpush1.bf16.msra.mxu0 %v1294
    %1811 = vmatprep.subr.bf16.mxu0 %v1304
    %1812 = vmatpush1.bf16.msra.mxu0 %v1303
    %1813 = vmatprep.subr.bf16.mxu0 %v1313
    %1814 = vmatpush1.bf16.msra.mxu0 %v1312
    %1815 = vmatprep.subr.bf16.mxu0 %v1322
    %1816 = vmatpush1.bf16.msra.mxu0 %v1321
    %1817 = vmatprep.subr.bf16.mxu0 %v1331
    %1818 = vmatpush1.bf16.msra.mxu0 %v1330
    %1819 = vmatprep.subr.bf16.mxu0 %v1340
    %1820 = vmatpush1.bf16.msra.mxu0 %v1339
    %1821 = vmatprep.subr.bf16.mxu0 %v1349
    %1822 = vmatpush1.bf16.msra.mxu0 %v1348
    %1823 = vmatprep.subr.bf16.mxu0 %v1358
    %1824 = vmatpush1.bf16.msra.mxu0 %v1357
    %1825 = vmatprep.subr.bf16.mxu0 %v1367
    %1826 = vmatpush1.bf16.msra.mxu0 %v1366
    %1827 = vmatprep.subr.bf16.mxu0 %v1376
    %1828 = vmatpush1.bf16.msra.mxu0 %v1375
    %1829 = vmatprep.subr.bf16.mxu0 %v1385
    %1830 = vmatpush1.bf16.msra.mxu0 %v1384
    %1831 = vmatprep.subr.bf16.mxu0 %v1394
    %1832 = vmatpush1.bf16.msra.mxu0 %v1393
    %1833 = vmatprep.subr.bf16.mxu0 %v1403
    %1834 = vmatpush1.bf16.msra.mxu0 %v1402
    %1835 = vmatprep.mubr.bf16.mxu0 %v348
    %1836 = vmatmul.mubr.bf16.gmra.mrb[0].mxu0 %v347
    %v1837 = vpop.f32.mrb[0].mxu0
    %v1838 = vadd.f32 0.0, %v1837
    %v1839 = vpop.f32.mrb[0].mxu0
    %v1840 = vadd.f32 0.0, %v1839
    %v1841 = vpop.f32.mrb[0].mxu0
    %v1842 = vadd.f32 0.0, %v1841
    %v1843 = vpop.f32.mrb[0].mxu0
    %v1844 = vadd.f32 0.0, %v1843
    %1845 = vmatprep.mubr.bf16.mxu0 %v351
    %1846 = vmatmul.mubr.bf16.gmra.mrb[0].mxu0 %v350
    %v1847 = vpop.f32.mrb[0].mxu0
    %v1848 = vadd.f32 0.0, %v1847
    %v1849 = vpop.f32.mrb[0].mxu0
    %v1850 = vadd.f32 0.0, %v1849
    %v1851 = vpop.f32.mrb[0].mxu0
    %v1852 = vadd.f32 0.0, %v1851
    %v1853 = vpop.f32.mrb[0].mxu0
    %v1854 = vadd.f32 0.0, %v1853
    %1855 = vdwg.mxu0
    %1856 = vmatprep.subr.bf16.mxu0 %v1412
    %1857 = vmatpush1.bf16.msra.mxu0 %v1411
    %1858 = vmatprep.subr.bf16.mxu0 %v1421
    %1859 = vmatpush1.bf16.msra.mxu0 %v1420
    %1860 = vmatprep.subr.bf16.mxu0 %v1430
    %1861 = vmatpush1.bf16.msra.mxu0 %v1429
    %1862 = vmatprep.subr.bf16.mxu0 %v1439
    %1863 = vmatpush1.bf16.msra.mxu0 %v1438
    %1864 = vmatprep.subr.bf16.mxu0 %v1448
    %1865 = vmatpush1.bf16.msra.mxu0 %v1447
    %1866 = vmatprep.subr.bf16.mxu0 %v1457
    %1867 = vmatpush1.bf16.msra.mxu0 %v1456
    %1868 = vmatprep.subr.bf16.mxu0 %v1466
    %1869 = vmatpush1.bf16.msra.mxu0 %v1465
    %1870 = vmatprep.subr.bf16.mxu0 %v1475
    %1871 = vmatpush1.bf16.msra.mxu0 %v1474
    %1872 = vmatprep.subr.bf16.mxu0 0
    %1873 = vmatpush1.bf16.msra.mxu0 0
    %1874 = vmatprep.subr.bf16.mxu0 0
    %1875 = vmatpush1.bf16.msra.mxu0 0
    %1876 = vmatprep.subr.bf16.mxu0 0
    %1877 = vmatpush1.bf16.msra.mxu0 0
    %1878 = vmatprep.subr.bf16.mxu0 0
    %1879 = vmatpush1.bf16.msra.mxu0 0
    %1880 = vmatprep.subr.bf16.mxu0 0
    %1881 = vmatpush1.bf16.msra.mxu0 0
    %1882 = vmatprep.subr.bf16.mxu0 0
    %1883 = vmatpush1.bf16.msra.mxu0 0
    %1884 = vmatprep.subr.bf16.mxu0 0
    %1885 = vmatpush1.bf16.msra.mxu0 0
    %1886 = vmatprep.subr.bf16.mxu0 0
    %1887 = vmatpush1.bf16.msra.mxu0 0
    %1888 = vmatprep.mubr.bf16.mxu0 0
    %1889 = vmatmul.mubr.bf16.gmra.mrb[0].mxu0 %v349
    %v1890 = vpop.f32.mrb[0].mxu0
    %v1891 = vadd.f32 %v1838, %v1890
    %v1892 = vpop.f32.mrb[0].mxu0
    %v1893 = vadd.f32 %v1840, %v1892
    %v1894 = vpop.f32.mrb[0].mxu0
    %v1895 = vadd.f32 %v1842, %v1894
    %v1896 = vpop.f32.mrb[0].mxu0
    %v1897 = vadd.f32 %v1844, %v1896
    %1898 = vmatprep.mubr.bf16.mxu0 0
    %1899 = vmatmul.mubr.bf16.gmra.mrb[0].mxu0 %v352
    %v1900 = vpop.f32.mrb[0].mxu0
    %v1901 = vadd.f32 %v1848, %v1900
    %v1902 = vpop.f32.mrb[0].mxu0
    %v1903 = vadd.f32 %v1850, %v1902
    %v1904 = vpop.f32.mrb[0].mxu0
    %v1905 = vadd.f32 %v1852, %v1904
    %v1906 = vpop.f32.mrb[0].mxu0
    %v1907 = vadd.f32 %v1854, %v1906
    %1908 = vdwg.mxu0
    %1909 = vmatprep.subr.bf16.mxu0 %v1270
    %1910 = vmatpush1.bf16.msra.mxu0 %v1269
    %1911 = vmatprep.subr.bf16.mxu0 %v1279
    %1912 = vmatpush1.bf16.msra.mxu0 %v1278
    %1913 = vmatprep.subr.bf16.mxu0 %v1288
    %1914 = vmatpush1.bf16.msra.mxu0 %v1287
    %1915 = vmatprep.subr.bf16.mxu0 %v1297
    %1916 = vmatpush1.bf16.msra.mxu0 %v1296
    %1917 = vmatprep.subr.bf16.mxu0 %v1306
    %1918 = vmatpush1.bf16.msra.mxu0 %v1305
    %1919 = vmatprep.subr.bf16.mxu0 %v1315
    %1920 = vmatpush1.bf16.msra.mxu0 %v1314
    %1921 = vmatprep.subr.bf16.mxu0 %v1324
    %1922 = vmatpush1.bf16.msra.mxu0 %v1323
    %1923 = vmatprep.subr.bf16.mxu0 %v1333
    %1924 = vmatpush1.bf16.msra.mxu0 %v1332
    %1925 = vmatprep.subr.bf16.mxu0 %v1342
    %1926 = vmatpush1.bf16.msra.mxu0 %v1341
    %1927 = vmatprep.subr.bf16.mxu0 %v1351
    %1928 = vmatpush1.bf16.msra.mxu0 %v1350
    %1929 = vmatprep.subr.bf16.mxu0 %v1360
    %1930 = vmatpush1.bf16.msra.mxu0 %v1359
    %1931 = vmatprep.subr.bf16.mxu0 %v1369
    %1932 = vmatpush1.bf16.msra.mxu0 %v1368
    %1933 = vmatprep.subr.bf16.mxu0 %v1378
    %1934 = vmatpush1.bf16.msra.mxu0 %v1377
    %1935 = vmatprep.subr.bf16.mxu0 %v1387
    %1936 = vmatpush1.bf16.msra.mxu0 %v1386
    %1937 = vmatprep.subr.bf16.mxu0 %v1396
    %1938 = vmatpush1.bf16.msra.mxu0 %v1395
    %1939 = vmatprep.subr.bf16.mxu0 %v1405
    %1940 = vmatpush1.bf16.msra.mxu0 %v1404
    %1941 = vmatprep.mubr.bf16.mxu0 %v348
    %1942 = vmatmul.mubr.bf16.gmra.mrb[0].mxu0 %v347
    %v1943 = vpop.f32.mrb[0].mxu0
    %v1944 = vadd.f32 0.0, %v1943
    %v1945 = vpop.f32.mrb[0].mxu0
    %v1946 = vadd.f32 0.0, %v1945
    %v1947 = vpop.f32.mrb[0].mxu0
    %v1948 = vadd.f32 0.0, %v1947
    %v1949 = vpop.f32.mrb[0].mxu0
    %v1950 = vadd.f32 0.0, %v1949
    %1951 = vmatprep.mubr.bf16.mxu0 %v351
    %1952 = vmatmul.mubr.bf16.gmra.mrb[0].mxu0 %v350
    %v1953 = vpop.f32.mrb[0].mxu0
    %v1954 = vadd.f32 0.0, %v1953
    %v1955 = vpop.f32.mrb[0].mxu0
    %v1956 = vadd.f32 0.0, %v1955
    %v1957 = vpop.f32.mrb[0].mxu0
    %v1958 = vadd.f32 0.0, %v1957
    %v1959 = vpop.f32.mrb[0].mxu0
    %v1960 = vadd.f32 0.0, %v1959
    %1961 = vdwg.mxu0
    %1962 = vmatprep.subr.bf16.mxu0 %v1414
    %1963 = vmatpush1.bf16.msra.mxu0 %v1413
    %1964 = vmatprep.subr.bf16.mxu0 %v1423
    %1965 = vmatpush1.bf16.msra.mxu0 %v1422
    %1966 = vmatprep.subr.bf16.mxu0 %v1432
    %1967 = vmatpush1.bf16.msra.mxu0 %v1431
    %1968 = vmatprep.subr.bf16.mxu0 %v1441
    %1969 = vmatpush1.bf16.msra.mxu0 %v1440
    %1970 = vmatprep.subr.bf16.mxu0 %v1450
    %1971 = vmatpush1.bf16.msra.mxu0 %v1449
    %1972 = vmatprep.subr.bf16.mxu0 %v1459
    %1973 = vmatpush1.bf16.msra.mxu0 %v1458
    %1974 = vmatprep.subr.bf16.mxu0 %v1468
    %1975 = vmatpush1.bf16.msra.mxu0 %v1467
    %1976 = vmatprep.subr.bf16.mxu0 %v1477
    %1977 = vmatpush1.bf16.msra.mxu0 %v1476
    %1978 = vmatprep.subr.bf16.mxu0 0
    %1979 = vmatpush1.bf16.msra.mxu0 0
    %1980 = vmatprep.subr.bf16.mxu0 0
    %1981 = vmatpush1.bf16.msra.mxu0 0
    %1982 = vmatprep.subr.bf16.mxu0 0
    %1983 = vmatpush1.bf16.msra.mxu0 0
    %1984 = vmatprep.subr.bf16.mxu0 0
    %1985 = vmatpush1.bf16.msra.mxu0 0
    %1986 = vmatprep.subr.bf16.mxu0 0
    %1987 = vmatpush1.bf16.msra.mxu0 0
    %1988 = vmatprep.subr.bf16.mxu0 0
    %1989 = vmatpush1.bf16.msra.mxu0 0
    %1990 = vmatprep.subr.bf16.mxu0 0
    %1991 = vmatpush1.bf16.msra.mxu0 0
    %1992 = vmatprep.subr.bf16.mxu0 0
    %1993 = vmatpush1.bf16.msra.mxu0 0
    %1994 = vmatprep.mubr.bf16.mxu0 0
    %1995 = vmatmul.mubr.bf16.gmra.mrb[0].mxu0 %v349
    %v1996 = vpop.f32.mrb[0].mxu0
    %v1997 = vadd.f32 %v1944, %v1996
    %v1998 = vpop.f32.mrb[0].mxu0
    %v1999 = vadd.f32 %v1946, %v1998
    %v2000 = vpop.f32.mrb[0].mxu0
    %v2001 = vadd.f32 %v1948, %v2000
    %v2002 = vpop.f32.mrb[0].mxu0
    %v2003 = vadd.f32 %v1950, %v2002
    %2004 = vmatprep.mubr.bf16.mxu0 0
    %2005 = vmatmul.mubr.bf16.gmra.mrb[0].mxu0 %v352
    %v2006 = vpop.f32.mrb[0].mxu0
    %v2007 = vadd.f32 %v1954, %v2006
    %v2008 = vpop.f32.mrb[0].mxu0
    %v2009 = vadd.f32 %v1956, %v2008
    %v2010 = vpop.f32.mrb[0].mxu0
    %v2011 = vadd.f32 %v1958, %v2010
    %v2012 = vpop.f32.mrb[0].mxu0
    %v2013 = vadd.f32 %v1960, %v2012
    %2014 = vdwg.mxu0
    %2015 = vmatprep.subr.bf16.mxu0 %v1272
    %2016 = vmatpush1.bf16.msra.mxu0 %v1271
    %2017 = vmatprep.subr.bf16.mxu0 %v1281
    %2018 = vmatpush1.bf16.msra.mxu0 %v1280
    %2019 = vmatprep.subr.bf16.mxu0 %v1290
    %2020 = vmatpush1.bf16.msra.mxu0 %v1289
    %2021 = vmatprep.subr.bf16.mxu0 %v1299
    %2022 = vmatpush1.bf16.msra.mxu0 %v1298
    %2023 = vmatprep.subr.bf16.mxu0 %v1308
    %2024 = vmatpush1.bf16.msra.mxu0 %v1307
    %2025 = vmatprep.subr.bf16.mxu0 %v1317
    %2026 = vmatpush1.bf16.msra.mxu0 %v1316
    %2027 = vmatprep.subr.bf16.mxu0 %v1326
    %2028 = vmatpush1.bf16.msra.mxu0 %v1325
    %2029 = vmatprep.subr.bf16.mxu0 %v1335
    %2030 = vmatpush1.bf16.msra.mxu0 %v1334
    %2031 = vmatprep.subr.bf16.mxu0 %v1344
    %2032 = vmatpush1.bf16.msra.mxu0 %v1343
    %2033 = vmatprep.subr.bf16.mxu0 %v1353
    %2034 = vmatpush1.bf16.msra.mxu0 %v1352
    %2035 = vmatprep.subr.bf16.mxu0 %v1362
    %2036 = vmatpush1.bf16.msra.mxu0 %v1361
    %2037 = vmatprep.subr.bf16.mxu0 %v1371
    %2038 = vmatpush1.bf16.msra.mxu0 %v1370
    %2039 = vmatprep.subr.bf16.mxu0 %v1380
    %2040 = vmatpush1.bf16.msra.mxu0 %v1379
    %2041 = vmatprep.subr.bf16.mxu0 %v1389
    %2042 = vmatpush1.bf16.msra.mxu0 %v1388
    %2043 = vmatprep.subr.bf16.mxu0 %v1398
    %2044 = vmatpush1.bf16.msra.mxu0 %v1397
    %2045 = vmatprep.subr.bf16.mxu0 %v1407
    %2046 = vmatpush1.bf16.msra.mxu0 %v1406
    %2047 = vmatprep.mubr.bf16.mxu0 %v348
    %2048 = vmatmul.mubr.bf16.gmra.mrb[0].mxu0 %v347
    %v2049 = vpop.f32.mrb[0].mxu0
    %v2050 = vadd.f32 0.0, %v2049
    %v2051 = vpop.f32.mrb[0].mxu0
    %v2052 = vadd.f32 0.0, %v2051
    %v2053 = vpop.f32.mrb[0].mxu0
    %v2054 = vadd.f32 0.0, %v2053
    %v2055 = vpop.f32.mrb[0].mxu0
    %v2056 = vadd.f32 0.0, %v2055
    %2057 = vmatprep.mubr.bf16.mxu0 %v351
    %2058 = vmatmul.mubr.bf16.gmra.mrb[0].mxu0 %v350
    %v2059 = vpop.f32.mrb[0].mxu0
    %v2060 = vadd.f32 0.0, %v2059
    %v2061 = vpop.f32.mrb[0].mxu0
    %v2062 = vadd.f32 0.0, %v2061
    %v2063 = vpop.f32.mrb[0].mxu0
    %v2064 = vadd.f32 0.0, %v2063
    %v2065 = vpop.f32.mrb[0].mxu0
    %v2066 = vadd.f32 0.0, %v2065
    %2067 = vdwg.mxu0
    %2068 = vmatprep.subr.bf16.mxu0 %v1416
    %2069 = vmatpush1.bf16.msra.mxu0 %v1415
    %2070 = vmatprep.subr.bf16.mxu0 %v1425
    %2071 = vmatpush1.bf16.msra.mxu0 %v1424
    %2072 = vmatprep.subr.bf16.mxu0 %v1434
    %2073 = vmatpush1.bf16.msra.mxu0 %v1433
    %2074 = vmatprep.subr.bf16.mxu0 %v1443
    %2075 = vmatpush1.bf16.msra.mxu0 %v1442
    %2076 = vmatprep.subr.bf16.mxu0 %v1452
    %2077 = vmatpush1.bf16.msra.mxu0 %v1451
    %2078 = vmatprep.subr.bf16.mxu0 %v1461
    %2079 = vmatpush1.bf16.msra.mxu0 %v1460
    %2080 = vmatprep.subr.bf16.mxu0 %v1470
    %2081 = vmatpush1.bf16.msra.mxu0 %v1469
    %2082 = vmatprep.subr.bf16.mxu0 %v1479
    %2083 = vmatpush1.bf16.msra.mxu0 %v1478
    %2084 = vmatprep.subr.bf16.mxu0 0
    %2085 = vmatpush1.bf16.msra.mxu0 0
    %2086 = vmatprep.subr.bf16.mxu0 0
    %2087 = vmatpush1.bf16.msra.mxu0 0
    %2088 = vmatprep.subr.bf16.mxu0 0
    %2089 = vmatpush1.bf16.msra.mxu0 0
    %2090 = vmatprep.subr.bf16.mxu0 0
    %2091 = vmatpush1.bf16.msra.mxu0 0
    %2092 = vmatprep.subr.bf16.mxu0 0
    %2093 = vmatpush1.bf16.msra.mxu0 0
    %2094 = vmatprep.subr.bf16.mxu0 0
    %2095 = vmatpush1.bf16.msra.mxu0 0
    %2096 = vmatprep.subr.bf16.mxu0 0
    %2097 = vmatpush1.bf16.msra.mxu0 0
    %2098 = vmatprep.subr.bf16.mxu0 0
    %2099 = vmatpush1.bf16.msra.mxu0 0
    %2100 = vmatprep.mubr.bf16.mxu0 0
    %2101 = vmatmul.mubr.bf16.gmra.mrb[0].mxu0 %v349
    %v2102 = vpop.f32.mrb[0].mxu0
    %v2103 = vadd.f32 %v2050, %v2102
    %v2104 = vpop.f32.mrb[0].mxu0
    %v2105 = vadd.f32 %v2052, %v2104
    %v2106 = vpop.f32.mrb[0].mxu0
    %v2107 = vadd.f32 %v2054, %v2106
    %v2108 = vpop.f32.mrb[0].mxu0
    %v2109 = vadd.f32 %v2056, %v2108
    %2110 = vmatprep.mubr.bf16.mxu0 0
    %2111 = vmatmul.mubr.bf16.gmra.mrb[0].mxu0 %v352
    %v2112 = vpop.f32.mrb[0].mxu0
    %v2113 = vadd.f32 %v2060, %v2112
    %v2114 = vpop.f32.mrb[0].mxu0
    %v2115 = vadd.f32 %v2062, %v2114
    %v2116 = vpop.f32.mrb[0].mxu0
    %v2117 = vadd.f32 %v2064, %v2116
    %v2118 = vpop.f32.mrb[0].mxu0
    %v2119 = vadd.f32 %v2066, %v2118
    %2120 = vdwg.mxu0
    %2121 = vmatprep.subr.bf16.mxu0 0
    %2122 = vmatpush1.bf16.msra.mxu0 %v1273
    %2123 = vmatprep.subr.bf16.mxu0 0
    %2124 = vmatpush1.bf16.msra.mxu0 %v1282
    %2125 = vmatprep.subr.bf16.mxu0 0
    %2126 = vmatpush1.bf16.msra.mxu0 %v1291
    %2127 = vmatprep.subr.bf16.mxu0 0
    %2128 = vmatpush1.bf16.msra.mxu0 %v1300
    %2129 = vmatprep.subr.bf16.mxu0 0
    %2130 = vmatpush1.bf16.msra.mxu0 %v1309
    %2131 = vmatprep.subr.bf16.mxu0 0
    %2132 = vmatpush1.bf16.msra.mxu0 %v1318
    %2133 = vmatprep.subr.bf16.mxu0 0
    %2134 = vmatpush1.bf16.msra.mxu0 %v1327
    %2135 = vmatprep.subr.bf16.mxu0 0
    %2136 = vmatpush1.bf16.msra.mxu0 %v1336
    %2137 = vmatprep.subr.bf16.mxu0 0
    %2138 = vmatpush1.bf16.msra.mxu0 %v1345
    %2139 = vmatprep.subr.bf16.mxu0 0
    %2140 = vmatpush1.bf16.msra.mxu0 %v1354
    %2141 = vmatprep.subr.bf16.mxu0 0
    %2142 = vmatpush1.bf16.msra.mxu0 %v1363
    %2143 = vmatprep.subr.bf16.mxu0 0
    %2144 = vmatpush1.bf16.msra.mxu0 %v1372
    %2145 = vmatprep.subr.bf16.mxu0 0
    %2146 = vmatpush1.bf16.msra.mxu0 %v1381
    %2147 = vmatprep.subr.bf16.mxu0 0
    %2148 = vmatpush1.bf16.msra.mxu0 %v1390
    %2149 = vmatprep.subr.bf16.mxu0 0
    %2150 = vmatpush1.bf16.msra.mxu0 %v1399
    %2151 = vmatprep.subr.bf16.mxu0 0
    %2152 = vmatpush1.bf16.msra.mxu0 %v1408
    %2153 = vmatprep.mubr.bf16.mxu0 %v348
    %2154 = vmatmul.mubr.bf16.gmra.mrb[0].mxu0 %v347
    %v2155 = vpop.f32.mrb[0].mxu0
    %v2156 = vadd.f32 0.0, %v2155
    %v2157 = vpop.f32.mrb[0].mxu0
    %v2158 = vpop.f32.mrb[0].mxu0
    %v2159 = vadd.f32 0.0, %v2158
    %v2160 = vpop.f32.mrb[0].mxu0
    %2161 = vmatprep.mubr.bf16.mxu0 %v351
    %2162 = vmatmul.mubr.bf16.gmra.mrb[0].mxu0 %v350
    %v2163 = vpop.f32.mrb[0].mxu0
    %v2164 = vadd.f32 0.0, %v2163
    %v2165 = vpop.f32.mrb[0].mxu0
    %v2166 = vpop.f32.mrb[0].mxu0
    %v2167 = vadd.f32 0.0, %v2166
    %v2168 = vpop.f32.mrb[0].mxu0
    %2169 = vdwg.mxu0
    %2170 = vmatprep.subr.bf16.mxu0 0
    %2171 = vmatpush1.bf16.msra.mxu0 %v1417
    %2172 = vmatprep.subr.bf16.mxu0 0
    %2173 = vmatpush1.bf16.msra.mxu0 %v1426
    %2174 = vmatprep.subr.bf16.mxu0 0
    %2175 = vmatpush1.bf16.msra.mxu0 %v1435
    %2176 = vmatprep.subr.bf16.mxu0 0
    %2177 = vmatpush1.bf16.msra.mxu0 %v1444
    %2178 = vmatprep.subr.bf16.mxu0 0
    %2179 = vmatpush1.bf16.msra.mxu0 %v1453
    %2180 = vmatprep.subr.bf16.mxu0 0
    %2181 = vmatpush1.bf16.msra.mxu0 %v1462
    %2182 = vmatprep.subr.bf16.mxu0 0
    %2183 = vmatpush1.bf16.msra.mxu0 %v1471
    %2184 = vmatprep.subr.bf16.mxu0 0
    %2185 = vmatpush1.bf16.msra.mxu0 %v1480
    %2186 = vmatprep.subr.bf16.mxu0 0
    %2187 = vmatpush1.bf16.msra.mxu0 0
    %2188 = vmatprep.subr.bf16.mxu0 0
    %2189 = vmatpush1.bf16.msra.mxu0 0
    %2190 = vmatprep.subr.bf16.mxu0 0
    %2191 = vmatpush1.bf16.msra.mxu0 0
    %2192 = vmatprep.subr.bf16.mxu0 0
    %2193 = vmatpush1.bf16.msra.mxu0 0
    %2194 = vmatprep.subr.bf16.mxu0 0
    %2195 = vmatpush1.bf16.msra.mxu0 0
    %2196 = vmatprep.subr.bf16.mxu0 0
    %2197 = vmatpush1.bf16.msra.mxu0 0
    %2198 = vmatprep.subr.bf16.mxu0 0
    %2199 = vmatpush1.bf16.msra.mxu0 0
    %2200 = vmatprep.subr.bf16.mxu0 0
    %2201 = vmatpush1.bf16.msra.mxu0 0
    %2202 = vmatprep.mubr.bf16.mxu0 0
    %2203 = vmatmul.mubr.bf16.gmra.mrb[0].mxu0 %v349
    %v2204 = vpop.f32.mrb[0].mxu0
    %v2205 = vadd.f32 %v2156, %v2204
    %v2206 = vpop.f32.mrb[0].mxu0
    %v2207 = vpop.f32.mrb[0].mxu0
    %v2208 = vadd.f32 %v2159, %v2207
    %v2209 = vpop.f32.mrb[0].mxu0
    %2210 = vmatprep.mubr.bf16.mxu0 0
    %2211 = vmatmul.mubr.bf16.gmra.mrb[0].mxu0 %v352
    %v2212 = vpop.f32.mrb[0].mxu0
    %v2213 = vadd.f32 %v2164, %v2212
    %v2214 = vpop.f32.mrb[0].mxu0
    %v2215 = vpop.f32.mrb[0].mxu0
    %v2216 = vadd.f32 %v2167, %v2215
    %v2217 = vpop.f32.mrb[0].mxu0
    %2218 = vdwg.mxu0
    %v2219 = vmul.f32 %v1785, 0.05103104
    %v2220 = vmul.f32 %v1787, 0.05103104
    %v2221 = vmul.f32 %v1891, 0.05103104
    %v2222 = vmul.f32 %v1789, 0.05103104
    %v2223 = vmul.f32 %v1791, 0.05103104
    %v2224 = vmul.f32 %v1895, 0.05103104
    %v2225 = vmul.f32 %v1795, 0.05103104
    %v2226 = vmul.f32 %v1797, 0.05103104
    %v2227 = vmul.f32 %v1901, 0.05103104
    %v2228 = vmul.f32 %v1799, 0.05103104
    %v2229 = vmul.f32 %v1801, 0.05103104
    %v2230 = vmul.f32 %v1905, 0.05103104
    %v2231 = vpack.c.bf16 %v2222, %v2219
    %v2232 = vpack.c.bf16 %v2223, %v2220
    %v2233 = vpack.c.bf16 %v2224, %v2221
    %v2234 = vpack.c.bf16 %v2228, %v2225
    %v2235 = vpack.c.bf16 %v2229, %v2226
    %v2236 = vpack.c.bf16 %v2230, %v2227
    %v2237 = vpack.c.bf16 %v1897, %v1893
    %v2238 = vpack.c.bf16 %v2001, %v1997
    %v2239 = vpack.c.bf16 %v2003, %v1999
    %v2240 = vpack.c.bf16 %v1907, %v1903
    %v2241 = vpack.c.bf16 %v2011, %v2007
    %v2242 = vpack.c.bf16 %v2013, %v2009
    %v2243 = vpack.c.bf16 %v2107, %v2103
    %v2244 = vpack.c.bf16 %v2109, %v2105
    %v2245 = vpack.c.bf16 %v2208, %v2205
    %v2246 = vpack.c.bf16 %v2117, %v2113
    %v2247 = vpack.c.bf16 %v2119, %v2115
    %v2248 = vpack.c.bf16 %v2216, %v2213
    %2251 = vrot.lane.b32.xlu0 %v2231, 64
    %v2252 = vpop.permute.xlu0 %2251
    %2253 = vrot.lane.b32.xlu0 %v2234, 64
    %v2254 = vpop.permute.xlu0 %2253
    %2257 = vrot.lane.b32.xlu0 %v2232, 64
    %v2258 = vpop.permute.xlu0 %2257
    %2259 = vrot.lane.b32.xlu0 %v2235, 64
    %v2260 = vpop.permute.xlu0 %2259
    %2263 = vrot.lane.b32.xlu0 %v2233, 64
    %v2264 = vpop.permute.xlu0 %2263
    %2265 = vrot.lane.b32.xlu0 %v2236, 64
    %v2266 = vpop.permute.xlu0 %2265
    %2269 = vrot.lane.b32.xlu0 %v2237, 64
    %v2270 = vpop.permute.xlu0 %2269
    %2271 = vrot.lane.b32.xlu0 %v2240, 64
    %v2272 = vpop.permute.xlu0 %2271
    %2275 = vrot.lane.b32.xlu0 %v2238, 64
    %v2276 = vpop.permute.xlu0 %2275
    %2277 = vrot.lane.b32.xlu0 %v2241, 64
    %v2278 = vpop.permute.xlu0 %2277
    %2281 = vrot.lane.b32.xlu0 %v2239, 64
    %v2282 = vpop.permute.xlu0 %2281
    %2283 = vrot.lane.b32.xlu0 %v2242, 64
    %v2284 = vpop.permute.xlu0 %2283
    %2287 = vrot.lane.b32.xlu0 %v2243, 64
    %v2288 = vpop.permute.xlu0 %2287
    %2289 = vrot.lane.b32.xlu0 %v2246, 64
    %v2290 = vpop.permute.xlu0 %2289
    %2295 = vrot.lane.b32.xlu0 %v2244, 64
    %v2296 = vpop.permute.xlu0 %2295
    %2297 = vrot.lane.b32.xlu0 %v2247, 64
    %v2298 = vpop.permute.xlu0 %2297
    %2303 = vrot.lane.b32.xlu0 %v2245, 64
    %v2304 = vpop.permute.xlu0 %2303
    %2305 = vrot.lane.b32.xlu0 %v2248, 64
    %v2306 = vpop.permute.xlu0 %2305
    %vm2309 = vcmask 523264
    %v2311 = vsel %vm2309, %v2231, 0
    %v2314 = vsel %vm2309, %v2237, 0
    %2316 = vmatprep.subr.bf16.mxu0 0
    %2317 = vmatpush1.bf16.xpose.msra.mxu0 %v2314
    %2318 = vmatprep.subr.bf16.mxu0 0
    %2319 = vmatpush1.bf16.xpose.msra.mxu0 0
    %2320 = vmatprep.subr.bf16.mxu0 0
    %2321 = vmatpush1.bf16.xpose.msra.mxu0 0
    %2322 = vmatprep.subr.bf16.mxu0 0
    %2323 = vmatpush1.bf16.xpose.msra.mxu0 0
    %2324 = vmatprep.subr.bf16.mxu0 0
    %2325 = vmatpush1.bf16.xpose.msra.mxu0 0
    %2326 = vmatprep.subr.bf16.mxu0 0
    %2327 = vmatpush1.bf16.xpose.msra.mxu0 0
    %2328 = vmatprep.subr.bf16.mxu0 0
    %2329 = vmatpush1.bf16.xpose.msra.mxu0 0
    %2330 = vmatprep.subr.bf16.mxu0 0
    %2331 = vmatpush1.bf16.xpose.msra.mxu0 0
    %2332 = vmatprep.subr.bf16.mxu0 0
    %2333 = vmatpush1.bf16.xpose.msra.mxu0 0
    %2334 = vmatprep.subr.bf16.mxu0 0
    %2335 = vmatpush1.bf16.xpose.msra.mxu0 0
    %2336 = vmatprep.subr.bf16.mxu0 0
    %2337 = vmatpush1.bf16.xpose.msra.mxu0 0
    %2338 = vmatprep.subr.bf16.mxu0 0
    %2339 = vmatpush1.bf16.xpose.msra.mxu0 0
    %2340 = vmatprep.subr.bf16.mxu0 0
    %2341 = vmatpush1.bf16.xpose.msra.mxu0 0
    %2342 = vmatprep.subr.bf16.mxu0 0
    %2343 = vmatpush1.bf16.xpose.msra.mxu0 0
    %2344 = vmatprep.subr.bf16.mxu0 0
    %2345 = vmatpush1.bf16.xpose.msra.mxu0 0
    %2346 = vmatprep.subr.bf16.mxu0 0
    %2347 = vmatpush1.bf16.xpose.msra.mxu0 0
    %2348 = vmatprep.mubr.bf16.mxu0 0
    %2349 = vmatmul.mubr.bf16.gmra.mrb[0].mxu0 %v2311
    %v2350 = vpop.f32.mrb[0].mxu0
    %v2351 = vadd.f32 0.0, %v2350
    %v2352 = vpop.f32.mrb[0].mxu0
    %v2353 = vpop.f32.mrb[0].mxu0
    %v2354 = vadd.f32 0.0, %v2353
    %v2355 = vpop.f32.mrb[0].mxu0
    %2356 = vdwg.mxu0
    %v2358 = vsel %vm2309, %v2234, 0
    %v2361 = vsel %vm2309, %v2240, 0
    %2363 = vmatprep.subr.bf16.mxu0 0
    %2364 = vmatpush1.bf16.xpose.msra.mxu0 %v2361
    %2365 = vmatprep.subr.bf16.mxu0 0
    %2366 = vmatpush1.bf16.xpose.msra.mxu0 0
    %2367 = vmatprep.subr.bf16.mxu0 0
    %2368 = vmatpush1.bf16.xpose.msra.mxu0 0
    %2369 = vmatprep.subr.bf16.mxu0 0
    %2370 = vmatpush1.bf16.xpose.msra.mxu0 0
    %2371 = vmatprep.subr.bf16.mxu0 0
    %2372 = vmatpush1.bf16.xpose.msra.mxu0 0
    %2373 = vmatprep.subr.bf16.mxu0 0
    %2374 = vmatpush1.bf16.xpose.msra.mxu0 0
    %2375 = vmatprep.subr.bf16.mxu0 0
    %2376 = vmatpush1.bf16.xpose.msra.mxu0 0
    %2377 = vmatprep.subr.bf16.mxu0 0
    %2378 = vmatpush1.bf16.xpose.msra.mxu0 0
    %2379 = vmatprep.subr.bf16.mxu0 0
    %2380 = vmatpush1.bf16.xpose.msra.mxu0 0
    %2381 = vmatprep.subr.bf16.mxu0 0
    %2382 = vmatpush1.bf16.xpose.msra.mxu0 0
    %2383 = vmatprep.subr.bf16.mxu0 0
    %2384 = vmatpush1.bf16.xpose.msra.mxu0 0
    %2385 = vmatprep.subr.bf16.mxu0 0
    %2386 = vmatpush1.bf16.xpose.msra.mxu0 0
    %2387 = vmatprep.subr.bf16.mxu0 0
    %2388 = vmatpush1.bf16.xpose.msra.mxu0 0
    %2389 = vmatprep.subr.bf16.mxu0 0
    %2390 = vmatpush1.bf16.xpose.msra.mxu0 0
    %2391 = vmatprep.subr.bf16.mxu0 0
    %2392 = vmatpush1.bf16.xpose.msra.mxu0 0
    %2393 = vmatprep.subr.bf16.mxu0 0
    %2394 = vmatpush1.bf16.xpose.msra.mxu0 0
    %2395 = vmatprep.mubr.bf16.mxu0 0
    %2396 = vmatmul.mubr.bf16.gmra.mrb[0].mxu0 %v2358
    %v2397 = vpop.f32.mrb[0].mxu0
    %v2398 = vadd.f32 0.0, %v2397
    %v2399 = vpop.f32.mrb[0].mxu0
    %v2400 = vpop.f32.mrb[0].mxu0
    %v2401 = vadd.f32 0.0, %v2400
    %v2402 = vpop.f32.mrb[0].mxu0
    %2403 = vdwg.mxu0
    %v2405 = vsel %vm2309, %v2252, 0
    %v2408 = vsel %vm2309, %v2270, 0
    %2410 = vmatprep.subr.bf16.mxu0 0
    %2411 = vmatpush1.bf16.xpose.msra.mxu0 %v2408
    %2412 = vmatprep.subr.bf16.mxu0 0
    %2413 = vmatpush1.bf16.xpose.msra.mxu0 0
    %2414 = vmatprep.subr.bf16.mxu0 0
    %2415 = vmatpush1.bf16.xpose.msra.mxu0 0
    %2416 = vmatprep.subr.bf16.mxu0 0
    %2417 = vmatpush1.bf16.xpose.msra.mxu0 0
    %2418 = vmatprep.subr.bf16.mxu0 0
    %2419 = vmatpush1.bf16.xpose.msra.mxu0 0
    %2420 = vmatprep.subr.bf16.mxu0 0
    %2421 = vmatpush1.bf16.xpose.msra.mxu0 0
    %2422 = vmatprep.subr.bf16.mxu0 0
    %2423 = vmatpush1.bf16.xpose.msra.mxu0 0
    %2424 = vmatprep.subr.bf16.mxu0 0
    %2425 = vmatpush1.bf16.xpose.msra.mxu0 0
    %2426 = vmatprep.subr.bf16.mxu0 0
    %2427 = vmatpush1.bf16.xpose.msra.mxu0 0
    %2428 = vmatprep.subr.bf16.mxu0 0
    %2429 = vmatpush1.bf16.xpose.msra.mxu0 0
    %2430 = vmatprep.subr.bf16.mxu0 0
    %2431 = vmatpush1.bf16.xpose.msra.mxu0 0
    %2432 = vmatprep.subr.bf16.mxu0 0
    %2433 = vmatpush1.bf16.xpose.msra.mxu0 0
    %2434 = vmatprep.subr.bf16.mxu0 0
    %2435 = vmatpush1.bf16.xpose.msra.mxu0 0
    %2436 = vmatprep.subr.bf16.mxu0 0
    %2437 = vmatpush1.bf16.xpose.msra.mxu0 0
    %2438 = vmatprep.subr.bf16.mxu0 0
    %2439 = vmatpush1.bf16.xpose.msra.mxu0 0
    %2440 = vmatprep.subr.bf16.mxu0 0
    %2441 = vmatpush1.bf16.xpose.msra.mxu0 0
    %2442 = vmatprep.mubr.bf16.mxu0 0
    %2443 = vmatmul.mubr.bf16.gmra.mrb[0].mxu0 %v2405
    %v2444 = vpop.f32.mrb[0].mxu0
    %v2445 = vadd.f32 0.0, %v2444
    %v2446 = vpop.f32.mrb[0].mxu0
    %v2447 = vpop.f32.mrb[0].mxu0
    %v2448 = vadd.f32 0.0, %v2447
    %v2449 = vpop.f32.mrb[0].mxu0
    %2450 = vdwg.mxu0
    %v2452 = vsel %vm2309, %v2254, 0
    %v2455 = vsel %vm2309, %v2272, 0
    %2457 = vmatprep.subr.bf16.mxu0 0
    %2458 = vmatpush1.bf16.xpose.msra.mxu0 %v2455
    %2459 = vmatprep.subr.bf16.mxu0 0
    %2460 = vmatpush1.bf16.xpose.msra.mxu0 0
    %2461 = vmatprep.subr.bf16.mxu0 0
    %2462 = vmatpush1.bf16.xpose.msra.mxu0 0
    %2463 = vmatprep.subr.bf16.mxu0 0
    %2464 = vmatpush1.bf16.xpose.msra.mxu0 0
    %2465 = vmatprep.subr.bf16.mxu0 0
    %2466 = vmatpush1.bf16.xpose.msra.mxu0 0
    %2467 = vmatprep.subr.bf16.mxu0 0
    %2468 = vmatpush1.bf16.xpose.msra.mxu0 0
    %2469 = vmatprep.subr.bf16.mxu0 0
    %2470 = vmatpush1.bf16.xpose.msra.mxu0 0
    %2471 = vmatprep.subr.bf16.mxu0 0
    %2472 = vmatpush1.bf16.xpose.msra.mxu0 0
    %2473 = vmatprep.subr.bf16.mxu0 0
    %2474 = vmatpush1.bf16.xpose.msra.mxu0 0
    %2475 = vmatprep.subr.bf16.mxu0 0
    %2476 = vmatpush1.bf16.xpose.msra.mxu0 0
    %2477 = vmatprep.subr.bf16.mxu0 0
    %2478 = vmatpush1.bf16.xpose.msra.mxu0 0
    %2479 = vmatprep.subr.bf16.mxu0 0
    %2480 = vmatpush1.bf16.xpose.msra.mxu0 0
    %2481 = vmatprep.subr.bf16.mxu0 0
    %2482 = vmatpush1.bf16.xpose.msra.mxu0 0
    %2483 = vmatprep.subr.bf16.mxu0 0
    %2484 = vmatpush1.bf16.xpose.msra.mxu0 0
    %2485 = vmatprep.subr.bf16.mxu0 0
    %2486 = vmatpush1.bf16.xpose.msra.mxu0 0
    %2487 = vmatprep.subr.bf16.mxu0 0
    %2488 = vmatpush1.bf16.xpose.msra.mxu0 0
    %2489 = vmatprep.mubr.bf16.mxu0 0
    %2490 = vmatmul.mubr.bf16.gmra.mrb[0].mxu0 %v2452
    %v2491 = vpop.f32.mrb[0].mxu0
    %v2492 = vadd.f32 0.0, %v2491
    %v2493 = vpop.f32.mrb[0].mxu0
    %v2494 = vpop.f32.mrb[0].mxu0
    %v2495 = vadd.f32 0.0, %v2494
    %v2496 = vpop.f32.mrb[0].mxu0
    %2497 = vdwg.mxu0
    %v2499 = vsel %vm2309, %v2232, 0
    %v2502 = vsel %vm2309, %v2238, 0
    %2504 = vmatprep.subr.bf16.mxu0 0
    %2505 = vmatpush1.bf16.xpose.msra.mxu0 %v2502
    %2506 = vmatprep.subr.bf16.mxu0 0
    %2507 = vmatpush1.bf16.xpose.msra.mxu0 0
    %2508 = vmatprep.subr.bf16.mxu0 0
    %2509 = vmatpush1.bf16.xpose.msra.mxu0 0
    %2510 = vmatprep.subr.bf16.mxu0 0
    %2511 = vmatpush1.bf16.xpose.msra.mxu0 0
    %2512 = vmatprep.subr.bf16.mxu0 0
    %2513 = vmatpush1.bf16.xpose.msra.mxu0 0
    %2514 = vmatprep.subr.bf16.mxu0 0
    %2515 = vmatpush1.bf16.xpose.msra.mxu0 0
    %2516 = vmatprep.subr.bf16.mxu0 0
    %2517 = vmatpush1.bf16.xpose.msra.mxu0 0
    %2518 = vmatprep.subr.bf16.mxu0 0
    %2519 = vmatpush1.bf16.xpose.msra.mxu0 0
    %2520 = vmatprep.subr.bf16.mxu0 0
    %2521 = vmatpush1.bf16.xpose.msra.mxu0 0
    %2522 = vmatprep.subr.bf16.mxu0 0
    %2523 = vmatpush1.bf16.xpose.msra.mxu0 0
    %2524 = vmatprep.subr.bf16.mxu0 0
    %2525 = vmatpush1.bf16.xpose.msra.mxu0 0
    %2526 = vmatprep.subr.bf16.mxu0 0
    %2527 = vmatpush1.bf16.xpose.msra.mxu0 0
    %2528 = vmatprep.subr.bf16.mxu0 0
    %2529 = vmatpush1.bf16.xpose.msra.mxu0 0
    %2530 = vmatprep.subr.bf16.mxu0 0
    %2531 = vmatpush1.bf16.xpose.msra.mxu0 0
    %2532 = vmatprep.subr.bf16.mxu0 0
    %2533 = vmatpush1.bf16.xpose.msra.mxu0 0
    %2534 = vmatprep.subr.bf16.mxu0 0
    %2535 = vmatpush1.bf16.xpose.msra.mxu0 0
    %2536 = vmatprep.mubr.bf16.mxu0 0
    %2537 = vmatmul.mubr.bf16.gmra.mrb[0].mxu0 %v2499
    %v2538 = vpop.f32.mrb[0].mxu0
    %v2539 = vadd.f32 0.0, %v2538
    %v2540 = vpop.f32.mrb[0].mxu0
    %v2541 = vpop.f32.mrb[0].mxu0
    %v2542 = vadd.f32 0.0, %v2541
    %v2543 = vpop.f32.mrb[0].mxu0
    %2544 = vdwg.mxu0
    %v2546 = vsel %vm2309, %v2235, 0
    %v2549 = vsel %vm2309, %v2241, 0
    %2551 = vmatprep.subr.bf16.mxu0 0
    %2552 = vmatpush1.bf16.xpose.msra.mxu0 %v2549
    %2553 = vmatprep.subr.bf16.mxu0 0
    %2554 = vmatpush1.bf16.xpose.msra.mxu0 0
    %2555 = vmatprep.subr.bf16.mxu0 0
    %2556 = vmatpush1.bf16.xpose.msra.mxu0 0
    %2557 = vmatprep.subr.bf16.mxu0 0
    %2558 = vmatpush1.bf16.xpose.msra.mxu0 0
    %2559 = vmatprep.subr.bf16.mxu0 0
    %2560 = vmatpush1.bf16.xpose.msra.mxu0 0
    %2561 = vmatprep.subr.bf16.mxu0 0
    %2562 = vmatpush1.bf16.xpose.msra.mxu0 0
    %2563 = vmatprep.subr.bf16.mxu0 0
    %2564 = vmatpush1.bf16.xpose.msra.mxu0 0
    %2565 = vmatprep.subr.bf16.mxu0 0
    %2566 = vmatpush1.bf16.xpose.msra.mxu0 0
    %2567 = vmatprep.subr.bf16.mxu0 0
    %2568 = vmatpush1.bf16.xpose.msra.mxu0 0
    %2569 = vmatprep.subr.bf16.mxu0 0
    %2570 = vmatpush1.bf16.xpose.msra.mxu0 0
    %2571 = vmatprep.subr.bf16.mxu0 0
    %2572 = vmatpush1.bf16.xpose.msra.mxu0 0
    %2573 = vmatprep.subr.bf16.mxu0 0
    %2574 = vmatpush1.bf16.xpose.msra.mxu0 0
    %2575 = vmatprep.subr.bf16.mxu0 0
    %2576 = vmatpush1.bf16.xpose.msra.mxu0 0
    %2577 = vmatprep.subr.bf16.mxu0 0
    %2578 = vmatpush1.bf16.xpose.msra.mxu0 0
    %2579 = vmatprep.subr.bf16.mxu0 0
    %2580 = vmatpush1.bf16.xpose.msra.mxu0 0
    %2581 = vmatprep.subr.bf16.mxu0 0
    %2582 = vmatpush1.bf16.xpose.msra.mxu0 0
    %2583 = vmatprep.mubr.bf16.mxu0 0
    %2584 = vmatmul.mubr.bf16.gmra.mrb[0].mxu0 %v2546
    %v2585 = vpop.f32.mrb[0].mxu0
    %v2586 = vadd.f32 0.0, %v2585
    %v2587 = vpop.f32.mrb[0].mxu0
    %v2588 = vpop.f32.mrb[0].mxu0
    %v2589 = vadd.f32 0.0, %v2588
    %v2590 = vpop.f32.mrb[0].mxu0
    %2591 = vdwg.mxu0
    %v2593 = vsel %vm2309, %v2258, 0
    %v2596 = vsel %vm2309, %v2276, 0
    %2598 = vmatprep.subr.bf16.mxu0 0
    %2599 = vmatpush1.bf16.xpose.msra.mxu0 %v2596
    %2600 = vmatprep.subr.bf16.mxu0 0
    %2601 = vmatpush1.bf16.xpose.msra.mxu0 0
    %2602 = vmatprep.subr.bf16.mxu0 0
    %2603 = vmatpush1.bf16.xpose.msra.mxu0 0
    %2604 = vmatprep.subr.bf16.mxu0 0
    %2605 = vmatpush1.bf16.xpose.msra.mxu0 0
    %2606 = vmatprep.subr.bf16.mxu0 0
    %2607 = vmatpush1.bf16.xpose.msra.mxu0 0
    %2608 = vmatprep.subr.bf16.mxu0 0
    %2609 = vmatpush1.bf16.xpose.msra.mxu0 0
    %2610 = vmatprep.subr.bf16.mxu0 0
    %2611 = vmatpush1.bf16.xpose.msra.mxu0 0
    %2612 = vmatprep.subr.bf16.mxu0 0
    %2613 = vmatpush1.bf16.xpose.msra.mxu0 0
    %2614 = vmatprep.subr.bf16.mxu0 0
    %2615 = vmatpush1.bf16.xpose.msra.mxu0 0
    %2616 = vmatprep.subr.bf16.mxu0 0
    %2617 = vmatpush1.bf16.xpose.msra.mxu0 0
    %2618 = vmatprep.subr.bf16.mxu0 0
    %2619 = vmatpush1.bf16.xpose.msra.mxu0 0
    %2620 = vmatprep.subr.bf16.mxu0 0
    %2621 = vmatpush1.bf16.xpose.msra.mxu0 0
    %2622 = vmatprep.subr.bf16.mxu0 0
    %2623 = vmatpush1.bf16.xpose.msra.mxu0 0
    %2624 = vmatprep.subr.bf16.mxu0 0
    %2625 = vmatpush1.bf16.xpose.msra.mxu0 0
    %2626 = vmatprep.subr.bf16.mxu0 0
    %2627 = vmatpush1.bf16.xpose.msra.mxu0 0
    %2628 = vmatprep.subr.bf16.mxu0 0
    %2629 = vmatpush1.bf16.xpose.msra.mxu0 0
    %2630 = vmatprep.mubr.bf16.mxu0 0
    %2631 = vmatmul.mubr.bf16.gmra.mrb[0].mxu0 %v2593
    %v2632 = vpop.f32.mrb[0].mxu0
    %v2633 = vadd.f32 0.0, %v2632
    %v2634 = vpop.f32.mrb[0].mxu0
    %v2635 = vpop.f32.mrb[0].mxu0
    %v2636 = vadd.f32 0.0, %v2635
    %v2637 = vpop.f32.mrb[0].mxu0
    %2638 = vdwg.mxu0
    %v2640 = vsel %vm2309, %v2260, 0
    %v2643 = vsel %vm2309, %v2278, 0
    %2645 = vmatprep.subr.bf16.mxu0 0
    %2646 = vmatpush1.bf16.xpose.msra.mxu0 %v2643
    %2647 = vmatprep.subr.bf16.mxu0 0
    %2648 = vmatpush1.bf16.xpose.msra.mxu0 0
    %2649 = vmatprep.subr.bf16.mxu0 0
    %2650 = vmatpush1.bf16.xpose.msra.mxu0 0
    %2651 = vmatprep.subr.bf16.mxu0 0
    %2652 = vmatpush1.bf16.xpose.msra.mxu0 0
    %2653 = vmatprep.subr.bf16.mxu0 0
    %2654 = vmatpush1.bf16.xpose.msra.mxu0 0
    %2655 = vmatprep.subr.bf16.mxu0 0
    %2656 = vmatpush1.bf16.xpose.msra.mxu0 0
    %2657 = vmatprep.subr.bf16.mxu0 0
    %2658 = vmatpush1.bf16.xpose.msra.mxu0 0
    %2659 = vmatprep.subr.bf16.mxu0 0
    %2660 = vmatpush1.bf16.xpose.msra.mxu0 0
    %2661 = vmatprep.subr.bf16.mxu0 0
    %2662 = vmatpush1.bf16.xpose.msra.mxu0 0
    %2663 = vmatprep.subr.bf16.mxu0 0
    %2664 = vmatpush1.bf16.xpose.msra.mxu0 0
    %2665 = vmatprep.subr.bf16.mxu0 0
    %2666 = vmatpush1.bf16.xpose.msra.mxu0 0
    %2667 = vmatprep.subr.bf16.mxu0 0
    %2668 = vmatpush1.bf16.xpose.msra.mxu0 0
    %2669 = vmatprep.subr.bf16.mxu0 0
    %2670 = vmatpush1.bf16.xpose.msra.mxu0 0
    %2671 = vmatprep.subr.bf16.mxu0 0
    %2672 = vmatpush1.bf16.xpose.msra.mxu0 0
    %2673 = vmatprep.subr.bf16.mxu0 0
    %2674 = vmatpush1.bf16.xpose.msra.mxu0 0
    %2675 = vmatprep.subr.bf16.mxu0 0
    %2676 = vmatpush1.bf16.xpose.msra.mxu0 0
    %2677 = vmatprep.mubr.bf16.mxu0 0
    %2678 = vmatmul.mubr.bf16.gmra.mrb[0].mxu0 %v2640
    %v2679 = vpop.f32.mrb[0].mxu0
    %v2680 = vadd.f32 0.0, %v2679
    %v2681 = vpop.f32.mrb[0].mxu0
    %v2682 = vpop.f32.mrb[0].mxu0
    %v2683 = vadd.f32 0.0, %v2682
    %v2684 = vpop.f32.mrb[0].mxu0
    %2685 = vdwg.mxu0
    %v2687 = vsel %vm2309, %v2233, 0
    %v2690 = vsel %vm2309, %v2239, 0
    %2692 = vmatprep.subr.bf16.mxu0 0
    %2693 = vmatpush1.bf16.xpose.msra.mxu0 %v2690
    %2694 = vmatprep.subr.bf16.mxu0 0
    %2695 = vmatpush1.bf16.xpose.msra.mxu0 0
    %2696 = vmatprep.subr.bf16.mxu0 0
    %2697 = vmatpush1.bf16.xpose.msra.mxu0 0
    %2698 = vmatprep.subr.bf16.mxu0 0
    %2699 = vmatpush1.bf16.xpose.msra.mxu0 0
    %2700 = vmatprep.subr.bf16.mxu0 0
    %2701 = vmatpush1.bf16.xpose.msra.mxu0 0
    %2702 = vmatprep.subr.bf16.mxu0 0
    %2703 = vmatpush1.bf16.xpose.msra.mxu0 0
    %2704 = vmatprep.subr.bf16.mxu0 0
    %2705 = vmatpush1.bf16.xpose.msra.mxu0 0
    %2706 = vmatprep.subr.bf16.mxu0 0
    %2707 = vmatpush1.bf16.xpose.msra.mxu0 0
    %2708 = vmatprep.subr.bf16.mxu0 0
    %2709 = vmatpush1.bf16.xpose.msra.mxu0 0
    %2710 = vmatprep.subr.bf16.mxu0 0
    %2711 = vmatpush1.bf16.xpose.msra.mxu0 0
    %2712 = vmatprep.subr.bf16.mxu0 0
    %2713 = vmatpush1.bf16.xpose.msra.mxu0 0
    %2714 = vmatprep.subr.bf16.mxu0 0
    %2715 = vmatpush1.bf16.xpose.msra.mxu0 0
    %2716 = vmatprep.subr.bf16.mxu0 0
    %2717 = vmatpush1.bf16.xpose.msra.mxu0 0
    %2718 = vmatprep.subr.bf16.mxu0 0
    %2719 = vmatpush1.bf16.xpose.msra.mxu0 0
    %2720 = vmatprep.subr.bf16.mxu0 0
    %2721 = vmatpush1.bf16.xpose.msra.mxu0 0
    %2722 = vmatprep.subr.bf16.mxu0 0
    %2723 = vmatpush1.bf16.xpose.msra.mxu0 0
    %2724 = vmatprep.mubr.bf16.mxu0 0
    %2725 = vmatmul.mubr.bf16.gmra.mrb[0].mxu0 %v2687
    %v2726 = vpop.f32.mrb[0].mxu0
    %v2727 = vadd.f32 0.0, %v2726
    %v2728 = vpop.f32.mrb[0].mxu0
    %v2729 = vpop.f32.mrb[0].mxu0
    %v2730 = vadd.f32 0.0, %v2729
    %v2731 = vpop.f32.mrb[0].mxu0
    %2732 = vdwg.mxu0
    %v2734 = vsel %vm2309, %v2236, 0
    %v2737 = vsel %vm2309, %v2242, 0
    %2739 = vmatprep.subr.bf16.mxu0 0
    %2740 = vmatpush1.bf16.xpose.msra.mxu0 %v2737
    %2741 = vmatprep.subr.bf16.mxu0 0
    %2742 = vmatpush1.bf16.xpose.msra.mxu0 0
    %2743 = vmatprep.subr.bf16.mxu0 0
    %2744 = vmatpush1.bf16.xpose.msra.mxu0 0
    %2745 = vmatprep.subr.bf16.mxu0 0
    %2746 = vmatpush1.bf16.xpose.msra.mxu0 0
    %2747 = vmatprep.subr.bf16.mxu0 0
    %2748 = vmatpush1.bf16.xpose.msra.mxu0 0
    %2749 = vmatprep.subr.bf16.mxu0 0
    %2750 = vmatpush1.bf16.xpose.msra.mxu0 0
    %2751 = vmatprep.subr.bf16.mxu0 0
    %2752 = vmatpush1.bf16.xpose.msra.mxu0 0
    %2753 = vmatprep.subr.bf16.mxu0 0
    %2754 = vmatpush1.bf16.xpose.msra.mxu0 0
    %2755 = vmatprep.subr.bf16.mxu0 0
    %2756 = vmatpush1.bf16.xpose.msra.mxu0 0
    %2757 = vmatprep.subr.bf16.mxu0 0
    %2758 = vmatpush1.bf16.xpose.msra.mxu0 0
    %2759 = vmatprep.subr.bf16.mxu0 0
    %2760 = vmatpush1.bf16.xpose.msra.mxu0 0
    %2761 = vmatprep.subr.bf16.mxu0 0
    %2762 = vmatpush1.bf16.xpose.msra.mxu0 0
    %2763 = vmatprep.subr.bf16.mxu0 0
    %2764 = vmatpush1.bf16.xpose.msra.mxu0 0
    %2765 = vmatprep.subr.bf16.mxu0 0
    %2766 = vmatpush1.bf16.xpose.msra.mxu0 0
    %2767 = vmatprep.subr.bf16.mxu0 0
    %2768 = vmatpush1.bf16.xpose.msra.mxu0 0
    %2769 = vmatprep.subr.bf16.mxu0 0
    %2770 = vmatpush1.bf16.xpose.msra.mxu0 0
    %2771 = vmatprep.mubr.bf16.mxu0 0
    %2772 = vmatmul.mubr.bf16.gmra.mrb[0].mxu0 %v2734
    %v2773 = vpop.f32.mrb[0].mxu0
    %v2774 = vadd.f32 0.0, %v2773
    %v2775 = vpop.f32.mrb[0].mxu0
    %v2776 = vpop.f32.mrb[0].mxu0
    %v2777 = vadd.f32 0.0, %v2776
    %v2778 = vpop.f32.mrb[0].mxu0
    %2779 = vdwg.mxu0
    %v2781 = vsel %vm2309, %v2264, 0
    %v2784 = vsel %vm2309, %v2282, 0
    %2786 = vmatprep.subr.bf16.mxu0 0
    %2787 = vmatpush1.bf16.xpose.msra.mxu0 %v2784
    %2788 = vmatprep.subr.bf16.mxu0 0
    %2789 = vmatpush1.bf16.xpose.msra.mxu0 0
    %2790 = vmatprep.subr.bf16.mxu0 0
    %2791 = vmatpush1.bf16.xpose.msra.mxu0 0
    %2792 = vmatprep.subr.bf16.mxu0 0
    %2793 = vmatpush1.bf16.xpose.msra.mxu0 0
    %2794 = vmatprep.subr.bf16.mxu0 0
    %2795 = vmatpush1.bf16.xpose.msra.mxu0 0
    %2796 = vmatprep.subr.bf16.mxu0 0
    %2797 = vmatpush1.bf16.xpose.msra.mxu0 0
    %2798 = vmatprep.subr.bf16.mxu0 0
    %2799 = vmatpush1.bf16.xpose.msra.mxu0 0
    %2800 = vmatprep.subr.bf16.mxu0 0
    %2801 = vmatpush1.bf16.xpose.msra.mxu0 0
    %2802 = vmatprep.subr.bf16.mxu0 0
    %2803 = vmatpush1.bf16.xpose.msra.mxu0 0
    %2804 = vmatprep.subr.bf16.mxu0 0
    %2805 = vmatpush1.bf16.xpose.msra.mxu0 0
    %2806 = vmatprep.subr.bf16.mxu0 0
    %2807 = vmatpush1.bf16.xpose.msra.mxu0 0
    %2808 = vmatprep.subr.bf16.mxu0 0
    %2809 = vmatpush1.bf16.xpose.msra.mxu0 0
    %2810 = vmatprep.subr.bf16.mxu0 0
    %2811 = vmatpush1.bf16.xpose.msra.mxu0 0
    %2812 = vmatprep.subr.bf16.mxu0 0
    %2813 = vmatpush1.bf16.xpose.msra.mxu0 0
    %2814 = vmatprep.subr.bf16.mxu0 0
    %2815 = vmatpush1.bf16.xpose.msra.mxu0 0
    %2816 = vmatprep.subr.bf16.mxu0 0
    %2817 = vmatpush1.bf16.xpose.msra.mxu0 0
    %2818 = vmatprep.mubr.bf16.mxu0 0
    %2819 = vmatmul.mubr.bf16.gmra.mrb[0].mxu0 %v2781
    %v2820 = vpop.f32.mrb[0].mxu0
    %v2821 = vadd.f32 0.0, %v2820
    %v2822 = vpop.f32.mrb[0].mxu0
    %v2823 = vpop.f32.mrb[0].mxu0
    %v2824 = vadd.f32 0.0, %v2823
    %v2825 = vpop.f32.mrb[0].mxu0
    %2826 = vdwg.mxu0
    %v2828 = vsel %vm2309, %v2266, 0
    %v2831 = vsel %vm2309, %v2284, 0
    %2833 = vmatprep.subr.bf16.mxu0 0
    %2834 = vmatpush1.bf16.xpose.msra.mxu0 %v2831
    %2835 = vmatprep.subr.bf16.mxu0 0
    %2836 = vmatpush1.bf16.xpose.msra.mxu0 0
    %2837 = vmatprep.subr.bf16.mxu0 0
    %2838 = vmatpush1.bf16.xpose.msra.mxu0 0
    %2839 = vmatprep.subr.bf16.mxu0 0
    %2840 = vmatpush1.bf16.xpose.msra.mxu0 0
    %2841 = vmatprep.subr.bf16.mxu0 0
    %2842 = vmatpush1.bf16.xpose.msra.mxu0 0
    %2843 = vmatprep.subr.bf16.mxu0 0
    %2844 = vmatpush1.bf16.xpose.msra.mxu0 0
    %2845 = vmatprep.subr.bf16.mxu0 0
    %2846 = vmatpush1.bf16.xpose.msra.mxu0 0
    %2847 = vmatprep.subr.bf16.mxu0 0
    %2848 = vmatpush1.bf16.xpose.msra.mxu0 0
    %2849 = vmatprep.subr.bf16.mxu0 0
    %2850 = vmatpush1.bf16.xpose.msra.mxu0 0
    %2851 = vmatprep.subr.bf16.mxu0 0
    %2852 = vmatpush1.bf16.xpose.msra.mxu0 0
    %2853 = vmatprep.subr.bf16.mxu0 0
    %2854 = vmatpush1.bf16.xpose.msra.mxu0 0
    %2855 = vmatprep.subr.bf16.mxu0 0
    %2856 = vmatpush1.bf16.xpose.msra.mxu0 0
    %2857 = vmatprep.subr.bf16.mxu0 0
    %2858 = vmatpush1.bf16.xpose.msra.mxu0 0
    %2859 = vmatprep.subr.bf16.mxu0 0
    %2860 = vmatpush1.bf16.xpose.msra.mxu0 0
    %2861 = vmatprep.subr.bf16.mxu0 0
    %2862 = vmatpush1.bf16.xpose.msra.mxu0 0
    %2863 = vmatprep.subr.bf16.mxu0 0
    %2864 = vmatpush1.bf16.xpose.msra.mxu0 0
    %2865 = vmatprep.mubr.bf16.mxu0 0
    %2866 = vmatmul.mubr.bf16.gmra.mrb[0].mxu0 %v2828
    %v2867 = vpop.f32.mrb[0].mxu0
    %v2868 = vadd.f32 0.0, %v2867
    %v2869 = vpop.f32.mrb[0].mxu0
    %v2870 = vpop.f32.mrb[0].mxu0
    %v2871 = vadd.f32 0.0, %v2870
    %v2872 = vpop.f32.mrb[0].mxu0
    %2873 = vdwg.mxu0
    %v2874 = vlaneseq
    %v2875 = vshrl.u32 %v2874, 7
    %v2876 = vadd.s32 %v2875, 8
    %v2877 = vlaneseq
    %v2878 = vand.u32 %v2877, 127
    %vm2879 = vcmp.ge.s32.totalorder %v2875, %v2878
    %vm2880 = vcmp.ge.s32.totalorder %v2876, %v2878
    %v2881 = vsel %vm2879, 1, 0
    %v2882 = vsel %vm2880, 1, 0
    %vm2883 = vcmp.eq.s32.totalorder %v2881, 1
    %vm2884 = vcmp.eq.s32.totalorder %v2882, 1
    %v2885 = vsel %vm2883, %v2351, -1e+30
    %v2886 = vsel %vm2884, %v2354, -1e+30
    %v2887 = vsel %vm2883, %v2398, -1e+30
    %v2888 = vsel %vm2884, %v2401, -1e+30
    %v2889 = vsel %vm2883, %v2445, -1e+30
    %v2890 = vsel %vm2884, %v2448, -1e+30
    %v2891 = vsel %vm2883, %v2492, -1e+30
    %v2892 = vsel %vm2884, %v2495, -1e+30
    %v2893 = vsel %vm2883, %v2539, -1e+30
    %v2894 = vsel %vm2884, %v2542, -1e+30
    %v2895 = vsel %vm2883, %v2586, -1e+30
    %v2896 = vsel %vm2884, %v2589, -1e+30
    %v2897 = vsel %vm2883, %v2633, -1e+30
    %v2898 = vsel %vm2884, %v2636, -1e+30
    %v2899 = vsel %vm2883, %v2680, -1e+30
    %v2900 = vsel %vm2884, %v2683, -1e+30
    %v2901 = vsel %vm2883, %v2727, -1e+30
    %v2902 = vsel %vm2884, %v2730, -1e+30
    %v2903 = vsel %vm2883, %v2774, -1e+30
    %v2904 = vsel %vm2884, %v2777, -1e+30
    %v2905 = vsel %vm2883, %v2821, -1e+30
    %v2906 = vsel %vm2884, %v2824, -1e+30
    %v2907 = vsel %vm2883, %v2868, -1e+30
    %v2908 = vsel %vm2884, %v2871, -1e+30
    %vm2909 = vcmask 130048
    %v2910 = vsel %vm2909, %v2885, -inf
    %2911 = vmax.xlane.f32.xlu0 %v2910
    %v2912 = vpop.xlane.xlu0 %2911
    %v2913 = vsel %vm2909, %v2886, -inf
    %2914 = vmax.xlane.f32.xlu0 %v2913
    %v2915 = vpop.xlane.xlu0 %2914
    %v2916 = vsel %vm2909, %v2887, -inf
    %2917 = vmax.xlane.f32.xlu0 %v2916
    %v2918 = vpop.xlane.xlu0 %2917
    %v2919 = vsel %vm2909, %v2888, -inf
    %2920 = vmax.xlane.f32.xlu0 %v2919
    %v2921 = vpop.xlane.xlu0 %2920
    %v2922 = vsel %vm2909, %v2889, -inf
    %2923 = vmax.xlane.f32.xlu0 %v2922
    %v2924 = vpop.xlane.xlu0 %2923
    %v2925 = vsel %vm2909, %v2890, -inf
    %2926 = vmax.xlane.f32.xlu0 %v2925
    %v2927 = vpop.xlane.xlu0 %2926
    %v2928 = vsel %vm2909, %v2891, -inf
    %2929 = vmax.xlane.f32.xlu0 %v2928
    %v2930 = vpop.xlane.xlu0 %2929
    %v2931 = vsel %vm2909, %v2892, -inf
    %2932 = vmax.xlane.f32.xlu0 %v2931
    %v2933 = vpop.xlane.xlu0 %2932
    %v2934 = vsel %vm2909, %v2893, -inf
    %2935 = vmax.xlane.f32.xlu0 %v2934
    %v2936 = vpop.xlane.xlu0 %2935
    %v2937 = vsel %vm2909, %v2894, -inf
    %2938 = vmax.xlane.f32.xlu0 %v2937
    %v2939 = vpop.xlane.xlu0 %2938
    %v2940 = vsel %vm2909, %v2895, -inf
    %2941 = vmax.xlane.f32.xlu0 %v2940
    %v2942 = vpop.xlane.xlu0 %2941
    %v2943 = vsel %vm2909, %v2896, -inf
    %2944 = vmax.xlane.f32.xlu0 %v2943
    %v2945 = vpop.xlane.xlu0 %2944
    %v2946 = vsel %vm2909, %v2897, -inf
    %2947 = vmax.xlane.f32.xlu0 %v2946
    %v2948 = vpop.xlane.xlu0 %2947
    %v2949 = vsel %vm2909, %v2898, -inf
    %2950 = vmax.xlane.f32.xlu0 %v2949
    %v2951 = vpop.xlane.xlu0 %2950
    %v2952 = vsel %vm2909, %v2899, -inf
    %2953 = vmax.xlane.f32.xlu0 %v2952
    %v2954 = vpop.xlane.xlu0 %2953
    %v2955 = vsel %vm2909, %v2900, -inf
    %2956 = vmax.xlane.f32.xlu0 %v2955
    %v2957 = vpop.xlane.xlu0 %2956
    %v2958 = vsel %vm2909, %v2901, -inf
    %2959 = vmax.xlane.f32.xlu0 %v2958
    %v2960 = vpop.xlane.xlu0 %2959
    %v2961 = vsel %vm2909, %v2902, -inf
    %2962 = vmax.xlane.f32.xlu0 %v2961
    %v2963 = vpop.xlane.xlu0 %2962
    %v2964 = vsel %vm2909, %v2903, -inf
    %2965 = vmax.xlane.f32.xlu0 %v2964
    %v2966 = vpop.xlane.xlu0 %2965
    %v2967 = vsel %vm2909, %v2904, -inf
    %2968 = vmax.xlane.f32.xlu0 %v2967
    %v2969 = vpop.xlane.xlu0 %2968
    %v2970 = vsel %vm2909, %v2905, -inf
    %2971 = vmax.xlane.f32.xlu0 %v2970
    %v2972 = vpop.xlane.xlu0 %2971
    %v2973 = vsel %vm2909, %v2906, -inf
    %2974 = vmax.xlane.f32.xlu0 %v2973
    %v2975 = vpop.xlane.xlu0 %2974
    %v2976 = vsel %vm2909, %v2907, -inf
    %2977 = vmax.xlane.f32.xlu0 %v2976
    %v2978 = vpop.xlane.xlu0 %2977
    %v2979 = vsel %vm2909, %v2908, -inf
    %2980 = vmax.xlane.f32.xlu0 %v2979
    %v2981 = vpop.xlane.xlu0 %2980
    %v2982 = vsub.f32 %v2885, %v2912
    %v2983 = vsub.f32 %v2886, %v2915
    %v2984 = vsub.f32 %v2887, %v2918
    %v2985 = vsub.f32 %v2888, %v2921
    %v2986 = vsub.f32 %v2889, %v2924
    %v2987 = vsub.f32 %v2890, %v2927
    %v2988 = vsub.f32 %v2891, %v2930
    %v2989 = vsub.f32 %v2892, %v2933
    %v2990 = vsub.f32 %v2893, %v2936
    %v2991 = vsub.f32 %v2894, %v2939
    %v2992 = vsub.f32 %v2895, %v2942
    %v2993 = vsub.f32 %v2896, %v2945
    %v2994 = vsub.f32 %v2897, %v2948
    %v2995 = vsub.f32 %v2898, %v2951
    %v2996 = vsub.f32 %v2899, %v2954
    %v2997 = vsub.f32 %v2900, %v2957
    %v2998 = vsub.f32 %v2901, %v2960
    %v2999 = vsub.f32 %v2902, %v2963
    %v3000 = vsub.f32 %v2903, %v2966
    %v3001 = vsub.f32 %v2904, %v2969
    %v3002 = vsub.f32 %v2905, %v2972
    %v3003 = vsub.f32 %v2906, %v2975
    %v3004 = vsub.f32 %v2907, %v2978
    %v3005 = vsub.f32 %v2908, %v2981
    %v3006 = vmul.f32 %v2982, 1.442695
    %v3007 = vpow.pop %v3006
    %v3008 = vmul.f32 %v2983, 1.442695
    %v3009 = vpow.pop %v3008
    %v3010 = vmul.f32 %v2984, 1.442695
    %v3011 = vpow.pop %v3010
    %v3012 = vmul.f32 %v2985, 1.442695
    %v3013 = vpow.pop %v3012
    %v3014 = vmul.f32 %v2986, 1.442695
    %v3015 = vpow.pop %v3014
    %v3016 = vmul.f32 %v2987, 1.442695
    %v3017 = vpow.pop %v3016
    %v3018 = vmul.f32 %v2988, 1.442695
    %v3019 = vpow.pop %v3018
    %v3020 = vmul.f32 %v2989, 1.442695
    %v3021 = vpow.pop %v3020
    %v3022 = vmul.f32 %v2990, 1.442695
    %v3023 = vpow.pop %v3022
    %v3024 = vmul.f32 %v2991, 1.442695
    %v3025 = vpow.pop %v3024
    %v3026 = vmul.f32 %v2992, 1.442695
    %v3027 = vpow.pop %v3026
    %v3028 = vmul.f32 %v2993, 1.442695
    %v3029 = vpow.pop %v3028
    %v3030 = vmul.f32 %v2994, 1.442695
    %v3031 = vpow.pop %v3030
    %v3032 = vmul.f32 %v2995, 1.442695
    %v3033 = vpow.pop %v3032
    %v3034 = vmul.f32 %v2996, 1.442695
    %v3035 = vpow.pop %v3034
    %v3036 = vmul.f32 %v2997, 1.442695
    %v3037 = vpow.pop %v3036
    %v3038 = vmul.f32 %v2998, 1.442695
    %v3039 = vpow.pop %v3038
    %v3040 = vmul.f32 %v2999, 1.442695
    %v3041 = vpow.pop %v3040
    %v3042 = vmul.f32 %v3000, 1.442695
    %v3043 = vpow.pop %v3042
    %v3044 = vmul.f32 %v3001, 1.442695
    %v3045 = vpow.pop %v3044
    %v3046 = vmul.f32 %v3002, 1.442695
    %v3047 = vpow.pop %v3046
    %v3048 = vmul.f32 %v3003, 1.442695
    %v3049 = vpow.pop %v3048
    %v3050 = vmul.f32 %v3004, 1.442695
    %v3051 = vpow.pop %v3050
    %v3052 = vmul.f32 %v3005, 1.442695
    %v3053 = vpow.pop %v3052
    %v3054 = vsel %vm2909, %v3007, 0.0
    %3055 = vadd.xlane.f32.xlu0 %v3054
    %v3056 = vpop.xlane.xlu0 %3055
    %v3057 = vsel %vm2909, %v3009, 0.0
    %3058 = vadd.xlane.f32.xlu0 %v3057
    %v3059 = vpop.xlane.xlu0 %3058
    %v3060 = vsel %vm2909, %v3011, 0.0
    %3061 = vadd.xlane.f32.xlu0 %v3060
    %v3062 = vpop.xlane.xlu0 %3061
    %v3063 = vsel %vm2909, %v3013, 0.0
    %3064 = vadd.xlane.f32.xlu0 %v3063
    %v3065 = vpop.xlane.xlu0 %3064
    %v3066 = vsel %vm2909, %v3015, 0.0
    %3067 = vadd.xlane.f32.xlu0 %v3066
    %v3068 = vpop.xlane.xlu0 %3067
    %v3069 = vsel %vm2909, %v3017, 0.0
    %3070 = vadd.xlane.f32.xlu0 %v3069
    %v3071 = vpop.xlane.xlu0 %3070
    %v3072 = vsel %vm2909, %v3019, 0.0
    %3073 = vadd.xlane.f32.xlu0 %v3072
    %v3074 = vpop.xlane.xlu0 %3073
    %v3075 = vsel %vm2909, %v3021, 0.0
    %3076 = vadd.xlane.f32.xlu0 %v3075
    %v3077 = vpop.xlane.xlu0 %3076
    %v3078 = vsel %vm2909, %v3023, 0.0
    %3079 = vadd.xlane.f32.xlu0 %v3078
    %v3080 = vpop.xlane.xlu0 %3079
    %v3081 = vsel %vm2909, %v3025, 0.0
    %3082 = vadd.xlane.f32.xlu0 %v3081
    %v3083 = vpop.xlane.xlu0 %3082
    %v3084 = vsel %vm2909, %v3027, 0.0
    %3085 = vadd.xlane.f32.xlu0 %v3084
    %v3086 = vpop.xlane.xlu0 %3085
    %v3087 = vsel %vm2909, %v3029, 0.0
    %3088 = vadd.xlane.f32.xlu0 %v3087
    %v3089 = vpop.xlane.xlu0 %3088
    %v3090 = vsel %vm2909, %v3031, 0.0
    %3091 = vadd.xlane.f32.xlu0 %v3090
    %v3092 = vpop.xlane.xlu0 %3091
    %v3093 = vsel %vm2909, %v3033, 0.0
    %3094 = vadd.xlane.f32.xlu0 %v3093
    %v3095 = vpop.xlane.xlu0 %3094
    %v3096 = vsel %vm2909, %v3035, 0.0
    %3097 = vadd.xlane.f32.xlu0 %v3096
    %v3098 = vpop.xlane.xlu0 %3097
    %v3099 = vsel %vm2909, %v3037, 0.0
    %3100 = vadd.xlane.f32.xlu0 %v3099
    %v3101 = vpop.xlane.xlu0 %3100
    %v3102 = vsel %vm2909, %v3039, 0.0
    %3103 = vadd.xlane.f32.xlu0 %v3102
    %v3104 = vpop.xlane.xlu0 %3103
    %v3105 = vsel %vm2909, %v3041, 0.0
    %3106 = vadd.xlane.f32.xlu0 %v3105
    %v3107 = vpop.xlane.xlu0 %3106
    %v3108 = vsel %vm2909, %v3043, 0.0
    %3109 = vadd.xlane.f32.xlu0 %v3108
    %v3110 = vpop.xlane.xlu0 %3109
    %v3111 = vsel %vm2909, %v3045, 0.0
    %3112 = vadd.xlane.f32.xlu0 %v3111
    %v3113 = vpop.xlane.xlu0 %3112
    %v3114 = vsel %vm2909, %v3047, 0.0
    %3115 = vadd.xlane.f32.xlu0 %v3114
    %v3116 = vpop.xlane.xlu0 %3115
    %v3117 = vsel %vm2909, %v3049, 0.0
    %3118 = vadd.xlane.f32.xlu0 %v3117
    %v3119 = vpop.xlane.xlu0 %3118
    %v3120 = vsel %vm2909, %v3051, 0.0
    %3121 = vadd.xlane.f32.xlu0 %v3120
    %v3122 = vpop.xlane.xlu0 %3121
    %v3123 = vsel %vm2909, %v3053, 0.0
    %3124 = vadd.xlane.f32.xlu0 %v3123
    %v3125 = vpop.xlane.xlu0 %3124
    %v3126 = vrcp.pop %v3056
    %v3127 = vrcp.pop %v3059
    %v3128 = vrcp.pop %v3062
    %v3129 = vrcp.pop %v3065
    %v3130 = vrcp.pop %v3068
    %v3131 = vrcp.pop %v3071
    %v3132 = vrcp.pop %v3074
    %v3133 = vrcp.pop %v3077
    %v3134 = vrcp.pop %v3080
    %v3135 = vrcp.pop %v3083
    %v3136 = vrcp.pop %v3086
    %v3137 = vrcp.pop %v3089
    %v3138 = vrcp.pop %v3092
    %v3139 = vrcp.pop %v3095
    %v3140 = vrcp.pop %v3098
    %v3141 = vrcp.pop %v3101
    %v3142 = vrcp.pop %v3104
    %v3143 = vrcp.pop %v3107
    %v3144 = vrcp.pop %v3110
    %v3145 = vrcp.pop %v3113
    %v3146 = vrcp.pop %v3116
    %v3147 = vrcp.pop %v3119
    %v3148 = vrcp.pop %v3122
    %v3149 = vrcp.pop %v3125
    %v3150 = vmul.f32 %v3007, %v3126
    %v3151 = vmul.f32 %v3009, %v3127
    %v3152 = vmul.f32 %v3011, %v3128
    %v3153 = vmul.f32 %v3013, %v3129
    %v3154 = vmul.f32 %v3015, %v3130
    %v3155 = vmul.f32 %v3017, %v3131
    %v3156 = vmul.f32 %v3019, %v3132
    %v3157 = vmul.f32 %v3021, %v3133
    %v3158 = vmul.f32 %v3023, %v3134
    %v3159 = vmul.f32 %v3025, %v3135
    %v3160 = vmul.f32 %v3027, %v3136
    %v3161 = vmul.f32 %v3029, %v3137
    %v3162 = vmul.f32 %v3031, %v3138
    %v3163 = vmul.f32 %v3033, %v3139
    %v3164 = vmul.f32 %v3035, %v3140
    %v3165 = vmul.f32 %v3037, %v3141
    %v3166 = vmul.f32 %v3039, %v3142
    %v3167 = vmul.f32 %v3041, %v3143
    %v3168 = vmul.f32 %v3043, %v3144
    %v3169 = vmul.f32 %v3045, %v3145
    %v3170 = vmul.f32 %v3047, %v3146
    %v3171 = vmul.f32 %v3049, %v3147
    %v3172 = vmul.f32 %v3051, %v3148
    %v3173 = vmul.f32 %v3053, %v3149
    %v3174 = vpack.c.bf16 %v3151, %v3150
    %v3175 = vpack.c.bf16 %v3153, %v3152
    %v3176 = vpack.c.bf16 %v3155, %v3154
    %v3177 = vpack.c.bf16 %v3157, %v3156
    %v3178 = vpack.c.bf16 %v3159, %v3158
    %v3179 = vpack.c.bf16 %v3161, %v3160
    %v3180 = vpack.c.bf16 %v3163, %v3162
    %v3181 = vpack.c.bf16 %v3165, %v3164
    %v3182 = vpack.c.bf16 %v3167, %v3166
    %v3183 = vpack.c.bf16 %v3169, %v3168
    %v3184 = vpack.c.bf16 %v3171, %v3170
    %v3185 = vpack.c.bf16 %v3173, %v3172
    %v3187 = vsel %vm2909, %v3174, 0
    %3189 = vmatprep.subr.bf16.mxu0 0
    %3190 = vmatpush1.bf16.msra.mxu0 %v2243
    %3191 = vmatprep.subr.bf16.mxu0 0
    %3192 = vmatpush1.bf16.msra.mxu0 0
    %3193 = vmatprep.subr.bf16.mxu0 0
    %3194 = vmatpush1.bf16.msra.mxu0 0
    %3195 = vmatprep.subr.bf16.mxu0 0
    %3196 = vmatpush1.bf16.msra.mxu0 0
    %3197 = vmatprep.subr.bf16.mxu0 0
    %3198 = vmatpush1.bf16.msra.mxu0 0
    %3199 = vmatprep.subr.bf16.mxu0 0
    %3200 = vmatpush1.bf16.msra.mxu0 0
    %3201 = vmatprep.subr.bf16.mxu0 0
    %3202 = vmatpush1.bf16.msra.mxu0 0
    %3203 = vmatprep.subr.bf16.mxu0 0
    %3204 = vmatpush1.bf16.msra.mxu0 0
    %3205 = vmatprep.subr.bf16.mxu0 0
    %3206 = vmatpush1.bf16.msra.mxu0 0
    %3207 = vmatprep.subr.bf16.mxu0 0
    %3208 = vmatpush1.bf16.msra.mxu0 0
    %3209 = vmatprep.subr.bf16.mxu0 0
    %3210 = vmatpush1.bf16.msra.mxu0 0
    %3211 = vmatprep.subr.bf16.mxu0 0
    %3212 = vmatpush1.bf16.msra.mxu0 0
    %3213 = vmatprep.subr.bf16.mxu0 0
    %3214 = vmatpush1.bf16.msra.mxu0 0
    %3215 = vmatprep.subr.bf16.mxu0 0
    %3216 = vmatpush1.bf16.msra.mxu0 0
    %3217 = vmatprep.subr.bf16.mxu0 0
    %3218 = vmatpush1.bf16.msra.mxu0 0
    %3219 = vmatprep.subr.bf16.mxu0 0
    %3220 = vmatpush1.bf16.msra.mxu0 0
    %3221 = vmatprep.mubr.bf16.mxu0 0
    %3222 = vmatmul.mubr.bf16.gmra.mrb[0].mxu0 %v3187
    %v3223 = vpop.f32.mrb[0].mxu0
    %v3224 = vadd.f32 0.0, %v3223
    %v3225 = vpop.f32.mrb[0].mxu0
    %v3226 = vpop.f32.mrb[0].mxu0
    %v3227 = vadd.f32 0.0, %v3226
    %v3228 = vpop.f32.mrb[0].mxu0
    %3229 = vdwg.mxu0
    %v3231 = vsel %vm2909, %v3175, 0
    %3233 = vmatprep.subr.bf16.mxu0 0
    %3234 = vmatpush1.bf16.msra.mxu0 %v2246
    %3235 = vmatprep.subr.bf16.mxu0 0
    %3236 = vmatpush1.bf16.msra.mxu0 0
    %3237 = vmatprep.subr.bf16.mxu0 0
    %3238 = vmatpush1.bf16.msra.mxu0 0
    %3239 = vmatprep.subr.bf16.mxu0 0
    %3240 = vmatpush1.bf16.msra.mxu0 0
    %3241 = vmatprep.subr.bf16.mxu0 0
    %3242 = vmatpush1.bf16.msra.mxu0 0
    %3243 = vmatprep.subr.bf16.mxu0 0
    %3244 = vmatpush1.bf16.msra.mxu0 0
    %3245 = vmatprep.subr.bf16.mxu0 0
    %3246 = vmatpush1.bf16.msra.mxu0 0
    %3247 = vmatprep.subr.bf16.mxu0 0
    %3248 = vmatpush1.bf16.msra.mxu0 0
    %3249 = vmatprep.subr.bf16.mxu0 0
    %3250 = vmatpush1.bf16.msra.mxu0 0
    %3251 = vmatprep.subr.bf16.mxu0 0
    %3252 = vmatpush1.bf16.msra.mxu0 0
    %3253 = vmatprep.subr.bf16.mxu0 0
    %3254 = vmatpush1.bf16.msra.mxu0 0
    %3255 = vmatprep.subr.bf16.mxu0 0
    %3256 = vmatpush1.bf16.msra.mxu0 0
    %3257 = vmatprep.subr.bf16.mxu0 0
    %3258 = vmatpush1.bf16.msra.mxu0 0
    %3259 = vmatprep.subr.bf16.mxu0 0
    %3260 = vmatpush1.bf16.msra.mxu0 0
    %3261 = vmatprep.subr.bf16.mxu0 0
    %3262 = vmatpush1.bf16.msra.mxu0 0
    %3263 = vmatprep.subr.bf16.mxu0 0
    %3264 = vmatpush1.bf16.msra.mxu0 0
    %3265 = vmatprep.mubr.bf16.mxu0 0
    %3266 = vmatmul.mubr.bf16.gmra.mrb[0].mxu0 %v3231
    %v3267 = vpop.f32.mrb[0].mxu0
    %v3268 = vadd.f32 0.0, %v3267
    %v3269 = vpop.f32.mrb[0].mxu0
    %v3270 = vpop.f32.mrb[0].mxu0
    %v3271 = vadd.f32 0.0, %v3270
    %v3272 = vpop.f32.mrb[0].mxu0
    %3273 = vdwg.mxu0
    %v3275 = vsel %vm2909, %v3176, 0
    %3277 = vmatprep.subr.bf16.mxu0 0
    %3278 = vmatpush1.bf16.msra.mxu0 %v2288
    %3279 = vmatprep.subr.bf16.mxu0 0
    %3280 = vmatpush1.bf16.msra.mxu0 0
    %3281 = vmatprep.subr.bf16.mxu0 0
    %3282 = vmatpush1.bf16.msra.mxu0 0
    %3283 = vmatprep.subr.bf16.mxu0 0
    %3284 = vmatpush1.bf16.msra.mxu0 0
    %3285 = vmatprep.subr.bf16.mxu0 0
    %3286 = vmatpush1.bf16.msra.mxu0 0
    %3287 = vmatprep.subr.bf16.mxu0 0
    %3288 = vmatpush1.bf16.msra.mxu0 0
    %3289 = vmatprep.subr.bf16.mxu0 0
    %3290 = vmatpush1.bf16.msra.mxu0 0
    %3291 = vmatprep.subr.bf16.mxu0 0
    %3292 = vmatpush1.bf16.msra.mxu0 0
    %3293 = vmatprep.subr.bf16.mxu0 0
    %3294 = vmatpush1.bf16.msra.mxu0 0
    %3295 = vmatprep.subr.bf16.mxu0 0
    %3296 = vmatpush1.bf16.msra.mxu0 0
    %3297 = vmatprep.subr.bf16.mxu0 0
    %3298 = vmatpush1.bf16.msra.mxu0 0
    %3299 = vmatprep.subr.bf16.mxu0 0
    %3300 = vmatpush1.bf16.msra.mxu0 0
    %3301 = vmatprep.subr.bf16.mxu0 0
    %3302 = vmatpush1.bf16.msra.mxu0 0
    %3303 = vmatprep.subr.bf16.mxu0 0
    %3304 = vmatpush1.bf16.msra.mxu0 0
    %3305 = vmatprep.subr.bf16.mxu0 0
    %3306 = vmatpush1.bf16.msra.mxu0 0
    %3307 = vmatprep.subr.bf16.mxu0 0
    %3308 = vmatpush1.bf16.msra.mxu0 0
    %3309 = vmatprep.mubr.bf16.mxu0 0
    %3310 = vmatmul.mubr.bf16.gmra.mrb[0].mxu0 %v3275
    %v3311 = vpop.f32.mrb[0].mxu0
    %v3312 = vadd.f32 0.0, %v3311
    %v3313 = vpop.f32.mrb[0].mxu0
    %v3314 = vpop.f32.mrb[0].mxu0
    %v3315 = vadd.f32 0.0, %v3314
    %v3316 = vpop.f32.mrb[0].mxu0
    %3317 = vdwg.mxu0
    %v3319 = vsel %vm2909, %v3177, 0
    %3321 = vmatprep.subr.bf16.mxu0 0
    %3322 = vmatpush1.bf16.msra.mxu0 %v2290
    %3323 = vmatprep.subr.bf16.mxu0 0
    %3324 = vmatpush1.bf16.msra.mxu0 0
    %3325 = vmatprep.subr.bf16.mxu0 0
    %3326 = vmatpush1.bf16.msra.mxu0 0
    %3327 = vmatprep.subr.bf16.mxu0 0
    %3328 = vmatpush1.bf16.msra.mxu0 0
    %3329 = vmatprep.subr.bf16.mxu0 0
    %3330 = vmatpush1.bf16.msra.mxu0 0
    %3331 = vmatprep.subr.bf16.mxu0 0
    %3332 = vmatpush1.bf16.msra.mxu0 0
    %3333 = vmatprep.subr.bf16.mxu0 0
    %3334 = vmatpush1.bf16.msra.mxu0 0
    %3335 = vmatprep.subr.bf16.mxu0 0
    %3336 = vmatpush1.bf16.msra.mxu0 0
    %3337 = vmatprep.subr.bf16.mxu0 0
    %3338 = vmatpush1.bf16.msra.mxu0 0
    %3339 = vmatprep.subr.bf16.mxu0 0
    %3340 = vmatpush1.bf16.msra.mxu0 0
    %3341 = vmatprep.subr.bf16.mxu0 0
    %3342 = vmatpush1.bf16.msra.mxu0 0
    %3343 = vmatprep.subr.bf16.mxu0 0
    %3344 = vmatpush1.bf16.msra.mxu0 0
    %3345 = vmatprep.subr.bf16.mxu0 0
    %3346 = vmatpush1.bf16.msra.mxu0 0
    %3347 = vmatprep.subr.bf16.mxu0 0
    %3348 = vmatpush1.bf16.msra.mxu0 0
    %3349 = vmatprep.subr.bf16.mxu0 0
    %3350 = vmatpush1.bf16.msra.mxu0 0
    %3351 = vmatprep.subr.bf16.mxu0 0
    %3352 = vmatpush1.bf16.msra.mxu0 0
    %3353 = vmatprep.mubr.bf16.mxu0 0
    %3354 = vmatmul.mubr.bf16.gmra.mrb[0].mxu0 %v3319
    %v3355 = vpop.f32.mrb[0].mxu0
    %v3356 = vadd.f32 0.0, %v3355
    %v3357 = vpop.f32.mrb[0].mxu0
    %v3358 = vpop.f32.mrb[0].mxu0
    %v3359 = vadd.f32 0.0, %v3358
    %v3360 = vpop.f32.mrb[0].mxu0
    %3361 = vdwg.mxu0
    %v3363 = vsel %vm2909, %v3178, 0
    %3365 = vmatprep.subr.bf16.mxu0 0
    %3366 = vmatpush1.bf16.msra.mxu0 %v2244
    %3367 = vmatprep.subr.bf16.mxu0 0
    %3368 = vmatpush1.bf16.msra.mxu0 0
    %3369 = vmatprep.subr.bf16.mxu0 0
    %3370 = vmatpush1.bf16.msra.mxu0 0
    %3371 = vmatprep.subr.bf16.mxu0 0
    %3372 = vmatpush1.bf16.msra.mxu0 0
    %3373 = vmatprep.subr.bf16.mxu0 0
    %3374 = vmatpush1.bf16.msra.mxu0 0
    %3375 = vmatprep.subr.bf16.mxu0 0
    %3376 = vmatpush1.bf16.msra.mxu0 0
    %3377 = vmatprep.subr.bf16.mxu0 0
    %3378 = vmatpush1.bf16.msra.mxu0 0
    %3379 = vmatprep.subr.bf16.mxu0 0
    %3380 = vmatpush1.bf16.msra.mxu0 0
    %3381 = vmatprep.subr.bf16.mxu0 0
    %3382 = vmatpush1.bf16.msra.mxu0 0
    %3383 = vmatprep.subr.bf16.mxu0 0
    %3384 = vmatpush1.bf16.msra.mxu0 0
    %3385 = vmatprep.subr.bf16.mxu0 0
    %3386 = vmatpush1.bf16.msra.mxu0 0
    %3387 = vmatprep.subr.bf16.mxu0 0
    %3388 = vmatpush1.bf16.msra.mxu0 0
    %3389 = vmatprep.subr.bf16.mxu0 0
    %3390 = vmatpush1.bf16.msra.mxu0 0
    %3391 = vmatprep.subr.bf16.mxu0 0
    %3392 = vmatpush1.bf16.msra.mxu0 0
    %3393 = vmatprep.subr.bf16.mxu0 0
    %3394 = vmatpush1.bf16.msra.mxu0 0
    %3395 = vmatprep.subr.bf16.mxu0 0
    %3396 = vmatpush1.bf16.msra.mxu0 0
    %3397 = vmatprep.mubr.bf16.mxu0 0
    %3398 = vmatmul.mubr.bf16.gmra.mrb[0].mxu0 %v3363
    %v3399 = vpop.f32.mrb[0].mxu0
    %v3400 = vadd.f32 0.0, %v3399
    %v3401 = vpop.f32.mrb[0].mxu0
    %v3402 = vpop.f32.mrb[0].mxu0
    %v3403 = vadd.f32 0.0, %v3402
    %v3404 = vpop.f32.mrb[0].mxu0
    %3405 = vdwg.mxu0
    %v3407 = vsel %vm2909, %v3179, 0
    %3409 = vmatprep.subr.bf16.mxu0 0
    %3410 = vmatpush1.bf16.msra.mxu0 %v2247
    %3411 = vmatprep.subr.bf16.mxu0 0
    %3412 = vmatpush1.bf16.msra.mxu0 0
    %3413 = vmatprep.subr.bf16.mxu0 0
    %3414 = vmatpush1.bf16.msra.mxu0 0
    %3415 = vmatprep.subr.bf16.mxu0 0
    %3416 = vmatpush1.bf16.msra.mxu0 0
    %3417 = vmatprep.subr.bf16.mxu0 0
    %3418 = vmatpush1.bf16.msra.mxu0 0
    %3419 = vmatprep.subr.bf16.mxu0 0
    %3420 = vmatpush1.bf16.msra.mxu0 0
    %3421 = vmatprep.subr.bf16.mxu0 0
    %3422 = vmatpush1.bf16.msra.mxu0 0
    %3423 = vmatprep.subr.bf16.mxu0 0
    %3424 = vmatpush1.bf16.msra.mxu0 0
    %3425 = vmatprep.subr.bf16.mxu0 0
    %3426 = vmatpush1.bf16.msra.mxu0 0
    %3427 = vmatprep.subr.bf16.mxu0 0
    %3428 = vmatpush1.bf16.msra.mxu0 0
    %3429 = vmatprep.subr.bf16.mxu0 0
    %3430 = vmatpush1.bf16.msra.mxu0 0
    %3431 = vmatprep.subr.bf16.mxu0 0
    %3432 = vmatpush1.bf16.msra.mxu0 0
    %3433 = vmatprep.subr.bf16.mxu0 0
    %3434 = vmatpush1.bf16.msra.mxu0 0
    %3435 = vmatprep.subr.bf16.mxu0 0
    %3436 = vmatpush1.bf16.msra.mxu0 0
    %3437 = vmatprep.subr.bf16.mxu0 0
    %3438 = vmatpush1.bf16.msra.mxu0 0
    %3439 = vmatprep.subr.bf16.mxu0 0
    %3440 = vmatpush1.bf16.msra.mxu0 0
    %3441 = vmatprep.mubr.bf16.mxu0 0
    %3442 = vmatmul.mubr.bf16.gmra.mrb[0].mxu0 %v3407
    %v3443 = vpop.f32.mrb[0].mxu0
    %v3444 = vadd.f32 0.0, %v3443
    %v3445 = vpop.f32.mrb[0].mxu0
    %v3446 = vpop.f32.mrb[0].mxu0
    %v3447 = vadd.f32 0.0, %v3446
    %v3448 = vpop.f32.mrb[0].mxu0
    %3449 = vdwg.mxu0
    %v3451 = vsel %vm2909, %v3180, 0
    %3453 = vmatprep.subr.bf16.mxu0 0
    %3454 = vmatpush1.bf16.msra.mxu0 %v2296
    %3455 = vmatprep.subr.bf16.mxu0 0
    %3456 = vmatpush1.bf16.msra.mxu0 0
    %3457 = vmatprep.subr.bf16.mxu0 0
    %3458 = vmatpush1.bf16.msra.mxu0 0
    %3459 = vmatprep.subr.bf16.mxu0 0
    %3460 = vmatpush1.bf16.msra.mxu0 0
    %3461 = vmatprep.subr.bf16.mxu0 0
    %3462 = vmatpush1.bf16.msra.mxu0 0
    %3463 = vmatprep.subr.bf16.mxu0 0
    %3464 = vmatpush1.bf16.msra.mxu0 0
    %3465 = vmatprep.subr.bf16.mxu0 0
    %3466 = vmatpush1.bf16.msra.mxu0 0
    %3467 = vmatprep.subr.bf16.mxu0 0
    %3468 = vmatpush1.bf16.msra.mxu0 0
    %3469 = vmatprep.subr.bf16.mxu0 0
    %3470 = vmatpush1.bf16.msra.mxu0 0
    %3471 = vmatprep.subr.bf16.mxu0 0
    %3472 = vmatpush1.bf16.msra.mxu0 0
    %3473 = vmatprep.subr.bf16.mxu0 0
    %3474 = vmatpush1.bf16.msra.mxu0 0
    %3475 = vmatprep.subr.bf16.mxu0 0
    %3476 = vmatpush1.bf16.msra.mxu0 0
    %3477 = vmatprep.subr.bf16.mxu0 0
    %3478 = vmatpush1.bf16.msra.mxu0 0
    %3479 = vmatprep.subr.bf16.mxu0 0
    %3480 = vmatpush1.bf16.msra.mxu0 0
    %3481 = vmatprep.subr.bf16.mxu0 0
    %3482 = vmatpush1.bf16.msra.mxu0 0
    %3483 = vmatprep.subr.bf16.mxu0 0
    %3484 = vmatpush1.bf16.msra.mxu0 0
    %3485 = vmatprep.mubr.bf16.mxu0 0
    %3486 = vmatmul.mubr.bf16.gmra.mrb[0].mxu0 %v3451
    %v3487 = vpop.f32.mrb[0].mxu0
    %v3488 = vadd.f32 0.0, %v3487
    %v3489 = vpop.f32.mrb[0].mxu0
    %v3490 = vpop.f32.mrb[0].mxu0
    %v3491 = vadd.f32 0.0, %v3490
    %v3492 = vpop.f32.mrb[0].mxu0
    %3493 = vdwg.mxu0
    %v3495 = vsel %vm2909, %v3181, 0
    %3497 = vmatprep.subr.bf16.mxu0 0
    %3498 = vmatpush1.bf16.msra.mxu0 %v2298
    %3499 = vmatprep.subr.bf16.mxu0 0
    %3500 = vmatpush1.bf16.msra.mxu0 0
    %3501 = vmatprep.subr.bf16.mxu0 0
    %3502 = vmatpush1.bf16.msra.mxu0 0
    %3503 = vmatprep.subr.bf16.mxu0 0
    %3504 = vmatpush1.bf16.msra.mxu0 0
    %3505 = vmatprep.subr.bf16.mxu0 0
    %3506 = vmatpush1.bf16.msra.mxu0 0
    %3507 = vmatprep.subr.bf16.mxu0 0
    %3508 = vmatpush1.bf16.msra.mxu0 0
    %3509 = vmatprep.subr.bf16.mxu0 0
    %3510 = vmatpush1.bf16.msra.mxu0 0
    %3511 = vmatprep.subr.bf16.mxu0 0
    %3512 = vmatpush1.bf16.msra.mxu0 0
    %3513 = vmatprep.subr.bf16.mxu0 0
    %3514 = vmatpush1.bf16.msra.mxu0 0
    %3515 = vmatprep.subr.bf16.mxu0 0
    %3516 = vmatpush1.bf16.msra.mxu0 0
    %3517 = vmatprep.subr.bf16.mxu0 0
    %3518 = vmatpush1.bf16.msra.mxu0 0
    %3519 = vmatprep.subr.bf16.mxu0 0
    %3520 = vmatpush1.bf16.msra.mxu0 0
    %3521 = vmatprep.subr.bf16.mxu0 0
    %3522 = vmatpush1.bf16.msra.mxu0 0
    %3523 = vmatprep.subr.bf16.mxu0 0
    %3524 = vmatpush1.bf16.msra.mxu0 0
    %3525 = vmatprep.subr.bf16.mxu0 0
    %3526 = vmatpush1.bf16.msra.mxu0 0
    %3527 = vmatprep.subr.bf16.mxu0 0
    %3528 = vmatpush1.bf16.msra.mxu0 0
    %3529 = vmatprep.mubr.bf16.mxu0 0
    %3530 = vmatmul.mubr.bf16.gmra.mrb[0].mxu0 %v3495
    %v3531 = vpop.f32.mrb[0].mxu0
    %v3532 = vadd.f32 0.0, %v3531
    %v3533 = vpop.f32.mrb[0].mxu0
    %v3534 = vpop.f32.mrb[0].mxu0
    %v3535 = vadd.f32 0.0, %v3534
    %v3536 = vpop.f32.mrb[0].mxu0
    %3537 = vdwg.mxu0
    %v3539 = vsel %vm2909, %v3182, 0
    %3541 = vmatprep.subr.bf16.mxu0 0
    %3542 = vmatpush1.bf16.msra.mxu0 %v2245
    %3543 = vmatprep.subr.bf16.mxu0 0
    %3544 = vmatpush1.bf16.msra.mxu0 0
    %3545 = vmatprep.subr.bf16.mxu0 0
    %3546 = vmatpush1.bf16.msra.mxu0 0
    %3547 = vmatprep.subr.bf16.mxu0 0
    %3548 = vmatpush1.bf16.msra.mxu0 0
    %3549 = vmatprep.subr.bf16.mxu0 0
    %3550 = vmatpush1.bf16.msra.mxu0 0
    %3551 = vmatprep.subr.bf16.mxu0 0
    %3552 = vmatpush1.bf16.msra.mxu0 0
    %3553 = vmatprep.subr.bf16.mxu0 0
    %3554 = vmatpush1.bf16.msra.mxu0 0
    %3555 = vmatprep.subr.bf16.mxu0 0
    %3556 = vmatpush1.bf16.msra.mxu0 0
    %3557 = vmatprep.subr.bf16.mxu0 0
    %3558 = vmatpush1.bf16.msra.mxu0 0
    %3559 = vmatprep.subr.bf16.mxu0 0
    %3560 = vmatpush1.bf16.msra.mxu0 0
    %3561 = vmatprep.subr.bf16.mxu0 0
    %3562 = vmatpush1.bf16.msra.mxu0 0
    %3563 = vmatprep.subr.bf16.mxu0 0
    %3564 = vmatpush1.bf16.msra.mxu0 0
    %3565 = vmatprep.subr.bf16.mxu0 0
    %3566 = vmatpush1.bf16.msra.mxu0 0
    %3567 = vmatprep.subr.bf16.mxu0 0
    %3568 = vmatpush1.bf16.msra.mxu0 0
    %3569 = vmatprep.subr.bf16.mxu0 0
    %3570 = vmatpush1.bf16.msra.mxu0 0
    %3571 = vmatprep.subr.bf16.mxu0 0
    %3572 = vmatpush1.bf16.msra.mxu0 0
    %3573 = vmatprep.mubr.bf16.mxu0 0
    %3574 = vmatmul.mubr.bf16.gmra.mrb[0].mxu0 %v3539
    %v3575 = vpop.f32.mrb[0].mxu0
    %v3576 = vadd.f32 0.0, %v3575
    %v3577 = vpop.f32.mrb[0].mxu0
    %v3578 = vpop.f32.mrb[0].mxu0
    %v3579 = vadd.f32 0.0, %v3578
    %v3580 = vpop.f32.mrb[0].mxu0
    %3581 = vdwg.mxu0
    %v3583 = vsel %vm2909, %v3183, 0
    %3585 = vmatprep.subr.bf16.mxu0 0
    %3586 = vmatpush1.bf16.msra.mxu0 %v2248
    %3587 = vmatprep.subr.bf16.mxu0 0
    %3588 = vmatpush1.bf16.msra.mxu0 0
    %3589 = vmatprep.subr.bf16.mxu0 0
    %3590 = vmatpush1.bf16.msra.mxu0 0
    %3591 = vmatprep.subr.bf16.mxu0 0
    %3592 = vmatpush1.bf16.msra.mxu0 0
    %3593 = vmatprep.subr.bf16.mxu0 0
    %3594 = vmatpush1.bf16.msra.mxu0 0
    %3595 = vmatprep.subr.bf16.mxu0 0
    %3596 = vmatpush1.bf16.msra.mxu0 0
    %3597 = vmatprep.subr.bf16.mxu0 0
    %3598 = vmatpush1.bf16.msra.mxu0 0
    %3599 = vmatprep.subr.bf16.mxu0 0
    %3600 = vmatpush1.bf16.msra.mxu0 0
    %3601 = vmatprep.subr.bf16.mxu0 0
    %3602 = vmatpush1.bf16.msra.mxu0 0
    %3603 = vmatprep.subr.bf16.mxu0 0
    %3604 = vmatpush1.bf16.msra.mxu0 0
    %3605 = vmatprep.subr.bf16.mxu0 0
    %3606 = vmatpush1.bf16.msra.mxu0 0
    %3607 = vmatprep.subr.bf16.mxu0 0
    %3608 = vmatpush1.bf16.msra.mxu0 0
    %3609 = vmatprep.subr.bf16.mxu0 0
    %3610 = vmatpush1.bf16.msra.mxu0 0
    %3611 = vmatprep.subr.bf16.mxu0 0
    %3612 = vmatpush1.bf16.msra.mxu0 0
    %3613 = vmatprep.subr.bf16.mxu0 0
    %3614 = vmatpush1.bf16.msra.mxu0 0
    %3615 = vmatprep.subr.bf16.mxu0 0
    %3616 = vmatpush1.bf16.msra.mxu0 0
    %3617 = vmatprep.mubr.bf16.mxu0 0
    %3618 = vmatmul.mubr.bf16.gmra.mrb[0].mxu0 %v3583
    %v3619 = vpop.f32.mrb[0].mxu0
    %v3620 = vadd.f32 0.0, %v3619
    %v3621 = vpop.f32.mrb[0].mxu0
    %v3622 = vpop.f32.mrb[0].mxu0
    %v3623 = vadd.f32 0.0, %v3622
    %v3624 = vpop.f32.mrb[0].mxu0
    %3625 = vdwg.mxu0
    %v3627 = vsel %vm2909, %v3184, 0
    %3629 = vmatprep.subr.bf16.mxu0 0
    %3630 = vmatpush1.bf16.msra.mxu0 %v2304
    %3631 = vmatprep.subr.bf16.mxu0 0
    %3632 = vmatpush1.bf16.msra.mxu0 0
    %3633 = vmatprep.subr.bf16.mxu0 0
    %3634 = vmatpush1.bf16.msra.mxu0 0
    %3635 = vmatprep.subr.bf16.mxu0 0
    %3636 = vmatpush1.bf16.msra.mxu0 0
    %3637 = vmatprep.subr.bf16.mxu0 0
    %3638 = vmatpush1.bf16.msra.mxu0 0
    %3639 = vmatprep.subr.bf16.mxu0 0
    %3640 = vmatpush1.bf16.msra.mxu0 0
    %3641 = vmatprep.subr.bf16.mxu0 0
    %3642 = vmatpush1.bf16.msra.mxu0 0
    %3643 = vmatprep.subr.bf16.mxu0 0
    %3644 = vmatpush1.bf16.msra.mxu0 0
    %3645 = vmatprep.subr.bf16.mxu0 0
    %3646 = vmatpush1.bf16.msra.mxu0 0
    %3647 = vmatprep.subr.bf16.mxu0 0
    %3648 = vmatpush1.bf16.msra.mxu0 0
    %3649 = vmatprep.subr.bf16.mxu0 0
    %3650 = vmatpush1.bf16.msra.mxu0 0
    %3651 = vmatprep.subr.bf16.mxu0 0
    %3652 = vmatpush1.bf16.msra.mxu0 0
    %3653 = vmatprep.subr.bf16.mxu0 0
    %3654 = vmatpush1.bf16.msra.mxu0 0
    %3655 = vmatprep.subr.bf16.mxu0 0
    %3656 = vmatpush1.bf16.msra.mxu0 0
    %3657 = vmatprep.subr.bf16.mxu0 0
    %3658 = vmatpush1.bf16.msra.mxu0 0
    %3659 = vmatprep.subr.bf16.mxu0 0
    %3660 = vmatpush1.bf16.msra.mxu0 0
    %3661 = vmatprep.mubr.bf16.mxu0 0
    %3662 = vmatmul.mubr.bf16.gmra.mrb[0].mxu0 %v3627
    %v3663 = vpop.f32.mrb[0].mxu0
    %v3664 = vadd.f32 0.0, %v3663
    %v3665 = vpop.f32.mrb[0].mxu0
    %v3666 = vpop.f32.mrb[0].mxu0
    %v3667 = vadd.f32 0.0, %v3666
    %v3668 = vpop.f32.mrb[0].mxu0
    %3669 = vdwg.mxu0
    %v3671 = vsel %vm2909, %v3185, 0
    %3673 = vmatprep.subr.bf16.mxu0 0
    %3674 = vmatpush1.bf16.msra.mxu0 %v2306
    %3675 = vmatprep.subr.bf16.mxu0 0
    %3676 = vmatpush1.bf16.msra.mxu0 0
    %3677 = vmatprep.subr.bf16.mxu0 0
    %3678 = vmatpush1.bf16.msra.mxu0 0
    %3679 = vmatprep.subr.bf16.mxu0 0
    %3680 = vmatpush1.bf16.msra.mxu0 0
    %3681 = vmatprep.subr.bf16.mxu0 0
    %3682 = vmatpush1.bf16.msra.mxu0 0
    %3683 = vmatprep.subr.bf16.mxu0 0
    %3684 = vmatpush1.bf16.msra.mxu0 0
    %3685 = vmatprep.subr.bf16.mxu0 0
    %3686 = vmatpush1.bf16.msra.mxu0 0
    %3687 = vmatprep.subr.bf16.mxu0 0
    %3688 = vmatpush1.bf16.msra.mxu0 0
    %3689 = vmatprep.subr.bf16.mxu0 0
    %3690 = vmatpush1.bf16.msra.mxu0 0
    %3691 = vmatprep.subr.bf16.mxu0 0
    %3692 = vmatpush1.bf16.msra.mxu0 0
    %3693 = vmatprep.subr.bf16.mxu0 0
    %3694 = vmatpush1.bf16.msra.mxu0 0
    %3695 = vmatprep.subr.bf16.mxu0 0
    %3696 = vmatpush1.bf16.msra.mxu0 0
    %3697 = vmatprep.subr.bf16.mxu0 0
    %3698 = vmatpush1.bf16.msra.mxu0 0
    %3699 = vmatprep.subr.bf16.mxu0 0
    %3700 = vmatpush1.bf16.msra.mxu0 0
    %3701 = vmatprep.subr.bf16.mxu0 0
    %3702 = vmatpush1.bf16.msra.mxu0 0
    %3703 = vmatprep.subr.bf16.mxu0 0
    %3704 = vmatpush1.bf16.msra.mxu0 0
    %3705 = vmatprep.mubr.bf16.mxu0 0
    %3706 = vmatmul.mubr.bf16.gmra.mrb[0].mxu0 %v3671
    %v3707 = vpop.f32.mrb[0].mxu0
    %v3708 = vadd.f32 0.0, %v3707
    %v3709 = vpop.f32.mrb[0].mxu0
    %v3710 = vpop.f32.mrb[0].mxu0
    %v3711 = vadd.f32 0.0, %v3710
    %v3712 = vpop.f32.mrb[0].mxu0
    %3713 = vdwg.mxu0
    %3718 = vrot.lane.b32.xlu0 %v3312, 64
    %v3719 = vpop.permute.xlu0 %3718
    %3720 = vrot.lane.b32.xlu0 %v3315, 64
    %v3721 = vpop.permute.xlu0 %3720
    %3722 = vrot.lane.b32.xlu0 %v3356, 64
    %v3723 = vpop.permute.xlu0 %3722
    %3724 = vrot.lane.b32.xlu0 %v3359, 64
    %v3725 = vpop.permute.xlu0 %3724
    %3734 = vrot.lane.b32.xlu0 %v3488, 64
    %v3735 = vpop.permute.xlu0 %3734
    %3736 = vrot.lane.b32.xlu0 %v3491, 64
    %v3737 = vpop.permute.xlu0 %3736
    %3738 = vrot.lane.b32.xlu0 %v3532, 64
    %v3739 = vpop.permute.xlu0 %3738
    %3740 = vrot.lane.b32.xlu0 %v3535, 64
    %v3741 = vpop.permute.xlu0 %3740
    %3750 = vrot.lane.b32.xlu0 %v3664, 64
    %v3751 = vpop.permute.xlu0 %3750
    %3752 = vrot.lane.b32.xlu0 %v3667, 64
    %v3753 = vpop.permute.xlu0 %3752
    %3754 = vrot.lane.b32.xlu0 %v3708, 64
    %v3755 = vpop.permute.xlu0 %3754
    %3756 = vrot.lane.b32.xlu0 %v3711, 64
    %v3757 = vpop.permute.xlu0 %3756
    %v3762 = vsel %vm2309, %v3224, %v3719
    %v3763 = vsel %vm2309, %v3227, %v3721
    %v3764 = vsel %vm2309, %v3268, %v3723
    %v3765 = vsel %vm2309, %v3271, %v3725
    %v3766 = vsel %vm2309, %v3400, %v3735
    %v3767 = vsel %vm2309, %v3403, %v3737
    %v3768 = vsel %vm2309, %v3444, %v3739
    %v3769 = vsel %vm2309, %v3447, %v3741
    %v3770 = vsel %vm2309, %v3576, %v3751
    %v3771 = vsel %vm2309, %v3579, %v3753
    %v3772 = vsel %vm2309, %v3620, %v3755
    %v3773 = vsel %vm2309, %v3623, %v3757
    %v3774 = vpack.c.bf16 %v3763, %v3762
    %v3775 = vpack.c.bf16 %v3767, %v3766
    %v3776 = vpack.c.bf16 %v3771, %v3770
    %v3777 = vpack.c.bf16 %v3765, %v3764
    %v3778 = vpack.c.bf16 %v3769, %v3768
    %v3779 = vpack.c.bf16 %v3773, %v3772
    %v3780 = vld [vmem:[#allocation10] sm:$0xff]
    %v3781 = vld [vmem:[#allocation10 + $0x8] sm:$0xf]
    %v3782 = vld [vmem:[#allocation10 + $0xc] sm:$0xff]
    %v3783 = vld [vmem:[#allocation10 + $0x14] sm:$0xf]
    %v3784 = vld [vmem:[#allocation10 + $0x18] sm:$0xff]
    %v3785 = vld [vmem:[#allocation10 + $0x20] sm:$0xf]
    %v3786 = vld [vmem:[#allocation10 + $0x24] sm:$0xff]
    %v3787 = vld [vmem:[#allocation10 + $0x2c] sm:$0xf]
    %v3788 = vld [vmem:[#allocation10 + $0x30] sm:$0xff]
    %v3789 = vld [vmem:[#allocation10 + $0x38] sm:$0xf]
    %v3790 = vld [vmem:[#allocation10 + $0x3c] sm:$0xff]
    %v3791 = vld [vmem:[#allocation10 + $0x44] sm:$0xf]
    %v3792 = vld [vmem:[#allocation10 + $0x48] sm:$0xff]
    %v3793 = vld [vmem:[#allocation10 + $0x50] sm:$0xf]
    %v3794 = vld [vmem:[#allocation10 + $0x54] sm:$0xff]
    %v3795 = vld [vmem:[#allocation10 + $0x5c] sm:$0xf]
    %v3796 = vld [vmem:[#allocation10 + $0x60] sm:$0xff]
    %v3797 = vld [vmem:[#allocation10 + $0x68] sm:$0xf]
    %v3798 = vld [vmem:[#allocation10 + $0x6c] sm:$0xff]
    %v3799 = vld [vmem:[#allocation10 + $0x74] sm:$0xf]
    %v3800 = vld [vmem:[#allocation10 + $0x78] sm:$0xff]
    %v3801 = vld [vmem:[#allocation10 + $0x80] sm:$0xf]
    %v3802 = vld [vmem:[#allocation10 + $0x84] sm:$0xff]
    %v3803 = vld [vmem:[#allocation10 + $0x8c] sm:$0xf]
    %v3804 = vld [vmem:[#allocation10 + $0x90] sm:$0xff]
    %v3805 = vld [vmem:[#allocation10 + $0x98] sm:$0xf]
    %v3806 = vld [vmem:[#allocation10 + $0x9c] sm:$0xff]
    %v3807 = vld [vmem:[#allocation10 + $0xa4] sm:$0xf]
    %v3808 = vld [vmem:[#allocation10 + $0xa8] sm:$0xff]
    %v3809 = vld [vmem:[#allocation10 + $0xb0] sm:$0xf]
    %v3810 = vld [vmem:[#allocation10 + $0xb4] sm:$0xff]
    %v3811 = vld [vmem:[#allocation10 + $0xbc] sm:$0xf]
    %v3812 = vld [vmem:[#allocation10 + $0xc0] sm:$0xff]
    %v3813 = vld [vmem:[#allocation10 + $0xc8] sm:$0xf]
    %v3814 = vld [vmem:[#allocation10 + $0xcc] sm:$0xff]
    %v3815 = vld [vmem:[#allocation10 + $0xd4] sm:$0xf]
    %v3816 = vld [vmem:[#allocation10 + $0xd8] sm:$0xff]
    %v3817 = vld [vmem:[#allocation10 + $0xe0] sm:$0xf]
    %v3818 = vld [vmem:[#allocation10 + $0xe4] sm:$0xff]
    %v3819 = vld [vmem:[#allocation10 + $0xec] sm:$0xf]
    %v3820 = vld [vmem:[#allocation10 + $0xf0] sm:$0xff]
    %v3821 = vld [vmem:[#allocation10 + $0xf8] sm:$0xf]
    %v3822 = vld [vmem:[#allocation10 + $0xfc] sm:$0xff]
    %v3823 = vld [vmem:[#allocation10 + $0x104] sm:$0xf]
    %v3824 = vld [vmem:[#allocation10 + $0x108] sm:$0xff]
    %v3825 = vld [vmem:[#allocation10 + $0x110] sm:$0xf]
    %v3826 = vld [vmem:[#allocation10 + $0x114] sm:$0xff]
    %v3827 = vld [vmem:[#allocation10 + $0x11c] sm:$0xf]
    %v3828 = vld [vmem:[#allocation10 + $0x120] sm:$0xff]
    %v3829 = vld [vmem:[#allocation10 + $0x128] sm:$0xf]
    %v3830 = vld [vmem:[#allocation10 + $0x12c] sm:$0xff]
    %v3831 = vld [vmem:[#allocation10 + $0x134] sm:$0xf]
    %v3832 = vld [vmem:[#allocation10 + $0x138] sm:$0xff]
    %v3833 = vld [vmem:[#allocation10 + $0x140] sm:$0xf]
    %v3834 = vld [vmem:[#allocation10 + $0x144] sm:$0xff]
    %v3835 = vld [vmem:[#allocation10 + $0x14c] sm:$0xf]
    %v3836 = vld [vmem:[#allocation10 + $0x150] sm:$0xff]
    %v3837 = vld [vmem:[#allocation10 + $0x158] sm:$0xf]
    %v3838 = vld [vmem:[#allocation10 + $0x15c] sm:$0xff]
    %v3839 = vld [vmem:[#allocation10 + $0x164] sm:$0xf]
    %v3840 = vld [vmem:[#allocation10 + $0x168] sm:$0xff]
    %v3841 = vld [vmem:[#allocation10 + $0x170] sm:$0xf]
    %v3842 = vld [vmem:[#allocation10 + $0x174] sm:$0xff]
    %v3843 = vld [vmem:[#allocation10 + $0x17c] sm:$0xf]
    %v3844 = vld [vmem:[#allocation10 + $0x180] sm:$0xff]
    %v3845 = vld [vmem:[#allocation10 + $0x188] sm:$0xf]
    %v3846 = vld [vmem:[#allocation10 + $0x18c] sm:$0xff]
    %v3847 = vld [vmem:[#allocation10 + $0x194] sm:$0xf]
    %v3848 = vld [vmem:[#allocation10 + $0x198] sm:$0xff]
    %v3849 = vld [vmem:[#allocation10 + $0x1a0] sm:$0xf]
    %v3850 = vld [vmem:[#allocation10 + $0x1a4] sm:$0xff]
    %v3851 = vld [vmem:[#allocation10 + $0x1ac] sm:$0xf]
    %v3852 = vld [vmem:[#allocation10 + $0x1b0] sm:$0xff]
    %v3853 = vld [vmem:[#allocation10 + $0x1b8] sm:$0xf]
    %v3854 = vld [vmem:[#allocation10 + $0x1bc] sm:$0xff]
    %v3855 = vld [vmem:[#allocation10 + $0x1c4] sm:$0xf]
    %v3856 = vld [vmem:[#allocation10 + $0x1c8] sm:$0xff]
    %v3857 = vld [vmem:[#allocation10 + $0x1d0] sm:$0xf]
    %v3858 = vld [vmem:[#allocation10 + $0x1d4] sm:$0xff]
    %v3859 = vld [vmem:[#allocation10 + $0x1dc] sm:$0xf]
    %v3860 = vld [vmem:[#allocation10 + $0x1e0] sm:$0xff]
    %v3861 = vld [vmem:[#allocation10 + $0x1e8] sm:$0xf]
    %v3862 = vld [vmem:[#allocation10 + $0x1ec] sm:$0xff]
    %v3863 = vld [vmem:[#allocation10 + $0x1f4] sm:$0xf]
    %v3864 = vld [vmem:[#allocation10 + $0x1f8] sm:$0xff]
    %v3865 = vld [vmem:[#allocation10 + $0x200] sm:$0xf]
    %v3866 = vld [vmem:[#allocation10 + $0x204] sm:$0xff]
    %v3867 = vld [vmem:[#allocation10 + $0x20c] sm:$0xf]
    %v3868 = vld [vmem:[#allocation10 + $0x210] sm:$0xff]
    %v3869 = vld [vmem:[#allocation10 + $0x218] sm:$0xf]
    %v3870 = vld [vmem:[#allocation10 + $0x21c] sm:$0xff]
    %v3871 = vld [vmem:[#allocation10 + $0x224] sm:$0xf]
    %v3872 = vld [vmem:[#allocation10 + $0x228] sm:$0xff]
    %v3873 = vld [vmem:[#allocation10 + $0x230] sm:$0xf]
    %v3874 = vld [vmem:[#allocation10 + $0x234] sm:$0xff]
    %v3875 = vld [vmem:[#allocation10 + $0x23c] sm:$0xf]
    %v3876 = vld [vmem:[#allocation11] sm:$0x7]
    %v3878 = vlaneseq
    %v3879 = vshrl.u32 %v3878, 7
    %v3880 = vsub.s32 0, %v3879
    %v3881 = vrot.slane %v3876, %v3880
    %v3882 = vlaneseq
    %v3883 = vshrl.u32 %v3882, 7
    %v3884 = vsub.s32 1, %v3883
    %v3885 = vrot.slane %v3876, %v3884
    %v3886 = vlaneseq
    %v3887 = vshrl.u32 %v3886, 7
    %v3888 = vsub.s32 2, %v3887
    %v3889 = vrot.slane %v3876, %v3888
    %v3989 = vunpack.c.l.b16 %v3780
    %v3990 = vunpack.c.h.b16 %v3780
    %v3991 = vunpack.c.l.b16 %v3781
    %v3992 = vunpack.c.l.b16 %v3782
    %v3993 = vunpack.c.h.b16 %v3782
    %v3994 = vunpack.c.l.b16 %v3783
    %v3995 = vunpack.c.l.b16 %v3784
    %v3996 = vunpack.c.h.b16 %v3784
    %v3997 = vunpack.c.l.b16 %v3785
    %v3998 = vunpack.c.l.b16 %v3786
    %v3999 = vunpack.c.h.b16 %v3786
    %v4000 = vunpack.c.l.b16 %v3787
    %v4001 = vunpack.c.l.b16 %v3788
    %v4002 = vunpack.c.h.b16 %v3788
    %v4003 = vunpack.c.l.b16 %v3789
    %v4004 = vunpack.c.l.b16 %v3790
    %v4005 = vunpack.c.h.b16 %v3790
    %v4006 = vunpack.c.l.b16 %v3791
    %v4007 = vunpack.c.l.b16 %v3792
    %v4008 = vunpack.c.h.b16 %v3792
    %v4009 = vunpack.c.l.b16 %v3793
    %v4010 = vunpack.c.l.b16 %v3794
    %v4011 = vunpack.c.h.b16 %v3794
    %v4012 = vunpack.c.l.b16 %v3795
    %v4013 = vunpack.c.l.b16 %v3796
    %v4014 = vunpack.c.h.b16 %v3796
    %v4015 = vunpack.c.l.b16 %v3797
    %v4016 = vunpack.c.l.b16 %v3798
    %v4017 = vunpack.c.h.b16 %v3798
    %v4018 = vunpack.c.l.b16 %v3799
    %v4019 = vunpack.c.l.b16 %v3800
    %v4020 = vunpack.c.h.b16 %v3800
    %v4021 = vunpack.c.l.b16 %v3801
    %v4022 = vunpack.c.l.b16 %v3802
    %v4023 = vunpack.c.h.b16 %v3802
    %v4024 = vunpack.c.l.b16 %v3803
    %v4025 = vunpack.c.l.b16 %v3804
    %v4026 = vunpack.c.h.b16 %v3804
    %v4027 = vunpack.c.l.b16 %v3805
    %v4028 = vunpack.c.l.b16 %v3806
    %v4029 = vunpack.c.h.b16 %v3806
    %v4030 = vunpack.c.l.b16 %v3807
    %v4031 = vunpack.c.l.b16 %v3808
    %v4032 = vunpack.c.h.b16 %v3808
    %v4033 = vunpack.c.l.b16 %v3809
    %v4034 = vunpack.c.l.b16 %v3810
    %v4035 = vunpack.c.h.b16 %v3810
    %v4036 = vunpack.c.l.b16 %v3811
    %v4037 = vunpack.c.l.b16 %v3812
    %v4038 = vunpack.c.h.b16 %v3812
    %v4039 = vunpack.c.l.b16 %v3813
    %v4040 = vunpack.c.l.b16 %v3814
    %v4041 = vunpack.c.h.b16 %v3814
    %v4042 = vunpack.c.l.b16 %v3815
    %v4043 = vunpack.c.l.b16 %v3816
    %v4044 = vunpack.c.h.b16 %v3816
    %v4045 = vunpack.c.l.b16 %v3817
    %v4046 = vunpack.c.l.b16 %v3818
    %v4047 = vunpack.c.h.b16 %v3818
    %v4048 = vunpack.c.l.b16 %v3819
    %v4049 = vunpack.c.l.b16 %v3820
    %v4050 = vunpack.c.h.b16 %v3820
    %v4051 = vunpack.c.l.b16 %v3821
    %v4052 = vunpack.c.l.b16 %v3822
    %v4053 = vunpack.c.h.b16 %v3822
    %v4054 = vunpack.c.l.b16 %v3823
    %v4055 = vunpack.c.l.b16 %v3824
    %v4056 = vunpack.c.h.b16 %v3824
    %v4057 = vunpack.c.l.b16 %v3825
    %v4058 = vunpack.c.l.b16 %v3826
    %v4059 = vunpack.c.h.b16 %v3826
    %v4060 = vunpack.c.l.b16 %v3827
    %v4061 = vunpack.c.l.b16 %v3828
    %v4062 = vunpack.c.h.b16 %v3828
    %v4063 = vunpack.c.l.b16 %v3829
    %v4064 = vunpack.c.l.b16 %v3830
    %v4065 = vunpack.c.h.b16 %v3830
    %v4066 = vunpack.c.l.b16 %v3831
    %v4067 = vunpack.c.l.b16 %v3832
    %v4068 = vunpack.c.h.b16 %v3832
    %v4069 = vunpack.c.l.b16 %v3833
    %v4070 = vunpack.c.l.b16 %v3834
    %v4071 = vunpack.c.h.b16 %v3834
    %v4072 = vunpack.c.l.b16 %v3835
    %v4073 = vunpack.c.l.b16 %v3836
    %v4074 = vunpack.c.h.b16 %v3836
    %v4075 = vunpack.c.l.b16 %v3837
    %v4076 = vunpack.c.l.b16 %v3838
    %v4077 = vunpack.c.h.b16 %v3838
    %v4078 = vunpack.c.l.b16 %v3839
    %v4079 = vunpack.c.l.b16 %v3840
    %v4080 = vunpack.c.h.b16 %v3840
    %v4081 = vunpack.c.l.b16 %v3841
    %v4082 = vunpack.c.l.b16 %v3842
    %v4083 = vunpack.c.h.b16 %v3842
    %v4084 = vunpack.c.l.b16 %v3843
    %v4085 = vunpack.c.l.b16 %v3844
    %v4086 = vunpack.c.h.b16 %v3844
    %v4087 = vunpack.c.l.b16 %v3845
    %v4088 = vunpack.c.l.b16 %v3846
    %v4089 = vunpack.c.h.b16 %v3846
    %v4090 = vunpack.c.l.b16 %v3847
    %v4091 = vunpack.c.l.b16 %v3848
    %v4092 = vunpack.c.h.b16 %v3848
    %v4093 = vunpack.c.l.b16 %v3849
    %v4094 = vunpack.c.l.b16 %v3850
    %v4095 = vunpack.c.h.b16 %v3850
    %v4096 = vunpack.c.l.b16 %v3851
    %v4097 = vunpack.c.l.b16 %v3852
    %v4098 = vunpack.c.h.b16 %v3852
    %v4099 = vunpack.c.l.b16 %v3853
    %v4100 = vunpack.c.l.b16 %v3854
    %v4101 = vunpack.c.h.b16 %v3854
    %v4102 = vunpack.c.l.b16 %v3855
    %v4103 = vunpack.c.l.b16 %v3856
    %v4104 = vunpack.c.h.b16 %v3856
    %v4105 = vunpack.c.l.b16 %v3857
    %v4106 = vunpack.c.l.b16 %v3858
    %v4107 = vunpack.c.h.b16 %v3858
    %v4108 = vunpack.c.l.b16 %v3859
    %v4109 = vunpack.c.l.b16 %v3860
    %v4110 = vunpack.c.h.b16 %v3860
    %v4111 = vunpack.c.l.b16 %v3861
    %v4112 = vunpack.c.l.b16 %v3862
    %v4113 = vunpack.c.h.b16 %v3862
    %v4114 = vunpack.c.l.b16 %v3863
    %v4115 = vunpack.c.l.b16 %v3864
    %v4116 = vunpack.c.h.b16 %v3864
    %v4117 = vunpack.c.l.b16 %v3865
    %v4118 = vunpack.c.l.b16 %v3866
    %v4119 = vunpack.c.h.b16 %v3866
    %v4120 = vunpack.c.l.b16 %v3867
    %v4121 = vunpack.c.l.b16 %v3868
    %v4122 = vunpack.c.h.b16 %v3868
    %v4123 = vunpack.c.l.b16 %v3869
    %v4124 = vunpack.c.l.b16 %v3870
    %v4125 = vunpack.c.h.b16 %v3870
    %v4126 = vunpack.c.l.b16 %v3871
    %v4127 = vunpack.c.l.b16 %v3872
    %v4128 = vunpack.c.h.b16 %v3872
    %v4129 = vunpack.c.l.b16 %v3873
    %v4130 = vunpack.c.l.b16 %v3874
    %v4131 = vunpack.c.h.b16 %v3874
    %v4132 = vunpack.c.l.b16 %v3875
    %v4133 = vpack.c.b16 %v3992, %v3989
    %v4134 = vpack.c.b16 %v3993, %v3990
    %v4135 = vpack.c.b16 %v3994, %v3991
    %v4136 = vpack.c.b16 %v3998, %v3995
    %v4137 = vpack.c.b16 %v3999, %v3996
    %v4138 = vpack.c.b16 %v4000, %v3997
    %v4139 = vpack.c.b16 %v4004, %v4001
    %v4140 = vpack.c.b16 %v4005, %v4002
    %v4141 = vpack.c.b16 %v4006, %v4003
    %v4142 = vpack.c.b16 %v4010, %v4007
    %v4143 = vpack.c.b16 %v4011, %v4008
    %v4144 = vpack.c.b16 %v4012, %v4009
    %v4145 = vpack.c.b16 %v4016, %v4013
    %v4146 = vpack.c.b16 %v4017, %v4014
    %v4147 = vpack.c.b16 %v4018, %v4015
    %v4148 = vpack.c.b16 %v4022, %v4019
    %v4149 = vpack.c.b16 %v4023, %v4020
    %v4150 = vpack.c.b16 %v4024, %v4021
    %v4151 = vpack.c.b16 %v4028, %v4025
    %v4152 = vpack.c.b16 %v4029, %v4026
    %v4153 = vpack.c.b16 %v4030, %v4027
    %v4154 = vpack.c.b16 %v4034, %v4031
    %v4155 = vpack.c.b16 %v4035, %v4032
    %v4156 = vpack.c.b16 %v4036, %v4033
    %v4157 = vpack.c.b16 %v4040, %v4037
    %v4158 = vpack.c.b16 %v4041, %v4038
    %v4159 = vpack.c.b16 %v4042, %v4039
    %v4160 = vpack.c.b16 %v4046, %v4043
    %v4161 = vpack.c.b16 %v4047, %v4044
    %v4162 = vpack.c.b16 %v4048, %v4045
    %v4163 = vpack.c.b16 %v4052, %v4049
    %v4164 = vpack.c.b16 %v4053, %v4050
    %v4165 = vpack.c.b16 %v4054, %v4051
    %v4166 = vpack.c.b16 %v4058, %v4055
    %v4167 = vpack.c.b16 %v4059, %v4056
    %v4168 = vpack.c.b16 %v4060, %v4057
    %v4169 = vpack.c.b16 %v4064, %v4061
    %v4170 = vpack.c.b16 %v4065, %v4062
    %v4171 = vpack.c.b16 %v4066, %v4063
    %v4172 = vpack.c.b16 %v4070, %v4067
    %v4173 = vpack.c.b16 %v4071, %v4068
    %v4174 = vpack.c.b16 %v4072, %v4069
    %v4175 = vpack.c.b16 %v4076, %v4073
    %v4176 = vpack.c.b16 %v4077, %v4074
    %v4177 = vpack.c.b16 %v4078, %v4075
    %v4178 = vpack.c.b16 %v4082, %v4079
    %v4179 = vpack.c.b16 %v4083, %v4080
    %v4180 = vpack.c.b16 %v4084, %v4081
    %v4181 = vpack.c.b16 %v4088, %v4085
    %v4182 = vpack.c.b16 %v4089, %v4086
    %v4183 = vpack.c.b16 %v4090, %v4087
    %v4184 = vpack.c.b16 %v4094, %v4091
    %v4185 = vpack.c.b16 %v4095, %v4092
    %v4186 = vpack.c.b16 %v4096, %v4093
    %v4187 = vpack.c.b16 %v4100, %v4097
    %v4188 = vpack.c.b16 %v4101, %v4098
    %v4189 = vpack.c.b16 %v4102, %v4099
    %v4190 = vpack.c.b16 %v4106, %v4103
    %v4191 = vpack.c.b16 %v4107, %v4104
    %v4192 = vpack.c.b16 %v4108, %v4105
    %v4193 = vpack.c.b16 %v4112, %v4109
    %v4194 = vpack.c.b16 %v4113, %v4110
    %v4195 = vpack.c.b16 %v4114, %v4111
    %v4196 = vpack.c.b16 %v4118, %v4115
    %v4197 = vpack.c.b16 %v4119, %v4116
    %v4198 = vpack.c.b16 %v4120, %v4117
    %v4199 = vpack.c.b16 %v4124, %v4121
    %v4200 = vpack.c.b16 %v4125, %v4122
    %v4201 = vpack.c.b16 %v4126, %v4123
    %v4202 = vpack.c.b16 %v4130, %v4127
    %v4203 = vpack.c.b16 %v4131, %v4128
    %v4204 = vpack.c.b16 %v4132, %v4129
    %4277 = vmatprep.subr.bf16.mxu0 %v4134
    %4278 = vmatpush1.bf16.msra.mxu0 %v4133
    %4279 = vmatprep.subr.bf16.mxu0 %v4137
    %4280 = vmatpush1.bf16.msra.mxu0 %v4136
    %4281 = vmatprep.subr.bf16.mxu0 %v4140
    %4282 = vmatpush1.bf16.msra.mxu0 %v4139
    %4283 = vmatprep.subr.bf16.mxu0 %v4143
    %4284 = vmatpush1.bf16.msra.mxu0 %v4142
    %4285 = vmatprep.subr.bf16.mxu0 %v4146
    %4286 = vmatpush1.bf16.msra.mxu0 %v4145
    %4287 = vmatprep.subr.bf16.mxu0 %v4149
    %4288 = vmatpush1.bf16.msra.mxu0 %v4148
    %4289 = vmatprep.subr.bf16.mxu0 %v4152
    %4290 = vmatpush1.bf16.msra.mxu0 %v4151
    %4291 = vmatprep.subr.bf16.mxu0 %v4155
    %4292 = vmatpush1.bf16.msra.mxu0 %v4154
    %4293 = vmatprep.subr.bf16.mxu0 %v4158
    %4294 = vmatpush1.bf16.msra.mxu0 %v4157
    %4295 = vmatprep.subr.bf16.mxu0 %v4161
    %4296 = vmatpush1.bf16.msra.mxu0 %v4160
    %4297 = vmatprep.subr.bf16.mxu0 %v4164
    %4298 = vmatpush1.bf16.msra.mxu0 %v4163
    %4299 = vmatprep.subr.bf16.mxu0 %v4167
    %4300 = vmatpush1.bf16.msra.mxu0 %v4166
    %4301 = vmatprep.subr.bf16.mxu0 %v4170
    %4302 = vmatpush1.bf16.msra.mxu0 %v4169
    %4303 = vmatprep.subr.bf16.mxu0 %v4173
    %4304 = vmatpush1.bf16.msra.mxu0 %v4172
    %4305 = vmatprep.subr.bf16.mxu0 %v4176
    %4306 = vmatpush1.bf16.msra.mxu0 %v4175
    %4307 = vmatprep.subr.bf16.mxu0 %v4179
    %4308 = vmatpush1.bf16.msra.mxu0 %v4178
    %4309 = vmatprep.mubr.bf16.mxu0 %v3775
    %4310 = vmatmul.mubr.bf16.gmra.mrb[0].mxu0 %v3774
    %v4311 = vpop.f32.mrb[0].mxu0
    %v4312 = vadd.f32 %v3881, %v4311
    %v4313 = vpop.f32.mrb[0].mxu0
    %v4314 = vadd.f32 %v3885, %v4313
    %v4315 = vpop.f32.mrb[0].mxu0
    %v4316 = vadd.f32 %v3881, %v4315
    %v4317 = vpop.f32.mrb[0].mxu0
    %v4318 = vadd.f32 %v3885, %v4317
    %4319 = vmatprep.mubr.bf16.mxu0 %v3778
    %4320 = vmatmul.mubr.bf16.gmra.mrb[0].mxu0 %v3777
    %v4321 = vpop.f32.mrb[0].mxu0
    %v4322 = vadd.f32 %v3881, %v4321
    %v4323 = vpop.f32.mrb[0].mxu0
    %v4324 = vadd.f32 %v3885, %v4323
    %v4325 = vpop.f32.mrb[0].mxu0
    %v4326 = vadd.f32 %v3881, %v4325
    %v4327 = vpop.f32.mrb[0].mxu0
    %v4328 = vadd.f32 %v3885, %v4327
    %4329 = vdwg.mxu0
    %4330 = vmatprep.subr.bf16.mxu0 %v4182
    %4331 = vmatpush1.bf16.msra.mxu0 %v4181
    %4332 = vmatprep.subr.bf16.mxu0 %v4185
    %4333 = vmatpush1.bf16.msra.mxu0 %v4184
    %4334 = vmatprep.subr.bf16.mxu0 %v4188
    %4335 = vmatpush1.bf16.msra.mxu0 %v4187
    %4336 = vmatprep.subr.bf16.mxu0 %v4191
    %4337 = vmatpush1.bf16.msra.mxu0 %v4190
    %4338 = vmatprep.subr.bf16.mxu0 %v4194
    %4339 = vmatpush1.bf16.msra.mxu0 %v4193
    %4340 = vmatprep.subr.bf16.mxu0 %v4197
    %4341 = vmatpush1.bf16.msra.mxu0 %v4196
    %4342 = vmatprep.subr.bf16.mxu0 %v4200
    %4343 = vmatpush1.bf16.msra.mxu0 %v4199
    %4344 = vmatprep.subr.bf16.mxu0 %v4203
    %4345 = vmatpush1.bf16.msra.mxu0 %v4202
    %4346 = vmatprep.subr.bf16.mxu0 0
    %4347 = vmatpush1.bf16.msra.mxu0 0
    %4348 = vmatprep.subr.bf16.mxu0 0
    %4349 = vmatpush1.bf16.msra.mxu0 0
    %4350 = vmatprep.subr.bf16.mxu0 0
    %4351 = vmatpush1.bf16.msra.mxu0 0
    %4352 = vmatprep.subr.bf16.mxu0 0
    %4353 = vmatpush1.bf16.msra.mxu0 0
    %4354 = vmatprep.subr.bf16.mxu0 0
    %4355 = vmatpush1.bf16.msra.mxu0 0
    %4356 = vmatprep.subr.bf16.mxu0 0
    %4357 = vmatpush1.bf16.msra.mxu0 0
    %4358 = vmatprep.subr.bf16.mxu0 0
    %4359 = vmatpush1.bf16.msra.mxu0 0
    %4360 = vmatprep.subr.bf16.mxu0 0
    %4361 = vmatpush1.bf16.msra.mxu0 0
    %4362 = vmatprep.mubr.bf16.mxu0 0
    %4363 = vmatmul.mubr.bf16.gmra.mrb[0].mxu0 %v3776
    %v4364 = vpop.f32.mrb[0].mxu0
    %v4365 = vadd.f32 %v4312, %v4364
    %v4366 = vpop.f32.mrb[0].mxu0
    %v4367 = vadd.f32 %v4314, %v4366
    %v4368 = vpop.f32.mrb[0].mxu0
    %v4369 = vadd.f32 %v4316, %v4368
    %v4370 = vpop.f32.mrb[0].mxu0
    %v4371 = vadd.f32 %v4318, %v4370
    %4372 = vmatprep.mubr.bf16.mxu0 0
    %4373 = vmatmul.mubr.bf16.gmra.mrb[0].mxu0 %v3779
    %v4374 = vpop.f32.mrb[0].mxu0
    %v4375 = vadd.f32 %v4322, %v4374
    %v4376 = vpop.f32.mrb[0].mxu0
    %v4377 = vadd.f32 %v4324, %v4376
    %v4378 = vpop.f32.mrb[0].mxu0
    %v4379 = vadd.f32 %v4326, %v4378
    %v4380 = vpop.f32.mrb[0].mxu0
    %v4381 = vadd.f32 %v4328, %v4380
    %4382 = vdwg.mxu0
    %4383 = vmatprep.subr.bf16.mxu0 0
    %4384 = vmatpush1.bf16.msra.mxu0 %v4135
    %4385 = vmatprep.subr.bf16.mxu0 0
    %4386 = vmatpush1.bf16.msra.mxu0 %v4138
    %4387 = vmatprep.subr.bf16.mxu0 0
    %4388 = vmatpush1.bf16.msra.mxu0 %v4141
    %4389 = vmatprep.subr.bf16.mxu0 0
    %4390 = vmatpush1.bf16.msra.mxu0 %v4144
    %4391 = vmatprep.subr.bf16.mxu0 0
    %4392 = vmatpush1.bf16.msra.mxu0 %v4147
    %4393 = vmatprep.subr.bf16.mxu0 0
    %4394 = vmatpush1.bf16.msra.mxu0 %v4150
    %4395 = vmatprep.subr.bf16.mxu0 0
    %4396 = vmatpush1.bf16.msra.mxu0 %v4153
    %4397 = vmatprep.subr.bf16.mxu0 0
    %4398 = vmatpush1.bf16.msra.mxu0 %v4156
    %4399 = vmatprep.subr.bf16.mxu0 0
    %4400 = vmatpush1.bf16.msra.mxu0 %v4159
    %4401 = vmatprep.subr.bf16.mxu0 0
    %4402 = vmatpush1.bf16.msra.mxu0 %v4162
    %4403 = vmatprep.subr.bf16.mxu0 0
    %4404 = vmatpush1.bf16.msra.mxu0 %v4165
    %4405 = vmatprep.subr.bf16.mxu0 0
    %4406 = vmatpush1.bf16.msra.mxu0 %v4168
    %4407 = vmatprep.subr.bf16.mxu0 0
    %4408 = vmatpush1.bf16.msra.mxu0 %v4171
    %4409 = vmatprep.subr.bf16.mxu0 0
    %4410 = vmatpush1.bf16.msra.mxu0 %v4174
    %4411 = vmatprep.subr.bf16.mxu0 0
    %4412 = vmatpush1.bf16.msra.mxu0 %v4177
    %4413 = vmatprep.subr.bf16.mxu0 0
    %4414 = vmatpush1.bf16.msra.mxu0 %v4180
    %4415 = vmatprep.mubr.bf16.mxu0 %v3775
    %4416 = vmatmul.mubr.bf16.gmra.mrb[0].mxu0 %v3774
    %v4417 = vpop.f32.mrb[0].mxu0
    %v4418 = vadd.f32 %v3889, %v4417
    %v4419 = vpop.f32.mrb[0].mxu0
    %v4420 = vpop.f32.mrb[0].mxu0
    %v4421 = vadd.f32 %v3889, %v4420
    %v4422 = vpop.f32.mrb[0].mxu0
    %4423 = vmatprep.mubr.bf16.mxu0 %v3778
    %4424 = vmatmul.mubr.bf16.gmra.mrb[0].mxu0 %v3777
    %v4425 = vpop.f32.mrb[0].mxu0
    %v4426 = vadd.f32 %v3889, %v4425
    %v4427 = vpop.f32.mrb[0].mxu0
    %v4428 = vpop.f32.mrb[0].mxu0
    %v4429 = vadd.f32 %v3889, %v4428
    %v4430 = vpop.f32.mrb[0].mxu0
    %4431 = vdwg.mxu0
    %4432 = vmatprep.subr.bf16.mxu0 0
    %4433 = vmatpush1.bf16.msra.mxu0 %v4183
    %4434 = vmatprep.subr.bf16.mxu0 0
    %4435 = vmatpush1.bf16.msra.mxu0 %v4186
    %4436 = vmatprep.subr.bf16.mxu0 0
    %4437 = vmatpush1.bf16.msra.mxu0 %v4189
    %4438 = vmatprep.subr.bf16.mxu0 0
    %4439 = vmatpush1.bf16.msra.mxu0 %v4192
    %4440 = vmatprep.subr.bf16.mxu0 0
    %4441 = vmatpush1.bf16.msra.mxu0 %v4195
    %4442 = vmatprep.subr.bf16.mxu0 0
    %4443 = vmatpush1.bf16.msra.mxu0 %v4198
    %4444 = vmatprep.subr.bf16.mxu0 0
    %4445 = vmatpush1.bf16.msra.mxu0 %v4201
    %4446 = vmatprep.subr.bf16.mxu0 0
    %4447 = vmatpush1.bf16.msra.mxu0 %v4204
    %4448 = vmatprep.subr.bf16.mxu0 0
    %4449 = vmatpush1.bf16.msra.mxu0 0
    %4450 = vmatprep.subr.bf16.mxu0 0
    %4451 = vmatpush1.bf16.msra.mxu0 0
    %4452 = vmatprep.subr.bf16.mxu0 0
    %4453 = vmatpush1.bf16.msra.mxu0 0
    %4454 = vmatprep.subr.bf16.mxu0 0
    %4455 = vmatpush1.bf16.msra.mxu0 0
    %4456 = vmatprep.subr.bf16.mxu0 0
    %4457 = vmatpush1.bf16.msra.mxu0 0
    %4458 = vmatprep.subr.bf16.mxu0 0
    %4459 = vmatpush1.bf16.msra.mxu0 0
    %4460 = vmatprep.subr.bf16.mxu0 0
    %4461 = vmatpush1.bf16.msra.mxu0 0
    %4462 = vmatprep.subr.bf16.mxu0 0
    %4463 = vmatpush1.bf16.msra.mxu0 0
    %4464 = vmatprep.mubr.bf16.mxu0 0
    %4465 = vmatmul.mubr.bf16.gmra.mrb[0].mxu0 %v3776
    %v4466 = vpop.f32.mrb[0].mxu0
    %v4467 = vadd.f32 %v4418, %v4466
    %v4468 = vpop.f32.mrb[0].mxu0
    %v4469 = vpop.f32.mrb[0].mxu0
    %v4470 = vadd.f32 %v4421, %v4469
    %v4471 = vpop.f32.mrb[0].mxu0
    %4472 = vmatprep.mubr.bf16.mxu0 0
    %4473 = vmatmul.mubr.bf16.gmra.mrb[0].mxu0 %v3779
    %v4474 = vpop.f32.mrb[0].mxu0
    %v4475 = vadd.f32 %v4426, %v4474
    %v4476 = vpop.f32.mrb[0].mxu0
    %v4477 = vpop.f32.mrb[0].mxu0
    %v4478 = vadd.f32 %v4429, %v4477
    %v4479 = vpop.f32.mrb[0].mxu0
    %4480 = vdwg.mxu0
    %v4481 = vadd.f32 %v192, %v4365
    %v4482 = vadd.f32 %v193, %v4367
    %v4483 = vadd.f32 %v194, %v4467
    %v4484 = vadd.f32 %v195, %v4369
    %v4485 = vadd.f32 %v196, %v4371
    %v4486 = vadd.f32 %v197, %v4470
    %v4487 = vadd.f32 %v198, %v4375
    %v4488 = vadd.f32 %v199, %v4377
    %v4489 = vadd.f32 %v200, %v4475
    %v4490 = vadd.f32 %v201, %v4379
    %v4491 = vadd.f32 %v202, %v4381
    %v4492 = vadd.f32 %v203, %v4478
    %v4493 = vld [vmem:[#allocation13] sm:$0x7]
    %v4494 = vld [vmem:[#allocation14] sm:$0x7]
    %v4495 = vadd.f32 %v4481, %v4482
    %v4496 = vadd.f32 %v4495, %v4483
    %4497 = vadd.xlane.f32.xlu0 %v4496
    %v4498 = vpop.xlane.xlu0 %4497
    %v4499 = vadd.f32 %v4484, %v4485
    %v4500 = vadd.f32 %v4499, %v4486
    %4501 = vadd.xlane.f32.xlu0 %v4500
    %v4502 = vpop.xlane.xlu0 %4501
    %v4503 = vadd.f32 %v4487, %v4488
    %v4504 = vadd.f32 %v4503, %v4489
    %4505 = vadd.xlane.f32.xlu0 %v4504
    %v4506 = vpop.xlane.xlu0 %4505
    %v4507 = vadd.f32 %v4490, %v4491
    %v4508 = vadd.f32 %v4507, %v4492
    %4509 = vadd.xlane.f32.xlu0 %v4508
    %v4510 = vpop.xlane.xlu0 %4509
    %v4511 = vmul.f32 %v4498, %v222
    %v4512 = vmul.f32 %v4502, %v222
    %v4513 = vmul.f32 %v4506, %v222
    %v4514 = vmul.f32 %v4510, %v222
    %v4515 = vsub.f32 %v4481, %v4511
    %v4516 = vsub.f32 %v4482, %v4511
    %v4517 = vsub.f32 %v4483, %v4511
    %v4518 = vsub.f32 %v4484, %v4512
    %v4519 = vsub.f32 %v4485, %v4512
    %v4520 = vsub.f32 %v4486, %v4512
    %v4521 = vsub.f32 %v4487, %v4513
    %v4522 = vsub.f32 %v4488, %v4513
    %v4523 = vsub.f32 %v4489, %v4513
    %v4524 = vsub.f32 %v4490, %v4514
    %v4525 = vsub.f32 %v4491, %v4514
    %v4526 = vsub.f32 %v4492, %v4514
    %v4527 = vmul.f32 %v4515, %v4515
    %v4528 = vmul.f32 %v4516, %v4516
    %v4529 = vmul.f32 %v4517, %v4517
    %v4530 = vmul.f32 %v4518, %v4518
    %v4531 = vmul.f32 %v4519, %v4519
    %v4532 = vmul.f32 %v4520, %v4520
    %v4533 = vmul.f32 %v4521, %v4521
    %v4534 = vmul.f32 %v4522, %v4522
    %v4535 = vmul.f32 %v4523, %v4523
    %v4536 = vmul.f32 %v4524, %v4524
    %v4537 = vmul.f32 %v4525, %v4525
    %v4538 = vmul.f32 %v4526, %v4526
    %v4539 = vadd.f32 %v4527, %v4528
    %v4540 = vadd.f32 %v4539, %v4529
    %4541 = vadd.xlane.f32.xlu0 %v4540
    %v4542 = vpop.xlane.xlu0 %4541
    %v4543 = vadd.f32 %v4530, %v4531
    %v4544 = vadd.f32 %v4543, %v4532
    %4545 = vadd.xlane.f32.xlu0 %v4544
    %v4546 = vpop.xlane.xlu0 %4545
    %v4547 = vadd.f32 %v4533, %v4534
    %v4548 = vadd.f32 %v4547, %v4535
    %4549 = vadd.xlane.f32.xlu0 %v4548
    %v4550 = vpop.xlane.xlu0 %4549
    %v4551 = vadd.f32 %v4536, %v4537
    %v4552 = vadd.f32 %v4551, %v4538
    %4553 = vadd.xlane.f32.xlu0 %v4552
    %v4554 = vpop.xlane.xlu0 %4553
    %v4555 = vmul.f32 %v4542, %v222
    %v4556 = vmul.f32 %v4546, %v222
    %v4557 = vmul.f32 %v4550, %v222
    %v4558 = vmul.f32 %v4554, %v222
    %v4559 = vadd.f32 %v4555, 1e-05
    %v4560 = vadd.f32 %v4556, 1e-05
    %v4561 = vadd.f32 %v4557, 1e-05
    %v4562 = vadd.f32 %v4558, 1e-05
    %v4563 = vrsqrt.pop %v4559
    %v4564 = vrsqrt.pop %v4560
    %v4565 = vrsqrt.pop %v4561
    %v4566 = vrsqrt.pop %v4562
    %v4567 = vmul.f32 %v4515, %v4563
    %v4568 = vmul.f32 %v4516, %v4563
    %v4569 = vmul.f32 %v4517, %v4563
    %v4570 = vmul.f32 %v4518, %v4564
    %v4571 = vmul.f32 %v4519, %v4564
    %v4572 = vmul.f32 %v4520, %v4564
    %v4573 = vmul.f32 %v4521, %v4565
    %v4574 = vmul.f32 %v4522, %v4565
    %v4575 = vmul.f32 %v4523, %v4565
    %v4576 = vmul.f32 %v4524, %v4566
    %v4577 = vmul.f32 %v4525, %v4566
    %v4578 = vmul.f32 %v4526, %v4566
    %v4580 = vlaneseq
    %v4581 = vshrl.u32 %v4580, 7
    %v4582 = vsub.s32 0, %v4581
    %v4583 = vrot.slane %v4493, %v4582
    %v4584 = vlaneseq
    %v4585 = vshrl.u32 %v4584, 7
    %v4586 = vsub.s32 1, %v4585
    %v4587 = vrot.slane %v4493, %v4586
    %v4588 = vlaneseq
    %v4589 = vshrl.u32 %v4588, 7
    %v4590 = vsub.s32 2, %v4589
    %v4591 = vrot.slane %v4493, %v4590
    %v4595 = vmul.f32 %v4567, %v4583
    %v4596 = vmul.f32 %v4568, %v4587
    %v4597 = vmul.f32 %v4569, %v4591
    %v4598 = vmul.f32 %v4570, %v4583
    %v4599 = vmul.f32 %v4571, %v4587
    %v4600 = vmul.f32 %v4572, %v4591
    %v4601 = vmul.f32 %v4573, %v4583
    %v4602 = vmul.f32 %v4574, %v4587
    %v4603 = vmul.f32 %v4575, %v4591
    %v4604 = vmul.f32 %v4576, %v4583
    %v4605 = vmul.f32 %v4577, %v4587
    %v4606 = vmul.f32 %v4578, %v4591
    %v4608 = vlaneseq
    %v4609 = vshrl.u32 %v4608, 7
    %v4610 = vsub.s32 0, %v4609
    %v4611 = vrot.slane %v4494, %v4610
    %v4612 = vlaneseq
    %v4613 = vshrl.u32 %v4612, 7
    %v4614 = vsub.s32 1, %v4613
    %v4615 = vrot.slane %v4494, %v4614
    %v4616 = vlaneseq
    %v4617 = vshrl.u32 %v4616, 7
    %v4618 = vsub.s32 2, %v4617
    %v4619 = vrot.slane %v4494, %v4618
    %v4623 = vadd.f32 %v4595, %v4611
    %v4624 = vadd.f32 %v4596, %v4615
    %v4625 = vadd.f32 %v4597, %v4619
    %v4626 = vadd.f32 %v4598, %v4611
    %v4627 = vadd.f32 %v4599, %v4615
    %v4628 = vadd.f32 %v4600, %v4619
    %v4629 = vadd.f32 %v4601, %v4611
    %v4630 = vadd.f32 %v4602, %v4615
    %v4631 = vadd.f32 %v4603, %v4619
    %v4632 = vadd.f32 %v4604, %v4611
    %v4633 = vadd.f32 %v4605, %v4615
    %v4634 = vadd.f32 %v4606, %v4619
    %v4635 = vpack.c.bf16 %v4626, %v4623
    %v4636 = vpack.c.bf16 %v4627, %v4624
    %v4637 = vpack.c.bf16 %v4628, %v4625
    %v4638 = vpack.c.bf16 %v4632, %v4629
    %v4639 = vpack.c.bf16 %v4633, %v4630
    %v4640 = vpack.c.bf16 %v4634, %v4631
    %v4641 = vld [vmem:[#allocation16] sm:$0xff]
    %v4642 = vld [vmem:[#allocation16 + $0x8] sm:$0xff]
    %v4643 = vld [vmem:[#allocation16 + $0x10] sm:$0xff]
    %v4644 = vld [vmem:[#allocation16 + $0x18] sm:$0xff]
    %v4645 = vld [vmem:[#allocation16 + $0x20] sm:$0xff]
    %v4646 = vld [vmem:[#allocation16 + $0x28] sm:$0xff]
    %v4647 = vld [vmem:[#allocation16 + $0x30] sm:$0xff]
    %v4648 = vld [vmem:[#allocation16 + $0x38] sm:$0xff]
    %v4649 = vld [vmem:[#allocation16 + $0x40] sm:$0xff]
    %v4650 = vld [vmem:[#allocation16 + $0x48] sm:$0xff]
    %v4651 = vld [vmem:[#allocation16 + $0x50] sm:$0xff]
    %v4652 = vld [vmem:[#allocation16 + $0x58] sm:$0xff]
    %v4653 = vld [vmem:[#allocation16 + $0x60] sm:$0xff]
    %v4654 = vld [vmem:[#allocation16 + $0x68] sm:$0xff]
    %v4655 = vld [vmem:[#allocation16 + $0x70] sm:$0xff]
    %v4656 = vld [vmem:[#allocation16 + $0x78] sm:$0xff]
    %v4657 = vld [vmem:[#allocation16 + $0x80] sm:$0xff]
    %v4658 = vld [vmem:[#allocation16 + $0x88] sm:$0xff]
    %v4659 = vld [vmem:[#allocation16 + $0x90] sm:$0xff]
    %v4660 = vld [vmem:[#allocation16 + $0x98] sm:$0xff]
    %v4661 = vld [vmem:[#allocation16 + $0xa0] sm:$0xff]
    %v4662 = vld [vmem:[#allocation16 + $0xa8] sm:$0xff]
    %v4663 = vld [vmem:[#allocation16 + $0xb0] sm:$0xff]
    %v4664 = vld [vmem:[#allocation16 + $0xb8] sm:$0xff]
    %v4665 = vld [vmem:[#allocation16 + $0xc0] sm:$0xff]
    %v4666 = vld [vmem:[#allocation16 + $0xc8] sm:$0xff]
    %v4667 = vld [vmem:[#allocation16 + $0xd0] sm:$0xff]
    %v4668 = vld [vmem:[#allocation16 + $0xd8] sm:$0xff]
    %v4669 = vld [vmem:[#allocation16 + $0xe0] sm:$0xff]
    %v4670 = vld [vmem:[#allocation16 + $0xe8] sm:$0xff]
    %v4671 = vld [vmem:[#allocation16 + $0xf0] sm:$0xff]
    %v4672 = vld [vmem:[#allocation16 + $0xf8] sm:$0xff]
    %v4673 = vld [vmem:[#allocation16 + $0x100] sm:$0xff]
    %v4674 = vld [vmem:[#allocation16 + $0x108] sm:$0xff]
    %v4675 = vld [vmem:[#allocation16 + $0x110] sm:$0xff]
    %v4676 = vld [vmem:[#allocation16 + $0x118] sm:$0xff]
    %v4677 = vld [vmem:[#allocation16 + $0x120] sm:$0xff]
    %v4678 = vld [vmem:[#allocation16 + $0x128] sm:$0xff]
    %v4679 = vld [vmem:[#allocation16 + $0x130] sm:$0xff]
    %v4680 = vld [vmem:[#allocation16 + $0x138] sm:$0xff]
    %v4681 = vld [vmem:[#allocation16 + $0x140] sm:$0xff]
    %v4682 = vld [vmem:[#allocation16 + $0x148] sm:$0xff]
    %v4683 = vld [vmem:[#allocation16 + $0x150] sm:$0xff]
    %v4684 = vld [vmem:[#allocation16 + $0x158] sm:$0xff]
    %v4685 = vld [vmem:[#allocation16 + $0x160] sm:$0xff]
    %v4686 = vld [vmem:[#allocation16 + $0x168] sm:$0xff]
    %v4687 = vld [vmem:[#allocation16 + $0x170] sm:$0xff]
    %v4688 = vld [vmem:[#allocation16 + $0x178] sm:$0xff]
    %v4689 = vld [vmem:[#allocation16 + $0x180] sm:$0xff]
    %v4690 = vld [vmem:[#allocation16 + $0x188] sm:$0xff]
    %v4691 = vld [vmem:[#allocation16 + $0x190] sm:$0xff]
    %v4692 = vld [vmem:[#allocation16 + $0x198] sm:$0xff]
    %v4693 = vld [vmem:[#allocation16 + $0x1a0] sm:$0xff]
    %v4694 = vld [vmem:[#allocation16 + $0x1a8] sm:$0xff]
    %v4695 = vld [vmem:[#allocation16 + $0x1b0] sm:$0xff]
    %v4696 = vld [vmem:[#allocation16 + $0x1b8] sm:$0xff]
    %v4697 = vld [vmem:[#allocation16 + $0x1c0] sm:$0xff]
    %v4698 = vld [vmem:[#allocation16 + $0x1c8] sm:$0xff]
    %v4699 = vld [vmem:[#allocation16 + $0x1d0] sm:$0xff]
    %v4700 = vld [vmem:[#allocation16 + $0x1d8] sm:$0xff]
    %v4701 = vld [vmem:[#allocation16 + $0x1e0] sm:$0xff]
    %v4702 = vld [vmem:[#allocation16 + $0x1e8] sm:$0xff]
    %v4703 = vld [vmem:[#allocation16 + $0x1f0] sm:$0xff]
    %v4704 = vld [vmem:[#allocation16 + $0x1f8] sm:$0xff]
    %v4705 = vld [vmem:[#allocation16 + $0x200] sm:$0xff]
    %v4706 = vld [vmem:[#allocation16 + $0x208] sm:$0xff]
    %v4707 = vld [vmem:[#allocation16 + $0x210] sm:$0xff]
    %v4708 = vld [vmem:[#allocation16 + $0x218] sm:$0xff]
    %v4709 = vld [vmem:[#allocation16 + $0x220] sm:$0xff]
    %v4710 = vld [vmem:[#allocation16 + $0x228] sm:$0xff]
    %v4711 = vld [vmem:[#allocation16 + $0x230] sm:$0xff]
    %v4712 = vld [vmem:[#allocation16 + $0x238] sm:$0xff]
    %v4713 = vld [vmem:[#allocation16 + $0x240] sm:$0xff]
    %v4714 = vld [vmem:[#allocation16 + $0x248] sm:$0xff]
    %v4715 = vld [vmem:[#allocation16 + $0x250] sm:$0xff]
    %v4716 = vld [vmem:[#allocation16 + $0x258] sm:$0xff]
    %v4717 = vld [vmem:[#allocation16 + $0x260] sm:$0xff]
    %v4718 = vld [vmem:[#allocation16 + $0x268] sm:$0xff]
    %v4719 = vld [vmem:[#allocation16 + $0x270] sm:$0xff]
    %v4720 = vld [vmem:[#allocation16 + $0x278] sm:$0xff]
    %v4721 = vld [vmem:[#allocation16 + $0x280] sm:$0xff]
    %v4722 = vld [vmem:[#allocation16 + $0x288] sm:$0xff]
    %v4723 = vld [vmem:[#allocation16 + $0x290] sm:$0xff]
    %v4724 = vld [vmem:[#allocation16 + $0x298] sm:$0xff]
    %v4725 = vld [vmem:[#allocation16 + $0x2a0] sm:$0xff]
    %v4726 = vld [vmem:[#allocation16 + $0x2a8] sm:$0xff]
    %v4727 = vld [vmem:[#allocation16 + $0x2b0] sm:$0xff]
    %v4728 = vld [vmem:[#allocation16 + $0x2b8] sm:$0xff]
    %v4729 = vld [vmem:[#allocation16 + $0x2c0] sm:$0xff]
    %v4730 = vld [vmem:[#allocation16 + $0x2c8] sm:$0xff]
    %v4731 = vld [vmem:[#allocation16 + $0x2d0] sm:$0xff]
    %v4732 = vld [vmem:[#allocation16 + $0x2d8] sm:$0xff]
    %v4733 = vld [vmem:[#allocation16 + $0x2e0] sm:$0xff]
    %v4734 = vld [vmem:[#allocation16 + $0x2e8] sm:$0xff]
    %v4735 = vld [vmem:[#allocation16 + $0x2f0] sm:$0xff]
    %v4736 = vld [vmem:[#allocation16 + $0x2f8] sm:$0xff]
    %v4737 = vld [vmem:[#allocation16 + $0x300] sm:$0xff]
    %v4738 = vld [vmem:[#allocation16 + $0x308] sm:$0xff]
    %v4739 = vld [vmem:[#allocation16 + $0x310] sm:$0xff]
    %v4740 = vld [vmem:[#allocation16 + $0x318] sm:$0xff]
    %v4741 = vld [vmem:[#allocation16 + $0x320] sm:$0xff]
    %v4742 = vld [vmem:[#allocation16 + $0x328] sm:$0xff]
    %v4743 = vld [vmem:[#allocation16 + $0x330] sm:$0xff]
    %v4744 = vld [vmem:[#allocation16 + $0x338] sm:$0xff]
    %v4745 = vld [vmem:[#allocation16 + $0x340] sm:$0xff]
    %v4746 = vld [vmem:[#allocation16 + $0x348] sm:$0xff]
    %v4747 = vld [vmem:[#allocation16 + $0x350] sm:$0xff]
    %v4748 = vld [vmem:[#allocation16 + $0x358] sm:$0xff]
    %v4749 = vld [vmem:[#allocation16 + $0x360] sm:$0xff]
    %v4750 = vld [vmem:[#allocation16 + $0x368] sm:$0xff]
    %v4751 = vld [vmem:[#allocation16 + $0x370] sm:$0xff]
    %v4752 = vld [vmem:[#allocation16 + $0x378] sm:$0xff]
    %v4753 = vld [vmem:[#allocation16 + $0x380] sm:$0xff]
    %v4754 = vld [vmem:[#allocation16 + $0x388] sm:$0xff]
    %v4755 = vld [vmem:[#allocation16 + $0x390] sm:$0xff]
    %v4756 = vld [vmem:[#allocation16 + $0x398] sm:$0xff]
    %v4757 = vld [vmem:[#allocation16 + $0x3a0] sm:$0xff]
    %v4758 = vld [vmem:[#allocation16 + $0x3a8] sm:$0xff]
    %v4759 = vld [vmem:[#allocation16 + $0x3b0] sm:$0xff]
    %v4760 = vld [vmem:[#allocation16 + $0x3b8] sm:$0xff]
    %v4761 = vld [vmem:[#allocation16 + $0x3c0] sm:$0xff]
    %v4762 = vld [vmem:[#allocation16 + $0x3c8] sm:$0xff]
    %v4763 = vld [vmem:[#allocation16 + $0x3d0] sm:$0xff]
    %v4764 = vld [vmem:[#allocation16 + $0x3d8] sm:$0xff]
    %v4765 = vld [vmem:[#allocation16 + $0x3e0] sm:$0xff]
    %v4766 = vld [vmem:[#allocation16 + $0x3e8] sm:$0xff]
    %v4767 = vld [vmem:[#allocation16 + $0x3f0] sm:$0xff]
    %v4768 = vld [vmem:[#allocation16 + $0x3f8] sm:$0xff]
    %v4769 = vld [vmem:[#allocation16 + $0x400] sm:$0xff]
    %v4770 = vld [vmem:[#allocation16 + $0x408] sm:$0xff]
    %v4771 = vld [vmem:[#allocation16 + $0x410] sm:$0xff]
    %v4772 = vld [vmem:[#allocation16 + $0x418] sm:$0xff]
    %v4773 = vld [vmem:[#allocation16 + $0x420] sm:$0xff]
    %v4774 = vld [vmem:[#allocation16 + $0x428] sm:$0xff]
    %v4775 = vld [vmem:[#allocation16 + $0x430] sm:$0xff]
    %v4776 = vld [vmem:[#allocation16 + $0x438] sm:$0xff]
    %v4777 = vld [vmem:[#allocation16 + $0x440] sm:$0xff]
    %v4778 = vld [vmem:[#allocation16 + $0x448] sm:$0xff]
    %v4779 = vld [vmem:[#allocation16 + $0x450] sm:$0xff]
    %v4780 = vld [vmem:[#allocation16 + $0x458] sm:$0xff]
    %v4781 = vld [vmem:[#allocation16 + $0x460] sm:$0xff]
    %v4782 = vld [vmem:[#allocation16 + $0x468] sm:$0xff]
    %v4783 = vld [vmem:[#allocation16 + $0x470] sm:$0xff]
    %v4784 = vld [vmem:[#allocation16 + $0x478] sm:$0xff]
    %v4785 = vld [vmem:[#allocation16 + $0x480] sm:$0xff]
    %v4786 = vld [vmem:[#allocation16 + $0x488] sm:$0xff]
    %v4787 = vld [vmem:[#allocation16 + $0x490] sm:$0xff]
    %v4788 = vld [vmem:[#allocation16 + $0x498] sm:$0xff]
    %v4789 = vld [vmem:[#allocation16 + $0x4a0] sm:$0xff]
    %v4790 = vld [vmem:[#allocation16 + $0x4a8] sm:$0xff]
    %v4791 = vld [vmem:[#allocation16 + $0x4b0] sm:$0xff]
    %v4792 = vld [vmem:[#allocation16 + $0x4b8] sm:$0xff]
    %v4793 = vld [vmem:[#allocation16 + $0x4c0] sm:$0xff]
    %v4794 = vld [vmem:[#allocation16 + $0x4c8] sm:$0xff]
    %v4795 = vld [vmem:[#allocation16 + $0x4d0] sm:$0xff]
    %v4796 = vld [vmem:[#allocation16 + $0x4d8] sm:$0xff]
    %v4797 = vld [vmem:[#allocation16 + $0x4e0] sm:$0xff]
    %v4798 = vld [vmem:[#allocation16 + $0x4e8] sm:$0xff]
    %v4799 = vld [vmem:[#allocation16 + $0x4f0] sm:$0xff]
    %v4800 = vld [vmem:[#allocation16 + $0x4f8] sm:$0xff]
    %v4801 = vld [vmem:[#allocation16 + $0x500] sm:$0xff]
    %v4802 = vld [vmem:[#allocation16 + $0x508] sm:$0xff]
    %v4803 = vld [vmem:[#allocation16 + $0x510] sm:$0xff]
    %v4804 = vld [vmem:[#allocation16 + $0x518] sm:$0xff]
    %v4805 = vld [vmem:[#allocation16 + $0x520] sm:$0xff]
    %v4806 = vld [vmem:[#allocation16 + $0x528] sm:$0xff]
    %v4807 = vld [vmem:[#allocation16 + $0x530] sm:$0xff]
    %v4808 = vld [vmem:[#allocation16 + $0x538] sm:$0xff]
    %v4809 = vld [vmem:[#allocation16 + $0x540] sm:$0xff]
    %v4810 = vld [vmem:[#allocation16 + $0x548] sm:$0xff]
    %v4811 = vld [vmem:[#allocation16 + $0x550] sm:$0xff]
    %v4812 = vld [vmem:[#allocation16 + $0x558] sm:$0xff]
    %v4813 = vld [vmem:[#allocation16 + $0x560] sm:$0xff]
    %v4814 = vld [vmem:[#allocation16 + $0x568] sm:$0xff]
    %v4815 = vld [vmem:[#allocation16 + $0x570] sm:$0xff]
    %v4816 = vld [vmem:[#allocation16 + $0x578] sm:$0xff]
    %v4817 = vld [vmem:[#allocation16 + $0x580] sm:$0xff]
    %v4818 = vld [vmem:[#allocation16 + $0x588] sm:$0xff]
    %v4819 = vld [vmem:[#allocation16 + $0x590] sm:$0xff]
    %v4820 = vld [vmem:[#allocation16 + $0x598] sm:$0xff]
    %v4821 = vld [vmem:[#allocation16 + $0x5a0] sm:$0xff]
    %v4822 = vld [vmem:[#allocation16 + $0x5a8] sm:$0xff]
    %v4823 = vld [vmem:[#allocation16 + $0x5b0] sm:$0xff]
    %v4824 = vld [vmem:[#allocation16 + $0x5b8] sm:$0xff]
    %v4825 = vld [vmem:[#allocation16 + $0x5c0] sm:$0xff]
    %v4826 = vld [vmem:[#allocation16 + $0x5c8] sm:$0xff]
    %v4827 = vld [vmem:[#allocation16 + $0x5d0] sm:$0xff]
    %v4828 = vld [vmem:[#allocation16 + $0x5d8] sm:$0xff]
    %v4829 = vld [vmem:[#allocation16 + $0x5e0] sm:$0xff]
    %v4830 = vld [vmem:[#allocation16 + $0x5e8] sm:$0xff]
    %v4831 = vld [vmem:[#allocation16 + $0x5f0] sm:$0xff]
    %v4832 = vld [vmem:[#allocation16 + $0x5f8] sm:$0xff]
    %v4833 = vld [vmem:[#allocation16 + $0x600] sm:$0xff]
    %v4834 = vld [vmem:[#allocation16 + $0x608] sm:$0xff]
    %v4835 = vld [vmem:[#allocation16 + $0x610] sm:$0xff]
    %v4836 = vld [vmem:[#allocation16 + $0x618] sm:$0xff]
    %v4837 = vld [vmem:[#allocation16 + $0x620] sm:$0xff]
    %v4838 = vld [vmem:[#allocation16 + $0x628] sm:$0xff]
    %v4839 = vld [vmem:[#allocation16 + $0x630] sm:$0xff]
    %v4840 = vld [vmem:[#allocation16 + $0x638] sm:$0xff]
    %v4841 = vld [vmem:[#allocation16 + $0x640] sm:$0xff]
    %v4842 = vld [vmem:[#allocation16 + $0x648] sm:$0xff]
    %v4843 = vld [vmem:[#allocation16 + $0x650] sm:$0xff]
    %v4844 = vld [vmem:[#allocation16 + $0x658] sm:$0xff]
    %v4845 = vld [vmem:[#allocation16 + $0x660] sm:$0xff]
    %v4846 = vld [vmem:[#allocation16 + $0x668] sm:$0xff]
    %v4847 = vld [vmem:[#allocation16 + $0x670] sm:$0xff]
    %v4848 = vld [vmem:[#allocation16 + $0x678] sm:$0xff]
    %v4849 = vld [vmem:[#allocation16 + $0x680] sm:$0xff]
    %v4850 = vld [vmem:[#allocation16 + $0x688] sm:$0xff]
    %v4851 = vld [vmem:[#allocation16 + $0x690] sm:$0xff]
    %v4852 = vld [vmem:[#allocation16 + $0x698] sm:$0xff]
    %v4853 = vld [vmem:[#allocation16 + $0x6a0] sm:$0xff]
    %v4854 = vld [vmem:[#allocation16 + $0x6a8] sm:$0xff]
    %v4855 = vld [vmem:[#allocation16 + $0x6b0] sm:$0xff]
    %v4856 = vld [vmem:[#allocation16 + $0x6b8] sm:$0xff]
    %v4857 = vld [vmem:[#allocation16 + $0x6c0] sm:$0xff]
    %v4858 = vld [vmem:[#allocation16 + $0x6c8] sm:$0xff]
    %v4859 = vld [vmem:[#allocation16 + $0x6d0] sm:$0xff]
    %v4860 = vld [vmem:[#allocation16 + $0x6d8] sm:$0xff]
    %v4861 = vld [vmem:[#allocation16 + $0x6e0] sm:$0xff]
    %v4862 = vld [vmem:[#allocation16 + $0x6e8] sm:$0xff]
    %v4863 = vld [vmem:[#allocation16 + $0x6f0] sm:$0xff]
    %v4864 = vld [vmem:[#allocation16 + $0x6f8] sm:$0xff]
    %v4865 = vld [vmem:[#allocation16 + $0x700] sm:$0xff]
    %v4866 = vld [vmem:[#allocation16 + $0x708] sm:$0xff]
    %v4867 = vld [vmem:[#allocation16 + $0x710] sm:$0xff]
    %v4868 = vld [vmem:[#allocation16 + $0x718] sm:$0xff]
    %v4869 = vld [vmem:[#allocation16 + $0x720] sm:$0xff]
    %v4870 = vld [vmem:[#allocation16 + $0x728] sm:$0xff]
    %v4871 = vld [vmem:[#allocation16 + $0x730] sm:$0xff]
    %v4872 = vld [vmem:[#allocation16 + $0x738] sm:$0xff]
    %v4873 = vld [vmem:[#allocation16 + $0x740] sm:$0xff]
    %v4874 = vld [vmem:[#allocation16 + $0x748] sm:$0xff]
    %v4875 = vld [vmem:[#allocation16 + $0x750] sm:$0xff]
    %v4876 = vld [vmem:[#allocation16 + $0x758] sm:$0xff]
    %v4877 = vld [vmem:[#allocation16 + $0x760] sm:$0xff]
    %v4878 = vld [vmem:[#allocation16 + $0x768] sm:$0xff]
    %v4879 = vld [vmem:[#allocation16 + $0x770] sm:$0xff]
    %v4880 = vld [vmem:[#allocation16 + $0x778] sm:$0xff]
    %v4881 = vld [vmem:[#allocation16 + $0x780] sm:$0xff]
    %v4882 = vld [vmem:[#allocation16 + $0x788] sm:$0xff]
    %v4883 = vld [vmem:[#allocation16 + $0x790] sm:$0xff]
    %v4884 = vld [vmem:[#allocation16 + $0x798] sm:$0xff]
    %v4885 = vld [vmem:[#allocation16 + $0x7a0] sm:$0xff]
    %v4886 = vld [vmem:[#allocation16 + $0x7a8] sm:$0xff]
    %v4887 = vld [vmem:[#allocation16 + $0x7b0] sm:$0xff]
    %v4888 = vld [vmem:[#allocation16 + $0x7b8] sm:$0xff]
    %v4889 = vld [vmem:[#allocation16 + $0x7c0] sm:$0xff]
    %v4890 = vld [vmem:[#allocation16 + $0x7c8] sm:$0xff]
    %v4891 = vld [vmem:[#allocation16 + $0x7d0] sm:$0xff]
    %v4892 = vld [vmem:[#allocation16 + $0x7d8] sm:$0xff]
    %v4893 = vld [vmem:[#allocation16 + $0x7e0] sm:$0xff]
    %v4894 = vld [vmem:[#allocation16 + $0x7e8] sm:$0xff]
    %v4895 = vld [vmem:[#allocation16 + $0x7f0] sm:$0xff]
    %v4896 = vld [vmem:[#allocation16 + $0x7f8] sm:$0xff]
    %v4897 = vld [vmem:[#allocation16 + $0x800] sm:$0xff]
    %v4898 = vld [vmem:[#allocation16 + $0x808] sm:$0xff]
    %v4899 = vld [vmem:[#allocation16 + $0x810] sm:$0xff]
    %v4900 = vld [vmem:[#allocation16 + $0x818] sm:$0xff]
    %v4901 = vld [vmem:[#allocation16 + $0x820] sm:$0xff]
    %v4902 = vld [vmem:[#allocation16 + $0x828] sm:$0xff]
    %v4903 = vld [vmem:[#allocation16 + $0x830] sm:$0xff]
    %v4904 = vld [vmem:[#allocation16 + $0x838] sm:$0xff]
    %v4905 = vld [vmem:[#allocation16 + $0x840] sm:$0xff]
    %v4906 = vld [vmem:[#allocation16 + $0x848] sm:$0xff]
    %v4907 = vld [vmem:[#allocation16 + $0x850] sm:$0xff]
    %v4908 = vld [vmem:[#allocation16 + $0x858] sm:$0xff]
    %v4909 = vld [vmem:[#allocation16 + $0x860] sm:$0xff]
    %v4910 = vld [vmem:[#allocation16 + $0x868] sm:$0xff]
    %v4911 = vld [vmem:[#allocation16 + $0x870] sm:$0xff]
    %v4912 = vld [vmem:[#allocation16 + $0x878] sm:$0xff]
    %v4913 = vld [vmem:[#allocation16 + $0x880] sm:$0xff]
    %v4914 = vld [vmem:[#allocation16 + $0x888] sm:$0xff]
    %v4915 = vld [vmem:[#allocation16 + $0x890] sm:$0xff]
    %v4916 = vld [vmem:[#allocation16 + $0x898] sm:$0xff]
    %v4917 = vld [vmem:[#allocation16 + $0x8a0] sm:$0xff]
    %v4918 = vld [vmem:[#allocation16 + $0x8a8] sm:$0xff]
    %v4919 = vld [vmem:[#allocation16 + $0x8b0] sm:$0xff]
    %v4920 = vld [vmem:[#allocation16 + $0x8b8] sm:$0xff]
    %v4921 = vld [vmem:[#allocation16 + $0x8c0] sm:$0xff]
    %v4922 = vld [vmem:[#allocation16 + $0x8c8] sm:$0xff]
    %v4923 = vld [vmem:[#allocation16 + $0x8d0] sm:$0xff]
    %v4924 = vld [vmem:[#allocation16 + $0x8d8] sm:$0xff]
    %v4925 = vld [vmem:[#allocation16 + $0x8e0] sm:$0xff]
    %v4926 = vld [vmem:[#allocation16 + $0x8e8] sm:$0xff]
    %v4927 = vld [vmem:[#allocation16 + $0x8f0] sm:$0xff]
    %v4928 = vld [vmem:[#allocation16 + $0x8f8] sm:$0xff]
    %v4929 = vld [vmem:[#allocation17] sm:$0xff]
    %v4930 = vld [vmem:[#allocation17 + $0x8] sm:$0xf]
    %v4933 = vlaneseq
    %v4934 = vshrl.u32 %v4933, 7
    %v4935 = vsub.s32 0, %v4934
    %v4936 = vrot.slane %v4929, %v4935
    %v4937 = vlaneseq
    %v4938 = vshrl.u32 %v4937, 7
    %v4939 = vsub.s32 1, %v4938
    %v4940 = vrot.slane %v4929, %v4939
    %v4941 = vlaneseq
    %v4942 = vshrl.u32 %v4941, 7
    %v4943 = vsub.s32 2, %v4942
    %v4944 = vrot.slane %v4929, %v4943
    %v4945 = vlaneseq
    %v4946 = vshrl.u32 %v4945, 7
    %v4947 = vsub.s32 3, %v4946
    %v4948 = vrot.slane %v4929, %v4947
    %v4949 = vlaneseq
    %v4950 = vshrl.u32 %v4949, 7
    %v4951 = vsub.s32 4, %v4950
    %v4952 = vrot.slane %v4929, %v4951
    %v4953 = vlaneseq
    %v4954 = vshrl.u32 %v4953, 7
    %v4955 = vsub.s32 5, %v4954
    %v4956 = vrot.slane %v4929, %v4955
    %v4957 = vlaneseq
    %v4958 = vshrl.u32 %v4957, 7
    %v4959 = vsub.s32 6, %v4958
    %v4960 = vrot.slane %v4929, %v4959
    %v4961 = vlaneseq
    %v4962 = vshrl.u32 %v4961, 7
    %v4963 = vsub.s32 7, %v4962
    %v4964 = vrot.slane %v4929, %v4963
    %v4965 = vlaneseq
    %v4966 = vshrl.u32 %v4965, 7
    %v4967 = vsub.s32 0, %v4966
    %v4968 = vrot.slane %v4930, %v4967
    %v4969 = vlaneseq
    %v4970 = vshrl.u32 %v4969, 7
    %v4971 = vsub.s32 1, %v4970
    %v4972 = vrot.slane %v4930, %v4971
    %v4973 = vlaneseq
    %v4974 = vshrl.u32 %v4973, 7
    %v4975 = vsub.s32 2, %v4974
    %v4976 = vrot.slane %v4930, %v4975
    %v4977 = vlaneseq
    %v4978 = vshrl.u32 %v4977, 7
    %v4979 = vsub.s32 3, %v4978
    %v4980 = vrot.slane %v4930, %v4979
    %v5281 = vunpack.c.l.b16 %v4641
    %v5282 = vunpack.c.h.b16 %v4641
    %v5283 = vunpack.c.l.b16 %v4642
    %v5284 = vunpack.c.h.b16 %v4642
    %v5285 = vunpack.c.l.b16 %v4643
    %v5286 = vunpack.c.h.b16 %v4643
    %v5287 = vunpack.c.l.b16 %v4644
    %v5288 = vunpack.c.h.b16 %v4644
    %v5289 = vunpack.c.l.b16 %v4645
    %v5290 = vunpack.c.h.b16 %v4645
    %v5291 = vunpack.c.l.b16 %v4646
    %v5292 = vunpack.c.h.b16 %v4646
    %v5293 = vunpack.c.l.b16 %v4647
    %v5294 = vunpack.c.h.b16 %v4647
    %v5295 = vunpack.c.l.b16 %v4648
    %v5296 = vunpack.c.h.b16 %v4648
    %v5297 = vunpack.c.l.b16 %v4649
    %v5298 = vunpack.c.h.b16 %v4649
    %v5299 = vunpack.c.l.b16 %v4650
    %v5300 = vunpack.c.h.b16 %v4650
    %v5301 = vunpack.c.l.b16 %v4651
    %v5302 = vunpack.c.h.b16 %v4651
    %v5303 = vunpack.c.l.b16 %v4652
    %v5304 = vunpack.c.h.b16 %v4652
    %v5305 = vunpack.c.l.b16 %v4653
    %v5306 = vunpack.c.h.b16 %v4653
    %v5307 = vunpack.c.l.b16 %v4654
    %v5308 = vunpack.c.h.b16 %v4654
    %v5309 = vunpack.c.l.b16 %v4655
    %v5310 = vunpack.c.h.b16 %v4655
    %v5311 = vunpack.c.l.b16 %v4656
    %v5312 = vunpack.c.h.b16 %v4656
    %v5313 = vunpack.c.l.b16 %v4657
    %v5314 = vunpack.c.h.b16 %v4657
    %v5315 = vunpack.c.l.b16 %v4658
    %v5316 = vunpack.c.h.b16 %v4658
    %v5317 = vunpack.c.l.b16 %v4659
    %v5318 = vunpack.c.h.b16 %v4659
    %v5319 = vunpack.c.l.b16 %v4660
    %v5320 = vunpack.c.h.b16 %v4660
    %v5321 = vunpack.c.l.b16 %v4661
    %v5322 = vunpack.c.h.b16 %v4661
    %v5323 = vunpack.c.l.b16 %v4662
    %v5324 = vunpack.c.h.b16 %v4662
    %v5325 = vunpack.c.l.b16 %v4663
    %v5326 = vunpack.c.h.b16 %v4663
    %v5327 = vunpack.c.l.b16 %v4664
    %v5328 = vunpack.c.h.b16 %v4664
    %v5329 = vunpack.c.l.b16 %v4665
    %v5330 = vunpack.c.h.b16 %v4665
    %v5331 = vunpack.c.l.b16 %v4666
    %v5332 = vunpack.c.h.b16 %v4666
    %v5333 = vunpack.c.l.b16 %v4667
    %v5334 = vunpack.c.h.b16 %v4667
    %v5335 = vunpack.c.l.b16 %v4668
    %v5336 = vunpack.c.h.b16 %v4668
    %v5337 = vunpack.c.l.b16 %v4669
    %v5338 = vunpack.c.h.b16 %v4669
    %v5339 = vunpack.c.l.b16 %v4670
    %v5340 = vunpack.c.h.b16 %v4670
    %v5341 = vunpack.c.l.b16 %v4671
    %v5342 = vunpack.c.h.b16 %v4671
    %v5343 = vunpack.c.l.b16 %v4672
    %v5344 = vunpack.c.h.b16 %v4672
    %v5345 = vunpack.c.l.b16 %v4673
    %v5346 = vunpack.c.h.b16 %v4673
    %v5347 = vunpack.c.l.b16 %v4674
    %v5348 = vunpack.c.h.b16 %v4674
    %v5349 = vunpack.c.l.b16 %v4675
    %v5350 = vunpack.c.h.b16 %v4675
    %v5351 = vunpack.c.l.b16 %v4676
    %v5352 = vunpack.c.h.b16 %v4676
    %v5353 = vunpack.c.l.b16 %v4677
    %v5354 = vunpack.c.h.b16 %v4677
    %v5355 = vunpack.c.l.b16 %v4678
    %v5356 = vunpack.c.h.b16 %v4678
    %v5357 = vunpack.c.l.b16 %v4679
    %v5358 = vunpack.c.h.b16 %v4679
    %v5359 = vunpack.c.l.b16 %v4680
    %v5360 = vunpack.c.h.b16 %v4680
    %v5361 = vunpack.c.l.b16 %v4681
    %v5362 = vunpack.c.h.b16 %v4681
    %v5363 = vunpack.c.l.b16 %v4682
    %v5364 = vunpack.c.h.b16 %v4682
    %v5365 = vunpack.c.l.b16 %v4683
    %v5366 = vunpack.c.h.b16 %v4683
    %v5367 = vunpack.c.l.b16 %v4684
    %v5368 = vunpack.c.h.b16 %v4684
    %v5369 = vunpack.c.l.b16 %v4685
    %v5370 = vunpack.c.h.b16 %v4685
    %v5371 = vunpack.c.l.b16 %v4686
    %v5372 = vunpack.c.h.b16 %v4686
    %v5373 = vunpack.c.l.b16 %v4687
    %v5374 = vunpack.c.h.b16 %v4687
    %v5375 = vunpack.c.l.b16 %v4688
    %v5376 = vunpack.c.h.b16 %v4688
    %v5377 = vunpack.c.l.b16 %v4689
    %v5378 = vunpack.c.h.b16 %v4689
    %v5379 = vunpack.c.l.b16 %v4690
    %v5380 = vunpack.c.h.b16 %v4690
    %v5381 = vunpack.c.l.b16 %v4691
    %v5382 = vunpack.c.h.b16 %v4691
    %v5383 = vunpack.c.l.b16 %v4692
    %v5384 = vunpack.c.h.b16 %v4692
    %v5385 = vunpack.c.l.b16 %v4693
    %v5386 = vunpack.c.h.b16 %v4693
    %v5387 = vunpack.c.l.b16 %v4694
    %v5388 = vunpack.c.h.b16 %v4694
    %v5389 = vunpack.c.l.b16 %v4695
    %v5390 = vunpack.c.h.b16 %v4695
    %v5391 = vunpack.c.l.b16 %v4696
    %v5392 = vunpack.c.h.b16 %v4696
    %v5393 = vunpack.c.l.b16 %v4697
    %v5394 = vunpack.c.h.b16 %v4697
    %v5395 = vunpack.c.l.b16 %v4698
    %v5396 = vunpack.c.h.b16 %v4698
    %v5397 = vunpack.c.l.b16 %v4699
    %v5398 = vunpack.c.h.b16 %v4699
    %v5399 = vunpack.c.l.b16 %v4700
    %v5400 = vunpack.c.h.b16 %v4700
    %v5401 = vunpack.c.l.b16 %v4701
    %v5402 = vunpack.c.h.b16 %v4701
    %v5403 = vunpack.c.l.b16 %v4702
    %v5404 = vunpack.c.h.b16 %v4702
    %v5405 = vunpack.c.l.b16 %v4703
    %v5406 = vunpack.c.h.b16 %v4703
    %v5407 = vunpack.c.l.b16 %v4704
    %v5408 = vunpack.c.h.b16 %v4704
    %v5409 = vunpack.c.l.b16 %v4705
    %v5410 = vunpack.c.h.b16 %v4705
    %v5411 = vunpack.c.l.b16 %v4706
    %v5412 = vunpack.c.h.b16 %v4706
    %v5413 = vunpack.c.l.b16 %v4707
    %v5414 = vunpack.c.h.b16 %v4707
    %v5415 = vunpack.c.l.b16 %v4708
    %v5416 = vunpack.c.h.b16 %v4708
    %v5417 = vunpack.c.l.b16 %v4709
    %v5418 = vunpack.c.h.b16 %v4709
    %v5419 = vunpack.c.l.b16 %v4710
    %v5420 = vunpack.c.h.b16 %v4710
    %v5421 = vunpack.c.l.b16 %v4711
    %v5422 = vunpack.c.h.b16 %v4711
    %v5423 = vunpack.c.l.b16 %v4712
    %v5424 = vunpack.c.h.b16 %v4712
    %v5425 = vunpack.c.l.b16 %v4713
    %v5426 = vunpack.c.h.b16 %v4713
    %v5427 = vunpack.c.l.b16 %v4714
    %v5428 = vunpack.c.h.b16 %v4714
    %v5429 = vunpack.c.l.b16 %v4715
    %v5430 = vunpack.c.h.b16 %v4715
    %v5431 = vunpack.c.l.b16 %v4716
    %v5432 = vunpack.c.h.b16 %v4716
    %v5433 = vunpack.c.l.b16 %v4717
    %v5434 = vunpack.c.h.b16 %v4717
    %v5435 = vunpack.c.l.b16 %v4718
    %v5436 = vunpack.c.h.b16 %v4718
    %v5437 = vunpack.c.l.b16 %v4719
    %v5438 = vunpack.c.h.b16 %v4719
    %v5439 = vunpack.c.l.b16 %v4720
    %v5440 = vunpack.c.h.b16 %v4720
    %v5441 = vunpack.c.l.b16 %v4721
    %v5442 = vunpack.c.h.b16 %v4721
    %v5443 = vunpack.c.l.b16 %v4722
    %v5444 = vunpack.c.h.b16 %v4722
    %v5445 = vunpack.c.l.b16 %v4723
    %v5446 = vunpack.c.h.b16 %v4723
    %v5447 = vunpack.c.l.b16 %v4724
    %v5448 = vunpack.c.h.b16 %v4724
    %v5449 = vunpack.c.l.b16 %v4725
    %v5450 = vunpack.c.h.b16 %v4725
    %v5451 = vunpack.c.l.b16 %v4726
    %v5452 = vunpack.c.h.b16 %v4726
    %v5453 = vunpack.c.l.b16 %v4727
    %v5454 = vunpack.c.h.b16 %v4727
    %v5455 = vunpack.c.l.b16 %v4728
    %v5456 = vunpack.c.h.b16 %v4728
    %v5457 = vunpack.c.l.b16 %v4729
    %v5458 = vunpack.c.h.b16 %v4729
    %v5459 = vunpack.c.l.b16 %v4730
    %v5460 = vunpack.c.h.b16 %v4730
    %v5461 = vunpack.c.l.b16 %v4731
    %v5462 = vunpack.c.h.b16 %v4731
    %v5463 = vunpack.c.l.b16 %v4732
    %v5464 = vunpack.c.h.b16 %v4732
    %v5465 = vunpack.c.l.b16 %v4733
    %v5466 = vunpack.c.h.b16 %v4733
    %v5467 = vunpack.c.l.b16 %v4734
    %v5468 = vunpack.c.h.b16 %v4734
    %v5469 = vunpack.c.l.b16 %v4735
    %v5470 = vunpack.c.h.b16 %v4735
    %v5471 = vunpack.c.l.b16 %v4736
    %v5472 = vunpack.c.h.b16 %v4736
    %v5473 = vunpack.c.l.b16 %v4737
    %v5474 = vunpack.c.h.b16 %v4737
    %v5475 = vunpack.c.l.b16 %v4738
    %v5476 = vunpack.c.h.b16 %v4738
    %v5477 = vunpack.c.l.b16 %v4739
    %v5478 = vunpack.c.h.b16 %v4739
    %v5479 = vunpack.c.l.b16 %v4740
    %v5480 = vunpack.c.h.b16 %v4740
    %v5481 = vunpack.c.l.b16 %v4741
    %v5482 = vunpack.c.h.b16 %v4741
    %v5483 = vunpack.c.l.b16 %v4742
    %v5484 = vunpack.c.h.b16 %v4742
    %v5485 = vunpack.c.l.b16 %v4743
    %v5486 = vunpack.c.h.b16 %v4743
    %v5487 = vunpack.c.l.b16 %v4744
    %v5488 = vunpack.c.h.b16 %v4744
    %v5489 = vunpack.c.l.b16 %v4745
    %v5490 = vunpack.c.h.b16 %v4745
    %v5491 = vunpack.c.l.b16 %v4746
    %v5492 = vunpack.c.h.b16 %v4746
    %v5493 = vunpack.c.l.b16 %v4747
    %v5494 = vunpack.c.h.b16 %v4747
    %v5495 = vunpack.c.l.b16 %v4748
    %v5496 = vunpack.c.h.b16 %v4748
    %v5497 = vunpack.c.l.b16 %v4749
    %v5498 = vunpack.c.h.b16 %v4749
    %v5499 = vunpack.c.l.b16 %v4750
    %v5500 = vunpack.c.h.b16 %v4750
    %v5501 = vunpack.c.l.b16 %v4751
    %v5502 = vunpack.c.h.b16 %v4751
    %v5503 = vunpack.c.l.b16 %v4752
    %v5504 = vunpack.c.h.b16 %v4752
    %v5505 = vunpack.c.l.b16 %v4753
    %v5506 = vunpack.c.h.b16 %v4753
    %v5507 = vunpack.c.l.b16 %v4754
    %v5508 = vunpack.c.h.b16 %v4754
    %v5509 = vunpack.c.l.b16 %v4755
    %v5510 = vunpack.c.h.b16 %v4755
    %v5511 = vunpack.c.l.b16 %v4756
    %v5512 = vunpack.c.h.b16 %v4756
    %v5513 = vunpack.c.l.b16 %v4757
    %v5514 = vunpack.c.h.b16 %v4757
    %v5515 = vunpack.c.l.b16 %v4758
    %v5516 = vunpack.c.h.b16 %v4758
    %v5517 = vunpack.c.l.b16 %v4759
    %v5518 = vunpack.c.h.b16 %v4759
    %v5519 = vunpack.c.l.b16 %v4760
    %v5520 = vunpack.c.h.b16 %v4760
    %v5521 = vunpack.c.l.b16 %v4761
    %v5522 = vunpack.c.h.b16 %v4761
    %v5523 = vunpack.c.l.b16 %v4762
    %v5524 = vunpack.c.h.b16 %v4762
    %v5525 = vunpack.c.l.b16 %v4763
    %v5526 = vunpack.c.h.b16 %v4763
    %v5527 = vunpack.c.l.b16 %v4764
    %v5528 = vunpack.c.h.b16 %v4764
    %v5529 = vunpack.c.l.b16 %v4765
    %v5530 = vunpack.c.h.b16 %v4765
    %v5531 = vunpack.c.l.b16 %v4766
    %v5532 = vunpack.c.h.b16 %v4766
    %v5533 = vunpack.c.l.b16 %v4767
    %v5534 = vunpack.c.h.b16 %v4767
    %v5535 = vunpack.c.l.b16 %v4768
    %v5536 = vunpack.c.h.b16 %v4768
    %v5537 = vunpack.c.l.b16 %v4769
    %v5538 = vunpack.c.h.b16 %v4769
    %v5539 = vunpack.c.l.b16 %v4770
    %v5540 = vunpack.c.h.b16 %v4770
    %v5541 = vunpack.c.l.b16 %v4771
    %v5542 = vunpack.c.h.b16 %v4771
    %v5543 = vunpack.c.l.b16 %v4772
    %v5544 = vunpack.c.h.b16 %v4772
    %v5545 = vunpack.c.l.b16 %v4773
    %v5546 = vunpack.c.h.b16 %v4773
    %v5547 = vunpack.c.l.b16 %v4774
    %v5548 = vunpack.c.h.b16 %v4774
    %v5549 = vunpack.c.l.b16 %v4775
    %v5550 = vunpack.c.h.b16 %v4775
    %v5551 = vunpack.c.l.b16 %v4776
    %v5552 = vunpack.c.h.b16 %v4776
    %v5553 = vunpack.c.l.b16 %v4777
    %v5554 = vunpack.c.h.b16 %v4777
    %v5555 = vunpack.c.l.b16 %v4778
    %v5556 = vunpack.c.h.b16 %v4778
    %v5557 = vunpack.c.l.b16 %v4779
    %v5558 = vunpack.c.h.b16 %v4779
    %v5559 = vunpack.c.l.b16 %v4780
    %v5560 = vunpack.c.h.b16 %v4780
    %v5561 = vunpack.c.l.b16 %v4781
    %v5562 = vunpack.c.h.b16 %v4781
    %v5563 = vunpack.c.l.b16 %v4782
    %v5564 = vunpack.c.h.b16 %v4782
    %v5565 = vunpack.c.l.b16 %v4783
    %v5566 = vunpack.c.h.b16 %v4783
    %v5567 = vunpack.c.l.b16 %v4784
    %v5568 = vunpack.c.h.b16 %v4784
    %v5569 = vunpack.c.l.b16 %v4785
    %v5570 = vunpack.c.h.b16 %v4785
    %v5571 = vunpack.c.l.b16 %v4786
    %v5572 = vunpack.c.h.b16 %v4786
    %v5573 = vunpack.c.l.b16 %v4787
    %v5574 = vunpack.c.h.b16 %v4787
    %v5575 = vunpack.c.l.b16 %v4788
    %v5576 = vunpack.c.h.b16 %v4788
    %v5577 = vunpack.c.l.b16 %v4789
    %v5578 = vunpack.c.h.b16 %v4789
    %v5579 = vunpack.c.l.b16 %v4790
    %v5580 = vunpack.c.h.b16 %v4790
    %v5581 = vunpack.c.l.b16 %v4791
    %v5582 = vunpack.c.h.b16 %v4791
    %v5583 = vunpack.c.l.b16 %v4792
    %v5584 = vunpack.c.h.b16 %v4792
    %v5585 = vunpack.c.l.b16 %v4793
    %v5586 = vunpack.c.h.b16 %v4793
    %v5587 = vunpack.c.l.b16 %v4794
    %v5588 = vunpack.c.h.b16 %v4794
    %v5589 = vunpack.c.l.b16 %v4795
    %v5590 = vunpack.c.h.b16 %v4795
    %v5591 = vunpack.c.l.b16 %v4796
    %v5592 = vunpack.c.h.b16 %v4796
    %v5593 = vunpack.c.l.b16 %v4797
    %v5594 = vunpack.c.h.b16 %v4797
    %v5595 = vunpack.c.l.b16 %v4798
    %v5596 = vunpack.c.h.b16 %v4798
    %v5597 = vunpack.c.l.b16 %v4799
    %v5598 = vunpack.c.h.b16 %v4799
    %v5599 = vunpack.c.l.b16 %v4800
    %v5600 = vunpack.c.h.b16 %v4800
    %v5601 = vunpack.c.l.b16 %v4801
    %v5602 = vunpack.c.h.b16 %v4801
    %v5603 = vunpack.c.l.b16 %v4802
    %v5604 = vunpack.c.h.b16 %v4802
    %v5605 = vunpack.c.l.b16 %v4803
    %v5606 = vunpack.c.h.b16 %v4803
    %v5607 = vunpack.c.l.b16 %v4804
    %v5608 = vunpack.c.h.b16 %v4804
    %v5609 = vunpack.c.l.b16 %v4805
    %v5610 = vunpack.c.h.b16 %v4805
    %v5611 = vunpack.c.l.b16 %v4806
    %v5612 = vunpack.c.h.b16 %v4806
    %v5613 = vunpack.c.l.b16 %v4807
    %v5614 = vunpack.c.h.b16 %v4807
    %v5615 = vunpack.c.l.b16 %v4808
    %v5616 = vunpack.c.h.b16 %v4808
    %v5617 = vunpack.c.l.b16 %v4809
    %v5618 = vunpack.c.h.b16 %v4809
    %v5619 = vunpack.c.l.b16 %v4810
    %v5620 = vunpack.c.h.b16 %v4810
    %v5621 = vunpack.c.l.b16 %v4811
    %v5622 = vunpack.c.h.b16 %v4811
    %v5623 = vunpack.c.l.b16 %v4812
    %v5624 = vunpack.c.h.b16 %v4812
    %v5625 = vunpack.c.l.b16 %v4813
    %v5626 = vunpack.c.h.b16 %v4813
    %v5627 = vunpack.c.l.b16 %v4814
    %v5628 = vunpack.c.h.b16 %v4814
    %v5629 = vunpack.c.l.b16 %v4815
    %v5630 = vunpack.c.h.b16 %v4815
    %v5631 = vunpack.c.l.b16 %v4816
    %v5632 = vunpack.c.h.b16 %v4816
    %v5633 = vunpack.c.l.b16 %v4817
    %v5634 = vunpack.c.h.b16 %v4817
    %v5635 = vunpack.c.l.b16 %v4818
    %v5636 = vunpack.c.h.b16 %v4818
    %v5637 = vunpack.c.l.b16 %v4819
    %v5638 = vunpack.c.h.b16 %v4819
    %v5639 = vunpack.c.l.b16 %v4820
    %v5640 = vunpack.c.h.b16 %v4820
    %v5641 = vunpack.c.l.b16 %v4821
    %v5642 = vunpack.c.h.b16 %v4821
    %v5643 = vunpack.c.l.b16 %v4822
    %v5644 = vunpack.c.h.b16 %v4822
    %v5645 = vunpack.c.l.b16 %v4823
    %v5646 = vunpack.c.h.b16 %v4823
    %v5647 = vunpack.c.l.b16 %v4824
    %v5648 = vunpack.c.h.b16 %v4824
    %v5649 = vunpack.c.l.b16 %v4825
    %v5650 = vunpack.c.h.b16 %v4825
    %v5651 = vunpack.c.l.b16 %v4826
    %v5652 = vunpack.c.h.b16 %v4826
    %v5653 = vunpack.c.l.b16 %v4827
    %v5654 = vunpack.c.h.b16 %v4827
    %v5655 = vunpack.c.l.b16 %v4828
    %v5656 = vunpack.c.h.b16 %v4828
    %v5657 = vunpack.c.l.b16 %v4829
    %v5658 = vunpack.c.h.b16 %v4829
    %v5659 = vunpack.c.l.b16 %v4830
    %v5660 = vunpack.c.h.b16 %v4830
    %v5661 = vunpack.c.l.b16 %v4831
    %v5662 = vunpack.c.h.b16 %v4831
    %v5663 = vunpack.c.l.b16 %v4832
    %v5664 = vunpack.c.h.b16 %v4832
    %v5665 = vunpack.c.l.b16 %v4833
    %v5666 = vunpack.c.h.b16 %v4833
    %v5667 = vunpack.c.l.b16 %v4834
    %v5668 = vunpack.c.h.b16 %v4834
    %v5669 = vunpack.c.l.b16 %v4835
    %v5670 = vunpack.c.h.b16 %v4835
    %v5671 = vunpack.c.l.b16 %v4836
    %v5672 = vunpack.c.h.b16 %v4836
    %v5673 = vunpack.c.l.b16 %v4837
    %v5674 = vunpack.c.h.b16 %v4837
    %v5675 = vunpack.c.l.b16 %v4838
    %v5676 = vunpack.c.h.b16 %v4838
    %v5677 = vunpack.c.l.b16 %v4839
    %v5678 = vunpack.c.h.b16 %v4839
    %v5679 = vunpack.c.l.b16 %v4840
    %v5680 = vunpack.c.h.b16 %v4840
    %v5681 = vunpack.c.l.b16 %v4841
    %v5682 = vunpack.c.h.b16 %v4841
    %v5683 = vunpack.c.l.b16 %v4842
    %v5684 = vunpack.c.h.b16 %v4842
    %v5685 = vunpack.c.l.b16 %v4843
    %v5686 = vunpack.c.h.b16 %v4843
    %v5687 = vunpack.c.l.b16 %v4844
    %v5688 = vunpack.c.h.b16 %v4844
    %v5689 = vunpack.c.l.b16 %v4845
    %v5690 = vunpack.c.h.b16 %v4845
    %v5691 = vunpack.c.l.b16 %v4846
    %v5692 = vunpack.c.h.b16 %v4846
    %v5693 = vunpack.c.l.b16 %v4847
    %v5694 = vunpack.c.h.b16 %v4847
    %v5695 = vunpack.c.l.b16 %v4848
    %v5696 = vunpack.c.h.b16 %v4848
    %v5697 = vunpack.c.l.b16 %v4849
    %v5698 = vunpack.c.h.b16 %v4849
    %v5699 = vunpack.c.l.b16 %v4850
    %v5700 = vunpack.c.h.b16 %v4850
    %v5701 = vunpack.c.l.b16 %v4851
    %v5702 = vunpack.c.h.b16 %v4851
    %v5703 = vunpack.c.l.b16 %v4852
    %v5704 = vunpack.c.h.b16 %v4852
    %v5705 = vunpack.c.l.b16 %v4853
    %v5706 = vunpack.c.h.b16 %v4853
    %v5707 = vunpack.c.l.b16 %v4854
    %v5708 = vunpack.c.h.b16 %v4854
    %v5709 = vunpack.c.l.b16 %v4855
    %v5710 = vunpack.c.h.b16 %v4855
    %v5711 = vunpack.c.l.b16 %v4856
    %v5712 = vunpack.c.h.b16 %v4856
    %v5713 = vunpack.c.l.b16 %v4857
    %v5714 = vunpack.c.h.b16 %v4857
    %v5715 = vunpack.c.l.b16 %v4858
    %v5716 = vunpack.c.h.b16 %v4858
    %v5717 = vunpack.c.l.b16 %v4859
    %v5718 = vunpack.c.h.b16 %v4859
    %v5719 = vunpack.c.l.b16 %v4860
    %v5720 = vunpack.c.h.b16 %v4860
    %v5721 = vunpack.c.l.b16 %v4861
    %v5722 = vunpack.c.h.b16 %v4861
    %v5723 = vunpack.c.l.b16 %v4862
    %v5724 = vunpack.c.h.b16 %v4862
    %v5725 = vunpack.c.l.b16 %v4863
    %v5726 = vunpack.c.h.b16 %v4863
    %v5727 = vunpack.c.l.b16 %v4864
    %v5728 = vunpack.c.h.b16 %v4864
    %v5729 = vunpack.c.l.b16 %v4865
    %v5730 = vunpack.c.h.b16 %v4865
    %v5731 = vunpack.c.l.b16 %v4866
    %v5732 = vunpack.c.h.b16 %v4866
    %v5733 = vunpack.c.l.b16 %v4867
    %v5734 = vunpack.c.h.b16 %v4867
    %v5735 = vunpack.c.l.b16 %v4868
    %v5736 = vunpack.c.h.b16 %v4868
    %v5737 = vunpack.c.l.b16 %v4869
    %v5738 = vunpack.c.h.b16 %v4869
    %v5739 = vunpack.c.l.b16 %v4870
    %v5740 = vunpack.c.h.b16 %v4870
    %v5741 = vunpack.c.l.b16 %v4871
    %v5742 = vunpack.c.h.b16 %v4871
    %v5743 = vunpack.c.l.b16 %v4872
    %v5744 = vunpack.c.h.b16 %v4872
    %v5745 = vunpack.c.l.b16 %v4873
    %v5746 = vunpack.c.h.b16 %v4873
    %v5747 = vunpack.c.l.b16 %v4874
    %v5748 = vunpack.c.h.b16 %v4874
    %v5749 = vunpack.c.l.b16 %v4875
    %v5750 = vunpack.c.h.b16 %v4875
    %v5751 = vunpack.c.l.b16 %v4876
    %v5752 = vunpack.c.h.b16 %v4876
    %v5753 = vunpack.c.l.b16 %v4877
    %v5754 = vunpack.c.h.b16 %v4877
    %v5755 = vunpack.c.l.b16 %v4878
    %v5756 = vunpack.c.h.b16 %v4878
    %v5757 = vunpack.c.l.b16 %v4879
    %v5758 = vunpack.c.h.b16 %v4879
    %v5759 = vunpack.c.l.b16 %v4880
    %v5760 = vunpack.c.h.b16 %v4880
    %v5761 = vunpack.c.l.b16 %v4881
    %v5762 = vunpack.c.h.b16 %v4881
    %v5763 = vunpack.c.l.b16 %v4882
    %v5764 = vunpack.c.h.b16 %v4882
    %v5765 = vunpack.c.l.b16 %v4883
    %v5766 = vunpack.c.h.b16 %v4883
    %v5767 = vunpack.c.l.b16 %v4884
    %v5768 = vunpack.c.h.b16 %v4884
    %v5769 = vunpack.c.l.b16 %v4885
    %v5770 = vunpack.c.h.b16 %v4885
    %v5771 = vunpack.c.l.b16 %v4886
    %v5772 = vunpack.c.h.b16 %v4886
    %v5773 = vunpack.c.l.b16 %v4887
    %v5774 = vunpack.c.h.b16 %v4887
    %v5775 = vunpack.c.l.b16 %v4888
    %v5776 = vunpack.c.h.b16 %v4888
    %v5777 = vunpack.c.l.b16 %v4889
    %v5778 = vunpack.c.h.b16 %v4889
    %v5779 = vunpack.c.l.b16 %v4890
    %v5780 = vunpack.c.h.b16 %v4890
    %v5781 = vunpack.c.l.b16 %v4891
    %v5782 = vunpack.c.h.b16 %v4891
    %v5783 = vunpack.c.l.b16 %v4892
    %v5784 = vunpack.c.h.b16 %v4892
    %v5785 = vunpack.c.l.b16 %v4893
    %v5786 = vunpack.c.h.b16 %v4893
    %v5787 = vunpack.c.l.b16 %v4894
    %v5788 = vunpack.c.h.b16 %v4894
    %v5789 = vunpack.c.l.b16 %v4895
    %v5790 = vunpack.c.h.b16 %v4895
    %v5791 = vunpack.c.l.b16 %v4896
    %v5792 = vunpack.c.h.b16 %v4896
    %v5793 = vunpack.c.l.b16 %v4897
    %v5794 = vunpack.c.h.b16 %v4897
    %v5795 = vunpack.c.l.b16 %v4898
    %v5796 = vunpack.c.h.b16 %v4898
    %v5797 = vunpack.c.l.b16 %v4899
    %v5798 = vunpack.c.h.b16 %v4899
    %v5799 = vunpack.c.l.b16 %v4900
    %v5800 = vunpack.c.h.b16 %v4900
    %v5801 = vunpack.c.l.b16 %v4901
    %v5802 = vunpack.c.h.b16 %v4901
    %v5803 = vunpack.c.l.b16 %v4902
    %v5804 = vunpack.c.h.b16 %v4902
    %v5805 = vunpack.c.l.b16 %v4903
    %v5806 = vunpack.c.h.b16 %v4903
    %v5807 = vunpack.c.l.b16 %v4904
    %v5808 = vunpack.c.h.b16 %v4904
    %v5809 = vunpack.c.l.b16 %v4905
    %v5810 = vunpack.c.h.b16 %v4905
    %v5811 = vunpack.c.l.b16 %v4906
    %v5812 = vunpack.c.h.b16 %v4906
    %v5813 = vunpack.c.l.b16 %v4907
    %v5814 = vunpack.c.h.b16 %v4907
    %v5815 = vunpack.c.l.b16 %v4908
    %v5816 = vunpack.c.h.b16 %v4908
    %v5817 = vunpack.c.l.b16 %v4909
    %v5818 = vunpack.c.h.b16 %v4909
    %v5819 = vunpack.c.l.b16 %v4910
    %v5820 = vunpack.c.h.b16 %v4910
    %v5821 = vunpack.c.l.b16 %v4911
    %v5822 = vunpack.c.h.b16 %v4911
    %v5823 = vunpack.c.l.b16 %v4912
    %v5824 = vunpack.c.h.b16 %v4912
    %v5825 = vunpack.c.l.b16 %v4913
    %v5826 = vunpack.c.h.b16 %v4913
    %v5827 = vunpack.c.l.b16 %v4914
    %v5828 = vunpack.c.h.b16 %v4914
    %v5829 = vunpack.c.l.b16 %v4915
    %v5830 = vunpack.c.h.b16 %v4915
    %v5831 = vunpack.c.l.b16 %v4916
    %v5832 = vunpack.c.h.b16 %v4916
    %v5833 = vunpack.c.l.b16 %v4917
    %v5834 = vunpack.c.h.b16 %v4917
    %v5835 = vunpack.c.l.b16 %v4918
    %v5836 = vunpack.c.h.b16 %v4918
    %v5837 = vunpack.c.l.b16 %v4919
    %v5838 = vunpack.c.h.b16 %v4919
    %v5839 = vunpack.c.l.b16 %v4920
    %v5840 = vunpack.c.h.b16 %v4920
    %v5841 = vunpack.c.l.b16 %v4921
    %v5842 = vunpack.c.h.b16 %v4921
    %v5843 = vunpack.c.l.b16 %v4922
    %v5844 = vunpack.c.h.b16 %v4922
    %v5845 = vunpack.c.l.b16 %v4923
    %v5846 = vunpack.c.h.b16 %v4923
    %v5847 = vunpack.c.l.b16 %v4924
    %v5848 = vunpack.c.h.b16 %v4924
    %v5849 = vunpack.c.l.b16 %v4925
    %v5850 = vunpack.c.h.b16 %v4925
    %v5851 = vunpack.c.l.b16 %v4926
    %v5852 = vunpack.c.h.b16 %v4926
    %v5853 = vunpack.c.l.b16 %v4927
    %v5854 = vunpack.c.h.b16 %v4927
    %v5855 = vunpack.c.l.b16 %v4928
    %v5856 = vunpack.c.h.b16 %v4928
    %v5857 = vpack.c.b16 %v5293, %v5281
    %v5858 = vpack.c.b16 %v5294, %v5282
    %v5859 = vpack.c.b16 %v5295, %v5283
    %v5860 = vpack.c.b16 %v5296, %v5284
    %v5861 = vpack.c.b16 %v5297, %v5285
    %v5862 = vpack.c.b16 %v5298, %v5286
    %v5863 = vpack.c.b16 %v5299, %v5287
    %v5864 = vpack.c.b16 %v5300, %v5288
    %v5865 = vpack.c.b16 %v5301, %v5289
    %v5866 = vpack.c.b16 %v5302, %v5290
    %v5867 = vpack.c.b16 %v5303, %v5291
    %v5868 = vpack.c.b16 %v5304, %v5292
    %v5869 = vpack.c.b16 %v5317, %v5305
    %v5870 = vpack.c.b16 %v5318, %v5306
    %v5871 = vpack.c.b16 %v5319, %v5307
    %v5872 = vpack.c.b16 %v5320, %v5308
    %v5873 = vpack.c.b16 %v5321, %v5309
    %v5874 = vpack.c.b16 %v5322, %v5310
    %v5875 = vpack.c.b16 %v5323, %v5311
    %v5876 = vpack.c.b16 %v5324, %v5312
    %v5877 = vpack.c.b16 %v5325, %v5313
    %v5878 = vpack.c.b16 %v5326, %v5314
    %v5879 = vpack.c.b16 %v5327, %v5315
    %v5880 = vpack.c.b16 %v5328, %v5316
    %v5881 = vpack.c.b16 %v5341, %v5329
    %v5882 = vpack.c.b16 %v5342, %v5330
    %v5883 = vpack.c.b16 %v5343, %v5331
    %v5884 = vpack.c.b16 %v5344, %v5332
    %v5885 = vpack.c.b16 %v5345, %v5333
    %v5886 = vpack.c.b16 %v5346, %v5334
    %v5887 = vpack.c.b16 %v5347, %v5335
    %v5888 = vpack.c.b16 %v5348, %v5336
    %v5889 = vpack.c.b16 %v5349, %v5337
    %v5890 = vpack.c.b16 %v5350, %v5338
    %v5891 = vpack.c.b16 %v5351, %v5339
    %v5892 = vpack.c.b16 %v5352, %v5340
    %v5893 = vpack.c.b16 %v5365, %v5353
    %v5894 = vpack.c.b16 %v5366, %v5354
    %v5895 = vpack.c.b16 %v5367, %v5355
    %v5896 = vpack.c.b16 %v5368, %v5356
    %v5897 = vpack.c.b16 %v5369, %v5357
    %v5898 = vpack.c.b16 %v5370, %v5358
    %v5899 = vpack.c.b16 %v5371, %v5359
    %v5900 = vpack.c.b16 %v5372, %v5360
    %v5901 = vpack.c.b16 %v5373, %v5361
    %v5902 = vpack.c.b16 %v5374, %v5362
    %v5903 = vpack.c.b16 %v5375, %v5363
    %v5904 = vpack.c.b16 %v5376, %v5364
    %v5905 = vpack.c.b16 %v5389, %v5377
    %v5906 = vpack.c.b16 %v5390, %v5378
    %v5907 = vpack.c.b16 %v5391, %v5379
    %v5908 = vpack.c.b16 %v5392, %v5380
    %v5909 = vpack.c.b16 %v5393, %v5381
    %v5910 = vpack.c.b16 %v5394, %v5382
    %v5911 = vpack.c.b16 %v5395, %v5383
    %v5912 = vpack.c.b16 %v5396, %v5384
    %v5913 = vpack.c.b16 %v5397, %v5385
    %v5914 = vpack.c.b16 %v5398, %v5386
    %v5915 = vpack.c.b16 %v5399, %v5387
    %v5916 = vpack.c.b16 %v5400, %v5388
    %v5917 = vpack.c.b16 %v5413, %v5401
    %v5918 = vpack.c.b16 %v5414, %v5402
    %v5919 = vpack.c.b16 %v5415, %v5403
    %v5920 = vpack.c.b16 %v5416, %v5404
    %v5921 = vpack.c.b16 %v5417, %v5405
    %v5922 = vpack.c.b16 %v5418, %v5406
    %v5923 = vpack.c.b16 %v5419, %v5407
    %v5924 = vpack.c.b16 %v5420, %v5408
    %v5925 = vpack.c.b16 %v5421, %v5409
    %v5926 = vpack.c.b16 %v5422, %v5410
    %v5927 = vpack.c.b16 %v5423, %v5411
    %v5928 = vpack.c.b16 %v5424, %v5412
    %v5929 = vpack.c.b16 %v5437, %v5425
    %v5930 = vpack.c.b16 %v5438, %v5426
    %v5931 = vpack.c.b16 %v5439, %v5427
    %v5932 = vpack.c.b16 %v5440, %v5428
    %v5933 = vpack.c.b16 %v5441, %v5429
    %v5934 = vpack.c.b16 %v5442, %v5430
    %v5935 = vpack.c.b16 %v5443, %v5431
    %v5936 = vpack.c.b16 %v5444, %v5432
    %v5937 = vpack.c.b16 %v5445, %v5433
    %v5938 = vpack.c.b16 %v5446, %v5434
    %v5939 = vpack.c.b16 %v5447, %v5435
    %v5940 = vpack.c.b16 %v5448, %v5436
    %v5941 = vpack.c.b16 %v5461, %v5449
    %v5942 = vpack.c.b16 %v5462, %v5450
    %v5943 = vpack.c.b16 %v5463, %v5451
    %v5944 = vpack.c.b16 %v5464, %v5452
    %v5945 = vpack.c.b16 %v5465, %v5453
    %v5946 = vpack.c.b16 %v5466, %v5454
    %v5947 = vpack.c.b16 %v5467, %v5455
    %v5948 = vpack.c.b16 %v5468, %v5456
    %v5949 = vpack.c.b16 %v5469, %v5457
    %v5950 = vpack.c.b16 %v5470, %v5458
    %v5951 = vpack.c.b16 %v5471, %v5459
    %v5952 = vpack.c.b16 %v5472, %v5460
    %v5953 = vpack.c.b16 %v5485, %v5473
    %v5954 = vpack.c.b16 %v5486, %v5474
    %v5955 = vpack.c.b16 %v5487, %v5475
    %v5956 = vpack.c.b16 %v5488, %v5476
    %v5957 = vpack.c.b16 %v5489, %v5477
    %v5958 = vpack.c.b16 %v5490, %v5478
    %v5959 = vpack.c.b16 %v5491, %v5479
    %v5960 = vpack.c.b16 %v5492, %v5480
    %v5961 = vpack.c.b16 %v5493, %v5481
    %v5962 = vpack.c.b16 %v5494, %v5482
    %v5963 = vpack.c.b16 %v5495, %v5483
    %v5964 = vpack.c.b16 %v5496, %v5484
    %v5965 = vpack.c.b16 %v5509, %v5497
    %v5966 = vpack.c.b16 %v5510, %v5498
    %v5967 = vpack.c.b16 %v5511, %v5499
    %v5968 = vpack.c.b16 %v5512, %v5500
    %v5969 = vpack.c.b16 %v5513, %v5501
    %v5970 = vpack.c.b16 %v5514, %v5502
    %v5971 = vpack.c.b16 %v5515, %v5503
    %v5972 = vpack.c.b16 %v5516, %v5504
    %v5973 = vpack.c.b16 %v5517, %v5505
    %v5974 = vpack.c.b16 %v5518, %v5506
    %v5975 = vpack.c.b16 %v5519, %v5507
    %v5976 = vpack.c.b16 %v5520, %v5508
    %v5977 = vpack.c.b16 %v5533, %v5521
    %v5978 = vpack.c.b16 %v5534, %v5522
    %v5979 = vpack.c.b16 %v5535, %v5523
    %v5980 = vpack.c.b16 %v5536, %v5524
    %v5981 = vpack.c.b16 %v5537, %v5525
    %v5982 = vpack.c.b16 %v5538, %v5526
    %v5983 = vpack.c.b16 %v5539, %v5527
    %v5984 = vpack.c.b16 %v5540, %v5528
    %v5985 = vpack.c.b16 %v5541, %v5529
    %v5986 = vpack.c.b16 %v5542, %v5530
    %v5987 = vpack.c.b16 %v5543, %v5531
    %v5988 = vpack.c.b16 %v5544, %v5532
    %v5989 = vpack.c.b16 %v5557, %v5545
    %v5990 = vpack.c.b16 %v5558, %v5546
    %v5991 = vpack.c.b16 %v5559, %v5547
    %v5992 = vpack.c.b16 %v5560, %v5548
    %v5993 = vpack.c.b16 %v5561, %v5549
    %v5994 = vpack.c.b16 %v5562, %v5550
    %v5995 = vpack.c.b16 %v5563, %v5551
    %v5996 = vpack.c.b16 %v5564, %v5552
    %v5997 = vpack.c.b16 %v5565, %v5553
    %v5998 = vpack.c.b16 %v5566, %v5554
    %v5999 = vpack.c.b16 %v5567, %v5555
    %v6000 = vpack.c.b16 %v5568, %v5556
    %v6001 = vpack.c.b16 %v5581, %v5569
    %v6002 = vpack.c.b16 %v5582, %v5570
    %v6003 = vpack.c.b16 %v5583, %v5571
    %v6004 = vpack.c.b16 %v5584, %v5572
    %v6005 = vpack.c.b16 %v5585, %v5573
    %v6006 = vpack.c.b16 %v5586, %v5574
    %v6007 = vpack.c.b16 %v5587, %v5575
    %v6008 = vpack.c.b16 %v5588, %v5576
    %v6009 = vpack.c.b16 %v5589, %v5577
    %v6010 = vpack.c.b16 %v5590, %v5578
    %v6011 = vpack.c.b16 %v5591, %v5579
    %v6012 = vpack.c.b16 %v5592, %v5580
    %v6013 = vpack.c.b16 %v5605, %v5593
    %v6014 = vpack.c.b16 %v5606, %v5594
    %v6015 = vpack.c.b16 %v5607, %v5595
    %v6016 = vpack.c.b16 %v5608, %v5596
    %v6017 = vpack.c.b16 %v5609, %v5597
    %v6018 = vpack.c.b16 %v5610, %v5598
    %v6019 = vpack.c.b16 %v5611, %v5599
    %v6020 = vpack.c.b16 %v5612, %v5600
    %v6021 = vpack.c.b16 %v5613, %v5601
    %v6022 = vpack.c.b16 %v5614, %v5602
    %v6023 = vpack.c.b16 %v5615, %v5603
    %v6024 = vpack.c.b16 %v5616, %v5604
    %v6025 = vpack.c.b16 %v5629, %v5617
    %v6026 = vpack.c.b16 %v5630, %v5618
    %v6027 = vpack.c.b16 %v5631, %v5619
    %v6028 = vpack.c.b16 %v5632, %v5620
    %v6029 = vpack.c.b16 %v5633, %v5621
    %v6030 = vpack.c.b16 %v5634, %v5622
    %v6031 = vpack.c.b16 %v5635, %v5623
    %v6032 = vpack.c.b16 %v5636, %v5624
    %v6033 = vpack.c.b16 %v5637, %v5625
    %v6034 = vpack.c.b16 %v5638, %v5626
    %v6035 = vpack.c.b16 %v5639, %v5627
    %v6036 = vpack.c.b16 %v5640, %v5628
    %v6037 = vpack.c.b16 %v5653, %v5641
    %v6038 = vpack.c.b16 %v5654, %v5642
    %v6039 = vpack.c.b16 %v5655, %v5643
    %v6040 = vpack.c.b16 %v5656, %v5644
    %v6041 = vpack.c.b16 %v5657, %v5645
    %v6042 = vpack.c.b16 %v5658, %v5646
    %v6043 = vpack.c.b16 %v5659, %v5647
    %v6044 = vpack.c.b16 %v5660, %v5648
    %v6045 = vpack.c.b16 %v5661, %v5649
    %v6046 = vpack.c.b16 %v5662, %v5650
    %v6047 = vpack.c.b16 %v5663, %v5651
    %v6048 = vpack.c.b16 %v5664, %v5652
    %v6049 = vpack.c.b16 %v5677, %v5665
    %v6050 = vpack.c.b16 %v5678, %v5666
    %v6051 = vpack.c.b16 %v5679, %v5667
    %v6052 = vpack.c.b16 %v5680, %v5668
    %v6053 = vpack.c.b16 %v5681, %v5669
    %v6054 = vpack.c.b16 %v5682, %v5670
    %v6055 = vpack.c.b16 %v5683, %v5671
    %v6056 = vpack.c.b16 %v5684, %v5672
    %v6057 = vpack.c.b16 %v5685, %v5673
    %v6058 = vpack.c.b16 %v5686, %v5674
    %v6059 = vpack.c.b16 %v5687, %v5675
    %v6060 = vpack.c.b16 %v5688, %v5676
    %v6061 = vpack.c.b16 %v5701, %v5689
    %v6062 = vpack.c.b16 %v5702, %v5690
    %v6063 = vpack.c.b16 %v5703, %v5691
    %v6064 = vpack.c.b16 %v5704, %v5692
    %v6065 = vpack.c.b16 %v5705, %v5693
    %v6066 = vpack.c.b16 %v5706, %v5694
    %v6067 = vpack.c.b16 %v5707, %v5695
    %v6068 = vpack.c.b16 %v5708, %v5696
    %v6069 = vpack.c.b16 %v5709, %v5697
    %v6070 = vpack.c.b16 %v5710, %v5698
    %v6071 = vpack.c.b16 %v5711, %v5699
    %v6072 = vpack.c.b16 %v5712, %v5700
    %v6073 = vpack.c.b16 %v5725, %v5713
    %v6074 = vpack.c.b16 %v5726, %v5714
    %v6075 = vpack.c.b16 %v5727, %v5715
    %v6076 = vpack.c.b16 %v5728, %v5716
    %v6077 = vpack.c.b16 %v5729, %v5717
    %v6078 = vpack.c.b16 %v5730, %v5718
    %v6079 = vpack.c.b16 %v5731, %v5719
    %v6080 = vpack.c.b16 %v5732, %v5720
    %v6081 = vpack.c.b16 %v5733, %v5721
    %v6082 = vpack.c.b16 %v5734, %v5722
    %v6083 = vpack.c.b16 %v5735, %v5723
    %v6084 = vpack.c.b16 %v5736, %v5724
    %v6085 = vpack.c.b16 %v5749, %v5737
    %v6086 = vpack.c.b16 %v5750, %v5738
    %v6087 = vpack.c.b16 %v5751, %v5739
    %v6088 = vpack.c.b16 %v5752, %v5740
    %v6089 = vpack.c.b16 %v5753, %v5741
    %v6090 = vpack.c.b16 %v5754, %v5742
    %v6091 = vpack.c.b16 %v5755, %v5743
    %v6092 = vpack.c.b16 %v5756, %v5744
    %v6093 = vpack.c.b16 %v5757, %v5745
    %v6094 = vpack.c.b16 %v5758, %v5746
    %v6095 = vpack.c.b16 %v5759, %v5747
    %v6096 = vpack.c.b16 %v5760, %v5748
    %v6097 = vpack.c.b16 %v5773, %v5761
    %v6098 = vpack.c.b16 %v5774, %v5762
    %v6099 = vpack.c.b16 %v5775, %v5763
    %v6100 = vpack.c.b16 %v5776, %v5764
    %v6101 = vpack.c.b16 %v5777, %v5765
    %v6102 = vpack.c.b16 %v5778, %v5766
    %v6103 = vpack.c.b16 %v5779, %v5767
    %v6104 = vpack.c.b16 %v5780, %v5768
    %v6105 = vpack.c.b16 %v5781, %v5769
    %v6106 = vpack.c.b16 %v5782, %v5770
    %v6107 = vpack.c.b16 %v5783, %v5771
    %v6108 = vpack.c.b16 %v5784, %v5772
    %v6109 = vpack.c.b16 %v5797, %v5785
    %v6110 = vpack.c.b16 %v5798, %v5786
    %v6111 = vpack.c.b16 %v5799, %v5787
    %v6112 = vpack.c.b16 %v5800, %v5788
    %v6113 = vpack.c.b16 %v5801, %v5789
    %v6114 = vpack.c.b16 %v5802, %v5790
    %v6115 = vpack.c.b16 %v5803, %v5791
    %v6116 = vpack.c.b16 %v5804, %v5792
    %v6117 = vpack.c.b16 %v5805, %v5793
    %v6118 = vpack.c.b16 %v5806, %v5794
    %v6119 = vpack.c.b16 %v5807, %v5795
    %v6120 = vpack.c.b16 %v5808, %v5796
    %v6121 = vpack.c.b16 %v5821, %v5809
    %v6122 = vpack.c.b16 %v5822, %v5810
    %v6123 = vpack.c.b16 %v5823, %v5811
    %v6124 = vpack.c.b16 %v5824, %v5812
    %v6125 = vpack.c.b16 %v5825, %v5813
    %v6126 = vpack.c.b16 %v5826, %v5814
    %v6127 = vpack.c.b16 %v5827, %v5815
    %v6128 = vpack.c.b16 %v5828, %v5816
    %v6129 = vpack.c.b16 %v5829, %v5817
    %v6130 = vpack.c.b16 %v5830, %v5818
    %v6131 = vpack.c.b16 %v5831, %v5819
    %v6132 = vpack.c.b16 %v5832, %v5820
    %v6133 = vpack.c.b16 %v5845, %v5833
    %v6134 = vpack.c.b16 %v5846, %v5834
    %v6135 = vpack.c.b16 %v5847, %v5835
    %v6136 = vpack.c.b16 %v5848, %v5836
    %v6137 = vpack.c.b16 %v5849, %v5837
    %v6138 = vpack.c.b16 %v5850, %v5838
    %v6139 = vpack.c.b16 %v5851, %v5839
    %v6140 = vpack.c.b16 %v5852, %v5840
    %v6141 = vpack.c.b16 %v5853, %v5841
    %v6142 = vpack.c.b16 %v5854, %v5842
    %v6143 = vpack.c.b16 %v5855, %v5843
    %v6144 = vpack.c.b16 %v5856, %v5844
    %6433 = vmatprep.subr.bf16.mxu0 %v5858
    %6434 = vmatpush1.bf16.msra.mxu0 %v5857
    %6435 = vmatprep.subr.bf16.mxu0 %v5870
    %6436 = vmatpush1.bf16.msra.mxu0 %v5869
    %6437 = vmatprep.subr.bf16.mxu0 %v5882
    %6438 = vmatpush1.bf16.msra.mxu0 %v5881
    %6439 = vmatprep.subr.bf16.mxu0 %v5894
    %6440 = vmatpush1.bf16.msra.mxu0 %v5893
    %6441 = vmatprep.subr.bf16.mxu0 %v5906
    %6442 = vmatpush1.bf16.msra.mxu0 %v5905
    %6443 = vmatprep.subr.bf16.mxu0 %v5918
    %6444 = vmatpush1.bf16.msra.mxu0 %v5917
    %6445 = vmatprep.subr.bf16.mxu0 %v5930
    %6446 = vmatpush1.bf16.msra.mxu0 %v5929
    %6447 = vmatprep.subr.bf16.mxu0 %v5942
    %6448 = vmatpush1.bf16.msra.mxu0 %v5941
    %6449 = vmatprep.subr.bf16.mxu0 %v5954
    %6450 = vmatpush1.bf16.msra.mxu0 %v5953
    %6451 = vmatprep.subr.bf16.mxu0 %v5966
    %6452 = vmatpush1.bf16.msra.mxu0 %v5965
    %6453 = vmatprep.subr.bf16.mxu0 %v5978
    %6454 = vmatpush1.bf16.msra.mxu0 %v5977
    %6455 = vmatprep.subr.bf16.mxu0 %v5990
    %6456 = vmatpush1.bf16.msra.mxu0 %v5989
    %6457 = vmatprep.subr.bf16.mxu0 %v6002
    %6458 = vmatpush1.bf16.msra.mxu0 %v6001
    %6459 = vmatprep.subr.bf16.mxu0 %v6014
    %6460 = vmatpush1.bf16.msra.mxu0 %v6013
    %6461 = vmatprep.subr.bf16.mxu0 %v6026
    %6462 = vmatpush1.bf16.msra.mxu0 %v6025
    %6463 = vmatprep.subr.bf16.mxu0 %v6038
    %6464 = vmatpush1.bf16.msra.mxu0 %v6037
    %6465 = vmatprep.mubr.bf16.mxu0 %v4636
    %6466 = vmatmul.mubr.bf16.gmra.mrb[0].mxu0 %v4635
    %v6467 = vpop.f32.mrb[0].mxu0
    %v6468 = vadd.f32 %v4936, %v6467
    %v6469 = vpop.f32.mrb[0].mxu0
    %v6470 = vadd.f32 %v4940, %v6469
    %v6471 = vpop.f32.mrb[0].mxu0
    %v6472 = vadd.f32 %v4936, %v6471
    %v6473 = vpop.f32.mrb[0].mxu0
    %v6474 = vadd.f32 %v4940, %v6473
    %6475 = vmatprep.mubr.bf16.mxu0 %v4639
    %6476 = vmatmul.mubr.bf16.gmra.mrb[0].mxu0 %v4638
    %v6477 = vpop.f32.mrb[0].mxu0
    %v6478 = vadd.f32 %v4936, %v6477
    %v6479 = vpop.f32.mrb[0].mxu0
    %v6480 = vadd.f32 %v4940, %v6479
    %v6481 = vpop.f32.mrb[0].mxu0
    %v6482 = vadd.f32 %v4936, %v6481
    %v6483 = vpop.f32.mrb[0].mxu0
    %v6484 = vadd.f32 %v4940, %v6483
    %6485 = vdwg.mxu0
    %6486 = vmatprep.subr.bf16.mxu0 %v6050
    %6487 = vmatpush1.bf16.msra.mxu0 %v6049
    %6488 = vmatprep.subr.bf16.mxu0 %v6062
    %6489 = vmatpush1.bf16.msra.mxu0 %v6061
    %6490 = vmatprep.subr.bf16.mxu0 %v6074
    %6491 = vmatpush1.bf16.msra.mxu0 %v6073
    %6492 = vmatprep.subr.bf16.mxu0 %v6086
    %6493 = vmatpush1.bf16.msra.mxu0 %v6085
    %6494 = vmatprep.subr.bf16.mxu0 %v6098
    %6495 = vmatpush1.bf16.msra.mxu0 %v6097
    %6496 = vmatprep.subr.bf16.mxu0 %v6110
    %6497 = vmatpush1.bf16.msra.mxu0 %v6109
    %6498 = vmatprep.subr.bf16.mxu0 %v6122
    %6499 = vmatpush1.bf16.msra.mxu0 %v6121
    %6500 = vmatprep.subr.bf16.mxu0 %v6134
    %6501 = vmatpush1.bf16.msra.mxu0 %v6133
    %6502 = vmatprep.subr.bf16.mxu0 0
    %6503 = vmatpush1.bf16.msra.mxu0 0
    %6504 = vmatprep.subr.bf16.mxu0 0
    %6505 = vmatpush1.bf16.msra.mxu0 0
    %6506 = vmatprep.subr.bf16.mxu0 0
    %6507 = vmatpush1.bf16.msra.mxu0 0
    %6508 = vmatprep.subr.bf16.mxu0 0
    %6509 = vmatpush1.bf16.msra.mxu0 0
    %6510 = vmatprep.subr.bf16.mxu0 0
    %6511 = vmatpush1.bf16.msra.mxu0 0
    %6512 = vmatprep.subr.bf16.mxu0 0
    %6513 = vmatpush1.bf16.msra.mxu0 0
    %6514 = vmatprep.subr.bf16.mxu0 0
    %6515 = vmatpush1.bf16.msra.mxu0 0
    %6516 = vmatprep.subr.bf16.mxu0 0
    %6517 = vmatpush1.bf16.msra.mxu0 0
    %6518 = vmatprep.mubr.bf16.mxu0 0
    %6519 = vmatmul.mubr.bf16.gmra.mrb[0].mxu0 %v4637
    %v6520 = vpop.f32.mrb[0].mxu0
    %v6521 = vadd.f32 %v6468, %v6520
    %v6522 = vpop.f32.mrb[0].mxu0
    %v6523 = vadd.f32 %v6470, %v6522
    %v6524 = vpop.f32.mrb[0].mxu0
    %v6525 = vadd.f32 %v6472, %v6524
    %v6526 = vpop.f32.mrb[0].mxu0
    %v6527 = vadd.f32 %v6474, %v6526
    %6528 = vmatprep.mubr.bf16.mxu0 0
    %6529 = vmatmul.mubr.bf16.gmra.mrb[0].mxu0 %v4640
    %v6530 = vpop.f32.mrb[0].mxu0
    %v6531 = vadd.f32 %v6478, %v6530
    %v6532 = vpop.f32.mrb[0].mxu0
    %v6533 = vadd.f32 %v6480, %v6532
    %v6534 = vpop.f32.mrb[0].mxu0
    %v6535 = vadd.f32 %v6482, %v6534
    %v6536 = vpop.f32.mrb[0].mxu0
    %v6537 = vadd.f32 %v6484, %v6536
    %6538 = vdwg.mxu0
    %6539 = vmatprep.subr.bf16.mxu0 %v5860
    %6540 = vmatpush1.bf16.msra.mxu0 %v5859
    %6541 = vmatprep.subr.bf16.mxu0 %v5872
    %6542 = vmatpush1.bf16.msra.mxu0 %v5871
    %6543 = vmatprep.subr.bf16.mxu0 %v5884
    %6544 = vmatpush1.bf16.msra.mxu0 %v5883
    %6545 = vmatprep.subr.bf16.mxu0 %v5896
    %6546 = vmatpush1.bf16.msra.mxu0 %v5895
    %6547 = vmatprep.subr.bf16.mxu0 %v5908
    %6548 = vmatpush1.bf16.msra.mxu0 %v5907
    %6549 = vmatprep.subr.bf16.mxu0 %v5920
    %6550 = vmatpush1.bf16.msra.mxu0 %v5919
    %6551 = vmatprep.subr.bf16.mxu0 %v5932
    %6552 = vmatpush1.bf16.msra.mxu0 %v5931
    %6553 = vmatprep.subr.bf16.mxu0 %v5944
    %6554 = vmatpush1.bf16.msra.mxu0 %v5943
    %6555 = vmatprep.subr.bf16.mxu0 %v5956
    %6556 = vmatpush1.bf16.msra.mxu0 %v5955
    %6557 = vmatprep.subr.bf16.mxu0 %v5968
    %6558 = vmatpush1.bf16.msra.mxu0 %v5967
    %6559 = vmatprep.subr.bf16.mxu0 %v5980
    %6560 = vmatpush1.bf16.msra.mxu0 %v5979
    %6561 = vmatprep.subr.bf16.mxu0 %v5992
    %6562 = vmatpush1.bf16.msra.mxu0 %v5991
    %6563 = vmatprep.subr.bf16.mxu0 %v6004
    %6564 = vmatpush1.bf16.msra.mxu0 %v6003
    %6565 = vmatprep.subr.bf16.mxu0 %v6016
    %6566 = vmatpush1.bf16.msra.mxu0 %v6015
    %6567 = vmatprep.subr.bf16.mxu0 %v6028
    %6568 = vmatpush1.bf16.msra.mxu0 %v6027
    %6569 = vmatprep.subr.bf16.mxu0 %v6040
    %6570 = vmatpush1.bf16.msra.mxu0 %v6039
    %6571 = vmatprep.mubr.bf16.mxu0 %v4636
    %6572 = vmatmul.mubr.bf16.gmra.mrb[0].mxu0 %v4635
    %v6573 = vpop.f32.mrb[0].mxu0
    %v6574 = vadd.f32 %v4944, %v6573
    %v6575 = vpop.f32.mrb[0].mxu0
    %v6576 = vadd.f32 %v4948, %v6575
    %v6577 = vpop.f32.mrb[0].mxu0
    %v6578 = vadd.f32 %v4944, %v6577
    %v6579 = vpop.f32.mrb[0].mxu0
    %v6580 = vadd.f32 %v4948, %v6579
    %6581 = vmatprep.mubr.bf16.mxu0 %v4639
    %6582 = vmatmul.mubr.bf16.gmra.mrb[0].mxu0 %v4638
    %v6583 = vpop.f32.mrb[0].mxu0
    %v6584 = vadd.f32 %v4944, %v6583
    %v6585 = vpop.f32.mrb[0].mxu0
    %v6586 = vadd.f32 %v4948, %v6585
    %v6587 = vpop.f32.mrb[0].mxu0
    %v6588 = vadd.f32 %v4944, %v6587
    %v6589 = vpop.f32.mrb[0].mxu0
    %v6590 = vadd.f32 %v4948, %v6589
    %6591 = vdwg.mxu0
    %6592 = vmatprep.subr.bf16.mxu0 %v6052
    %6593 = vmatpush1.bf16.msra.mxu0 %v6051
    %6594 = vmatprep.subr.bf16.mxu0 %v6064
    %6595 = vmatpush1.bf16.msra.mxu0 %v6063
    %6596 = vmatprep.subr.bf16.mxu0 %v6076
    %6597 = vmatpush1.bf16.msra.mxu0 %v6075
    %6598 = vmatprep.subr.bf16.mxu0 %v6088
    %6599 = vmatpush1.bf16.msra.mxu0 %v6087
    %6600 = vmatprep.subr.bf16.mxu0 %v6100
    %6601 = vmatpush1.bf16.msra.mxu0 %v6099
    %6602 = vmatprep.subr.bf16.mxu0 %v6112
    %6603 = vmatpush1.bf16.msra.mxu0 %v6111
    %6604 = vmatprep.subr.bf16.mxu0 %v6124
    %6605 = vmatpush1.bf16.msra.mxu0 %v6123
    %6606 = vmatprep.subr.bf16.mxu0 %v6136
    %6607 = vmatpush1.bf16.msra.mxu0 %v6135
    %6608 = vmatprep.subr.bf16.mxu0 0
    %6609 = vmatpush1.bf16.msra.mxu0 0
    %6610 = vmatprep.subr.bf16.mxu0 0
    %6611 = vmatpush1.bf16.msra.mxu0 0
    %6612 = vmatprep.subr.bf16.mxu0 0
    %6613 = vmatpush1.bf16.msra.mxu0 0
    %6614 = vmatprep.subr.bf16.mxu0 0
    %6615 = vmatpush1.bf16.msra.mxu0 0
    %6616 = vmatprep.subr.bf16.mxu0 0
    %6617 = vmatpush1.bf16.msra.mxu0 0
    %6618 = vmatprep.subr.bf16.mxu0 0
    %6619 = vmatpush1.bf16.msra.mxu0 0
    %6620 = vmatprep.subr.bf16.mxu0 0
    %6621 = vmatpush1.bf16.msra.mxu0 0
    %6622 = vmatprep.subr.bf16.mxu0 0
    %6623 = vmatpush1.bf16.msra.mxu0 0
    %6624 = vmatprep.mubr.bf16.mxu0 0
    %6625 = vmatmul.mubr.bf16.gmra.mrb[0].mxu0 %v4637
    %v6626 = vpop.f32.mrb[0].mxu0
    %v6627 = vadd.f32 %v6574, %v6626
    %v6628 = vpop.f32.mrb[0].mxu0
    %v6629 = vadd.f32 %v6576, %v6628
    %v6630 = vpop.f32.mrb[0].mxu0
    %v6631 = vadd.f32 %v6578, %v6630
    %v6632 = vpop.f32.mrb[0].mxu0
    %v6633 = vadd.f32 %v6580, %v6632
    %6634 = vmatprep.mubr.bf16.mxu0 0
    %6635 = vmatmul.mubr.bf16.gmra.mrb[0].mxu0 %v4640
    %v6636 = vpop.f32.mrb[0].mxu0
    %v6637 = vadd.f32 %v6584, %v6636
    %v6638 = vpop.f32.mrb[0].mxu0
    %v6639 = vadd.f32 %v6586, %v6638
    %v6640 = vpop.f32.mrb[0].mxu0
    %v6641 = vadd.f32 %v6588, %v6640
    %v6642 = vpop.f32.mrb[0].mxu0
    %v6643 = vadd.f32 %v6590, %v6642
    %6644 = vdwg.mxu0
    %6645 = vmatprep.subr.bf16.mxu0 %v5862
    %6646 = vmatpush1.bf16.msra.mxu0 %v5861
    %6647 = vmatprep.subr.bf16.mxu0 %v5874
    %6648 = vmatpush1.bf16.msra.mxu0 %v5873
    %6649 = vmatprep.subr.bf16.mxu0 %v5886
    %6650 = vmatpush1.bf16.msra.mxu0 %v5885
    %6651 = vmatprep.subr.bf16.mxu0 %v5898
    %6652 = vmatpush1.bf16.msra.mxu0 %v5897
    %6653 = vmatprep.subr.bf16.mxu0 %v5910
    %6654 = vmatpush1.bf16.msra.mxu0 %v5909
    %6655 = vmatprep.subr.bf16.mxu0 %v5922
    %6656 = vmatpush1.bf16.msra.mxu0 %v5921
    %6657 = vmatprep.subr.bf16.mxu0 %v5934
    %6658 = vmatpush1.bf16.msra.mxu0 %v5933
    %6659 = vmatprep.subr.bf16.mxu0 %v5946
    %6660 = vmatpush1.bf16.msra.mxu0 %v5945
    %6661 = vmatprep.subr.bf16.mxu0 %v5958
    %6662 = vmatpush1.bf16.msra.mxu0 %v5957
    %6663 = vmatprep.subr.bf16.mxu0 %v5970
    %6664 = vmatpush1.bf16.msra.mxu0 %v5969
    %6665 = vmatprep.subr.bf16.mxu0 %v5982
    %6666 = vmatpush1.bf16.msra.mxu0 %v5981
    %6667 = vmatprep.subr.bf16.mxu0 %v5994
    %6668 = vmatpush1.bf16.msra.mxu0 %v5993
    %6669 = vmatprep.subr.bf16.mxu0 %v6006
    %6670 = vmatpush1.bf16.msra.mxu0 %v6005
    %6671 = vmatprep.subr.bf16.mxu0 %v6018
    %6672 = vmatpush1.bf16.msra.mxu0 %v6017
    %6673 = vmatprep.subr.bf16.mxu0 %v6030
    %6674 = vmatpush1.bf16.msra.mxu0 %v6029
    %6675 = vmatprep.subr.bf16.mxu0 %v6042
    %6676 = vmatpush1.bf16.msra.mxu0 %v6041
    %6677 = vmatprep.mubr.bf16.mxu0 %v4636
    %6678 = vmatmul.mubr.bf16.gmra.mrb[0].mxu0 %v4635
    %v6679 = vpop.f32.mrb[0].mxu0
    %v6680 = vadd.f32 %v4952, %v6679
    %v6681 = vpop.f32.mrb[0].mxu0
    %v6682 = vadd.f32 %v4956, %v6681
    %v6683 = vpop.f32.mrb[0].mxu0
    %v6684 = vadd.f32 %v4952, %v6683
    %v6685 = vpop.f32.mrb[0].mxu0
    %v6686 = vadd.f32 %v4956, %v6685
    %6687 = vmatprep.mubr.bf16.mxu0 %v4639
    %6688 = vmatmul.mubr.bf16.gmra.mrb[0].mxu0 %v4638
    %v6689 = vpop.f32.mrb[0].mxu0
    %v6690 = vadd.f32 %v4952, %v6689
    %v6691 = vpop.f32.mrb[0].mxu0
    %v6692 = vadd.f32 %v4956, %v6691
    %v6693 = vpop.f32.mrb[0].mxu0
    %v6694 = vadd.f32 %v4952, %v6693
    %v6695 = vpop.f32.mrb[0].mxu0
    %v6696 = vadd.f32 %v4956, %v6695
    %6697 = vdwg.mxu0
    %6698 = vmatprep.subr.bf16.mxu0 %v6054
    %6699 = vmatpush1.bf16.msra.mxu0 %v6053
    %6700 = vmatprep.subr.bf16.mxu0 %v6066
    %6701 = vmatpush1.bf16.msra.mxu0 %v6065
    %6702 = vmatprep.subr.bf16.mxu0 %v6078
    %6703 = vmatpush1.bf16.msra.mxu0 %v6077
    %6704 = vmatprep.subr.bf16.mxu0 %v6090
    %6705 = vmatpush1.bf16.msra.mxu0 %v6089
    %6706 = vmatprep.subr.bf16.mxu0 %v6102
    %6707 = vmatpush1.bf16.msra.mxu0 %v6101
    %6708 = vmatprep.subr.bf16.mxu0 %v6114
    %6709 = vmatpush1.bf16.msra.mxu0 %v6113
    %6710 = vmatprep.subr.bf16.mxu0 %v6126
    %6711 = vmatpush1.bf16.msra.mxu0 %v6125
    %6712 = vmatprep.subr.bf16.mxu0 %v6138
    %6713 = vmatpush1.bf16.msra.mxu0 %v6137
    %6714 = vmatprep.subr.bf16.mxu0 0
    %6715 = vmatpush1.bf16.msra.mxu0 0
    %6716 = vmatprep.subr.bf16.mxu0 0
    %6717 = vmatpush1.bf16.msra.mxu0 0
    %6718 = vmatprep.subr.bf16.mxu0 0
    %6719 = vmatpush1.bf16.msra.mxu0 0
    %6720 = vmatprep.subr.bf16.mxu0 0
    %6721 = vmatpush1.bf16.msra.mxu0 0
    %6722 = vmatprep.subr.bf16.mxu0 0
    %6723 = vmatpush1.bf16.msra.mxu0 0
    %6724 = vmatprep.subr.bf16.mxu0 0
    %6725 = vmatpush1.bf16.msra.mxu0 0
    %6726 = vmatprep.subr.bf16.mxu0 0
    %6727 = vmatpush1.bf16.msra.mxu0 0
    %6728 = vmatprep.subr.bf16.mxu0 0
    %6729 = vmatpush1.bf16.msra.mxu0 0
    %6730 = vmatprep.mubr.bf16.mxu0 0
    %6731 = vmatmul.mubr.bf16.gmra.mrb[0].mxu0 %v4637
    %v6732 = vpop.f32.mrb[0].mxu0
    %v6733 = vadd.f32 %v6680, %v6732
    %v6734 = vpop.f32.mrb[0].mxu0
    %v6735 = vadd.f32 %v6682, %v6734
    %v6736 = vpop.f32.mrb[0].mxu0
    %v6737 = vadd.f32 %v6684, %v6736
    %v6738 = vpop.f32.mrb[0].mxu0
    %v6739 = vadd.f32 %v6686, %v6738
    %6740 = vmatprep.mubr.bf16.mxu0 0
    %6741 = vmatmul.mubr.bf16.gmra.mrb[0].mxu0 %v4640
    %v6742 = vpop.f32.mrb[0].mxu0
    %v6743 = vadd.f32 %v6690, %v6742
    %v6744 = vpop.f32.mrb[0].mxu0
    %v6745 = vadd.f32 %v6692, %v6744
    %v6746 = vpop.f32.mrb[0].mxu0
    %v6747 = vadd.f32 %v6694, %v6746
    %v6748 = vpop.f32.mrb[0].mxu0
    %v6749 = vadd.f32 %v6696, %v6748
    %6750 = vdwg.mxu0
    %6751 = vmatprep.subr.bf16.mxu0 %v5864
    %6752 = vmatpush1.bf16.msra.mxu0 %v5863
    %6753 = vmatprep.subr.bf16.mxu0 %v5876
    %6754 = vmatpush1.bf16.msra.mxu0 %v5875
    %6755 = vmatprep.subr.bf16.mxu0 %v5888
    %6756 = vmatpush1.bf16.msra.mxu0 %v5887
    %6757 = vmatprep.subr.bf16.mxu0 %v5900
    %6758 = vmatpush1.bf16.msra.mxu0 %v5899
    %6759 = vmatprep.subr.bf16.mxu0 %v5912
    %6760 = vmatpush1.bf16.msra.mxu0 %v5911
    %6761 = vmatprep.subr.bf16.mxu0 %v5924
    %6762 = vmatpush1.bf16.msra.mxu0 %v5923
    %6763 = vmatprep.subr.bf16.mxu0 %v5936
    %6764 = vmatpush1.bf16.msra.mxu0 %v5935
    %6765 = vmatprep.subr.bf16.mxu0 %v5948
    %6766 = vmatpush1.bf16.msra.mxu0 %v5947
    %6767 = vmatprep.subr.bf16.mxu0 %v5960
    %6768 = vmatpush1.bf16.msra.mxu0 %v5959
    %6769 = vmatprep.subr.bf16.mxu0 %v5972
    %6770 = vmatpush1.bf16.msra.mxu0 %v5971
    %6771 = vmatprep.subr.bf16.mxu0 %v5984
    %6772 = vmatpush1.bf16.msra.mxu0 %v5983
    %6773 = vmatprep.subr.bf16.mxu0 %v5996
    %6774 = vmatpush1.bf16.msra.mxu0 %v5995
    %6775 = vmatprep.subr.bf16.mxu0 %v6008
    %6776 = vmatpush1.bf16.msra.mxu0 %v6007
    %6777 = vmatprep.subr.bf16.mxu0 %v6020
    %6778 = vmatpush1.bf16.msra.mxu0 %v6019
    %6779 = vmatprep.subr.bf16.mxu0 %v6032
    %6780 = vmatpush1.bf16.msra.mxu0 %v6031
    %6781 = vmatprep.subr.bf16.mxu0 %v6044
    %6782 = vmatpush1.bf16.msra.mxu0 %v6043
    %6783 = vmatprep.mubr.bf16.mxu0 %v4636
    %6784 = vmatmul.mubr.bf16.gmra.mrb[0].mxu0 %v4635
    %v6785 = vpop.f32.mrb[0].mxu0
    %v6786 = vadd.f32 %v4960, %v6785
    %v6787 = vpop.f32.mrb[0].mxu0
    %v6788 = vadd.f32 %v4964, %v6787
    %v6789 = vpop.f32.mrb[0].mxu0
    %v6790 = vadd.f32 %v4960, %v6789
    %v6791 = vpop.f32.mrb[0].mxu0
    %v6792 = vadd.f32 %v4964, %v6791
    %6793 = vmatprep.mubr.bf16.mxu0 %v4639
    %6794 = vmatmul.mubr.bf16.gmra.mrb[0].mxu0 %v4638
    %v6795 = vpop.f32.mrb[0].mxu0
    %v6796 = vadd.f32 %v4960, %v6795
    %v6797 = vpop.f32.mrb[0].mxu0
    %v6798 = vadd.f32 %v4964, %v6797
    %v6799 = vpop.f32.mrb[0].mxu0
    %v6800 = vadd.f32 %v4960, %v6799
    %v6801 = vpop.f32.mrb[0].mxu0
    %v6802 = vadd.f32 %v4964, %v6801
    %6803 = vdwg.mxu0
    %6804 = vmatprep.subr.bf16.mxu0 %v6056
    %6805 = vmatpush1.bf16.msra.mxu0 %v6055
    %6806 = vmatprep.subr.bf16.mxu0 %v6068
    %6807 = vmatpush1.bf16.msra.mxu0 %v6067
    %6808 = vmatprep.subr.bf16.mxu0 %v6080
    %6809 = vmatpush1.bf16.msra.mxu0 %v6079
    %6810 = vmatprep.subr.bf16.mxu0 %v6092
    %6811 = vmatpush1.bf16.msra.mxu0 %v6091
    %6812 = vmatprep.subr.bf16.mxu0 %v6104
    %6813 = vmatpush1.bf16.msra.mxu0 %v6103
    %6814 = vmatprep.subr.bf16.mxu0 %v6116
    %6815 = vmatpush1.bf16.msra.mxu0 %v6115
    %6816 = vmatprep.subr.bf16.mxu0 %v6128
    %6817 = vmatpush1.bf16.msra.mxu0 %v6127
    %6818 = vmatprep.subr.bf16.mxu0 %v6140
    %6819 = vmatpush1.bf16.msra.mxu0 %v6139
    %6820 = vmatprep.subr.bf16.mxu0 0
    %6821 = vmatpush1.bf16.msra.mxu0 0
    %6822 = vmatprep.subr.bf16.mxu0 0
    %6823 = vmatpush1.bf16.msra.mxu0 0
    %6824 = vmatprep.subr.bf16.mxu0 0
    %6825 = vmatpush1.bf16.msra.mxu0 0
    %6826 = vmatprep.subr.bf16.mxu0 0
    %6827 = vmatpush1.bf16.msra.mxu0 0
    %6828 = vmatprep.subr.bf16.mxu0 0
    %6829 = vmatpush1.bf16.msra.mxu0 0
    %6830 = vmatprep.subr.bf16.mxu0 0
    %6831 = vmatpush1.bf16.msra.mxu0 0
    %6832 = vmatprep.subr.bf16.mxu0 0
    %6833 = vmatpush1.bf16.msra.mxu0 0
    %6834 = vmatprep.subr.bf16.mxu0 0
    %6835 = vmatpush1.bf16.msra.mxu0 0
    %6836 = vmatprep.mubr.bf16.mxu0 0
    %6837 = vmatmul.mubr.bf16.gmra.mrb[0].mxu0 %v4637
    %v6838 = vpop.f32.mrb[0].mxu0
    %v6839 = vadd.f32 %v6786, %v6838
    %v6840 = vpop.f32.mrb[0].mxu0
    %v6841 = vadd.f32 %v6788, %v6840
    %v6842 = vpop.f32.mrb[0].mxu0
    %v6843 = vadd.f32 %v6790, %v6842
    %v6844 = vpop.f32.mrb[0].mxu0
    %v6845 = vadd.f32 %v6792, %v6844
    %6846 = vmatprep.mubr.bf16.mxu0 0
    %6847 = vmatmul.mubr.bf16.gmra.mrb[0].mxu0 %v4640
    %v6848 = vpop.f32.mrb[0].mxu0
    %v6849 = vadd.f32 %v6796, %v6848
    %v6850 = vpop.f32.mrb[0].mxu0
    %v6851 = vadd.f32 %v6798, %v6850
    %v6852 = vpop.f32.mrb[0].mxu0
    %v6853 = vadd.f32 %v6800, %v6852
    %v6854 = vpop.f32.mrb[0].mxu0
    %v6855 = vadd.f32 %v6802, %v6854
    %6856 = vdwg.mxu0
    %6857 = vmatprep.subr.bf16.mxu0 %v5866
    %6858 = vmatpush1.bf16.msra.mxu0 %v5865
    %6859 = vmatprep.subr.bf16.mxu0 %v5878
    %6860 = vmatpush1.bf16.msra.mxu0 %v5877
    %6861 = vmatprep.subr.bf16.mxu0 %v5890
    %6862 = vmatpush1.bf16.msra.mxu0 %v5889
    %6863 = vmatprep.subr.bf16.mxu0 %v5902
    %6864 = vmatpush1.bf16.msra.mxu0 %v5901
    %6865 = vmatprep.subr.bf16.mxu0 %v5914
    %6866 = vmatpush1.bf16.msra.mxu0 %v5913
    %6867 = vmatprep.subr.bf16.mxu0 %v5926
    %6868 = vmatpush1.bf16.msra.mxu0 %v5925
    %6869 = vmatprep.subr.bf16.mxu0 %v5938
    %6870 = vmatpush1.bf16.msra.mxu0 %v5937
    %6871 = vmatprep.subr.bf16.mxu0 %v5950
    %6872 = vmatpush1.bf16.msra.mxu0 %v5949
    %6873 = vmatprep.subr.bf16.mxu0 %v5962
    %6874 = vmatpush1.bf16.msra.mxu0 %v5961
    %6875 = vmatprep.subr.bf16.mxu0 %v5974
    %6876 = vmatpush1.bf16.msra.mxu0 %v5973
    %6877 = vmatprep.subr.bf16.mxu0 %v5986
    %6878 = vmatpush1.bf16.msra.mxu0 %v5985
    %6879 = vmatprep.subr.bf16.mxu0 %v5998
    %6880 = vmatpush1.bf16.msra.mxu0 %v5997
    %6881 = vmatprep.subr.bf16.mxu0 %v6010
    %6882 = vmatpush1.bf16.msra.mxu0 %v6009
    %6883 = vmatprep.subr.bf16.mxu0 %v6022
    %6884 = vmatpush1.bf16.msra.mxu0 %v6021
    %6885 = vmatprep.subr.bf16.mxu0 %v6034
    %6886 = vmatpush1.bf16.msra.mxu0 %v6033
    %6887 = vmatprep.subr.bf16.mxu0 %v6046
    %6888 = vmatpush1.bf16.msra.mxu0 %v6045
    %6889 = vmatprep.mubr.bf16.mxu0 %v4636
    %6890 = vmatmul.mubr.bf16.gmra.mrb[0].mxu0 %v4635
    %v6891 = vpop.f32.mrb[0].mxu0
    %v6892 = vadd.f32 %v4968, %v6891
    %v6893 = vpop.f32.mrb[0].mxu0
    %v6894 = vadd.f32 %v4972, %v6893
    %v6895 = vpop.f32.mrb[0].mxu0
    %v6896 = vadd.f32 %v4968, %v6895
    %v6897 = vpop.f32.mrb[0].mxu0
    %v6898 = vadd.f32 %v4972, %v6897
    %6899 = vmatprep.mubr.bf16.mxu0 %v4639
    %6900 = vmatmul.mubr.bf16.gmra.mrb[0].mxu0 %v4638
    %v6901 = vpop.f32.mrb[0].mxu0
    %v6902 = vadd.f32 %v4968, %v6901
    %v6903 = vpop.f32.mrb[0].mxu0
    %v6904 = vadd.f32 %v4972, %v6903
    %v6905 = vpop.f32.mrb[0].mxu0
    %v6906 = vadd.f32 %v4968, %v6905
    %v6907 = vpop.f32.mrb[0].mxu0
    %v6908 = vadd.f32 %v4972, %v6907
    %6909 = vdwg.mxu0
    %6910 = vmatprep.subr.bf16.mxu0 %v6058
    %6911 = vmatpush1.bf16.msra.mxu0 %v6057
    %6912 = vmatprep.subr.bf16.mxu0 %v6070
    %6913 = vmatpush1.bf16.msra.mxu0 %v6069
    %6914 = vmatprep.subr.bf16.mxu0 %v6082
    %6915 = vmatpush1.bf16.msra.mxu0 %v6081
    %6916 = vmatprep.subr.bf16.mxu0 %v6094
    %6917 = vmatpush1.bf16.msra.mxu0 %v6093
    %6918 = vmatprep.subr.bf16.mxu0 %v6106
    %6919 = vmatpush1.bf16.msra.mxu0 %v6105
    %6920 = vmatprep.subr.bf16.mxu0 %v6118
    %6921 = vmatpush1.bf16.msra.mxu0 %v6117
    %6922 = vmatprep.subr.bf16.mxu0 %v6130
    %6923 = vmatpush1.bf16.msra.mxu0 %v6129
    %6924 = vmatprep.subr.bf16.mxu0 %v6142
    %6925 = vmatpush1.bf16.msra.mxu0 %v6141
    %6926 = vmatprep.subr.bf16.mxu0 0
    %6927 = vmatpush1.bf16.msra.mxu0 0
    %6928 = vmatprep.subr.bf16.mxu0 0
    %6929 = vmatpush1.bf16.msra.mxu0 0
    %6930 = vmatprep.subr.bf16.mxu0 0
    %6931 = vmatpush1.bf16.msra.mxu0 0
    %6932 = vmatprep.subr.bf16.mxu0 0
    %6933 = vmatpush1.bf16.msra.mxu0 0
    %6934 = vmatprep.subr.bf16.mxu0 0
    %6935 = vmatpush1.bf16.msra.mxu0 0
    %6936 = vmatprep.subr.bf16.mxu0 0
    %6937 = vmatpush1.bf16.msra.mxu0 0
    %6938 = vmatprep.subr.bf16.mxu0 0
    %6939 = vmatpush1.bf16.msra.mxu0 0
    %6940 = vmatprep.subr.bf16.mxu0 0
    %6941 = vmatpush1.bf16.msra.mxu0 0
    %6942 = vmatprep.mubr.bf16.mxu0 0
    %6943 = vmatmul.mubr.bf16.gmra.mrb[0].mxu0 %v4637
    %v6944 = vpop.f32.mrb[0].mxu0
    %v6945 = vadd.f32 %v6892, %v6944
    %v6946 = vpop.f32.mrb[0].mxu0
    %v6947 = vadd.f32 %v6894, %v6946
    %v6948 = vpop.f32.mrb[0].mxu0
    %v6949 = vadd.f32 %v6896, %v6948
    %v6950 = vpop.f32.mrb[0].mxu0
    %v6951 = vadd.f32 %v6898, %v6950
    %6952 = vmatprep.mubr.bf16.mxu0 0
    %6953 = vmatmul.mubr.bf16.gmra.mrb[0].mxu0 %v4640
    %v6954 = vpop.f32.mrb[0].mxu0
    %v6955 = vadd.f32 %v6902, %v6954
    %v6956 = vpop.f32.mrb[0].mxu0
    %v6957 = vadd.f32 %v6904, %v6956
    %v6958 = vpop.f32.mrb[0].mxu0
    %v6959 = vadd.f32 %v6906, %v6958
    %v6960 = vpop.f32.mrb[0].mxu0
    %v6961 = vadd.f32 %v6908, %v6960
    %6962 = vdwg.mxu0
    %6963 = vmatprep.subr.bf16.mxu0 %v5868
    %6964 = vmatpush1.bf16.msra.mxu0 %v5867
    %6965 = vmatprep.subr.bf16.mxu0 %v5880
    %6966 = vmatpush1.bf16.msra.mxu0 %v5879
    %6967 = vmatprep.subr.bf16.mxu0 %v5892
    %6968 = vmatpush1.bf16.msra.mxu0 %v5891
    %6969 = vmatprep.subr.bf16.mxu0 %v5904
    %6970 = vmatpush1.bf16.msra.mxu0 %v5903
    %6971 = vmatprep.subr.bf16.mxu0 %v5916
    %6972 = vmatpush1.bf16.msra.mxu0 %v5915
    %6973 = vmatprep.subr.bf16.mxu0 %v5928
    %6974 = vmatpush1.bf16.msra.mxu0 %v5927
    %6975 = vmatprep.subr.bf16.mxu0 %v5940
    %6976 = vmatpush1.bf16.msra.mxu0 %v5939
    %6977 = vmatprep.subr.bf16.mxu0 %v5952
    %6978 = vmatpush1.bf16.msra.mxu0 %v5951
    %6979 = vmatprep.subr.bf16.mxu0 %v5964
    %6980 = vmatpush1.bf16.msra.mxu0 %v5963
    %6981 = vmatprep.subr.bf16.mxu0 %v5976
    %6982 = vmatpush1.bf16.msra.mxu0 %v5975
    %6983 = vmatprep.subr.bf16.mxu0 %v5988
    %6984 = vmatpush1.bf16.msra.mxu0 %v5987
    %6985 = vmatprep.subr.bf16.mxu0 %v6000
    %6986 = vmatpush1.bf16.msra.mxu0 %v5999
    %6987 = vmatprep.subr.bf16.mxu0 %v6012
    %6988 = vmatpush1.bf16.msra.mxu0 %v6011
    %6989 = vmatprep.subr.bf16.mxu0 %v6024
    %6990 = vmatpush1.bf16.msra.mxu0 %v6023
    %6991 = vmatprep.subr.bf16.mxu0 %v6036
    %6992 = vmatpush1.bf16.msra.mxu0 %v6035
    %6993 = vmatprep.subr.bf16.mxu0 %v6048
    %6994 = vmatpush1.bf16.msra.mxu0 %v6047
    %6995 = vmatprep.mubr.bf16.mxu0 %v4636
    %6996 = vmatmul.mubr.bf16.gmra.mrb[0].mxu0 %v4635
    %v6997 = vpop.f32.mrb[0].mxu0
    %v6998 = vadd.f32 %v4976, %v6997
    %v6999 = vpop.f32.mrb[0].mxu0
    %v7000 = vadd.f32 %v4980, %v6999
    %v7001 = vpop.f32.mrb[0].mxu0
    %v7002 = vadd.f32 %v4976, %v7001
    %v7003 = vpop.f32.mrb[0].mxu0
    %v7004 = vadd.f32 %v4980, %v7003
    %7005 = vmatprep.mubr.bf16.mxu0 %v4639
    %7006 = vmatmul.mubr.bf16.gmra.mrb[0].mxu0 %v4638
    %v7007 = vpop.f32.mrb[0].mxu0
    %v7008 = vadd.f32 %v4976, %v7007
    %v7009 = vpop.f32.mrb[0].mxu0
    %v7010 = vadd.f32 %v4980, %v7009
    %v7011 = vpop.f32.mrb[0].mxu0
    %v7012 = vadd.f32 %v4976, %v7011
    %v7013 = vpop.f32.mrb[0].mxu0
    %v7014 = vadd.f32 %v4980, %v7013
    %7015 = vdwg.mxu0
    %7016 = vmatprep.subr.bf16.mxu0 %v6060
    %7017 = vmatpush1.bf16.msra.mxu0 %v6059
    %7018 = vmatprep.subr.bf16.mxu0 %v6072
    %7019 = vmatpush1.bf16.msra.mxu0 %v6071
    %7020 = vmatprep.subr.bf16.mxu0 %v6084
    %7021 = vmatpush1.bf16.msra.mxu0 %v6083
    %7022 = vmatprep.subr.bf16.mxu0 %v6096
    %7023 = vmatpush1.bf16.msra.mxu0 %v6095
    %7024 = vmatprep.subr.bf16.mxu0 %v6108
    %7025 = vmatpush1.bf16.msra.mxu0 %v6107
    %7026 = vmatprep.subr.bf16.mxu0 %v6120
    %7027 = vmatpush1.bf16.msra.mxu0 %v6119
    %7028 = vmatprep.subr.bf16.mxu0 %v6132
    %7029 = vmatpush1.bf16.msra.mxu0 %v6131
    %7030 = vmatprep.subr.bf16.mxu0 %v6144
    %7031 = vmatpush1.bf16.msra.mxu0 %v6143
    %7032 = vmatprep.subr.bf16.mxu0 0
    %7033 = vmatpush1.bf16.msra.mxu0 0
    %7034 = vmatprep.subr.bf16.mxu0 0
    %7035 = vmatpush1.bf16.msra.mxu0 0
    %7036 = vmatprep.subr.bf16.mxu0 0
    %7037 = vmatpush1.bf16.msra.mxu0 0
    %7038 = vmatprep.subr.bf16.mxu0 0
    %7039 = vmatpush1.bf16.msra.mxu0 0
    %7040 = vmatprep.subr.bf16.mxu0 0
    %7041 = vmatpush1.bf16.msra.mxu0 0
    %7042 = vmatprep.subr.bf16.mxu0 0
    %7043 = vmatpush1.bf16.msra.mxu0 0
    %7044 = vmatprep.subr.bf16.mxu0 0
    %7045 = vmatpush1.bf16.msra.mxu0 0
    %7046 = vmatprep.subr.bf16.mxu0 0
    %7047 = vmatpush1.bf16.msra.mxu0 0
    %7048 = vmatprep.mubr.bf16.mxu0 0
    %7049 = vmatmul.mubr.bf16.gmra.mrb[0].mxu0 %v4637
    %v7050 = vpop.f32.mrb[0].mxu0
    %v7051 = vadd.f32 %v6998, %v7050
    %v7052 = vpop.f32.mrb[0].mxu0
    %v7053 = vadd.f32 %v7000, %v7052
    %v7054 = vpop.f32.mrb[0].mxu0
    %v7055 = vadd.f32 %v7002, %v7054
    %v7056 = vpop.f32.mrb[0].mxu0
    %v7057 = vadd.f32 %v7004, %v7056
    %7058 = vmatprep.mubr.bf16.mxu0 0
    %7059 = vmatmul.mubr.bf16.gmra.mrb[0].mxu0 %v4640
    %v7060 = vpop.f32.mrb[0].mxu0
    %v7061 = vadd.f32 %v7008, %v7060
    %v7062 = vpop.f32.mrb[0].mxu0
    %v7063 = vadd.f32 %v7010, %v7062
    %v7064 = vpop.f32.mrb[0].mxu0
    %v7065 = vadd.f32 %v7012, %v7064
    %v7066 = vpop.f32.mrb[0].mxu0
    %v7067 = vadd.f32 %v7014, %v7066
    %7068 = vdwg.mxu0
    %v7069 = vmax.f32 %v6521, 0.0
    %v7070 = vmax.f32 %v6523, 0.0
    %v7071 = vmax.f32 %v6627, 0.0
    %v7072 = vmax.f32 %v6629, 0.0
    %v7073 = vmax.f32 %v6733, 0.0
    %v7074 = vmax.f32 %v6735, 0.0
    %v7075 = vmax.f32 %v6839, 0.0
    %v7076 = vmax.f32 %v6841, 0.0
    %v7077 = vmax.f32 %v6945, 0.0
    %v7078 = vmax.f32 %v6947, 0.0
    %v7079 = vmax.f32 %v7051, 0.0
    %v7080 = vmax.f32 %v7053, 0.0
    %v7081 = vmax.f32 %v6525, 0.0
    %v7082 = vmax.f32 %v6527, 0.0
    %v7083 = vmax.f32 %v6631, 0.0
    %v7084 = vmax.f32 %v6633, 0.0
    %v7085 = vmax.f32 %v6737, 0.0
    %v7086 = vmax.f32 %v6739, 0.0
    %v7087 = vmax.f32 %v6843, 0.0
    %v7088 = vmax.f32 %v6845, 0.0
    %v7089 = vmax.f32 %v6949, 0.0
    %v7090 = vmax.f32 %v6951, 0.0
    %v7091 = vmax.f32 %v7055, 0.0
    %v7092 = vmax.f32 %v7057, 0.0
    %v7093 = vmax.f32 %v6531, 0.0
    %v7094 = vmax.f32 %v6533, 0.0
    %v7095 = vmax.f32 %v6637, 0.0
    %v7096 = vmax.f32 %v6639, 0.0
    %v7097 = vmax.f32 %v6743, 0.0
    %v7098 = vmax.f32 %v6745, 0.0
    %v7099 = vmax.f32 %v6849, 0.0
    %v7100 = vmax.f32 %v6851, 0.0
    %v7101 = vmax.f32 %v6955, 0.0
    %v7102 = vmax.f32 %v6957, 0.0
    %v7103 = vmax.f32 %v7061, 0.0
    %v7104 = vmax.f32 %v7063, 0.0
    %v7105 = vmax.f32 %v6535, 0.0
    %v7106 = vmax.f32 %v6537, 0.0
    %v7107 = vmax.f32 %v6641, 0.0
    %v7108 = vmax.f32 %v6643, 0.0
    %v7109 = vmax.f32 %v6747, 0.0
    %v7110 = vmax.f32 %v6749, 0.0
    %v7111 = vmax.f32 %v6853, 0.0
    %v7112 = vmax.f32 %v6855, 0.0
    %v7113 = vmax.f32 %v6959, 0.0
    %v7114 = vmax.f32 %v6961, 0.0
    %v7115 = vmax.f32 %v7065, 0.0
    %v7116 = vmax.f32 %v7067, 0.0
    %v7117 = vpack.c.bf16 %v7081, %v7069
    %v7118 = vpack.c.bf16 %v7082, %v7070
    %v7119 = vpack.c.bf16 %v7083, %v7071
    %v7120 = vpack.c.bf16 %v7084, %v7072
    %v7121 = vpack.c.bf16 %v7085, %v7073
    %v7122 = vpack.c.bf16 %v7086, %v7074
    %v7123 = vpack.c.bf16 %v7087, %v7075
    %v7124 = vpack.c.bf16 %v7088, %v7076
    %v7125 = vpack.c.bf16 %v7089, %v7077
    %v7126 = vpack.c.bf16 %v7090, %v7078
    %v7127 = vpack.c.bf16 %v7091, %v7079
    %v7128 = vpack.c.bf16 %v7092, %v7080
    %v7129 = vpack.c.bf16 %v7105, %v7093
    %v7130 = vpack.c.bf16 %v7106, %v7094
    %v7131 = vpack.c.bf16 %v7107, %v7095
    %v7132 = vpack.c.bf16 %v7108, %v7096
    %v7133 = vpack.c.bf16 %v7109, %v7097
    %v7134 = vpack.c.bf16 %v7110, %v7098
    %v7135 = vpack.c.bf16 %v7111, %v7099
    %v7136 = vpack.c.bf16 %v7112, %v7100
    %v7137 = vpack.c.bf16 %v7113, %v7101
    %v7138 = vpack.c.bf16 %v7114, %v7102
    %v7139 = vpack.c.bf16 %v7115, %v7103
    %v7140 = vpack.c.bf16 %v7116, %v7104
    %v7141 = vld [vmem:[#allocation19] sm:$0xff]
    %v7142 = vld [vmem:[#allocation19 + $0x8] sm:$0xf]
    %v7143 = vld [vmem:[#allocation19 + $0xc] sm:$0xff]
    %v7144 = vld [vmem:[#allocation19 + $0x14] sm:$0xf]
    %v7145 = vld [vmem:[#allocation19 + $0x18] sm:$0xff]
    %v7146 = vld [vmem:[#allocation19 + $0x20] sm:$0xf]
    %v7147 = vld [vmem:[#allocation19 + $0x24] sm:$0xff]
    %v7148 = vld [vmem:[#allocation19 + $0x2c] sm:$0xf]
    %v7149 = vld [vmem:[#allocation19 + $0x30] sm:$0xff]
    %v7150 = vld [vmem:[#allocation19 + $0x38] sm:$0xf]
    %v7151 = vld [vmem:[#allocation19 + $0x3c] sm:$0xff]
    %v7152 = vld [vmem:[#allocation19 + $0x44] sm:$0xf]
    %v7153 = vld [vmem:[#allocation19 + $0x48] sm:$0xff]
    %v7154 = vld [vmem:[#allocation19 + $0x50] sm:$0xf]
    %v7155 = vld [vmem:[#allocation19 + $0x54] sm:$0xff]
    %v7156 = vld [vmem:[#allocation19 + $0x5c] sm:$0xf]
    %v7157 = vld [vmem:[#allocation19 + $0x60] sm:$0xff]
    %v7158 = vld [vmem:[#allocation19 + $0x68] sm:$0xf]
    %v7159 = vld [vmem:[#allocation19 + $0x6c] sm:$0xff]
    %v7160 = vld [vmem:[#allocation19 + $0x74] sm:$0xf]
    %v7161 = vld [vmem:[#allocation19 + $0x78] sm:$0xff]
    %v7162 = vld [vmem:[#allocation19 + $0x80] sm:$0xf]
    %v7163 = vld [vmem:[#allocation19 + $0x84] sm:$0xff]
    %v7164 = vld [vmem:[#allocation19 + $0x8c] sm:$0xf]
    %v7165 = vld [vmem:[#allocation19 + $0x90] sm:$0xff]
    %v7166 = vld [vmem:[#allocation19 + $0x98] sm:$0xf]
    %v7167 = vld [vmem:[#allocation19 + $0x9c] sm:$0xff]
    %v7168 = vld [vmem:[#allocation19 + $0xa4] sm:$0xf]
    %v7169 = vld [vmem:[#allocation19 + $0xa8] sm:$0xff]
    %v7170 = vld [vmem:[#allocation19 + $0xb0] sm:$0xf]
    %v7171 = vld [vmem:[#allocation19 + $0xb4] sm:$0xff]
    %v7172 = vld [vmem:[#allocation19 + $0xbc] sm:$0xf]
    %v7173 = vld [vmem:[#allocation19 + $0xc0] sm:$0xff]
    %v7174 = vld [vmem:[#allocation19 + $0xc8] sm:$0xf]
    %v7175 = vld [vmem:[#allocation19 + $0xcc] sm:$0xff]
    %v7176 = vld [vmem:[#allocation19 + $0xd4] sm:$0xf]
    %v7177 = vld [vmem:[#allocation19 + $0xd8] sm:$0xff]
    %v7178 = vld [vmem:[#allocation19 + $0xe0] sm:$0xf]
    %v7179 = vld [vmem:[#allocation19 + $0xe4] sm:$0xff]
    %v7180 = vld [vmem:[#allocation19 + $0xec] sm:$0xf]
    %v7181 = vld [vmem:[#allocation19 + $0xf0] sm:$0xff]
    %v7182 = vld [vmem:[#allocation19 + $0xf8] sm:$0xf]
    %v7183 = vld [vmem:[#allocation19 + $0xfc] sm:$0xff]
    %v7184 = vld [vmem:[#allocation19 + $0x104] sm:$0xf]
    %v7185 = vld [vmem:[#allocation19 + $0x108] sm:$0xff]
    %v7186 = vld [vmem:[#allocation19 + $0x110] sm:$0xf]
    %v7187 = vld [vmem:[#allocation19 + $0x114] sm:$0xff]
    %v7188 = vld [vmem:[#allocation19 + $0x11c] sm:$0xf]
    %v7189 = vld [vmem:[#allocation19 + $0x120] sm:$0xff]
    %v7190 = vld [vmem:[#allocation19 + $0x128] sm:$0xf]
    %v7191 = vld [vmem:[#allocation19 + $0x12c] sm:$0xff]
    %v7192 = vld [vmem:[#allocation19 + $0x134] sm:$0xf]
    %v7193 = vld [vmem:[#allocation19 + $0x138] sm:$0xff]
    %v7194 = vld [vmem:[#allocation19 + $0x140] sm:$0xf]
    %v7195 = vld [vmem:[#allocation19 + $0x144] sm:$0xff]
    %v7196 = vld [vmem:[#allocation19 + $0x14c] sm:$0xf]
    %v7197 = vld [vmem:[#allocation19 + $0x150] sm:$0xff]
    %v7198 = vld [vmem:[#allocation19 + $0x158] sm:$0xf]
    %v7199 = vld [vmem:[#allocation19 + $0x15c] sm:$0xff]
    %v7200 = vld [vmem:[#allocation19 + $0x164] sm:$0xf]
    %v7201 = vld [vmem:[#allocation19 + $0x168] sm:$0xff]
    %v7202 = vld [vmem:[#allocation19 + $0x170] sm:$0xf]
    %v7203 = vld [vmem:[#allocation19 + $0x174] sm:$0xff]
    %v7204 = vld [vmem:[#allocation19 + $0x17c] sm:$0xf]
    %v7205 = vld [vmem:[#allocation19 + $0x180] sm:$0xff]
    %v7206 = vld [vmem:[#allocation19 + $0x188] sm:$0xf]
    %v7207 = vld [vmem:[#allocation19 + $0x18c] sm:$0xff]
    %v7208 = vld [vmem:[#allocation19 + $0x194] sm:$0xf]
    %v7209 = vld [vmem:[#allocation19 + $0x198] sm:$0xff]
    %v7210 = vld [vmem:[#allocation19 + $0x1a0] sm:$0xf]
    %v7211 = vld [vmem:[#allocation19 + $0x1a4] sm:$0xff]
    %v7212 = vld [vmem:[#allocation19 + $0x1ac] sm:$0xf]
    %v7213 = vld [vmem:[#allocation19 + $0x1b0] sm:$0xff]
    %v7214 = vld [vmem:[#allocation19 + $0x1b8] sm:$0xf]
    %v7215 = vld [vmem:[#allocation19 + $0x1bc] sm:$0xff]
    %v7216 = vld [vmem:[#allocation19 + $0x1c4] sm:$0xf]
    %v7217 = vld [vmem:[#allocation19 + $0x1c8] sm:$0xff]
    %v7218 = vld [vmem:[#allocation19 + $0x1d0] sm:$0xf]
    %v7219 = vld [vmem:[#allocation19 + $0x1d4] sm:$0xff]
    %v7220 = vld [vmem:[#allocation19 + $0x1dc] sm:$0xf]
    %v7221 = vld [vmem:[#allocation19 + $0x1e0] sm:$0xff]
    %v7222 = vld [vmem:[#allocation19 + $0x1e8] sm:$0xf]
    %v7223 = vld [vmem:[#allocation19 + $0x1ec] sm:$0xff]
    %v7224 = vld [vmem:[#allocation19 + $0x1f4] sm:$0xf]
    %v7225 = vld [vmem:[#allocation19 + $0x1f8] sm:$0xff]
    %v7226 = vld [vmem:[#allocation19 + $0x200] sm:$0xf]
    %v7227 = vld [vmem:[#allocation19 + $0x204] sm:$0xff]
    %v7228 = vld [vmem:[#allocation19 + $0x20c] sm:$0xf]
    %v7229 = vld [vmem:[#allocation19 + $0x210] sm:$0xff]
    %v7230 = vld [vmem:[#allocation19 + $0x218] sm:$0xf]
    %v7231 = vld [vmem:[#allocation19 + $0x21c] sm:$0xff]
    %v7232 = vld [vmem:[#allocation19 + $0x224] sm:$0xf]
    %v7233 = vld [vmem:[#allocation19 + $0x228] sm:$0xff]
    %v7234 = vld [vmem:[#allocation19 + $0x230] sm:$0xf]
    %v7235 = vld [vmem:[#allocation19 + $0x234] sm:$0xff]
    %v7236 = vld [vmem:[#allocation19 + $0x23c] sm:$0xf]
    %v7237 = vld [vmem:[#allocation19 + $0x240] sm:$0xff]
    %v7238 = vld [vmem:[#allocation19 + $0x248] sm:$0xf]
    %v7239 = vld [vmem:[#allocation19 + $0x24c] sm:$0xff]
    %v7240 = vld [vmem:[#allocation19 + $0x254] sm:$0xf]
    %v7241 = vld [vmem:[#allocation19 + $0x258] sm:$0xff]
    %v7242 = vld [vmem:[#allocation19 + $0x260] sm:$0xf]
    %v7243 = vld [vmem:[#allocation19 + $0x264] sm:$0xff]
    %v7244 = vld [vmem:[#allocation19 + $0x26c] sm:$0xf]
    %v7245 = vld [vmem:[#allocation19 + $0x270] sm:$0xff]
    %v7246 = vld [vmem:[#allocation19 + $0x278] sm:$0xf]
    %v7247 = vld [vmem:[#allocation19 + $0x27c] sm:$0xff]
    %v7248 = vld [vmem:[#allocation19 + $0x284] sm:$0xf]
    %v7249 = vld [vmem:[#allocation19 + $0x288] sm:$0xff]
    %v7250 = vld [vmem:[#allocation19 + $0x290] sm:$0xf]
    %v7251 = vld [vmem:[#allocation19 + $0x294] sm:$0xff]
    %v7252 = vld [vmem:[#allocation19 + $0x29c] sm:$0xf]
    %v7253 = vld [vmem:[#allocation19 + $0x2a0] sm:$0xff]
    %v7254 = vld [vmem:[#allocation19 + $0x2a8] sm:$0xf]
    %v7255 = vld [vmem:[#allocation19 + $0x2ac] sm:$0xff]
    %v7256 = vld [vmem:[#allocation19 + $0x2b4] sm:$0xf]
    %v7257 = vld [vmem:[#allocation19 + $0x2b8] sm:$0xff]
    %v7258 = vld [vmem:[#allocation19 + $0x2c0] sm:$0xf]
    %v7259 = vld [vmem:[#allocation19 + $0x2c4] sm:$0xff]
    %v7260 = vld [vmem:[#allocation19 + $0x2cc] sm:$0xf]
    %v7261 = vld [vmem:[#allocation19 + $0x2d0] sm:$0xff]
    %v7262 = vld [vmem:[#allocation19 + $0x2d8] sm:$0xf]
    %v7263 = vld [vmem:[#allocation19 + $0x2dc] sm:$0xff]
    %v7264 = vld [vmem:[#allocation19 + $0x2e4] sm:$0xf]
    %v7265 = vld [vmem:[#allocation19 + $0x2e8] sm:$0xff]
    %v7266 = vld [vmem:[#allocation19 + $0x2f0] sm:$0xf]
    %v7267 = vld [vmem:[#allocation19 + $0x2f4] sm:$0xff]
    %v7268 = vld [vmem:[#allocation19 + $0x2fc] sm:$0xf]
    %v7269 = vld [vmem:[#allocation19 + $0x300] sm:$0xff]
    %v7270 = vld [vmem:[#allocation19 + $0x308] sm:$0xf]
    %v7271 = vld [vmem:[#allocation19 + $0x30c] sm:$0xff]
    %v7272 = vld [vmem:[#allocation19 + $0x314] sm:$0xf]
    %v7273 = vld [vmem:[#allocation19 + $0x318] sm:$0xff]
    %v7274 = vld [vmem:[#allocation19 + $0x320] sm:$0xf]
    %v7275 = vld [vmem:[#allocation19 + $0x324] sm:$0xff]
    %v7276 = vld [vmem:[#allocation19 + $0x32c] sm:$0xf]
    %v7277 = vld [vmem:[#allocation19 + $0x330] sm:$0xff]
    %v7278 = vld [vmem:[#allocation19 + $0x338] sm:$0xf]
    %v7279 = vld [vmem:[#allocation19 + $0x33c] sm:$0xff]
    %v7280 = vld [vmem:[#allocation19 + $0x344] sm:$0xf]
    %v7281 = vld [vmem:[#allocation19 + $0x348] sm:$0xff]
    %v7282 = vld [vmem:[#allocation19 + $0x350] sm:$0xf]
    %v7283 = vld [vmem:[#allocation19 + $0x354] sm:$0xff]
    %v7284 = vld [vmem:[#allocation19 + $0x35c] sm:$0xf]
    %v7285 = vld [vmem:[#allocation19 + $0x360] sm:$0xff]
    %v7286 = vld [vmem:[#allocation19 + $0x368] sm:$0xf]
    %v7287 = vld [vmem:[#allocation19 + $0x36c] sm:$0xff]
    %v7288 = vld [vmem:[#allocation19 + $0x374] sm:$0xf]
    %v7289 = vld [vmem:[#allocation19 + $0x378] sm:$0xff]
    %v7290 = vld [vmem:[#allocation19 + $0x380] sm:$0xf]
    %v7291 = vld [vmem:[#allocation19 + $0x384] sm:$0xff]
    %v7292 = vld [vmem:[#allocation19 + $0x38c] sm:$0xf]
    %v7293 = vld [vmem:[#allocation19 + $0x390] sm:$0xff]
    %v7294 = vld [vmem:[#allocation19 + $0x398] sm:$0xf]
    %v7295 = vld [vmem:[#allocation19 + $0x39c] sm:$0xff]
    %v7296 = vld [vmem:[#allocation19 + $0x3a4] sm:$0xf]
    %v7297 = vld [vmem:[#allocation19 + $0x3a8] sm:$0xff]
    %v7298 = vld [vmem:[#allocation19 + $0x3b0] sm:$0xf]
    %v7299 = vld [vmem:[#allocation19 + $0x3b4] sm:$0xff]
    %v7300 = vld [vmem:[#allocation19 + $0x3bc] sm:$0xf]
    %v7301 = vld [vmem:[#allocation19 + $0x3c0] sm:$0xff]
    %v7302 = vld [vmem:[#allocation19 + $0x3c8] sm:$0xf]
    %v7303 = vld [vmem:[#allocation19 + $0x3cc] sm:$0xff]
    %v7304 = vld [vmem:[#allocation19 + $0x3d4] sm:$0xf]
    %v7305 = vld [vmem:[#allocation19 + $0x3d8] sm:$0xff]
    %v7306 = vld [vmem:[#allocation19 + $0x3e0] sm:$0xf]
    %v7307 = vld [vmem:[#allocation19 + $0x3e4] sm:$0xff]
    %v7308 = vld [vmem:[#allocation19 + $0x3ec] sm:$0xf]
    %v7309 = vld [vmem:[#allocation19 + $0x3f0] sm:$0xff]
    %v7310 = vld [vmem:[#allocation19 + $0x3f8] sm:$0xf]
    %v7311 = vld [vmem:[#allocation19 + $0x3fc] sm:$0xff]
    %v7312 = vld [vmem:[#allocation19 + $0x404] sm:$0xf]
    %v7313 = vld [vmem:[#allocation19 + $0x408] sm:$0xff]
    %v7314 = vld [vmem:[#allocation19 + $0x410] sm:$0xf]
    %v7315 = vld [vmem:[#allocation19 + $0x414] sm:$0xff]
    %v7316 = vld [vmem:[#allocation19 + $0x41c] sm:$0xf]
    %v7317 = vld [vmem:[#allocation19 + $0x420] sm:$0xff]
    %v7318 = vld [vmem:[#allocation19 + $0x428] sm:$0xf]
    %v7319 = vld [vmem:[#allocation19 + $0x42c] sm:$0xff]
    %v7320 = vld [vmem:[#allocation19 + $0x434] sm:$0xf]
    %v7321 = vld [vmem:[#allocation19 + $0x438] sm:$0xff]
    %v7322 = vld [vmem:[#allocation19 + $0x440] sm:$0xf]
    %v7323 = vld [vmem:[#allocation19 + $0x444] sm:$0xff]
    %v7324 = vld [vmem:[#allocation19 + $0x44c] sm:$0xf]
    %v7325 = vld [vmem:[#allocation19 + $0x450] sm:$0xff]
    %v7326 = vld [vmem:[#allocation19 + $0x458] sm:$0xf]
    %v7327 = vld [vmem:[#allocation19 + $0x45c] sm:$0xff]
    %v7328 = vld [vmem:[#allocation19 + $0x464] sm:$0xf]
    %v7329 = vld [vmem:[#allocation19 + $0x468] sm:$0xff]
    %v7330 = vld [vmem:[#allocation19 + $0x470] sm:$0xf]
    %v7331 = vld [vmem:[#allocation19 + $0x474] sm:$0xff]
    %v7332 = vld [vmem:[#allocation19 + $0x47c] sm:$0xf]
    %v7333 = vld [vmem:[#allocation19 + $0x480] sm:$0xff]
    %v7334 = vld [vmem:[#allocation19 + $0x488] sm:$0xf]
    %v7335 = vld [vmem:[#allocation19 + $0x48c] sm:$0xff]
    %v7336 = vld [vmem:[#allocation19 + $0x494] sm:$0xf]
    %v7337 = vld [vmem:[#allocation19 + $0x498] sm:$0xff]
    %v7338 = vld [vmem:[#allocation19 + $0x4a0] sm:$0xf]
    %v7339 = vld [vmem:[#allocation19 + $0x4a4] sm:$0xff]
    %v7340 = vld [vmem:[#allocation19 + $0x4ac] sm:$0xf]
    %v7341 = vld [vmem:[#allocation19 + $0x4b0] sm:$0xff]
    %v7342 = vld [vmem:[#allocation19 + $0x4b8] sm:$0xf]
    %v7343 = vld [vmem:[#allocation19 + $0x4bc] sm:$0xff]
    %v7344 = vld [vmem:[#allocation19 + $0x4c4] sm:$0xf]
    %v7345 = vld [vmem:[#allocation19 + $0x4c8] sm:$0xff]
    %v7346 = vld [vmem:[#allocation19 + $0x4d0] sm:$0xf]
    %v7347 = vld [vmem:[#allocation19 + $0x4d4] sm:$0xff]
    %v7348 = vld [vmem:[#allocation19 + $0x4dc] sm:$0xf]
    %v7349 = vld [vmem:[#allocation19 + $0x4e0] sm:$0xff]
    %v7350 = vld [vmem:[#allocation19 + $0x4e8] sm:$0xf]
    %v7351 = vld [vmem:[#allocation19 + $0x4ec] sm:$0xff]
    %v7352 = vld [vmem:[#allocation19 + $0x4f4] sm:$0xf]
    %v7353 = vld [vmem:[#allocation19 + $0x4f8] sm:$0xff]
    %v7354 = vld [vmem:[#allocation19 + $0x500] sm:$0xf]
    %v7355 = vld [vmem:[#allocation19 + $0x504] sm:$0xff]
    %v7356 = vld [vmem:[#allocation19 + $0x50c] sm:$0xf]
    %v7357 = vld [vmem:[#allocation19 + $0x510] sm:$0xff]
    %v7358 = vld [vmem:[#allocation19 + $0x518] sm:$0xf]
    %v7359 = vld [vmem:[#allocation19 + $0x51c] sm:$0xff]
    %v7360 = vld [vmem:[#allocation19 + $0x524] sm:$0xf]
    %v7361 = vld [vmem:[#allocation19 + $0x528] sm:$0xff]
    %v7362 = vld [vmem:[#allocation19 + $0x530] sm:$0xf]
    %v7363 = vld [vmem:[#allocation19 + $0x534] sm:$0xff]
    %v7364 = vld [vmem:[#allocation19 + $0x53c] sm:$0xf]
    %v7365 = vld [vmem:[#allocation19 + $0x540] sm:$0xff]
    %v7366 = vld [vmem:[#allocation19 + $0x548] sm:$0xf]
    %v7367 = vld [vmem:[#allocation19 + $0x54c] sm:$0xff]
    %v7368 = vld [vmem:[#allocation19 + $0x554] sm:$0xf]
    %v7369 = vld [vmem:[#allocation19 + $0x558] sm:$0xff]
    %v7370 = vld [vmem:[#allocation19 + $0x560] sm:$0xf]
    %v7371 = vld [vmem:[#allocation19 + $0x564] sm:$0xff]
    %v7372 = vld [vmem:[#allocation19 + $0x56c] sm:$0xf]
    %v7373 = vld [vmem:[#allocation19 + $0x570] sm:$0xff]
    %v7374 = vld [vmem:[#allocation19 + $0x578] sm:$0xf]
    %v7375 = vld [vmem:[#allocation19 + $0x57c] sm:$0xff]
    %v7376 = vld [vmem:[#allocation19 + $0x584] sm:$0xf]
    %v7377 = vld [vmem:[#allocation19 + $0x588] sm:$0xff]
    %v7378 = vld [vmem:[#allocation19 + $0x590] sm:$0xf]
    %v7379 = vld [vmem:[#allocation19 + $0x594] sm:$0xff]
    %v7380 = vld [vmem:[#allocation19 + $0x59c] sm:$0xf]
    %v7381 = vld [vmem:[#allocation19 + $0x5a0] sm:$0xff]
    %v7382 = vld [vmem:[#allocation19 + $0x5a8] sm:$0xf]
    %v7383 = vld [vmem:[#allocation19 + $0x5ac] sm:$0xff]
    %v7384 = vld [vmem:[#allocation19 + $0x5b4] sm:$0xf]
    %v7385 = vld [vmem:[#allocation19 + $0x5b8] sm:$0xff]
    %v7386 = vld [vmem:[#allocation19 + $0x5c0] sm:$0xf]
    %v7387 = vld [vmem:[#allocation19 + $0x5c4] sm:$0xff]
    %v7388 = vld [vmem:[#allocation19 + $0x5cc] sm:$0xf]
    %v7389 = vld [vmem:[#allocation19 + $0x5d0] sm:$0xff]
    %v7390 = vld [vmem:[#allocation19 + $0x5d8] sm:$0xf]
    %v7391 = vld [vmem:[#allocation19 + $0x5dc] sm:$0xff]
    %v7392 = vld [vmem:[#allocation19 + $0x5e4] sm:$0xf]
    %v7393 = vld [vmem:[#allocation19 + $0x5e8] sm:$0xff]
    %v7394 = vld [vmem:[#allocation19 + $0x5f0] sm:$0xf]
    %v7395 = vld [vmem:[#allocation19 + $0x5f4] sm:$0xff]
    %v7396 = vld [vmem:[#allocation19 + $0x5fc] sm:$0xf]
    %v7397 = vld [vmem:[#allocation19 + $0x600] sm:$0xff]
    %v7398 = vld [vmem:[#allocation19 + $0x608] sm:$0xf]
    %v7399 = vld [vmem:[#allocation19 + $0x60c] sm:$0xff]
    %v7400 = vld [vmem:[#allocation19 + $0x614] sm:$0xf]
    %v7401 = vld [vmem:[#allocation19 + $0x618] sm:$0xff]
    %v7402 = vld [vmem:[#allocation19 + $0x620] sm:$0xf]
    %v7403 = vld [vmem:[#allocation19 + $0x624] sm:$0xff]
    %v7404 = vld [vmem:[#allocation19 + $0x62c] sm:$0xf]
    %v7405 = vld [vmem:[#allocation19 + $0x630] sm:$0xff]
    %v7406 = vld [vmem:[#allocation19 + $0x638] sm:$0xf]
    %v7407 = vld [vmem:[#allocation19 + $0x63c] sm:$0xff]
    %v7408 = vld [vmem:[#allocation19 + $0x644] sm:$0xf]
    %v7409 = vld [vmem:[#allocation19 + $0x648] sm:$0xff]
    %v7410 = vld [vmem:[#allocation19 + $0x650] sm:$0xf]
    %v7411 = vld [vmem:[#allocation19 + $0x654] sm:$0xff]
    %v7412 = vld [vmem:[#allocation19 + $0x65c] sm:$0xf]
    %v7413 = vld [vmem:[#allocation19 + $0x660] sm:$0xff]
    %v7414 = vld [vmem:[#allocation19 + $0x668] sm:$0xf]
    %v7415 = vld [vmem:[#allocation19 + $0x66c] sm:$0xff]
    %v7416 = vld [vmem:[#allocation19 + $0x674] sm:$0xf]
    %v7417 = vld [vmem:[#allocation19 + $0x678] sm:$0xff]
    %v7418 = vld [vmem:[#allocation19 + $0x680] sm:$0xf]
    %v7419 = vld [vmem:[#allocation19 + $0x684] sm:$0xff]
    %v7420 = vld [vmem:[#allocation19 + $0x68c] sm:$0xf]
    %v7421 = vld [vmem:[#allocation19 + $0x690] sm:$0xff]
    %v7422 = vld [vmem:[#allocation19 + $0x698] sm:$0xf]
    %v7423 = vld [vmem:[#allocation19 + $0x69c] sm:$0xff]
    %v7424 = vld [vmem:[#allocation19 + $0x6a4] sm:$0xf]
    %v7425 = vld [vmem:[#allocation19 + $0x6a8] sm:$0xff]
    %v7426 = vld [vmem:[#allocation19 + $0x6b0] sm:$0xf]
    %v7427 = vld [vmem:[#allocation19 + $0x6b4] sm:$0xff]
    %v7428 = vld [vmem:[#allocation19 + $0x6bc] sm:$0xf]
    %v7429 = vld [vmem:[#allocation19 + $0x6c0] sm:$0xff]
    %v7430 = vld [vmem:[#allocation19 + $0x6c8] sm:$0xf]
    %v7431 = vld [vmem:[#allocation19 + $0x6cc] sm:$0xff]
    %v7432 = vld [vmem:[#allocation19 + $0x6d4] sm:$0xf]
    %v7433 = vld [vmem:[#allocation19 + $0x6d8] sm:$0xff]
    %v7434 = vld [vmem:[#allocation19 + $0x6e0] sm:$0xf]
    %v7435 = vld [vmem:[#allocation19 + $0x6e4] sm:$0xff]
    %v7436 = vld [vmem:[#allocation19 + $0x6ec] sm:$0xf]
    %v7437 = vld [vmem:[#allocation19 + $0x6f0] sm:$0xff]
    %v7438 = vld [vmem:[#allocation19 + $0x6f8] sm:$0xf]
    %v7439 = vld [vmem:[#allocation19 + $0x6fc] sm:$0xff]
    %v7440 = vld [vmem:[#allocation19 + $0x704] sm:$0xf]
    %v7441 = vld [vmem:[#allocation19 + $0x708] sm:$0xff]
    %v7442 = vld [vmem:[#allocation19 + $0x710] sm:$0xf]
    %v7443 = vld [vmem:[#allocation19 + $0x714] sm:$0xff]
    %v7444 = vld [vmem:[#allocation19 + $0x71c] sm:$0xf]
    %v7445 = vld [vmem:[#allocation19 + $0x720] sm:$0xff]
    %v7446 = vld [vmem:[#allocation19 + $0x728] sm:$0xf]
    %v7447 = vld [vmem:[#allocation19 + $0x72c] sm:$0xff]
    %v7448 = vld [vmem:[#allocation19 + $0x734] sm:$0xf]
    %v7449 = vld [vmem:[#allocation19 + $0x738] sm:$0xff]
    %v7450 = vld [vmem:[#allocation19 + $0x740] sm:$0xf]
    %v7451 = vld [vmem:[#allocation19 + $0x744] sm:$0xff]
    %v7452 = vld [vmem:[#allocation19 + $0x74c] sm:$0xf]
    %v7453 = vld [vmem:[#allocation19 + $0x750] sm:$0xff]
    %v7454 = vld [vmem:[#allocation19 + $0x758] sm:$0xf]
    %v7455 = vld [vmem:[#allocation19 + $0x75c] sm:$0xff]
    %v7456 = vld [vmem:[#allocation19 + $0x764] sm:$0xf]
    %v7457 = vld [vmem:[#allocation19 + $0x768] sm:$0xff]
    %v7458 = vld [vmem:[#allocation19 + $0x770] sm:$0xf]
    %v7459 = vld [vmem:[#allocation19 + $0x774] sm:$0xff]
    %v7460 = vld [vmem:[#allocation19 + $0x77c] sm:$0xf]
    %v7461 = vld [vmem:[#allocation19 + $0x780] sm:$0xff]
    %v7462 = vld [vmem:[#allocation19 + $0x788] sm:$0xf]
    %v7463 = vld [vmem:[#allocation19 + $0x78c] sm:$0xff]
    %v7464 = vld [vmem:[#allocation19 + $0x794] sm:$0xf]
    %v7465 = vld [vmem:[#allocation19 + $0x798] sm:$0xff]
    %v7466 = vld [vmem:[#allocation19 + $0x7a0] sm:$0xf]
    %v7467 = vld [vmem:[#allocation19 + $0x7a4] sm:$0xff]
    %v7468 = vld [vmem:[#allocation19 + $0x7ac] sm:$0xf]
    %v7469 = vld [vmem:[#allocation19 + $0x7b0] sm:$0xff]
    %v7470 = vld [vmem:[#allocation19 + $0x7b8] sm:$0xf]
    %v7471 = vld [vmem:[#allocation19 + $0x7bc] sm:$0xff]
    %v7472 = vld [vmem:[#allocation19 + $0x7c4] sm:$0xf]
    %v7473 = vld [vmem:[#allocation19 + $0x7c8] sm:$0xff]
    %v7474 = vld [vmem:[#allocation19 + $0x7d0] sm:$0xf]
    %v7475 = vld [vmem:[#allocation19 + $0x7d4] sm:$0xff]
    %v7476 = vld [vmem:[#allocation19 + $0x7dc] sm:$0xf]
    %v7477 = vld [vmem:[#allocation19 + $0x7e0] sm:$0xff]
    %v7478 = vld [vmem:[#allocation19 + $0x7e8] sm:$0xf]
    %v7479 = vld [vmem:[#allocation19 + $0x7ec] sm:$0xff]
    %v7480 = vld [vmem:[#allocation19 + $0x7f4] sm:$0xf]
    %v7481 = vld [vmem:[#allocation19 + $0x7f8] sm:$0xff]
    %v7482 = vld [vmem:[#allocation19 + $0x800] sm:$0xf]
    %v7483 = vld [vmem:[#allocation19 + $0x804] sm:$0xff]
    %v7484 = vld [vmem:[#allocation19 + $0x80c] sm:$0xf]
    %v7485 = vld [vmem:[#allocation19 + $0x810] sm:$0xff]
    %v7486 = vld [vmem:[#allocation19 + $0x818] sm:$0xf]
    %v7487 = vld [vmem:[#allocation19 + $0x81c] sm:$0xff]
    %v7488 = vld [vmem:[#allocation19 + $0x824] sm:$0xf]
    %v7489 = vld [vmem:[#allocation19 + $0x828] sm:$0xff]
    %v7490 = vld [vmem:[#allocation19 + $0x830] sm:$0xf]
    %v7491 = vld [vmem:[#allocation19 + $0x834] sm:$0xff]
    %v7492 = vld [vmem:[#allocation19 + $0x83c] sm:$0xf]
    %v7493 = vld [vmem:[#allocation19 + $0x840] sm:$0xff]
    %v7494 = vld [vmem:[#allocation19 + $0x848] sm:$0xf]
    %v7495 = vld [vmem:[#allocation19 + $0x84c] sm:$0xff]
    %v7496 = vld [vmem:[#allocation19 + $0x854] sm:$0xf]
    %v7497 = vld [vmem:[#allocation19 + $0x858] sm:$0xff]
    %v7498 = vld [vmem:[#allocation19 + $0x860] sm:$0xf]
    %v7499 = vld [vmem:[#allocation19 + $0x864] sm:$0xff]
    %v7500 = vld [vmem:[#allocation19 + $0x86c] sm:$0xf]
    %v7501 = vld [vmem:[#allocation19 + $0x870] sm:$0xff]
    %v7502 = vld [vmem:[#allocation19 + $0x878] sm:$0xf]
    %v7503 = vld [vmem:[#allocation19 + $0x87c] sm:$0xff]
    %v7504 = vld [vmem:[#allocation19 + $0x884] sm:$0xf]
    %v7505 = vld [vmem:[#allocation19 + $0x888] sm:$0xff]
    %v7506 = vld [vmem:[#allocation19 + $0x890] sm:$0xf]
    %v7507 = vld [vmem:[#allocation19 + $0x894] sm:$0xff]
    %v7508 = vld [vmem:[#allocation19 + $0x89c] sm:$0xf]
    %v7509 = vld [vmem:[#allocation19 + $0x8a0] sm:$0xff]
    %v7510 = vld [vmem:[#allocation19 + $0x8a8] sm:$0xf]
    %v7511 = vld [vmem:[#allocation19 + $0x8ac] sm:$0xff]
    %v7512 = vld [vmem:[#allocation19 + $0x8b4] sm:$0xf]
    %v7513 = vld [vmem:[#allocation19 + $0x8b8] sm:$0xff]
    %v7514 = vld [vmem:[#allocation19 + $0x8c0] sm:$0xf]
    %v7515 = vld [vmem:[#allocation19 + $0x8c4] sm:$0xff]
    %v7516 = vld [vmem:[#allocation19 + $0x8cc] sm:$0xf]
    %v7517 = vld [vmem:[#allocation19 + $0x8d0] sm:$0xff]
    %v7518 = vld [vmem:[#allocation19 + $0x8d8] sm:$0xf]
    %v7519 = vld [vmem:[#allocation19 + $0x8dc] sm:$0xff]
    %v7520 = vld [vmem:[#allocation19 + $0x8e4] sm:$0xf]
    %v7521 = vld [vmem:[#allocation19 + $0x8e8] sm:$0xff]
    %v7522 = vld [vmem:[#allocation19 + $0x8f0] sm:$0xf]
    %v7523 = vld [vmem:[#allocation19 + $0x8f4] sm:$0xff]
    %v7524 = vld [vmem:[#allocation19 + $0x8fc] sm:$0xf]
    %v7525 = vld [vmem:[#allocation20] sm:$0x7]
    %v7527 = vlaneseq
    %v7528 = vshrl.u32 %v7527, 7
    %v7529 = vsub.s32 0, %v7528
    %v7530 = vrot.slane %v7525, %v7529
    %v7531 = vlaneseq
    %v7532 = vshrl.u32 %v7531, 7
    %v7533 = vsub.s32 1, %v7532
    %v7534 = vrot.slane %v7525, %v7533
    %v7535 = vlaneseq
    %v7536 = vshrl.u32 %v7535, 7
    %v7537 = vsub.s32 2, %v7536
    %v7538 = vrot.slane %v7525, %v7537
    %v7926 = vunpack.c.l.b16 %v7141
    %v7927 = vunpack.c.h.b16 %v7141
    %v7928 = vunpack.c.l.b16 %v7142
    %v7929 = vunpack.c.l.b16 %v7143
    %v7930 = vunpack.c.h.b16 %v7143
    %v7931 = vunpack.c.l.b16 %v7144
    %v7932 = vunpack.c.l.b16 %v7145
    %v7933 = vunpack.c.h.b16 %v7145
    %v7934 = vunpack.c.l.b16 %v7146
    %v7935 = vunpack.c.l.b16 %v7147
    %v7936 = vunpack.c.h.b16 %v7147
    %v7937 = vunpack.c.l.b16 %v7148
    %v7938 = vunpack.c.l.b16 %v7149
    %v7939 = vunpack.c.h.b16 %v7149
    %v7940 = vunpack.c.l.b16 %v7150
    %v7941 = vunpack.c.l.b16 %v7151
    %v7942 = vunpack.c.h.b16 %v7151
    %v7943 = vunpack.c.l.b16 %v7152
    %v7944 = vunpack.c.l.b16 %v7153
    %v7945 = vunpack.c.h.b16 %v7153
    %v7946 = vunpack.c.l.b16 %v7154
    %v7947 = vunpack.c.l.b16 %v7155
    %v7948 = vunpack.c.h.b16 %v7155
    %v7949 = vunpack.c.l.b16 %v7156
    %v7950 = vunpack.c.l.b16 %v7157
    %v7951 = vunpack.c.h.b16 %v7157
    %v7952 = vunpack.c.l.b16 %v7158
    %v7953 = vunpack.c.l.b16 %v7159
    %v7954 = vunpack.c.h.b16 %v7159
    %v7955 = vunpack.c.l.b16 %v7160
    %v7956 = vunpack.c.l.b16 %v7161
    %v7957 = vunpack.c.h.b16 %v7161
    %v7958 = vunpack.c.l.b16 %v7162
    %v7959 = vunpack.c.l.b16 %v7163
    %v7960 = vunpack.c.h.b16 %v7163
    %v7961 = vunpack.c.l.b16 %v7164
    %v7962 = vunpack.c.l.b16 %v7165
    %v7963 = vunpack.c.h.b16 %v7165
    %v7964 = vunpack.c.l.b16 %v7166
    %v7965 = vunpack.c.l.b16 %v7167
    %v7966 = vunpack.c.h.b16 %v7167
    %v7967 = vunpack.c.l.b16 %v7168
    %v7968 = vunpack.c.l.b16 %v7169
    %v7969 = vunpack.c.h.b16 %v7169
    %v7970 = vunpack.c.l.b16 %v7170
    %v7971 = vunpack.c.l.b16 %v7171
    %v7972 = vunpack.c.h.b16 %v7171
    %v7973 = vunpack.c.l.b16 %v7172
    %v7974 = vunpack.c.l.b16 %v7173
    %v7975 = vunpack.c.h.b16 %v7173
    %v7976 = vunpack.c.l.b16 %v7174
    %v7977 = vunpack.c.l.b16 %v7175
    %v7978 = vunpack.c.h.b16 %v7175
    %v7979 = vunpack.c.l.b16 %v7176
    %v7980 = vunpack.c.l.b16 %v7177
    %v7981 = vunpack.c.h.b16 %v7177
    %v7982 = vunpack.c.l.b16 %v7178
    %v7983 = vunpack.c.l.b16 %v7179
    %v7984 = vunpack.c.h.b16 %v7179
    %v7985 = vunpack.c.l.b16 %v7180
    %v7986 = vunpack.c.l.b16 %v7181
    %v7987 = vunpack.c.h.b16 %v7181
    %v7988 = vunpack.c.l.b16 %v7182
    %v7989 = vunpack.c.l.b16 %v7183
    %v7990 = vunpack.c.h.b16 %v7183
    %v7991 = vunpack.c.l.b16 %v7184
    %v7992 = vunpack.c.l.b16 %v7185
    %v7993 = vunpack.c.h.b16 %v7185
    %v7994 = vunpack.c.l.b16 %v7186
    %v7995 = vunpack.c.l.b16 %v7187
    %v7996 = vunpack.c.h.b16 %v7187
    %v7997 = vunpack.c.l.b16 %v7188
    %v7998 = vunpack.c.l.b16 %v7189
    %v7999 = vunpack.c.h.b16 %v7189
    %v8000 = vunpack.c.l.b16 %v7190
    %v8001 = vunpack.c.l.b16 %v7191
    %v8002 = vunpack.c.h.b16 %v7191
    %v8003 = vunpack.c.l.b16 %v7192
    %v8004 = vunpack.c.l.b16 %v7193
    %v8005 = vunpack.c.h.b16 %v7193
    %v8006 = vunpack.c.l.b16 %v7194
    %v8007 = vunpack.c.l.b16 %v7195
    %v8008 = vunpack.c.h.b16 %v7195
    %v8009 = vunpack.c.l.b16 %v7196
    %v8010 = vunpack.c.l.b16 %v7197
    %v8011 = vunpack.c.h.b16 %v7197
    %v8012 = vunpack.c.l.b16 %v7198
    %v8013 = vunpack.c.l.b16 %v7199
    %v8014 = vunpack.c.h.b16 %v7199
    %v8015 = vunpack.c.l.b16 %v7200
    %v8016 = vunpack.c.l.b16 %v7201
    %v8017 = vunpack.c.h.b16 %v7201
    %v8018 = vunpack.c.l.b16 %v7202
    %v8019 = vunpack.c.l.b16 %v7203
    %v8020 = vunpack.c.h.b16 %v7203
    %v8021 = vunpack.c.l.b16 %v7204
    %v8022 = vunpack.c.l.b16 %v7205
    %v8023 = vunpack.c.h.b16 %v7205
    %v8024 = vunpack.c.l.b16 %v7206
    %v8025 = vunpack.c.l.b16 %v7207
    %v8026 = vunpack.c.h.b16 %v7207
    %v8027 = vunpack.c.l.b16 %v7208
    %v8028 = vunpack.c.l.b16 %v7209
    %v8029 = vunpack.c.h.b16 %v7209
    %v8030 = vunpack.c.l.b16 %v7210
    %v8031 = vunpack.c.l.b16 %v7211
    %v8032 = vunpack.c.h.b16 %v7211
    %v8033 = vunpack.c.l.b16 %v7212
    %v8034 = vunpack.c.l.b16 %v7213
    %v8035 = vunpack.c.h.b16 %v7213
    %v8036 = vunpack.c.l.b16 %v7214
    %v8037 = vunpack.c.l.b16 %v7215
    %v8038 = vunpack.c.h.b16 %v7215
    %v8039 = vunpack.c.l.b16 %v7216
    %v8040 = vunpack.c.l.b16 %v7217
    %v8041 = vunpack.c.h.b16 %v7217
    %v8042 = vunpack.c.l.b16 %v7218
    %v8043 = vunpack.c.l.b16 %v7219
    %v8044 = vunpack.c.h.b16 %v7219
    %v8045 = vunpack.c.l.b16 %v7220
    %v8046 = vunpack.c.l.b16 %v7221
    %v8047 = vunpack.c.h.b16 %v7221
    %v8048 = vunpack.c.l.b16 %v7222
    %v8049 = vunpack.c.l.b16 %v7223
    %v8050 = vunpack.c.h.b16 %v7223
    %v8051 = vunpack.c.l.b16 %v7224
    %v8052 = vunpack.c.l.b16 %v7225
    %v8053 = vunpack.c.h.b16 %v7225
    %v8054 = vunpack.c.l.b16 %v7226
    %v8055 = vunpack.c.l.b16 %v7227
    %v8056 = vunpack.c.h.b16 %v7227
    %v8057 = vunpack.c.l.b16 %v7228
    %v8058 = vunpack.c.l.b16 %v7229
    %v8059 = vunpack.c.h.b16 %v7229
    %v8060 = vunpack.c.l.b16 %v7230
    %v8061 = vunpack.c.l.b16 %v7231
    %v8062 = vunpack.c.h.b16 %v7231
    %v8063 = vunpack.c.l.b16 %v7232
    %v8064 = vunpack.c.l.b16 %v7233
    %v8065 = vunpack.c.h.b16 %v7233
    %v8066 = vunpack.c.l.b16 %v7234
    %v8067 = vunpack.c.l.b16 %v7235
    %v8068 = vunpack.c.h.b16 %v7235
    %v8069 = vunpack.c.l.b16 %v7236
    %v8070 = vunpack.c.l.b16 %v7237
    %v8071 = vunpack.c.h.b16 %v7237
    %v8072 = vunpack.c.l.b16 %v7238
    %v8073 = vunpack.c.l.b16 %v7239
    %v8074 = vunpack.c.h.b16 %v7239
    %v8075 = vunpack.c.l.b16 %v7240
    %v8076 = vunpack.c.l.b16 %v7241
    %v8077 = vunpack.c.h.b16 %v7241
    %v8078 = vunpack.c.l.b16 %v7242
    %v8079 = vunpack.c.l.b16 %v7243
    %v8080 = vunpack.c.h.b16 %v7243
    %v8081 = vunpack.c.l.b16 %v7244
    %v8082 = vunpack.c.l.b16 %v7245
    %v8083 = vunpack.c.h.b16 %v7245
    %v8084 = vunpack.c.l.b16 %v7246
    %v8085 = vunpack.c.l.b16 %v7247
    %v8086 = vunpack.c.h.b16 %v7247
    %v8087 = vunpack.c.l.b16 %v7248
    %v8088 = vunpack.c.l.b16 %v7249
    %v8089 = vunpack.c.h.b16 %v7249
    %v8090 = vunpack.c.l.b16 %v7250
    %v8091 = vunpack.c.l.b16 %v7251
    %v8092 = vunpack.c.h.b16 %v7251
    %v8093 = vunpack.c.l.b16 %v7252
    %v8094 = vunpack.c.l.b16 %v7253
    %v8095 = vunpack.c.h.b16 %v7253
    %v8096 = vunpack.c.l.b16 %v7254
    %v8097 = vunpack.c.l.b16 %v7255
    %v8098 = vunpack.c.h.b16 %v7255
    %v8099 = vunpack.c.l.b16 %v7256
    %v8100 = vunpack.c.l.b16 %v7257
    %v8101 = vunpack.c.h.b16 %v7257
    %v8102 = vunpack.c.l.b16 %v7258
    %v8103 = vunpack.c.l.b16 %v7259
    %v8104 = vunpack.c.h.b16 %v7259
    %v8105 = vunpack.c.l.b16 %v7260
    %v8106 = vunpack.c.l.b16 %v7261
    %v8107 = vunpack.c.h.b16 %v7261
    %v8108 = vunpack.c.l.b16 %v7262
    %v8109 = vunpack.c.l.b16 %v7263
    %v8110 = vunpack.c.h.b16 %v7263
    %v8111 = vunpack.c.l.b16 %v7264
    %v8112 = vunpack.c.l.b16 %v7265
    %v8113 = vunpack.c.h.b16 %v7265
    %v8114 = vunpack.c.l.b16 %v7266
    %v8115 = vunpack.c.l.b16 %v7267
    %v8116 = vunpack.c.h.b16 %v7267
    %v8117 = vunpack.c.l.b16 %v7268
    %v8118 = vunpack.c.l.b16 %v7269
    %v8119 = vunpack.c.h.b16 %v7269
    %v8120 = vunpack.c.l.b16 %v7270
    %v8121 = vunpack.c.l.b16 %v7271
    %v8122 = vunpack.c.h.b16 %v7271
    %v8123 = vunpack.c.l.b16 %v7272
    %v8124 = vunpack.c.l.b16 %v7273
    %v8125 = vunpack.c.h.b16 %v7273
    %v8126 = vunpack.c.l.b16 %v7274
    %v8127 = vunpack.c.l.b16 %v7275
    %v8128 = vunpack.c.h.b16 %v7275
    %v8129 = vunpack.c.l.b16 %v7276
    %v8130 = vunpack.c.l.b16 %v7277
    %v8131 = vunpack.c.h.b16 %v7277
    %v8132 = vunpack.c.l.b16 %v7278
    %v8133 = vunpack.c.l.b16 %v7279
    %v8134 = vunpack.c.h.b16 %v7279
    %v8135 = vunpack.c.l.b16 %v7280
    %v8136 = vunpack.c.l.b16 %v7281
    %v8137 = vunpack.c.h.b16 %v7281
    %v8138 = vunpack.c.l.b16 %v7282
    %v8139 = vunpack.c.l.b16 %v7283
    %v8140 = vunpack.c.h.b16 %v7283
    %v8141 = vunpack.c.l.b16 %v7284
    %v8142 = vunpack.c.l.b16 %v7285
    %v8143 = vunpack.c.h.b16 %v7285
    %v8144 = vunpack.c.l.b16 %v7286
    %v8145 = vunpack.c.l.b16 %v7287
    %v8146 = vunpack.c.h.b16 %v7287
    %v8147 = vunpack.c.l.b16 %v7288
    %v8148 = vunpack.c.l.b16 %v7289
    %v8149 = vunpack.c.h.b16 %v7289
    %v8150 = vunpack.c.l.b16 %v7290
    %v8151 = vunpack.c.l.b16 %v7291
    %v8152 = vunpack.c.h.b16 %v7291
    %v8153 = vunpack.c.l.b16 %v7292
    %v8154 = vunpack.c.l.b16 %v7293
    %v8155 = vunpack.c.h.b16 %v7293
    %v8156 = vunpack.c.l.b16 %v7294
    %v8157 = vunpack.c.l.b16 %v7295
    %v8158 = vunpack.c.h.b16 %v7295
    %v8159 = vunpack.c.l.b16 %v7296
    %v8160 = vunpack.c.l.b16 %v7297
    %v8161 = vunpack.c.h.b16 %v7297
    %v8162 = vunpack.c.l.b16 %v7298
    %v8163 = vunpack.c.l.b16 %v7299
    %v8164 = vunpack.c.h.b16 %v7299
    %v8165 = vunpack.c.l.b16 %v7300
    %v8166 = vunpack.c.l.b16 %v7301
    %v8167 = vunpack.c.h.b16 %v7301
    %v8168 = vunpack.c.l.b16 %v7302
    %v8169 = vunpack.c.l.b16 %v7303
    %v8170 = vunpack.c.h.b16 %v7303
    %v8171 = vunpack.c.l.b16 %v7304
    %v8172 = vunpack.c.l.b16 %v7305
    %v8173 = vunpack.c.h.b16 %v7305
    %v8174 = vunpack.c.l.b16 %v7306
    %v8175 = vunpack.c.l.b16 %v7307
    %v8176 = vunpack.c.h.b16 %v7307
    %v8177 = vunpack.c.l.b16 %v7308
    %v8178 = vunpack.c.l.b16 %v7309
    %v8179 = vunpack.c.h.b16 %v7309
    %v8180 = vunpack.c.l.b16 %v7310
    %v8181 = vunpack.c.l.b16 %v7311
    %v8182 = vunpack.c.h.b16 %v7311
    %v8183 = vunpack.c.l.b16 %v7312
    %v8184 = vunpack.c.l.b16 %v7313
    %v8185 = vunpack.c.h.b16 %v7313
    %v8186 = vunpack.c.l.b16 %v7314
    %v8187 = vunpack.c.l.b16 %v7315
    %v8188 = vunpack.c.h.b16 %v7315
    %v8189 = vunpack.c.l.b16 %v7316
    %v8190 = vunpack.c.l.b16 %v7317
    %v8191 = vunpack.c.h.b16 %v7317
    %v8192 = vunpack.c.l.b16 %v7318
    %v8193 = vunpack.c.l.b16 %v7319
    %v8194 = vunpack.c.h.b16 %v7319
    %v8195 = vunpack.c.l.b16 %v7320
    %v8196 = vunpack.c.l.b16 %v7321
    %v8197 = vunpack.c.h.b16 %v7321
    %v8198 = vunpack.c.l.b16 %v7322
    %v8199 = vunpack.c.l.b16 %v7323
    %v8200 = vunpack.c.h.b16 %v7323
    %v8201 = vunpack.c.l.b16 %v7324
    %v8202 = vunpack.c.l.b16 %v7325
    %v8203 = vunpack.c.h.b16 %v7325
    %v8204 = vunpack.c.l.b16 %v7326
    %v8205 = vunpack.c.l.b16 %v7327
    %v8206 = vunpack.c.h.b16 %v7327
    %v8207 = vunpack.c.l.b16 %v7328
    %v8208 = vunpack.c.l.b16 %v7329
    %v8209 = vunpack.c.h.b16 %v7329
    %v8210 = vunpack.c.l.b16 %v7330
    %v8211 = vunpack.c.l.b16 %v7331
    %v8212 = vunpack.c.h.b16 %v7331
    %v8213 = vunpack.c.l.b16 %v7332
    %v8214 = vunpack.c.l.b16 %v7333
    %v8215 = vunpack.c.h.b16 %v7333
    %v8216 = vunpack.c.l.b16 %v7334
    %v8217 = vunpack.c.l.b16 %v7335
    %v8218 = vunpack.c.h.b16 %v7335
    %v8219 = vunpack.c.l.b16 %v7336
    %v8220 = vunpack.c.l.b16 %v7337
    %v8221 = vunpack.c.h.b16 %v7337
    %v8222 = vunpack.c.l.b16 %v7338
    %v8223 = vunpack.c.l.b16 %v7339
    %v8224 = vunpack.c.h.b16 %v7339
    %v8225 = vunpack.c.l.b16 %v7340
    %v8226 = vunpack.c.l.b16 %v7341
    %v8227 = vunpack.c.h.b16 %v7341
    %v8228 = vunpack.c.l.b16 %v7342
    %v8229 = vunpack.c.l.b16 %v7343
    %v8230 = vunpack.c.h.b16 %v7343
    %v8231 = vunpack.c.l.b16 %v7344
    %v8232 = vunpack.c.l.b16 %v7345
    %v8233 = vunpack.c.h.b16 %v7345
    %v8234 = vunpack.c.l.b16 %v7346
    %v8235 = vunpack.c.l.b16 %v7347
    %v8236 = vunpack.c.h.b16 %v7347
    %v8237 = vunpack.c.l.b16 %v7348
    %v8238 = vunpack.c.l.b16 %v7349
    %v8239 = vunpack.c.h.b16 %v7349
    %v8240 = vunpack.c.l.b16 %v7350
    %v8241 = vunpack.c.l.b16 %v7351
    %v8242 = vunpack.c.h.b16 %v7351
    %v8243 = vunpack.c.l.b16 %v7352
    %v8244 = vunpack.c.l.b16 %v7353
    %v8245 = vunpack.c.h.b16 %v7353
    %v8246 = vunpack.c.l.b16 %v7354
    %v8247 = vunpack.c.l.b16 %v7355
    %v8248 = vunpack.c.h.b16 %v7355
    %v8249 = vunpack.c.l.b16 %v7356
    %v8250 = vunpack.c.l.b16 %v7357
    %v8251 = vunpack.c.h.b16 %v7357
    %v8252 = vunpack.c.l.b16 %v7358
    %v8253 = vunpack.c.l.b16 %v7359
    %v8254 = vunpack.c.h.b16 %v7359
    %v8255 = vunpack.c.l.b16 %v7360
    %v8256 = vunpack.c.l.b16 %v7361
    %v8257 = vunpack.c.h.b16 %v7361
    %v8258 = vunpack.c.l.b16 %v7362
    %v8259 = vunpack.c.l.b16 %v7363
    %v8260 = vunpack.c.h.b16 %v7363
    %v8261 = vunpack.c.l.b16 %v7364
    %v8262 = vunpack.c.l.b16 %v7365
    %v8263 = vunpack.c.h.b16 %v7365
    %v8264 = vunpack.c.l.b16 %v7366
    %v8265 = vunpack.c.l.b16 %v7367
    %v8266 = vunpack.c.h.b16 %v7367
    %v8267 = vunpack.c.l.b16 %v7368
    %v8268 = vunpack.c.l.b16 %v7369
    %v8269 = vunpack.c.h.b16 %v7369
    %v8270 = vunpack.c.l.b16 %v7370
    %v8271 = vunpack.c.l.b16 %v7371
    %v8272 = vunpack.c.h.b16 %v7371
    %v8273 = vunpack.c.l.b16 %v7372
    %v8274 = vunpack.c.l.b16 %v7373
    %v8275 = vunpack.c.h.b16 %v7373
    %v8276 = vunpack.c.l.b16 %v7374
    %v8277 = vunpack.c.l.b16 %v7375
    %v8278 = vunpack.c.h.b16 %v7375
    %v8279 = vunpack.c.l.b16 %v7376
    %v8280 = vunpack.c.l.b16 %v7377
    %v8281 = vunpack.c.h.b16 %v7377
    %v8282 = vunpack.c.l.b16 %v7378
    %v8283 = vunpack.c.l.b16 %v7379
    %v8284 = vunpack.c.h.b16 %v7379
    %v8285 = vunpack.c.l.b16 %v7380
    %v8286 = vunpack.c.l.b16 %v7381
    %v8287 = vunpack.c.h.b16 %v7381
    %v8288 = vunpack.c.l.b16 %v7382
    %v8289 = vunpack.c.l.b16 %v7383
    %v8290 = vunpack.c.h.b16 %v7383
    %v8291 = vunpack.c.l.b16 %v7384
    %v8292 = vunpack.c.l.b16 %v7385
    %v8293 = vunpack.c.h.b16 %v7385
    %v8294 = vunpack.c.l.b16 %v7386
    %v8295 = vunpack.c.l.b16 %v7387
    %v8296 = vunpack.c.h.b16 %v7387
    %v8297 = vunpack.c.l.b16 %v7388
    %v8298 = vunpack.c.l.b16 %v7389
    %v8299 = vunpack.c.h.b16 %v7389
    %v8300 = vunpack.c.l.b16 %v7390
    %v8301 = vunpack.c.l.b16 %v7391
    %v8302 = vunpack.c.h.b16 %v7391
    %v8303 = vunpack.c.l.b16 %v7392
    %v8304 = vunpack.c.l.b16 %v7393
    %v8305 = vunpack.c.h.b16 %v7393
    %v8306 = vunpack.c.l.b16 %v7394
    %v8307 = vunpack.c.l.b16 %v7395
    %v8308 = vunpack.c.h.b16 %v7395
    %v8309 = vunpack.c.l.b16 %v7396
    %v8310 = vunpack.c.l.b16 %v7397
    %v8311 = vunpack.c.h.b16 %v7397
    %v8312 = vunpack.c.l.b16 %v7398
    %v8313 = vunpack.c.l.b16 %v7399
    %v8314 = vunpack.c.h.b16 %v7399
    %v8315 = vunpack.c.l.b16 %v7400
    %v8316 = vunpack.c.l.b16 %v7401
    %v8317 = vunpack.c.h.b16 %v7401
    %v8318 = vunpack.c.l.b16 %v7402
    %v8319 = vunpack.c.l.b16 %v7403
    %v8320 = vunpack.c.h.b16 %v7403
    %v8321 = vunpack.c.l.b16 %v7404
    %v8322 = vunpack.c.l.b16 %v7405
    %v8323 = vunpack.c.h.b16 %v7405
    %v8324 = vunpack.c.l.b16 %v7406
    %v8325 = vunpack.c.l.b16 %v7407
    %v8326 = vunpack.c.h.b16 %v7407
    %v8327 = vunpack.c.l.b16 %v7408
    %v8328 = vunpack.c.l.b16 %v7409
    %v8329 = vunpack.c.h.b16 %v7409
    %v8330 = vunpack.c.l.b16 %v7410
    %v8331 = vunpack.c.l.b16 %v7411
    %v8332 = vunpack.c.h.b16 %v7411
    %v8333 = vunpack.c.l.b16 %v7412
    %v8334 = vunpack.c.l.b16 %v7413
    %v8335 = vunpack.c.h.b16 %v7413
    %v8336 = vunpack.c.l.b16 %v7414
    %v8337 = vunpack.c.l.b16 %v7415
    %v8338 = vunpack.c.h.b16 %v7415
    %v8339 = vunpack.c.l.b16 %v7416
    %v8340 = vunpack.c.l.b16 %v7417
    %v8341 = vunpack.c.h.b16 %v7417
    %v8342 = vunpack.c.l.b16 %v7418
    %v8343 = vunpack.c.l.b16 %v7419
    %v8344 = vunpack.c.h.b16 %v7419
    %v8345 = vunpack.c.l.b16 %v7420
    %v8346 = vunpack.c.l.b16 %v7421
    %v8347 = vunpack.c.h.b16 %v7421
    %v8348 = vunpack.c.l.b16 %v7422
    %v8349 = vunpack.c.l.b16 %v7423
    %v8350 = vunpack.c.h.b16 %v7423
    %v8351 = vunpack.c.l.b16 %v7424
    %v8352 = vunpack.c.l.b16 %v7425
    %v8353 = vunpack.c.h.b16 %v7425
    %v8354 = vunpack.c.l.b16 %v7426
    %v8355 = vunpack.c.l.b16 %v7427
    %v8356 = vunpack.c.h.b16 %v7427
    %v8357 = vunpack.c.l.b16 %v7428
    %v8358 = vunpack.c.l.b16 %v7429
    %v8359 = vunpack.c.h.b16 %v7429
    %v8360 = vunpack.c.l.b16 %v7430
    %v8361 = vunpack.c.l.b16 %v7431
    %v8362 = vunpack.c.h.b16 %v7431
    %v8363 = vunpack.c.l.b16 %v7432
    %v8364 = vunpack.c.l.b16 %v7433
    %v8365 = vunpack.c.h.b16 %v7433
    %v8366 = vunpack.c.l.b16 %v7434
    %v8367 = vunpack.c.l.b16 %v7435
    %v8368 = vunpack.c.h.b16 %v7435
    %v8369 = vunpack.c.l.b16 %v7436
    %v8370 = vunpack.c.l.b16 %v7437
    %v8371 = vunpack.c.h.b16 %v7437
    %v8372 = vunpack.c.l.b16 %v7438
    %v8373 = vunpack.c.l.b16 %v7439
    %v8374 = vunpack.c.h.b16 %v7439
    %v8375 = vunpack.c.l.b16 %v7440
    %v8376 = vunpack.c.l.b16 %v7441
    %v8377 = vunpack.c.h.b16 %v7441
    %v8378 = vunpack.c.l.b16 %v7442
    %v8379 = vunpack.c.l.b16 %v7443
    %v8380 = vunpack.c.h.b16 %v7443
    %v8381 = vunpack.c.l.b16 %v7444
    %v8382 = vunpack.c.l.b16 %v7445
    %v8383 = vunpack.c.h.b16 %v7445
    %v8384 = vunpack.c.l.b16 %v7446
    %v8385 = vunpack.c.l.b16 %v7447
    %v8386 = vunpack.c.h.b16 %v7447
    %v8387 = vunpack.c.l.b16 %v7448
    %v8388 = vunpack.c.l.b16 %v7449
    %v8389 = vunpack.c.h.b16 %v7449
    %v8390 = vunpack.c.l.b16 %v7450
    %v8391 = vunpack.c.l.b16 %v7451
    %v8392 = vunpack.c.h.b16 %v7451
    %v8393 = vunpack.c.l.b16 %v7452
    %v8394 = vunpack.c.l.b16 %v7453
    %v8395 = vunpack.c.h.b16 %v7453
    %v8396 = vunpack.c.l.b16 %v7454
    %v8397 = vunpack.c.l.b16 %v7455
    %v8398 = vunpack.c.h.b16 %v7455
    %v8399 = vunpack.c.l.b16 %v7456
    %v8400 = vunpack.c.l.b16 %v7457
    %v8401 = vunpack.c.h.b16 %v7457
    %v8402 = vunpack.c.l.b16 %v7458
    %v8403 = vunpack.c.l.b16 %v7459
    %v8404 = vunpack.c.h.b16 %v7459
    %v8405 = vunpack.c.l.b16 %v7460
    %v8406 = vunpack.c.l.b16 %v7461
    %v8407 = vunpack.c.h.b16 %v7461
    %v8408 = vunpack.c.l.b16 %v7462
    %v8409 = vunpack.c.l.b16 %v7463
    %v8410 = vunpack.c.h.b16 %v7463
    %v8411 = vunpack.c.l.b16 %v7464
    %v8412 = vunpack.c.l.b16 %v7465
    %v8413 = vunpack.c.h.b16 %v7465
    %v8414 = vunpack.c.l.b16 %v7466
    %v8415 = vunpack.c.l.b16 %v7467
    %v8416 = vunpack.c.h.b16 %v7467
    %v8417 = vunpack.c.l.b16 %v7468
    %v8418 = vunpack.c.l.b16 %v7469
    %v8419 = vunpack.c.h.b16 %v7469
    %v8420 = vunpack.c.l.b16 %v7470
    %v8421 = vunpack.c.l.b16 %v7471
    %v8422 = vunpack.c.h.b16 %v7471
    %v8423 = vunpack.c.l.b16 %v7472
    %v8424 = vunpack.c.l.b16 %v7473
    %v8425 = vunpack.c.h.b16 %v7473
    %v8426 = vunpack.c.l.b16 %v7474
    %v8427 = vunpack.c.l.b16 %v7475
    %v8428 = vunpack.c.h.b16 %v7475
    %v8429 = vunpack.c.l.b16 %v7476
    %v8430 = vunpack.c.l.b16 %v7477
    %v8431 = vunpack.c.h.b16 %v7477
    %v8432 = vunpack.c.l.b16 %v7478
    %v8433 = vunpack.c.l.b16 %v7479
    %v8434 = vunpack.c.h.b16 %v7479
    %v8435 = vunpack.c.l.b16 %v7480
    %v8436 = vunpack.c.l.b16 %v7481
    %v8437 = vunpack.c.h.b16 %v7481
    %v8438 = vunpack.c.l.b16 %v7482
    %v8439 = vunpack.c.l.b16 %v7483
    %v8440 = vunpack.c.h.b16 %v7483
    %v8441 = vunpack.c.l.b16 %v7484
    %v8442 = vunpack.c.l.b16 %v7485
    %v8443 = vunpack.c.h.b16 %v7485
    %v8444 = vunpack.c.l.b16 %v7486
    %v8445 = vunpack.c.l.b16 %v7487
    %v8446 = vunpack.c.h.b16 %v7487
    %v8447 = vunpack.c.l.b16 %v7488
    %v8448 = vunpack.c.l.b16 %v7489
    %v8449 = vunpack.c.h.b16 %v7489
    %v8450 = vunpack.c.l.b16 %v7490
    %v8451 = vunpack.c.l.b16 %v7491
    %v8452 = vunpack.c.h.b16 %v7491
    %v8453 = vunpack.c.l.b16 %v7492
    %v8454 = vunpack.c.l.b16 %v7493
    %v8455 = vunpack.c.h.b16 %v7493
    %v8456 = vunpack.c.l.b16 %v7494
    %v8457 = vunpack.c.l.b16 %v7495
    %v8458 = vunpack.c.h.b16 %v7495
    %v8459 = vunpack.c.l.b16 %v7496
    %v8460 = vunpack.c.l.b16 %v7497
    %v8461 = vunpack.c.h.b16 %v7497
    %v8462 = vunpack.c.l.b16 %v7498
    %v8463 = vunpack.c.l.b16 %v7499
    %v8464 = vunpack.c.h.b16 %v7499
    %v8465 = vunpack.c.l.b16 %v7500
    %v8466 = vunpack.c.l.b16 %v7501
    %v8467 = vunpack.c.h.b16 %v7501
    %v8468 = vunpack.c.l.b16 %v7502
    %v8469 = vunpack.c.l.b16 %v7503
    %v8470 = vunpack.c.h.b16 %v7503
    %v8471 = vunpack.c.l.b16 %v7504
    %v8472 = vunpack.c.l.b16 %v7505
    %v8473 = vunpack.c.h.b16 %v7505
    %v8474 = vunpack.c.l.b16 %v7506
    %v8475 = vunpack.c.l.b16 %v7507
    %v8476 = vunpack.c.h.b16 %v7507
    %v8477 = vunpack.c.l.b16 %v7508
    %v8478 = vunpack.c.l.b16 %v7509
    %v8479 = vunpack.c.h.b16 %v7509
    %v8480 = vunpack.c.l.b16 %v7510
    %v8481 = vunpack.c.l.b16 %v7511
    %v8482 = vunpack.c.h.b16 %v7511
    %v8483 = vunpack.c.l.b16 %v7512
    %v8484 = vunpack.c.l.b16 %v7513
    %v8485 = vunpack.c.h.b16 %v7513
    %v8486 = vunpack.c.l.b16 %v7514
    %v8487 = vunpack.c.l.b16 %v7515
    %v8488 = vunpack.c.h.b16 %v7515
    %v8489 = vunpack.c.l.b16 %v7516
    %v8490 = vunpack.c.l.b16 %v7517
    %v8491 = vunpack.c.h.b16 %v7517
    %v8492 = vunpack.c.l.b16 %v7518
    %v8493 = vunpack.c.l.b16 %v7519
    %v8494 = vunpack.c.h.b16 %v7519
    %v8495 = vunpack.c.l.b16 %v7520
    %v8496 = vunpack.c.l.b16 %v7521
    %v8497 = vunpack.c.h.b16 %v7521
    %v8498 = vunpack.c.l.b16 %v7522
    %v8499 = vunpack.c.l.b16 %v7523
    %v8500 = vunpack.c.h.b16 %v7523
    %v8501 = vunpack.c.l.b16 %v7524
    %v8502 = vpack.c.b16 %v7929, %v7926
    %v8503 = vpack.c.b16 %v7930, %v7927
    %v8504 = vpack.c.b16 %v7931, %v7928
    %v8505 = vpack.c.b16 %v7935, %v7932
    %v8506 = vpack.c.b16 %v7936, %v7933
    %v8507 = vpack.c.b16 %v7937, %v7934
    %v8508 = vpack.c.b16 %v7941, %v7938
    %v8509 = vpack.c.b16 %v7942, %v7939
    %v8510 = vpack.c.b16 %v7943, %v7940
    %v8511 = vpack.c.b16 %v7947, %v7944
    %v8512 = vpack.c.b16 %v7948, %v7945
    %v8513 = vpack.c.b16 %v7949, %v7946
    %v8514 = vpack.c.b16 %v7953, %v7950
    %v8515 = vpack.c.b16 %v7954, %v7951
    %v8516 = vpack.c.b16 %v7955, %v7952
    %v8517 = vpack.c.b16 %v7959, %v7956
    %v8518 = vpack.c.b16 %v7960, %v7957
    %v8519 = vpack.c.b16 %v7961, %v7958
    %v8520 = vpack.c.b16 %v7965, %v7962
    %v8521 = vpack.c.b16 %v7966, %v7963
    %v8522 = vpack.c.b16 %v7967, %v7964
    %v8523 = vpack.c.b16 %v7971, %v7968
    %v8524 = vpack.c.b16 %v7972, %v7969
    %v8525 = vpack.c.b16 %v7973, %v7970
    %v8526 = vpack.c.b16 %v7977, %v7974
    %v8527 = vpack.c.b16 %v7978, %v7975
    %v8528 = vpack.c.b16 %v7979, %v7976
    %v8529 = vpack.c.b16 %v7983, %v7980
    %v8530 = vpack.c.b16 %v7984, %v7981
    %v8531 = vpack.c.b16 %v7985, %v7982
    %v8532 = vpack.c.b16 %v7989, %v7986
    %v8533 = vpack.c.b16 %v7990, %v7987
    %v8534 = vpack.c.b16 %v7991, %v7988
    %v8535 = vpack.c.b16 %v7995, %v7992
    %v8536 = vpack.c.b16 %v7996, %v7993
    %v8537 = vpack.c.b16 %v7997, %v7994
    %v8538 = vpack.c.b16 %v8001, %v7998
    %v8539 = vpack.c.b16 %v8002, %v7999
    %v8540 = vpack.c.b16 %v8003, %v8000
    %v8541 = vpack.c.b16 %v8007, %v8004
    %v8542 = vpack.c.b16 %v8008, %v8005
    %v8543 = vpack.c.b16 %v8009, %v8006
    %v8544 = vpack.c.b16 %v8013, %v8010
    %v8545 = vpack.c.b16 %v8014, %v8011
    %v8546 = vpack.c.b16 %v8015, %v8012
    %v8547 = vpack.c.b16 %v8019, %v8016
    %v8548 = vpack.c.b16 %v8020, %v8017
    %v8549 = vpack.c.b16 %v8021, %v8018
    %v8550 = vpack.c.b16 %v8025, %v8022
    %v8551 = vpack.c.b16 %v8026, %v8023
    %v8552 = vpack.c.b16 %v8027, %v8024
    %v8553 = vpack.c.b16 %v8031, %v8028
    %v8554 = vpack.c.b16 %v8032, %v8029
    %v8555 = vpack.c.b16 %v8033, %v8030
    %v8556 = vpack.c.b16 %v8037, %v8034
    %v8557 = vpack.c.b16 %v8038, %v8035
    %v8558 = vpack.c.b16 %v8039, %v8036
    %v8559 = vpack.c.b16 %v8043, %v8040
    %v8560 = vpack.c.b16 %v8044, %v8041
    %v8561 = vpack.c.b16 %v8045, %v8042
    %v8562 = vpack.c.b16 %v8049, %v8046
    %v8563 = vpack.c.b16 %v8050, %v8047
    %v8564 = vpack.c.b16 %v8051, %v8048
    %v8565 = vpack.c.b16 %v8055, %v8052
    %v8566 = vpack.c.b16 %v8056, %v8053
    %v8567 = vpack.c.b16 %v8057, %v8054
    %v8568 = vpack.c.b16 %v8061, %v8058
    %v8569 = vpack.c.b16 %v8062, %v8059
    %v8570 = vpack.c.b16 %v8063, %v8060
    %v8571 = vpack.c.b16 %v8067, %v8064
    %v8572 = vpack.c.b16 %v8068, %v8065
    %v8573 = vpack.c.b16 %v8069, %v8066
    %v8574 = vpack.c.b16 %v8073, %v8070
    %v8575 = vpack.c.b16 %v8074, %v8071
    %v8576 = vpack.c.b16 %v8075, %v8072
    %v8577 = vpack.c.b16 %v8079, %v8076
    %v8578 = vpack.c.b16 %v8080, %v8077
    %v8579 = vpack.c.b16 %v8081, %v8078
    %v8580 = vpack.c.b16 %v8085, %v8082
    %v8581 = vpack.c.b16 %v8086, %v8083
    %v8582 = vpack.c.b16 %v8087, %v8084
    %v8583 = vpack.c.b16 %v8091, %v8088
    %v8584 = vpack.c.b16 %v8092, %v8089
    %v8585 = vpack.c.b16 %v8093, %v8090
    %v8586 = vpack.c.b16 %v8097, %v8094
    %v8587 = vpack.c.b16 %v8098, %v8095
    %v8588 = vpack.c.b16 %v8099, %v8096
    %v8589 = vpack.c.b16 %v8103, %v8100
    %v8590 = vpack.c.b16 %v8104, %v8101
    %v8591 = vpack.c.b16 %v8105, %v8102
    %v8592 = vpack.c.b16 %v8109, %v8106
    %v8593 = vpack.c.b16 %v8110, %v8107
    %v8594 = vpack.c.b16 %v8111, %v8108
    %v8595 = vpack.c.b16 %v8115, %v8112
    %v8596 = vpack.c.b16 %v8116, %v8113
    %v8597 = vpack.c.b16 %v8117, %v8114
    %v8598 = vpack.c.b16 %v8121, %v8118
    %v8599 = vpack.c.b16 %v8122, %v8119
    %v8600 = vpack.c.b16 %v8123, %v8120
    %v8601 = vpack.c.b16 %v8127, %v8124
    %v8602 = vpack.c.b16 %v8128, %v8125
    %v8603 = vpack.c.b16 %v8129, %v8126
    %v8604 = vpack.c.b16 %v8133, %v8130
    %v8605 = vpack.c.b16 %v8134, %v8131
    %v8606 = vpack.c.b16 %v8135, %v8132
    %v8607 = vpack.c.b16 %v8139, %v8136
    %v8608 = vpack.c.b16 %v8140, %v8137
    %v8609 = vpack.c.b16 %v8141, %v8138
    %v8610 = vpack.c.b16 %v8145, %v8142
    %v8611 = vpack.c.b16 %v8146, %v8143
    %v8612 = vpack.c.b16 %v8147, %v8144
    %v8613 = vpack.c.b16 %v8151, %v8148
    %v8614 = vpack.c.b16 %v8152, %v8149
    %v8615 = vpack.c.b16 %v8153, %v8150
    %v8616 = vpack.c.b16 %v8157, %v8154
    %v8617 = vpack.c.b16 %v8158, %v8155
    %v8618 = vpack.c.b16 %v8159, %v8156
    %v8619 = vpack.c.b16 %v8163, %v8160
    %v8620 = vpack.c.b16 %v8164, %v8161
    %v8621 = vpack.c.b16 %v8165, %v8162
    %v8622 = vpack.c.b16 %v8169, %v8166
    %v8623 = vpack.c.b16 %v8170, %v8167
    %v8624 = vpack.c.b16 %v8171, %v8168
    %v8625 = vpack.c.b16 %v8175, %v8172
    %v8626 = vpack.c.b16 %v8176, %v8173
    %v8627 = vpack.c.b16 %v8177, %v8174
    %v8628 = vpack.c.b16 %v8181, %v8178
    %v8629 = vpack.c.b16 %v8182, %v8179
    %v8630 = vpack.c.b16 %v8183, %v8180
    %v8631 = vpack.c.b16 %v8187, %v8184
    %v8632 = vpack.c.b16 %v8188, %v8185
    %v8633 = vpack.c.b16 %v8189, %v8186
    %v8634 = vpack.c.b16 %v8193, %v8190
    %v8635 = vpack.c.b16 %v8194, %v8191
    %v8636 = vpack.c.b16 %v8195, %v8192
    %v8637 = vpack.c.b16 %v8199, %v8196
    %v8638 = vpack.c.b16 %v8200, %v8197
    %v8639 = vpack.c.b16 %v8201, %v8198
    %v8640 = vpack.c.b16 %v8205, %v8202
    %v8641 = vpack.c.b16 %v8206, %v8203
    %v8642 = vpack.c.b16 %v8207, %v8204
    %v8643 = vpack.c.b16 %v8211, %v8208
    %v8644 = vpack.c.b16 %v8212, %v8209
    %v8645 = vpack.c.b16 %v8213, %v8210
    %v8646 = vpack.c.b16 %v8217, %v8214
    %v8647 = vpack.c.b16 %v8218, %v8215
    %v8648 = vpack.c.b16 %v8219, %v8216
    %v8649 = vpack.c.b16 %v8223, %v8220
    %v8650 = vpack.c.b16 %v8224, %v8221
    %v8651 = vpack.c.b16 %v8225, %v8222
    %v8652 = vpack.c.b16 %v8229, %v8226
    %v8653 = vpack.c.b16 %v8230, %v8227
    %v8654 = vpack.c.b16 %v8231, %v8228
    %v8655 = vpack.c.b16 %v8235, %v8232
    %v8656 = vpack.c.b16 %v8236, %v8233
    %v8657 = vpack.c.b16 %v8237, %v8234
    %v8658 = vpack.c.b16 %v8241, %v8238
    %v8659 = vpack.c.b16 %v8242, %v8239
    %v8660 = vpack.c.b16 %v8243, %v8240
    %v8661 = vpack.c.b16 %v8247, %v8244
    %v8662 = vpack.c.b16 %v8248, %v8245
    %v8663 = vpack.c.b16 %v8249, %v8246
    %v8664 = vpack.c.b16 %v8253, %v8250
    %v8665 = vpack.c.b16 %v8254, %v8251
    %v8666 = vpack.c.b16 %v8255, %v8252
    %v8667 = vpack.c.b16 %v8259, %v8256
    %v8668 = vpack.c.b16 %v8260, %v8257
    %v8669 = vpack.c.b16 %v8261, %v8258
    %v8670 = vpack.c.b16 %v8265, %v8262
    %v8671 = vpack.c.b16 %v8266, %v8263
    %v8672 = vpack.c.b16 %v8267, %v8264
    %v8673 = vpack.c.b16 %v8271, %v8268
    %v8674 = vpack.c.b16 %v8272, %v8269
    %v8675 = vpack.c.b16 %v8273, %v8270
    %v8676 = vpack.c.b16 %v8277, %v8274
    %v8677 = vpack.c.b16 %v8278, %v8275
    %v8678 = vpack.c.b16 %v8279, %v8276
    %v8679 = vpack.c.b16 %v8283, %v8280
    %v8680 = vpack.c.b16 %v8284, %v8281
    %v8681 = vpack.c.b16 %v8285, %v8282
    %v8682 = vpack.c.b16 %v8289, %v8286
    %v8683 = vpack.c.b16 %v8290, %v8287
    %v8684 = vpack.c.b16 %v8291, %v8288
    %v8685 = vpack.c.b16 %v8295, %v8292
    %v8686 = vpack.c.b16 %v8296, %v8293
    %v8687 = vpack.c.b16 %v8297, %v8294
    %v8688 = vpack.c.b16 %v8301, %v8298
    %v8689 = vpack.c.b16 %v8302, %v8299
    %v8690 = vpack.c.b16 %v8303, %v8300
    %v8691 = vpack.c.b16 %v8307, %v8304
    %v8692 = vpack.c.b16 %v8308, %v8305
    %v8693 = vpack.c.b16 %v8309, %v8306
    %v8694 = vpack.c.b16 %v8313, %v8310
    %v8695 = vpack.c.b16 %v8314, %v8311
    %v8696 = vpack.c.b16 %v8315, %v8312
    %v8697 = vpack.c.b16 %v8319, %v8316
    %v8698 = vpack.c.b16 %v8320, %v8317
    %v8699 = vpack.c.b16 %v8321, %v8318
    %v8700 = vpack.c.b16 %v8325, %v8322
    %v8701 = vpack.c.b16 %v8326, %v8323
    %v8702 = vpack.c.b16 %v8327, %v8324
    %v8703 = vpack.c.b16 %v8331, %v8328
    %v8704 = vpack.c.b16 %v8332, %v8329
    %v8705 = vpack.c.b16 %v8333, %v8330
    %v8706 = vpack.c.b16 %v8337, %v8334
    %v8707 = vpack.c.b16 %v8338, %v8335
    %v8708 = vpack.c.b16 %v8339, %v8336
    %v8709 = vpack.c.b16 %v8343, %v8340
    %v8710 = vpack.c.b16 %v8344, %v8341
    %v8711 = vpack.c.b16 %v8345, %v8342
    %v8712 = vpack.c.b16 %v8349, %v8346
    %v8713 = vpack.c.b16 %v8350, %v8347
    %v8714 = vpack.c.b16 %v8351, %v8348
    %v8715 = vpack.c.b16 %v8355, %v8352
    %v8716 = vpack.c.b16 %v8356, %v8353
    %v8717 = vpack.c.b16 %v8357, %v8354
    %v8718 = vpack.c.b16 %v8361, %v8358
    %v8719 = vpack.c.b16 %v8362, %v8359
    %v8720 = vpack.c.b16 %v8363, %v8360
    %v8721 = vpack.c.b16 %v8367, %v8364
    %v8722 = vpack.c.b16 %v8368, %v8365
    %v8723 = vpack.c.b16 %v8369, %v8366
    %v8724 = vpack.c.b16 %v8373, %v8370
    %v8725 = vpack.c.b16 %v8374, %v8371
    %v8726 = vpack.c.b16 %v8375, %v8372
    %v8727 = vpack.c.b16 %v8379, %v8376
    %v8728 = vpack.c.b16 %v8380, %v8377
    %v8729 = vpack.c.b16 %v8381, %v8378
    %v8730 = vpack.c.b16 %v8385, %v8382
    %v8731 = vpack.c.b16 %v8386, %v8383
    %v8732 = vpack.c.b16 %v8387, %v8384
    %v8733 = vpack.c.b16 %v8391, %v8388
    %v8734 = vpack.c.b16 %v8392, %v8389
    %v8735 = vpack.c.b16 %v8393, %v8390
    %v8736 = vpack.c.b16 %v8397, %v8394
    %v8737 = vpack.c.b16 %v8398, %v8395
    %v8738 = vpack.c.b16 %v8399, %v8396
    %v8739 = vpack.c.b16 %v8403, %v8400
    %v8740 = vpack.c.b16 %v8404, %v8401
    %v8741 = vpack.c.b16 %v8405, %v8402
    %v8742 = vpack.c.b16 %v8409, %v8406
    %v8743 = vpack.c.b16 %v8410, %v8407
    %v8744 = vpack.c.b16 %v8411, %v8408
    %v8745 = vpack.c.b16 %v8415, %v8412
    %v8746 = vpack.c.b16 %v8416, %v8413
    %v8747 = vpack.c.b16 %v8417, %v8414
    %v8748 = vpack.c.b16 %v8421, %v8418
    %v8749 = vpack.c.b16 %v8422, %v8419
    %v8750 = vpack.c.b16 %v8423, %v8420
    %v8751 = vpack.c.b16 %v8427, %v8424
    %v8752 = vpack.c.b16 %v8428, %v8425
    %v8753 = vpack.c.b16 %v8429, %v8426
    %v8754 = vpack.c.b16 %v8433, %v8430
    %v8755 = vpack.c.b16 %v8434, %v8431
    %v8756 = vpack.c.b16 %v8435, %v8432
    %v8757 = vpack.c.b16 %v8439, %v8436
    %v8758 = vpack.c.b16 %v8440, %v8437
    %v8759 = vpack.c.b16 %v8441, %v8438
    %v8760 = vpack.c.b16 %v8445, %v8442
    %v8761 = vpack.c.b16 %v8446, %v8443
    %v8762 = vpack.c.b16 %v8447, %v8444
    %v8763 = vpack.c.b16 %v8451, %v8448
    %v8764 = vpack.c.b16 %v8452, %v8449
    %v8765 = vpack.c.b16 %v8453, %v8450
    %v8766 = vpack.c.b16 %v8457, %v8454
    %v8767 = vpack.c.b16 %v8458, %v8455
    %v8768 = vpack.c.b16 %v8459, %v8456
    %v8769 = vpack.c.b16 %v8463, %v8460
    %v8770 = vpack.c.b16 %v8464, %v8461
    %v8771 = vpack.c.b16 %v8465, %v8462
    %v8772 = vpack.c.b16 %v8469, %v8466
    %v8773 = vpack.c.b16 %v8470, %v8467
    %v8774 = vpack.c.b16 %v8471, %v8468
    %v8775 = vpack.c.b16 %v8475, %v8472
    %v8776 = vpack.c.b16 %v8476, %v8473
    %v8777 = vpack.c.b16 %v8477, %v8474
    %v8778 = vpack.c.b16 %v8481, %v8478
    %v8779 = vpack.c.b16 %v8482, %v8479
    %v8780 = vpack.c.b16 %v8483, %v8480
    %v8781 = vpack.c.b16 %v8487, %v8484
    %v8782 = vpack.c.b16 %v8488, %v8485
    %v8783 = vpack.c.b16 %v8489, %v8486
    %v8784 = vpack.c.b16 %v8493, %v8490
    %v8785 = vpack.c.b16 %v8494, %v8491
    %v8786 = vpack.c.b16 %v8495, %v8492
    %v8787 = vpack.c.b16 %v8499, %v8496
    %v8788 = vpack.c.b16 %v8500, %v8497
    %v8789 = vpack.c.b16 %v8501, %v8498
    %9078 = vmatprep.subr.bf16.mxu0 %v8503
    %9079 = vmatpush1.bf16.msra.mxu0 %v8502
    %9080 = vmatprep.subr.bf16.mxu0 %v8506
    %9081 = vmatpush1.bf16.msra.mxu0 %v8505
    %9082 = vmatprep.subr.bf16.mxu0 %v8509
    %9083 = vmatpush1.bf16.msra.mxu0 %v8508
    %9084 = vmatprep.subr.bf16.mxu0 %v8512
    %9085 = vmatpush1.bf16.msra.mxu0 %v8511
    %9086 = vmatprep.subr.bf16.mxu0 %v8515
    %9087 = vmatpush1.bf16.msra.mxu0 %v8514
    %9088 = vmatprep.subr.bf16.mxu0 %v8518
    %9089 = vmatpush1.bf16.msra.mxu0 %v8517
    %9090 = vmatprep.subr.bf16.mxu0 %v8521
    %9091 = vmatpush1.bf16.msra.mxu0 %v8520
    %9092 = vmatprep.subr.bf16.mxu0 %v8524
    %9093 = vmatpush1.bf16.msra.mxu0 %v8523
    %9094 = vmatprep.subr.bf16.mxu0 %v8527
    %9095 = vmatpush1.bf16.msra.mxu0 %v8526
    %9096 = vmatprep.subr.bf16.mxu0 %v8530
    %9097 = vmatpush1.bf16.msra.mxu0 %v8529
    %9098 = vmatprep.subr.bf16.mxu0 %v8533
    %9099 = vmatpush1.bf16.msra.mxu0 %v8532
    %9100 = vmatprep.subr.bf16.mxu0 %v8536
    %9101 = vmatpush1.bf16.msra.mxu0 %v8535
    %9102 = vmatprep.subr.bf16.mxu0 %v8539
    %9103 = vmatpush1.bf16.msra.mxu0 %v8538
    %9104 = vmatprep.subr.bf16.mxu0 %v8542
    %9105 = vmatpush1.bf16.msra.mxu0 %v8541
    %9106 = vmatprep.subr.bf16.mxu0 %v8545
    %9107 = vmatpush1.bf16.msra.mxu0 %v8544
    %9108 = vmatprep.subr.bf16.mxu0 %v8548
    %9109 = vmatpush1.bf16.msra.mxu0 %v8547
    %9110 = vmatprep.mubr.bf16.mxu0 %v7118
    %9111 = vmatmul.mubr.bf16.gmra.mrb[0].mxu0 %v7117
    %v9112 = vpop.f32.mrb[0].mxu0
    %v9113 = vadd.f32 %v7530, %v9112
    %v9114 = vpop.f32.mrb[0].mxu0
    %v9115 = vadd.f32 %v7534, %v9114
    %v9116 = vpop.f32.mrb[0].mxu0
    %v9117 = vadd.f32 %v7530, %v9116
    %v9118 = vpop.f32.mrb[0].mxu0
    %v9119 = vadd.f32 %v7534, %v9118
    %9120 = vmatprep.mubr.bf16.mxu0 %v7130
    %9121 = vmatmul.mubr.bf16.gmra.mrb[0].mxu0 %v7129
    %v9122 = vpop.f32.mrb[0].mxu0
    %v9123 = vadd.f32 %v7530, %v9122
    %v9124 = vpop.f32.mrb[0].mxu0
    %v9125 = vadd.f32 %v7534, %v9124
    %v9126 = vpop.f32.mrb[0].mxu0
    %v9127 = vadd.f32 %v7530, %v9126
    %v9128 = vpop.f32.mrb[0].mxu0
    %v9129 = vadd.f32 %v7534, %v9128
    %9130 = vdwg.mxu0
    %9131 = vmatprep.subr.bf16.mxu0 %v8551
    %9132 = vmatpush1.bf16.msra.mxu0 %v8550
    %9133 = vmatprep.subr.bf16.mxu0 %v8554
    %9134 = vmatpush1.bf16.msra.mxu0 %v8553
    %9135 = vmatprep.subr.bf16.mxu0 %v8557
    %9136 = vmatpush1.bf16.msra.mxu0 %v8556
    %9137 = vmatprep.subr.bf16.mxu0 %v8560
    %9138 = vmatpush1.bf16.msra.mxu0 %v8559
    %9139 = vmatprep.subr.bf16.mxu0 %v8563
    %9140 = vmatpush1.bf16.msra.mxu0 %v8562
    %9141 = vmatprep.subr.bf16.mxu0 %v8566
    %9142 = vmatpush1.bf16.msra.mxu0 %v8565
    %9143 = vmatprep.subr.bf16.mxu0 %v8569
    %9144 = vmatpush1.bf16.msra.mxu0 %v8568
    %9145 = vmatprep.subr.bf16.mxu0 %v8572
    %9146 = vmatpush1.bf16.msra.mxu0 %v8571
    %9147 = vmatprep.subr.bf16.mxu0 %v8575
    %9148 = vmatpush1.bf16.msra.mxu0 %v8574
    %9149 = vmatprep.subr.bf16.mxu0 %v8578
    %9150 = vmatpush1.bf16.msra.mxu0 %v8577
    %9151 = vmatprep.subr.bf16.mxu0 %v8581
    %9152 = vmatpush1.bf16.msra.mxu0 %v8580
    %9153 = vmatprep.subr.bf16.mxu0 %v8584
    %9154 = vmatpush1.bf16.msra.mxu0 %v8583
    %9155 = vmatprep.subr.bf16.mxu0 %v8587
    %9156 = vmatpush1.bf16.msra.mxu0 %v8586
    %9157 = vmatprep.subr.bf16.mxu0 %v8590
    %9158 = vmatpush1.bf16.msra.mxu0 %v8589
    %9159 = vmatprep.subr.bf16.mxu0 %v8593
    %9160 = vmatpush1.bf16.msra.mxu0 %v8592
    %9161 = vmatprep.subr.bf16.mxu0 %v8596
    %9162 = vmatpush1.bf16.msra.mxu0 %v8595
    %9163 = vmatprep.mubr.bf16.mxu0 %v7120
    %9164 = vmatmul.mubr.bf16.gmra.mrb[0].mxu0 %v7119
    %v9165 = vpop.f32.mrb[0].mxu0
    %v9166 = vadd.f32 %v9113, %v9165
    %v9167 = vpop.f32.mrb[0].mxu0
    %v9168 = vadd.f32 %v9115, %v9167
    %v9169 = vpop.f32.mrb[0].mxu0
    %v9170 = vadd.f32 %v9117, %v9169
    %v9171 = vpop.f32.mrb[0].mxu0
    %v9172 = vadd.f32 %v9119, %v9171
    %9173 = vmatprep.mubr.bf16.mxu0 %v7132
    %9174 = vmatmul.mubr.bf16.gmra.mrb[0].mxu0 %v7131
    %v9175 = vpop.f32.mrb[0].mxu0
    %v9176 = vadd.f32 %v9123, %v9175
    %v9177 = vpop.f32.mrb[0].mxu0
    %v9178 = vadd.f32 %v9125, %v9177
    %v9179 = vpop.f32.mrb[0].mxu0
    %v9180 = vadd.f32 %v9127, %v9179
    %v9181 = vpop.f32.mrb[0].mxu0
    %v9182 = vadd.f32 %v9129, %v9181
    %9183 = vdwg.mxu0
    %9184 = vmatprep.subr.bf16.mxu0 %v8599
    %9185 = vmatpush1.bf16.msra.mxu0 %v8598
    %9186 = vmatprep.subr.bf16.mxu0 %v8602
    %9187 = vmatpush1.bf16.msra.mxu0 %v8601
    %9188 = vmatprep.subr.bf16.mxu0 %v8605
    %9189 = vmatpush1.bf16.msra.mxu0 %v8604
    %9190 = vmatprep.subr.bf16.mxu0 %v8608
    %9191 = vmatpush1.bf16.msra.mxu0 %v8607
    %9192 = vmatprep.subr.bf16.mxu0 %v8611
    %9193 = vmatpush1.bf16.msra.mxu0 %v8610
    %9194 = vmatprep.subr.bf16.mxu0 %v8614
    %9195 = vmatpush1.bf16.msra.mxu0 %v8613
    %9196 = vmatprep.subr.bf16.mxu0 %v8617
    %9197 = vmatpush1.bf16.msra.mxu0 %v8616
    %9198 = vmatprep.subr.bf16.mxu0 %v8620
    %9199 = vmatpush1.bf16.msra.mxu0 %v8619
    %9200 = vmatprep.subr.bf16.mxu0 %v8623
    %9201 = vmatpush1.bf16.msra.mxu0 %v8622
    %9202 = vmatprep.subr.bf16.mxu0 %v8626
    %9203 = vmatpush1.bf16.msra.mxu0 %v8625
    %9204 = vmatprep.subr.bf16.mxu0 %v8629
    %9205 = vmatpush1.bf16.msra.mxu0 %v8628
    %9206 = vmatprep.subr.bf16.mxu0 %v8632
    %9207 = vmatpush1.bf16.msra.mxu0 %v8631
    %9208 = vmatprep.subr.bf16.mxu0 %v8635
    %9209 = vmatpush1.bf16.msra.mxu0 %v8634
    %9210 = vmatprep.subr.bf16.mxu0 %v8638
    %9211 = vmatpush1.bf16.msra.mxu0 %v8637
    %9212 = vmatprep.subr.bf16.mxu0 %v8641
    %9213 = vmatpush1.bf16.msra.mxu0 %v8640
    %9214 = vmatprep.subr.bf16.mxu0 %v8644
    %9215 = vmatpush1.bf16.msra.mxu0 %v8643
    %9216 = vmatprep.mubr.bf16.mxu0 %v7122
    %9217 = vmatmul.mubr.bf16.gmra.mrb[0].mxu0 %v7121
    %v9218 = vpop.f32.mrb[0].mxu0
    %v9219 = vadd.f32 %v9166, %v9218
    %v9220 = vpop.f32.mrb[0].mxu0
    %v9221 = vadd.f32 %v9168, %v9220
    %v9222 = vpop.f32.mrb[0].mxu0
    %v9223 = vadd.f32 %v9170, %v9222
    %v9224 = vpop.f32.mrb[0].mxu0
    %v9225 = vadd.f32 %v9172, %v9224
    %9226 = vmatprep.mubr.bf16.mxu0 %v7134
    %9227 = vmatmul.mubr.bf16.gmra.mrb[0].mxu0 %v7133
    %v9228 = vpop.f32.mrb[0].mxu0
    %v9229 = vadd.f32 %v9176, %v9228
    %v9230 = vpop.f32.mrb[0].mxu0
    %v9231 = vadd.f32 %v9178, %v9230
    %v9232 = vpop.f32.mrb[0].mxu0
    %v9233 = vadd.f32 %v9180, %v9232
    %v9234 = vpop.f32.mrb[0].mxu0
    %v9235 = vadd.f32 %v9182, %v9234
    %9236 = vdwg.mxu0
    %9237 = vmatprep.subr.bf16.mxu0 %v8647
    %9238 = vmatpush1.bf16.msra.mxu0 %v8646
    %9239 = vmatprep.subr.bf16.mxu0 %v8650
    %9240 = vmatpush1.bf16.msra.mxu0 %v8649
    %9241 = vmatprep.subr.bf16.mxu0 %v8653
    %9242 = vmatpush1.bf16.msra.mxu0 %v8652
    %9243 = vmatprep.subr.bf16.mxu0 %v8656
    %9244 = vmatpush1.bf16.msra.mxu0 %v8655
    %9245 = vmatprep.subr.bf16.mxu0 %v8659
    %9246 = vmatpush1.bf16.msra.mxu0 %v8658
    %9247 = vmatprep.subr.bf16.mxu0 %v8662
    %9248 = vmatpush1.bf16.msra.mxu0 %v8661
    %9249 = vmatprep.subr.bf16.mxu0 %v8665
    %9250 = vmatpush1.bf16.msra.mxu0 %v8664
    %9251 = vmatprep.subr.bf16.mxu0 %v8668
    %9252 = vmatpush1.bf16.msra.mxu0 %v8667
    %9253 = vmatprep.subr.bf16.mxu0 %v8671
    %9254 = vmatpush1.bf16.msra.mxu0 %v8670
    %9255 = vmatprep.subr.bf16.mxu0 %v8674
    %9256 = vmatpush1.bf16.msra.mxu0 %v8673
    %9257 = vmatprep.subr.bf16.mxu0 %v8677
    %9258 = vmatpush1.bf16.msra.mxu0 %v8676
    %9259 = vmatprep.subr.bf16.mxu0 %v8680
    %9260 = vmatpush1.bf16.msra.mxu0 %v8679
    %9261 = vmatprep.subr.bf16.mxu0 %v8683
    %9262 = vmatpush1.bf16.msra.mxu0 %v8682
    %9263 = vmatprep.subr.bf16.mxu0 %v8686
    %9264 = vmatpush1.bf16.msra.mxu0 %v8685
    %9265 = vmatprep.subr.bf16.mxu0 %v8689
    %9266 = vmatpush1.bf16.msra.mxu0 %v8688
    %9267 = vmatprep.subr.bf16.mxu0 %v8692
    %9268 = vmatpush1.bf16.msra.mxu0 %v8691
    %9269 = vmatprep.mubr.bf16.mxu0 %v7124
    %9270 = vmatmul.mubr.bf16.gmra.mrb[0].mxu0 %v7123
    %v9271 = vpop.f32.mrb[0].mxu0
    %v9272 = vadd.f32 %v9219, %v9271
    %v9273 = vpop.f32.mrb[0].mxu0
    %v9274 = vadd.f32 %v9221, %v9273
    %v9275 = vpop.f32.mrb[0].mxu0
    %v9276 = vadd.f32 %v9223, %v9275
    %v9277 = vpop.f32.mrb[0].mxu0
    %v9278 = vadd.f32 %v9225, %v9277
    %9279 = vmatprep.mubr.bf16.mxu0 %v7136
    %9280 = vmatmul.mubr.bf16.gmra.mrb[0].mxu0 %v7135
    %v9281 = vpop.f32.mrb[0].mxu0
    %v9282 = vadd.f32 %v9229, %v9281
    %v9283 = vpop.f32.mrb[0].mxu0
    %v9284 = vadd.f32 %v9231, %v9283
    %v9285 = vpop.f32.mrb[0].mxu0
    %v9286 = vadd.f32 %v9233, %v9285
    %v9287 = vpop.f32.mrb[0].mxu0
    %v9288 = vadd.f32 %v9235, %v9287
    %9289 = vdwg.mxu0
    %9290 = vmatprep.subr.bf16.mxu0 %v8695
    %9291 = vmatpush1.bf16.msra.mxu0 %v8694
    %9292 = vmatprep.subr.bf16.mxu0 %v8698
    %9293 = vmatpush1.bf16.msra.mxu0 %v8697
    %9294 = vmatprep.subr.bf16.mxu0 %v8701
    %9295 = vmatpush1.bf16.msra.mxu0 %v8700
    %9296 = vmatprep.subr.bf16.mxu0 %v8704
    %9297 = vmatpush1.bf16.msra.mxu0 %v8703
    %9298 = vmatprep.subr.bf16.mxu0 %v8707
    %9299 = vmatpush1.bf16.msra.mxu0 %v8706
    %9300 = vmatprep.subr.bf16.mxu0 %v8710
    %9301 = vmatpush1.bf16.msra.mxu0 %v8709
    %9302 = vmatprep.subr.bf16.mxu0 %v8713
    %9303 = vmatpush1.bf16.msra.mxu0 %v8712
    %9304 = vmatprep.subr.bf16.mxu0 %v8716
    %9305 = vmatpush1.bf16.msra.mxu0 %v8715
    %9306 = vmatprep.subr.bf16.mxu0 %v8719
    %9307 = vmatpush1.bf16.msra.mxu0 %v8718
    %9308 = vmatprep.subr.bf16.mxu0 %v8722
    %9309 = vmatpush1.bf16.msra.mxu0 %v8721
    %9310 = vmatprep.subr.bf16.mxu0 %v8725
    %9311 = vmatpush1.bf16.msra.mxu0 %v8724
    %9312 = vmatprep.subr.bf16.mxu0 %v8728
    %9313 = vmatpush1.bf16.msra.mxu0 %v8727
    %9314 = vmatprep.subr.bf16.mxu0 %v8731
    %9315 = vmatpush1.bf16.msra.mxu0 %v8730
    %9316 = vmatprep.subr.bf16.mxu0 %v8734
    %9317 = vmatpush1.bf16.msra.mxu0 %v8733
    %9318 = vmatprep.subr.bf16.mxu0 %v8737
    %9319 = vmatpush1.bf16.msra.mxu0 %v8736
    %9320 = vmatprep.subr.bf16.mxu0 %v8740
    %9321 = vmatpush1.bf16.msra.mxu0 %v8739
    %9322 = vmatprep.mubr.bf16.mxu0 %v7126
    %9323 = vmatmul.mubr.bf16.gmra.mrb[0].mxu0 %v7125
    %v9324 = vpop.f32.mrb[0].mxu0
    %v9325 = vadd.f32 %v9272, %v9324
    %v9326 = vpop.f32.mrb[0].mxu0
    %v9327 = vadd.f32 %v9274, %v9326
    %v9328 = vpop.f32.mrb[0].mxu0
    %v9329 = vadd.f32 %v9276, %v9328
    %v9330 = vpop.f32.mrb[0].mxu0
    %v9331 = vadd.f32 %v9278, %v9330
    %9332 = vmatprep.mubr.bf16.mxu0 %v7138
    %9333 = vmatmul.mubr.bf16.gmra.mrb[0].mxu0 %v7137
    %v9334 = vpop.f32.mrb[0].mxu0
    %v9335 = vadd.f32 %v9282, %v9334
    %v9336 = vpop.f32.mrb[0].mxu0
    %v9337 = vadd.f32 %v9284, %v9336
    %v9338 = vpop.f32.mrb[0].mxu0
    %v9339 = vadd.f32 %v9286, %v9338
    %v9340 = vpop.f32.mrb[0].mxu0
    %v9341 = vadd.f32 %v9288, %v9340
    %9342 = vdwg.mxu0
    %9343 = vmatprep.subr.bf16.mxu0 %v8743
    %9344 = vmatpush1.bf16.msra.mxu0 %v8742
    %9345 = vmatprep.subr.bf16.mxu0 %v8746
    %9346 = vmatpush1.bf16.msra.mxu0 %v8745
    %9347 = vmatprep.subr.bf16.mxu0 %v8749
    %9348 = vmatpush1.bf16.msra.mxu0 %v8748
    %9349 = vmatprep.subr.bf16.mxu0 %v8752
    %9350 = vmatpush1.bf16.msra.mxu0 %v8751
    %9351 = vmatprep.subr.bf16.mxu0 %v8755
    %9352 = vmatpush1.bf16.msra.mxu0 %v8754
    %9353 = vmatprep.subr.bf16.mxu0 %v8758
    %9354 = vmatpush1.bf16.msra.mxu0 %v8757
    %9355 = vmatprep.subr.bf16.mxu0 %v8761
    %9356 = vmatpush1.bf16.msra.mxu0 %v8760
    %9357 = vmatprep.subr.bf16.mxu0 %v8764
    %9358 = vmatpush1.bf16.msra.mxu0 %v8763
    %9359 = vmatprep.subr.bf16.mxu0 %v8767
    %9360 = vmatpush1.bf16.msra.mxu0 %v8766
    %9361 = vmatprep.subr.bf16.mxu0 %v8770
    %9362 = vmatpush1.bf16.msra.mxu0 %v8769
    %9363 = vmatprep.subr.bf16.mxu0 %v8773
    %9364 = vmatpush1.bf16.msra.mxu0 %v8772
    %9365 = vmatprep.subr.bf16.mxu0 %v8776
    %9366 = vmatpush1.bf16.msra.mxu0 %v8775
    %9367 = vmatprep.subr.bf16.mxu0 %v8779
    %9368 = vmatpush1.bf16.msra.mxu0 %v8778
    %9369 = vmatprep.subr.bf16.mxu0 %v8782
    %9370 = vmatpush1.bf16.msra.mxu0 %v8781
    %9371 = vmatprep.subr.bf16.mxu0 %v8785
    %9372 = vmatpush1.bf16.msra.mxu0 %v8784
    %9373 = vmatprep.subr.bf16.mxu0 %v8788
    %9374 = vmatpush1.bf16.msra.mxu0 %v8787
    %9375 = vmatprep.mubr.bf16.mxu0 %v7128
    %9376 = vmatmul.mubr.bf16.gmra.mrb[0].mxu0 %v7127
    %v9377 = vpop.f32.mrb[0].mxu0
    %v9378 = vadd.f32 %v9325, %v9377
    %v9379 = vpop.f32.mrb[0].mxu0
    %v9380 = vadd.f32 %v9327, %v9379
    %v9381 = vpop.f32.mrb[0].mxu0
    %v9382 = vadd.f32 %v9329, %v9381
    %v9383 = vpop.f32.mrb[0].mxu0
    %v9384 = vadd.f32 %v9331, %v9383
    %9385 = vmatprep.mubr.bf16.mxu0 %v7140
    %9386 = vmatmul.mubr.bf16.gmra.mrb[0].mxu0 %v7139
    %v9387 = vpop.f32.mrb[0].mxu0
    %v9388 = vadd.f32 %v9335, %v9387
    %v9389 = vpop.f32.mrb[0].mxu0
    %v9390 = vadd.f32 %v9337, %v9389
    %v9391 = vpop.f32.mrb[0].mxu0
    %v9392 = vadd.f32 %v9339, %v9391
    %v9393 = vpop.f32.mrb[0].mxu0
    %v9394 = vadd.f32 %v9341, %v9393
    %9395 = vdwg.mxu0
    %9396 = vmatprep.subr.bf16.mxu0 0
    %9397 = vmatpush1.bf16.msra.mxu0 %v8504
    %9398 = vmatprep.subr.bf16.mxu0 0
    %9399 = vmatpush1.bf16.msra.mxu0 %v8507
    %9400 = vmatprep.subr.bf16.mxu0 0
    %9401 = vmatpush1.bf16.msra.mxu0 %v8510
    %9402 = vmatprep.subr.bf16.mxu0 0
    %9403 = vmatpush1.bf16.msra.mxu0 %v8513
    %9404 = vmatprep.subr.bf16.mxu0 0
    %9405 = vmatpush1.bf16.msra.mxu0 %v8516
    %9406 = vmatprep.subr.bf16.mxu0 0
    %9407 = vmatpush1.bf16.msra.mxu0 %v8519
    %9408 = vmatprep.subr.bf16.mxu0 0
    %9409 = vmatpush1.bf16.msra.mxu0 %v8522
    %9410 = vmatprep.subr.bf16.mxu0 0
    %9411 = vmatpush1.bf16.msra.mxu0 %v8525
    %9412 = vmatprep.subr.bf16.mxu0 0
    %9413 = vmatpush1.bf16.msra.mxu0 %v8528
    %9414 = vmatprep.subr.bf16.mxu0 0
    %9415 = vmatpush1.bf16.msra.mxu0 %v8531
    %9416 = vmatprep.subr.bf16.mxu0 0
    %9417 = vmatpush1.bf16.msra.mxu0 %v8534
    %9418 = vmatprep.subr.bf16.mxu0 0
    %9419 = vmatpush1.bf16.msra.mxu0 %v8537
    %9420 = vmatprep.subr.bf16.mxu0 0
    %9421 = vmatpush1.bf16.msra.mxu0 %v8540
    %9422 = vmatprep.subr.bf16.mxu0 0
    %9423 = vmatpush1.bf16.msra.mxu0 %v8543
    %9424 = vmatprep.subr.bf16.mxu0 0
    %9425 = vmatpush1.bf16.msra.mxu0 %v8546
    %9426 = vmatprep.subr.bf16.mxu0 0
    %9427 = vmatpush1.bf16.msra.mxu0 %v8549
    %9428 = vmatprep.mubr.bf16.mxu0 %v7118
    %9429 = vmatmul.mubr.bf16.gmra.mrb[0].mxu0 %v7117
    %v9430 = vpop.f32.mrb[0].mxu0
    %v9431 = vadd.f32 %v7538, %v9430
    %v9432 = vpop.f32.mrb[0].mxu0
    %v9433 = vpop.f32.mrb[0].mxu0
    %v9434 = vadd.f32 %v7538, %v9433
    %v9435 = vpop.f32.mrb[0].mxu0
    %9436 = vmatprep.mubr.bf16.mxu0 %v7130
    %9437 = vmatmul.mubr.bf16.gmra.mrb[0].mxu0 %v7129
    %v9438 = vpop.f32.mrb[0].mxu0
    %v9439 = vadd.f32 %v7538, %v9438
    %v9440 = vpop.f32.mrb[0].mxu0
    %v9441 = vpop.f32.mrb[0].mxu0
    %v9442 = vadd.f32 %v7538, %v9441
    %v9443 = vpop.f32.mrb[0].mxu0
    %9444 = vdwg.mxu0
    %9445 = vmatprep.subr.bf16.mxu0 0
    %9446 = vmatpush1.bf16.msra.mxu0 %v8552
    %9447 = vmatprep.subr.bf16.mxu0 0
    %9448 = vmatpush1.bf16.msra.mxu0 %v8555
    %9449 = vmatprep.subr.bf16.mxu0 0
    %9450 = vmatpush1.bf16.msra.mxu0 %v8558
    %9451 = vmatprep.subr.bf16.mxu0 0
    %9452 = vmatpush1.bf16.msra.mxu0 %v8561
    %9453 = vmatprep.subr.bf16.mxu0 0
    %9454 = vmatpush1.bf16.msra.mxu0 %v8564
    %9455 = vmatprep.subr.bf16.mxu0 0
    %9456 = vmatpush1.bf16.msra.mxu0 %v8567
    %9457 = vmatprep.subr.bf16.mxu0 0
    %9458 = vmatpush1.bf16.msra.mxu0 %v8570
    %9459 = vmatprep.subr.bf16.mxu0 0
    %9460 = vmatpush1.bf16.msra.mxu0 %v8573
    %9461 = vmatprep.subr.bf16.mxu0 0
    %9462 = vmatpush1.bf16.msra.mxu0 %v8576
    %9463 = vmatprep.subr.bf16.mxu0 0
    %9464 = vmatpush1.bf16.msra.mxu0 %v8579
    %9465 = vmatprep.subr.bf16.mxu0 0
    %9466 = vmatpush1.bf16.msra.mxu0 %v8582
    %9467 = vmatprep.subr.bf16.mxu0 0
    %9468 = vmatpush1.bf16.msra.mxu0 %v8585
    %9469 = vmatprep.subr.bf16.mxu0 0
    %9470 = vmatpush1.bf16.msra.mxu0 %v8588
    %9471 = vmatprep.subr.bf16.mxu0 0
    %9472 = vmatpush1.bf16.msra.mxu0 %v8591
    %9473 = vmatprep.subr.bf16.mxu0 0
    %9474 = vmatpush1.bf16.msra.mxu0 %v8594
    %9475 = vmatprep.subr.bf16.mxu0 0
    %9476 = vmatpush1.bf16.msra.mxu0 %v8597
    %9477 = vmatprep.mubr.bf16.mxu0 %v7120
    %9478 = vmatmul.mubr.bf16.gmra.mrb[0].mxu0 %v7119
    %v9479 = vpop.f32.mrb[0].mxu0
    %v9480 = vadd.f32 %v9431, %v9479
    %v9481 = vpop.f32.mrb[0].mxu0
    %v9482 = vpop.f32.mrb[0].mxu0
    %v9483 = vadd.f32 %v9434, %v9482
    %v9484 = vpop.f32.mrb[0].mxu0
    %9485 = vmatprep.mubr.bf16.mxu0 %v7132
    %9486 = vmatmul.mubr.bf16.gmra.mrb[0].mxu0 %v7131
    %v9487 = vpop.f32.mrb[0].mxu0
    %v9488 = vadd.f32 %v9439, %v9487
    %v9489 = vpop.f32.mrb[0].mxu0
    %v9490 = vpop.f32.mrb[0].mxu0
    %v9491 = vadd.f32 %v9442, %v9490
    %v9492 = vpop.f32.mrb[0].mxu0
    %9493 = vdwg.mxu0
    %9494 = vmatprep.subr.bf16.mxu0 0
    %9495 = vmatpush1.bf16.msra.mxu0 %v8600
    %9496 = vmatprep.subr.bf16.mxu0 0
    %9497 = vmatpush1.bf16.msra.mxu0 %v8603
    %9498 = vmatprep.subr.bf16.mxu0 0
    %9499 = vmatpush1.bf16.msra.mxu0 %v8606
    %9500 = vmatprep.subr.bf16.mxu0 0
    %9501 = vmatpush1.bf16.msra.mxu0 %v8609
    %9502 = vmatprep.subr.bf16.mxu0 0
    %9503 = vmatpush1.bf16.msra.mxu0 %v8612
    %9504 = vmatprep.subr.bf16.mxu0 0
    %9505 = vmatpush1.bf16.msra.mxu0 %v8615
    %9506 = vmatprep.subr.bf16.mxu0 0
    %9507 = vmatpush1.bf16.msra.mxu0 %v8618
    %9508 = vmatprep.subr.bf16.mxu0 0
    %9509 = vmatpush1.bf16.msra.mxu0 %v8621
    %9510 = vmatprep.subr.bf16.mxu0 0
    %9511 = vmatpush1.bf16.msra.mxu0 %v8624
    %9512 = vmatprep.subr.bf16.mxu0 0
    %9513 = vmatpush1.bf16.msra.mxu0 %v8627
    %9514 = vmatprep.subr.bf16.mxu0 0
    %9515 = vmatpush1.bf16.msra.mxu0 %v8630
    %9516 = vmatprep.subr.bf16.mxu0 0
    %9517 = vmatpush1.bf16.msra.mxu0 %v8633
    %9518 = vmatprep.subr.bf16.mxu0 0
    %9519 = vmatpush1.bf16.msra.mxu0 %v8636
    %9520 = vmatprep.subr.bf16.mxu0 0
    %9521 = vmatpush1.bf16.msra.mxu0 %v8639
    %9522 = vmatprep.subr.bf16.mxu0 0
    %9523 = vmatpush1.bf16.msra.mxu0 %v8642
    %9524 = vmatprep.subr.bf16.mxu0 0
    %9525 = vmatpush1.bf16.msra.mxu0 %v8645
    %9526 = vmatprep.mubr.bf16.mxu0 %v7122
    %9527 = vmatmul.mubr.bf16.gmra.mrb[0].mxu0 %v7121
    %v9528 = vpop.f32.mrb[0].mxu0
    %v9529 = vadd.f32 %v9480, %v9528
    %v9530 = vpop.f32.mrb[0].mxu0
    %v9531 = vpop.f32.mrb[0].mxu0
    %v9532 = vadd.f32 %v9483, %v9531
    %v9533 = vpop.f32.mrb[0].mxu0
    %9534 = vmatprep.mubr.bf16.mxu0 %v7134
    %9535 = vmatmul.mubr.bf16.gmra.mrb[0].mxu0 %v7133
    %v9536 = vpop.f32.mrb[0].mxu0
    %v9537 = vadd.f32 %v9488, %v9536
    %v9538 = vpop.f32.mrb[0].mxu0
    %v9539 = vpop.f32.mrb[0].mxu0
    %v9540 = vadd.f32 %v9491, %v9539
    %v9541 = vpop.f32.mrb[0].mxu0
    %9542 = vdwg.mxu0
    %9543 = vmatprep.subr.bf16.mxu0 0
    %9544 = vmatpush1.bf16.msra.mxu0 %v8648
    %9545 = vmatprep.subr.bf16.mxu0 0
    %9546 = vmatpush1.bf16.msra.mxu0 %v8651
    %9547 = vmatprep.subr.bf16.mxu0 0
    %9548 = vmatpush1.bf16.msra.mxu0 %v8654
    %9549 = vmatprep.subr.bf16.mxu0 0
    %9550 = vmatpush1.bf16.msra.mxu0 %v8657
    %9551 = vmatprep.subr.bf16.mxu0 0
    %9552 = vmatpush1.bf16.msra.mxu0 %v8660
    %9553 = vmatprep.subr.bf16.mxu0 0
    %9554 = vmatpush1.bf16.msra.mxu0 %v8663
    %9555 = vmatprep.subr.bf16.mxu0 0
    %9556 = vmatpush1.bf16.msra.mxu0 %v8666
    %9557 = vmatprep.subr.bf16.mxu0 0
    %9558 = vmatpush1.bf16.msra.mxu0 %v8669
    %9559 = vmatprep.subr.bf16.mxu0 0
    %9560 = vmatpush1.bf16.msra.mxu0 %v8672
    %9561 = vmatprep.subr.bf16.mxu0 0
    %9562 = vmatpush1.bf16.msra.mxu0 %v8675
    %9563 = vmatprep.subr.bf16.mxu0 0
    %9564 = vmatpush1.bf16.msra.mxu0 %v8678
    %9565 = vmatprep.subr.bf16.mxu0 0
    %9566 = vmatpush1.bf16.msra.mxu0 %v8681
    %9567 = vmatprep.subr.bf16.mxu0 0
    %9568 = vmatpush1.bf16.msra.mxu0 %v8684
    %9569 = vmatprep.subr.bf16.mxu0 0
    %9570 = vmatpush1.bf16.msra.mxu0 %v8687
    %9571 = vmatprep.subr.bf16.mxu0 0
    %9572 = vmatpush1.bf16.msra.mxu0 %v8690
    %9573 = vmatprep.subr.bf16.mxu0 0
    %9574 = vmatpush1.bf16.msra.mxu0 %v8693
    %9575 = vmatprep.mubr.bf16.mxu0 %v7124
    %9576 = vmatmul.mubr.bf16.gmra.mrb[0].mxu0 %v7123
    %v9577 = vpop.f32.mrb[0].mxu0
    %v9578 = vadd.f32 %v9529, %v9577
    %v9579 = vpop.f32.mrb[0].mxu0
    %v9580 = vpop.f32.mrb[0].mxu0
    %v9581 = vadd.f32 %v9532, %v9580
    %v9582 = vpop.f32.mrb[0].mxu0
    %9583 = vmatprep.mubr.bf16.mxu0 %v7136
    %9584 = vmatmul.mubr.bf16.gmra.mrb[0].mxu0 %v7135
    %v9585 = vpop.f32.mrb[0].mxu0
    %v9586 = vadd.f32 %v9537, %v9585
    %v9587 = vpop.f32.mrb[0].mxu0
    %v9588 = vpop.f32.mrb[0].mxu0
    %v9589 = vadd.f32 %v9540, %v9588
    %v9590 = vpop.f32.mrb[0].mxu0
    %9591 = vdwg.mxu0
    %9592 = vmatprep.subr.bf16.mxu0 0
    %9593 = vmatpush1.bf16.msra.mxu0 %v8696
    %9594 = vmatprep.subr.bf16.mxu0 0
    %9595 = vmatpush1.bf16.msra.mxu0 %v8699
    %9596 = vmatprep.subr.bf16.mxu0 0
    %9597 = vmatpush1.bf16.msra.mxu0 %v8702
    %9598 = vmatprep.subr.bf16.mxu0 0
    %9599 = vmatpush1.bf16.msra.mxu0 %v8705
    %9600 = vmatprep.subr.bf16.mxu0 0
    %9601 = vmatpush1.bf16.msra.mxu0 %v8708
    %9602 = vmatprep.subr.bf16.mxu0 0
    %9603 = vmatpush1.bf16.msra.mxu0 %v8711
    %9604 = vmatprep.subr.bf16.mxu0 0
    %9605 = vmatpush1.bf16.msra.mxu0 %v8714
    %9606 = vmatprep.subr.bf16.mxu0 0
    %9607 = vmatpush1.bf16.msra.mxu0 %v8717
    %9608 = vmatprep.subr.bf16.mxu0 0
    %9609 = vmatpush1.bf16.msra.mxu0 %v8720
    %9610 = vmatprep.subr.bf16.mxu0 0
    %9611 = vmatpush1.bf16.msra.mxu0 %v8723
    %9612 = vmatprep.subr.bf16.mxu0 0
    %9613 = vmatpush1.bf16.msra.mxu0 %v8726
    %9614 = vmatprep.subr.bf16.mxu0 0
    %9615 = vmatpush1.bf16.msra.mxu0 %v8729
    %9616 = vmatprep.subr.bf16.mxu0 0
    %9617 = vmatpush1.bf16.msra.mxu0 %v8732
    %9618 = vmatprep.subr.bf16.mxu0 0
    %9619 = vmatpush1.bf16.msra.mxu0 %v8735
    %9620 = vmatprep.subr.bf16.mxu0 0
    %9621 = vmatpush1.bf16.msra.mxu0 %v8738
    %9622 = vmatprep.subr.bf16.mxu0 0
    %9623 = vmatpush1.bf16.msra.mxu0 %v8741
    %9624 = vmatprep.mubr.bf16.mxu0 %v7126
    %9625 = vmatmul.mubr.bf16.gmra.mrb[0].mxu0 %v7125
    %v9626 = vpop.f32.mrb[0].mxu0
    %v9627 = vadd.f32 %v9578, %v9626
    %v9628 = vpop.f32.mrb[0].mxu0
    %v9629 = vpop.f32.mrb[0].mxu0
    %v9630 = vadd.f32 %v9581, %v9629
    %v9631 = vpop.f32.mrb[0].mxu0
    %9632 = vmatprep.mubr.bf16.mxu0 %v7138
    %9633 = vmatmul.mubr.bf16.gmra.mrb[0].mxu0 %v7137
    %v9634 = vpop.f32.mrb[0].mxu0
    %v9635 = vadd.f32 %v9586, %v9634
    %v9636 = vpop.f32.mrb[0].mxu0
    %v9637 = vpop.f32.mrb[0].mxu0
    %v9638 = vadd.f32 %v9589, %v9637
    %v9639 = vpop.f32.mrb[0].mxu0
    %9640 = vdwg.mxu0
    %9641 = vmatprep.subr.bf16.mxu0 0
    %9642 = vmatpush1.bf16.msra.mxu0 %v8744
    %9643 = vmatprep.subr.bf16.mxu0 0
    %9644 = vmatpush1.bf16.msra.mxu0 %v8747
    %9645 = vmatprep.subr.bf16.mxu0 0
    %9646 = vmatpush1.bf16.msra.mxu0 %v8750
    %9647 = vmatprep.subr.bf16.mxu0 0
    %9648 = vmatpush1.bf16.msra.mxu0 %v8753
    %9649 = vmatprep.subr.bf16.mxu0 0
    %9650 = vmatpush1.bf16.msra.mxu0 %v8756
    %9651 = vmatprep.subr.bf16.mxu0 0
    %9652 = vmatpush1.bf16.msra.mxu0 %v8759
    %9653 = vmatprep.subr.bf16.mxu0 0
    %9654 = vmatpush1.bf16.msra.mxu0 %v8762
    %9655 = vmatprep.subr.bf16.mxu0 0
    %9656 = vmatpush1.bf16.msra.mxu0 %v8765
    %9657 = vmatprep.subr.bf16.mxu0 0
    %9658 = vmatpush1.bf16.msra.mxu0 %v8768
    %9659 = vmatprep.subr.bf16.mxu0 0
    %9660 = vmatpush1.bf16.msra.mxu0 %v8771
    %9661 = vmatprep.subr.bf16.mxu0 0
    %9662 = vmatpush1.bf16.msra.mxu0 %v8774
    %9663 = vmatprep.subr.bf16.mxu0 0
    %9664 = vmatpush1.bf16.msra.mxu0 %v8777
    %9665 = vmatprep.subr.bf16.mxu0 0
    %9666 = vmatpush1.bf16.msra.mxu0 %v8780
    %9667 = vmatprep.subr.bf16.mxu0 0
    %9668 = vmatpush1.bf16.msra.mxu0 %v8783
    %9669 = vmatprep.subr.bf16.mxu0 0
    %9670 = vmatpush1.bf16.msra.mxu0 %v8786
    %9671 = vmatprep.subr.bf16.mxu0 0
    %9672 = vmatpush1.bf16.msra.mxu0 %v8789
    %9673 = vmatprep.mubr.bf16.mxu0 %v7128
    %9674 = vmatmul.mubr.bf16.gmra.mrb[0].mxu0 %v7127
    %v9675 = vpop.f32.mrb[0].mxu0
    %v9676 = vadd.f32 %v9627, %v9675
    %v9677 = vpop.f32.mrb[0].mxu0
    %v9678 = vpop.f32.mrb[0].mxu0
    %v9679 = vadd.f32 %v9630, %v9678
    %v9680 = vpop.f32.mrb[0].mxu0
    %9681 = vmatprep.mubr.bf16.mxu0 %v7140
    %9682 = vmatmul.mubr.bf16.gmra.mrb[0].mxu0 %v7139
    %v9683 = vpop.f32.mrb[0].mxu0
    %v9684 = vadd.f32 %v9635, %v9683
    %v9685 = vpop.f32.mrb[0].mxu0
    %v9686 = vpop.f32.mrb[0].mxu0
    %v9687 = vadd.f32 %v9638, %v9686
    %v9688 = vpop.f32.mrb[0].mxu0
    %9689 = vdwg.mxu0
    %v9690 = vadd.f32 %v4481, %v9378
    %v9691 = vadd.f32 %v4482, %v9380
    %v9692 = vadd.f32 %v4483, %v9676
    %v9693 = vadd.f32 %v4484, %v9382
    %v9694 = vadd.f32 %v4485, %v9384
    %v9695 = vadd.f32 %v4486, %v9679
    %v9696 = vadd.f32 %v4487, %v9388
    %v9697 = vadd.f32 %v4488, %v9390
    %v9698 = vadd.f32 %v4489, %v9684
    %v9699 = vadd.f32 %v4490, %v9392
    %v9700 = vadd.f32 %v4491, %v9394
    %v9701 = vadd.f32 %v4492, %v9687
    %9702 = vst [vmem:[#allocation22] sm:$0xff] %v9690
    %9703 = vst [vmem:[#allocation22 + $0x8] sm:$0xff] %v9691
    %9704 = vst [vmem:[#allocation22 + $0x10] sm:$0xff] %v9692
    %9705 = vst [vmem:[#allocation22 + $0x18] sm:$0xff] %v9693
    %9706 = vst [vmem:[#allocation22 + $0x20] sm:$0xff] %v9694
    %9707 = vst [vmem:[#allocation22 + $0x28] sm:$0xff] %v9695
    %9708 = vst [vmem:[#allocation22 + $0x30] sm:$0xff] %v9696
    %9709 = vst [vmem:[#allocation22 + $0x38] sm:$0xff] %v9697
    %9710 = vst [vmem:[#allocation22 + $0x40] sm:$0xff] %v9698
    %9711 = vst [vmem:[#allocation22 + $0x48] sm:$0xff] %v9699
    %9712 = vst [vmem:[#allocation22 + $0x50] sm:$0xff] %v9700
    %9713 = vst [vmem:[#allocation22 + $0x58] sm:$0xff] %v9701
    // Predicated region
    $region98: #{block_forward.1} parent=1 // pred_check
      _
    $region99: #{block_forward.1} parent=1 // pred_check_branch
      %9715 = sbr.rel (0) target = $region101
    $region100: #{block_forward.1} parent=1 // pred_region
      %s9717 = ssub.s32 1536, 1536
      %9718 = vsyncadd [#allocation4], %s9717
      %s9719 = sshll.u32 [#allocation22], 4
      %s9720 = int_to_ptr.vmem [resolvable:$true] %s9719
      %9725 = dma.vmem_to_hbm [thread:$0]  %s9720, 1536, %s12, [#allocation4], 384, 384, 24
    $region101: #{block_forward.1} parent=1 // pred_fallthru
      _
    // Predicated region
    $region102: #{block_forward.1} parent=1 // pred_check
      _
    $region103: #{block_forward.1} parent=1 // pred_check_branch
      %9727 = sbr.rel (0) target = $region105
    $region104: #{block_forward.1} parent=1 // pred_region
      %9728 = dma.done [#allocation4], 1536
    $region105: #{block_forward.1} parent=1 // pred_fallthru
      _
    %9729 = vsyncpa [#allocation3], 1
    %9730 = vsyncpa [#allocation6], 1
    %9731 = vsyncpa [#allocation9], 1
    %9732 = vsyncpa [#allocation12], 1
    %9733 = vsyncpa [#allocation15], 1
    %9734 = vsyncpa [#allocation18], 1
    %9735 = vsyncpa [#allocation21], 1
    %9736 = vsyncpa [#allocation4], 1

</llo_original>
